<compile_context>
chip_gen: v6e
topology: v6e:2x2x1
jax: 0.10.0
libtpu: 0.0.40
codegen_flags: <defaults>
</compile_context>

<pallas_src>
import jax
import jax.numpy as jnp
import numpy as np
from jax.experimental import pallas as pl
from jax.experimental.pallas import tpu as pltpu

K = 3            # kernel_size used everywhere in the module
LANES = 128      # vreg lane width


# ------------------------------ fused kernel -------------------------------- #

def _make_decoder_kernel(B, hid_chan, out_chan, h_in, w_in, n_conv):
    """Builds the fully fused decoder kernel (closure over the static config)."""
    n_layers = n_conv + 1
    GROUP = LANES // hid_chan          # lanes per channel group (32 for hid_chan=4)
    PAD = K - 1                        # zero padding on each side (full correlation)
    TAPW = LANES - PAD                 # width of a kw-shifted tap (126)

    def kernel(*refs):
        x_ref, lw_ref, lb_ref = refs[0:3]
        conv_refs = refs[3:3 + 2 * n_layers]
        out_ref = refs[3 + 2 * n_layers]
        pad_a, pad_b = refs[3 + 2 * n_layers + 1:]

        # ---- Zero-once (feedback #2). Invariant: every later write into a ping/pong
        # buffer covers a strictly larger interior anchored at the same
        # (row=PAD, lane=c*GROUP+PAD) corner (stride-1, k=3 transpose convs grow h/w by
        # 2 per layer), so the padding ring read around any interior is always these
        # initial zeros.  Revisit if strides / kernel sizes / padding ever change. ----
        pad_a[...] = jnp.zeros_like(pad_a)
        pad_b[...] = jnp.zeros_like(pad_b)
        out_ref[...] = jnp.zeros_like(out_ref)

        # ---------------- Linear (MXU): (B, hid) @ (hid, h_in*128) + bias ----------- #
        # Weight/bias columns were zero-padded & permuted host-side so each output row
        # block of 128 lanes is already the lane-packed, zero-padded layer-0 input row.
        lin = (jnp.dot(x_ref[...], lw_ref[...], preferred_element_type=jnp.float32)
               + lb_ref[...])                                   # (B, h_in*128)
        for i in range(h_in):                                   # h_in aligned row stores
            pad_a[:, PAD + i, :] = lin[:, i * LANES:(i + 1) * LANES]

        # -------------- (n_conv+1) x (ConvTranspose2d 3x3, s=1 + ReLU) ---------- #
        # ConvTranspose2d(k=3, s=1) == full correlation of the 2-zero-padded input with
        # the spatially flipped kernel (flip + lane packing done host-side).
        bufs = (pad_a, pad_b)
        h, w = h_in, w_in
        for l in range(n_layers):
            last = l == n_layers - 1
            c_out_l = out_chan if last else hid_chan
            src, dst = bufs[l % 2], bufs[(l + 1) % 2]
            h_out, w_out = h + PAD, w + PAD
            wpk_ref = conv_refs[2 * l]      # VMEM (c_out_l*K*K, TAPW) packed weights
            b_ref = conv_refs[2 * l + 1]    # SMEM (c_out_l,) bias

            # one full-lane-width accumulator per output channel (4 input-channel
            # groups accumulate side-by-side on the lane axis)
            accs = [jnp.zeros((B, h_out, TAPW), jnp.float32) for _ in range(c_out_l)]
            for kh in range(K):
                for kw in range(K):
                    # one tap load per (kh,kw), reused for every output channel
                    tap = src[:, kh:kh + h_out, kw:kw + TAPW]   # (B, h_out, TAPW)
                    for co in range(c_out_l):
                        wv = wpk_ref[(co * K + kh) * K + kw, :]  # (TAPW,) packed weights
                        accs[co] = accs[co] + tap * wv           # full-width VPU FMA

            for co in range(c_out_l):
                acc = accs[co]
                # reduce the hid_chan lane groups into the conv output (width w_out)
                red = acc[:, :, 0:w_out]
                for g in range(1, hid_chan):
                    red = red + acc[:, :, g * GROUP:g * GROUP + w_out]
                val = jnp.maximum(red + b_ref[co], 0.0)          # bias + fused ReLU
                if last:
                    # lane-dense (B, H, 128) output slab; channel co at lanes co*GROUP+
                    out_ref[:, :, co * GROUP:co * GROUP + w_out] = val
                else:
                    dst[:, PAD:PAD + h_out,
                        co * GROUP + PAD:co * GROUP + PAD + w_out] = val
            h, w = h_out, w_out

    return kernel


# ------------------------------- the Decoder -------------------------------- #

def make_decoder_params(key, out_shape, hid_size, hid_chan, n_conv=3):
    """Deterministic synthetic parameters (shapes match the torch __init__)."""
    out_chan, H, W = out_shape
    h_in = H - 2 * (n_conv + 1)
    w_in = W - 2 * (n_conv + 1)
    flat = hid_chan * h_in * w_in

    keys = jax.random.split(key, 2 * (n_conv + 1) + 2)
    params = {
        # torch Linear weight is (out, in); store the transpose for x @ w_t
        "lin_w_t": jax.random.normal(keys[0], (hid_size, flat), jnp.float32) * 0.1,
        "lin_b": jax.random.normal(keys[1], (1, flat), jnp.float32) * 0.01,
        "log_scale": jnp.zeros((1,), jnp.float32),
        "convs": [],
    }
    c_in = hid_chan
    for i in range(n_conv + 1):
        c_out = hid_chan if i < n_conv else out_chan
        wk = jax.random.normal(keys[2 + 2 * i], (c_in, c_out, K, K), jnp.float32) * 0.1
        bk = jax.random.normal(keys[3 + 2 * i], (c_out,), jnp.float32) * 0.01
        params["convs"].append((wk, bk))
        c_in = c_out
    cfg = dict(hid_chan=hid_chan, out_chan=out_chan, h_in=h_in, w_in=w_in,
               n_conv=n_conv, H=H, W=W)
    return params, cfg


def pack_decoder_params(params, cfg):
    """Host-side, ONCE (feedback #5): flip + lane-pack conv weights, zero-pad/permute
    the Linear columns into the lane-packed padded layout."""
    hid_chan, out_chan = cfg["hid_chan"], cfg["out_chan"]
    h_in, w_in, n_conv = cfg["h_in"], cfg["w_in"], cfg["n_conv"]
    assert LANES % hid_chan == 0, "hid_chan must divide 128 for lane packing"
    GROUP = LANES // hid_chan
    PAD = K - 1
    TAPW = LANES - PAD
    # padded plane width per channel must fit inside its lane group
    assert w_in + 2 * n_conv + 2 * PAD <= GROUP, "spatial width too large for lane packing"

    # --- Linear: scatter columns into (row i) x (group c, lane PAD+j) layout ------ #
    lw = np.asarray(params["lin_w_t"], np.float32)          # (hid, flat)
    lb = np.asarray(params["lin_b"], np.float32)            # (1, flat)
    w_pad = np.zeros((lw.shape[0], h_in * LANES), np.float32)
    b_pad = np.zeros((1, h_in * LANES), np.float32)
    for c in range(hid_chan):
        for i in range(h_in):
            src = (c * h_in + i) * w_in
            dst = i * LANES + c * GROUP + PAD
            w_pad[:, dst:dst + w_in] = lw[:, src:src + w_in]
            b_pad[:, dst:dst + w_in] = lb[:, src:src + w_in]

    # --- Convs: flip spatially (transpose-conv == correlation with flipped kernel) and
    #     broadcast each input channel's scalar over its (kw-shifted) 32-lane group --- #
    convs = []
    lane = np.arange(TAPW)
    for (wc, bc) in params["convs"]:
        wf = np.asarray(wc, np.float32)[:, :, ::-1, ::-1]    # (hid_chan, c_out, K, K)
        c_out = wf.shape[1]
        wpk = np.zeros((c_out * K * K, TAPW), np.float32)
        for co in range(c_out):
            for kh in range(K):
                for kw in range(K):
                    ci = (lane + kw) // GROUP                # group of src lane (j + kw)
                    wpk[(co * K + kh) * K + kw, :] = wf[ci, co, kh, kw]
        convs.append((jnp.asarray(wpk), jnp.asarray(np.asarray(bc, np.float32))))

    return {"lin_w_t": jnp.asarray(w_pad), "lin_b": jnp.asarray(b_pad),
            "log_scale": params["log_scale"], "convs": convs}


def decoder_forward(packed, x, cfg):
    """x: (B, hid_size) -> (mean (B, C, H, W) NCHW, scale (1,))."""
    B = x.shape[0]
    hid_chan, out_chan = cfg["hid_chan"], cfg["out_chan"]
    h_in, w_in, n_conv = cfg["h_in"], cfg["w_in"], cfg["n_conv"]
    H, W = cfg["H"], cfg["W"]
    GROUP = LANES // hid_chan
    PAD = K - 1
    # tallest zero-padded plane = input of the last conv layer, padded by K-1 each side
    hp = h_in + 2 * n_conv + 2 * PAD

    vmem = pl.BlockSpec(memory_space=pltpu.MemorySpace.VMEM)
    smem = pl.BlockSpec(memory_space=pltpu.MemorySpace.SMEM)

    conv_args, conv_specs = [], []
    for (wpk, bc) in packed["convs"]:
        conv_args += [wpk, bc]
        conv_specs += [vmem, smem]

    kernel = _make_decoder_kernel(B, hid_chan, out_chan, h_in, w_in, n_conv)

    slab = pl.pallas_call(
        kernel,
        out_shape=jax.ShapeDtypeStruct((B, H, LANES), jnp.float32),   # lane-dense slab
        in_specs=[vmem, vmem, vmem] + conv_specs,
        out_specs=vmem,
        scratch_shapes=[
            pltpu.VMEM((B, hp, LANES), jnp.float32),   # ping padded, lane-packed planes
            pltpu.VMEM((B, hp, LANES), jnp.float32),   # pong padded, lane-packed planes
        ],
    )(x, packed["lin_w_t"], packed["lin_b"], *conv_args)

    # metadata-light unpack of the lane-packed slab -> (B, C, H, W)
    mean = slab.reshape(B, H, hid_chan, GROUP)[:, :, :out_chan, :W]
    mean = jnp.transpose(mean, (0, 2, 1, 3))

    scale = jnp.exp(packed["log_scale"])   # Normal scale (scalar parameter)
    return mean, scale


# --------------------------- pure-NumPy reference --------------------------- #

def _reference_forward_np(params, x, cfg):
    """NumPy reference implementing the torch semantics directly
    (ConvTranspose2d as a scatter of input*kernel into the output)."""
    xn = np.asarray(x, np.float32)
    h = (xn @ np.asarray(params["lin_w_t"], np.float32)
         + np.asarray(params["lin_b"], np.float32))
    B = xn.shape[0]
    h = h.reshape(B, cfg["hid_chan"], cfg["h_in"], cfg["w_in"])
    for (w, b) in params["convs"]:
        w = np.asarray(w, np.float32)
        b = np.asarray(b, np.float32)
        _, _, H_, W_ = h.shape
        c_out = w.shape[1]
        out = np.zeros((B, c_out, H_ + K - 1, W_ + K - 1), np.float32)
        for kh in range(K):
            for kw in range(K):
                out[:, :, kh:kh + H_, kw:kw + W_] += np.einsum(
                    "bchw,cd->bdhw", h, w[:, :, kh, kw])
        out = out + b.reshape(1, c_out, 1, 1)
        h = np.maximum(out, 0.0)
    return h   # trailing extra nn.ReLU() is idempotent


# ----------------------------------- main ----------------------------------- #

if __name__ == "__main__":
    key = jax.random.PRNGKey(0)

    out_shape = (3, 16, 16)      # (chan, H, W)
    hid_size = 32
    hid_chan = 4
    n_conv = 3
    B = 2

    params, cfg = make_decoder_params(key, out_shape, hid_size, hid_chan, n_conv)
    packed = pack_decoder_params(params, cfg)            # host-side packing, once
    x = jax.random.normal(jax.random.fold_in(key, 123), (B, hid_size), jnp.float32)

    fwd = jax.jit(lambda p, xx: decoder_forward(p, xx, cfg))
    mean, scale = fwd(packed, x)
    jax.block_until_ready((mean, scale))

    assert mean.shape == (B,) + out_shape, mean.shape
    assert mean.dtype == jnp.float32
    assert scale.shape == (1,)
    assert bool(jnp.all(mean >= 0.0))            # trailing ReLU
    assert bool(jnp.all(jnp.isfinite(mean)))

    # numerical check against the pure-NumPy ConvTranspose2d reference
    ref = _reference_forward_np(params, x, cfg)
    max_err = float(jnp.max(jnp.abs(mean - ref)))
    assert max_err < 5e-2, f"mismatch vs reference: {max_err}"

    print("KERNEL_OK")
</pallas_src>

<mosaic_0001>
module attributes {stable_mosaic.version = 11 : i64} {
  func.func @kernel(%arg0: memref<2x32xf32, #tpu.memory_space<vmem>>, %arg1: memref<32x1024xf32, #tpu.memory_space<vmem>>, %arg2: memref<1x1024xf32, #tpu.memory_space<vmem>>, %arg3: memref<36x126xf32, #tpu.memory_space<vmem>>, %arg4: memref<4xf32, #tpu.memory_space<smem>>, %arg5: memref<36x126xf32, #tpu.memory_space<vmem>>, %arg6: memref<4xf32, #tpu.memory_space<smem>>, %arg7: memref<36x126xf32, #tpu.memory_space<vmem>>, %arg8: memref<4xf32, #tpu.memory_space<smem>>, %arg9: memref<27x126xf32, #tpu.memory_space<vmem>>, %arg10: memref<3xf32, #tpu.memory_space<smem>>, %arg11: memref<2x16x128xf32, #tpu.memory_space<vmem>>, %arg12: memref<2x18x128xf32, #tpu.memory_space<vmem>>, %arg13: memref<2x18x128xf32, #tpu.memory_space<vmem>>) attributes {dimension_semantics = [], scalar_prefetch = 0 : i64, scratch_operands = 2 : i64, tpu.core_type = #tpu.core_type<tc>} {
    %cst = arith.constant 0.000000e+00 : f32
    %0 = vector.broadcast %cst : f32 to vector<2x18x128xf32>
    %c0 = arith.constant 0 : index
    %c0_0 = arith.constant 0 : index
    %c0_1 = arith.constant 0 : index
    %1 = vector.load %arg12[%c0, %c0_0, %c0_1] : memref<2x18x128xf32, #tpu.memory_space<vmem>>, vector<2x18x128xf32>
    tpu.vector_store %arg12[%c0, %c0_0, %c0_1], %0 {strides = array<i32>} : memref<2x18x128xf32, #tpu.memory_space<vmem>>, vector<2x18x128xf32>,
    %cst_2 = arith.constant 0.000000e+00 : f32
    %2 = vector.broadcast %cst_2 : f32 to vector<2x18x128xf32>
    %c0_3 = arith.constant 0 : index
    %c0_4 = arith.constant 0 : index
    %c0_5 = arith.constant 0 : index
    %3 = vector.load %arg13[%c0_3, %c0_4, %c0_5] : memref<2x18x128xf32, #tpu.memory_space<vmem>>, vector<2x18x128xf32>
    tpu.vector_store %arg13[%c0_3, %c0_4, %c0_5], %2 {strides = array<i32>} : memref<2x18x128xf32, #tpu.memory_space<vmem>>, vector<2x18x128xf32>,
    %cst_6 = arith.constant 0.000000e+00 : f32
    %4 = vector.broadcast %cst_6 : f32 to vector<2x16x128xf32>
    %c0_7 = arith.constant 0 : index
    %c0_8 = arith.constant 0 : index
    %c0_9 = arith.constant 0 : index
    %5 = vector.load %arg11[%c0_7, %c0_8, %c0_9] : memref<2x16x128xf32, #tpu.memory_space<vmem>>, vector<2x16x128xf32>
    tpu.vector_store %arg11[%c0_7, %c0_8, %c0_9], %4 {strides = array<i32>} : memref<2x16x128xf32, #tpu.memory_space<vmem>>, vector<2x16x128xf32>,
    %c0_10 = arith.constant 0 : index
    %c0_11 = arith.constant 0 : index
    %6 = vector.load %arg0[%c0_10, %c0_11] : memref<2x32xf32, #tpu.memory_space<vmem>>, vector<2x32xf32>
    %c0_12 = arith.constant 0 : index
    %c0_13 = arith.constant 0 : index
    %7 = vector.load %arg1[%c0_12, %c0_13] : memref<32x1024xf32, #tpu.memory_space<vmem>>, vector<32x1024xf32>
    %cst_14 = arith.constant dense<0.000000e+00> : vector<2x1024xf32>
    %8 = tpu.matmul %6, %7, %cst_14 {dimension_numbers = #tpu.dot_dimension_numbers<[1], [0], [0], [1], [0, 0, 1, 1], [], []>} : vector<2x32xf32>, vector<32x1024xf32>, vector<2x1024xf32> -> vector<2x1024xf32>
    %c0_15 = arith.constant 0 : index
    %c0_16 = arith.constant 0 : index
    %9 = vector.load %arg2[%c0_15, %c0_16] : memref<1x1024xf32, #tpu.memory_space<vmem>>, vector<1x1024xf32>
    %10 = vector.broadcast %9 : vector<1x1024xf32> to vector<2x1024xf32>
    %11 = arith.addf %8, %10 : vector<2x1024xf32>
    %12 = vector.extract_strided_slice %11 {offsets = [0, 0], sizes = [2, 128], strides = [1, 1]} : vector<2x1024xf32> to vector<2x128xf32>
    %c0_17 = arith.constant 0 : index
    %c2 = arith.constant 2 : index
    %c0_18 = arith.constant 0 : index
    %13 = vector.load %arg12[%c0_17, %c2, %c0_18] : memref<2x18x128xf32, #tpu.memory_space<vmem>>, vector<2x1x128xf32>
    %14 = vector.shape_cast %13 : vector<2x1x128xf32> to vector<2x128xf32>
    %15 = vector.shape_cast %12 : vector<2x128xf32> to vector<2x1x128xf32>
    tpu.vector_store %arg12[%c0_17, %c2, %c0_18], %15 {strides = array<i32>} : memref<2x18x128xf32, #tpu.memory_space<vmem>>, vector<2x1x128xf32>,
    %16 = vector.extract_strided_slice %11 {offsets = [0, 128], sizes = [2, 128], strides = [1, 1]} : vector<2x1024xf32> to vector<2x128xf32>
    %c0_19 = arith.constant 0 : index
    %c3 = arith.constant 3 : index
    %c0_20 = arith.constant 0 : index
    %17 = vector.load %arg12[%c0_19, %c3, %c0_20] : memref<2x18x128xf32, #tpu.memory_space<vmem>>, vector<2x1x128xf32>
    %18 = vector.shape_cast %17 : vector<2x1x128xf32> to vector<2x128xf32>
    %19 = vector.shape_cast %16 : vector<2x128xf32> to vector<2x1x128xf32>
    tpu.vector_store %arg12[%c0_19, %c3, %c0_20], %19 {strides = array<i32>} : memref<2x18x128xf32, #tpu.memory_space<vmem>>, vector<2x1x128xf32>,
    %20 = vector.extract_strided_slice %11 {offsets = [0, 256], sizes = [2, 128], strides = [1, 1]} : vector<2x1024xf32> to vector<2x128xf32>
    %c0_21 = arith.constant 0 : index
    %c4 = arith.constant 4 : index
    %c0_22 = arith.constant 0 : index
    %21 = vector.load %arg12[%c0_21, %c4, %c0_22] : memref<2x18x128xf32, #tpu.memory_space<vmem>>, vector<2x1x128xf32>
    %22 = vector.shape_cast %21 : vector<2x1x128xf32> to vector<2x128xf32>
    %23 = vector.shape_cast %20 : vector<2x128xf32> to vector<2x1x128xf32>
    tpu.vector_store %arg12[%c0_21, %c4, %c0_22], %23 {strides = array<i32>} : memref<2x18x128xf32, #tpu.memory_space<vmem>>, vector<2x1x128xf32>,
    %24 = vector.extract_strided_slice %11 {offsets = [0, 384], sizes = [2, 128], strides = [1, 1]} : vector<2x1024xf32> to vector<2x128xf32>
    %c0_23 = arith.constant 0 : index
    %c5 = arith.constant 5 : index
    %c0_24 = arith.constant 0 : index
    %25 = vector.load %arg12[%c0_23, %c5, %c0_24] : memref<2x18x128xf32, #tpu.memory_space<vmem>>, vector<2x1x128xf32>
    %26 = vector.shape_cast %25 : vector<2x1x128xf32> to vector<2x128xf32>
    %27 = vector.shape_cast %24 : vector<2x128xf32> to vector<2x1x128xf32>
    tpu.vector_store %arg12[%c0_23, %c5, %c0_24], %27 {strides = array<i32>} : memref<2x18x128xf32, #tpu.memory_space<vmem>>, vector<2x1x128xf32>,
    %28 = vector.extract_strided_slice %11 {offsets = [0, 512], sizes = [2, 128], strides = [1, 1]} : vector<2x1024xf32> to vector<2x128xf32>
    %c0_25 = arith.constant 0 : index
    %c6 = arith.constant 6 : index
    %c0_26 = arith.constant 0 : index
    %29 = vector.load %arg12[%c0_25, %c6, %c0_26] : memref<2x18x128xf32, #tpu.memory_space<vmem>>, vector<2x1x128xf32>
    %30 = vector.shape_cast %29 : vector<2x1x128xf32> to vector<2x128xf32>
    %31 = vector.shape_cast %28 : vector<2x128xf32> to vector<2x1x128xf32>
    tpu.vector_store %arg12[%c0_25, %c6, %c0_26], %31 {strides = array<i32>} : memref<2x18x128xf32, #tpu.memory_space<vmem>>, vector<2x1x128xf32>,
    %32 = vector.extract_strided_slice %11 {offsets = [0, 640], sizes = [2, 128], strides = [1, 1]} : vector<2x1024xf32> to vector<2x128xf32>
    %c0_27 = arith.constant 0 : index
    %c7 = arith.constant 7 : index
    %c0_28 = arith.constant 0 : index
    %33 = vector.load %arg12[%c0_27, %c7, %c0_28] : memref<2x18x128xf32, #tpu.memory_space<vmem>>, vector<2x1x128xf32>
    %34 = vector.shape_cast %33 : vector<2x1x128xf32> to vector<2x128xf32>
    %35 = vector.shape_cast %32 : vector<2x128xf32> to vector<2x1x128xf32>
    tpu.vector_store %arg12[%c0_27, %c7, %c0_28], %35 {strides = array<i32>} : memref<2x18x128xf32, #tpu.memory_space<vmem>>, vector<2x1x128xf32>,
    %36 = vector.extract_strided_slice %11 {offsets = [0, 768], sizes = [2, 128], strides = [1, 1]} : vector<2x1024xf32> to vector<2x128xf32>
    %c0_29 = arith.constant 0 : index
    %c8 = arith.constant 8 : index
    %c0_30 = arith.constant 0 : index
    %37 = vector.load %arg12[%c0_29, %c8, %c0_30] : memref<2x18x128xf32, #tpu.memory_space<vmem>>, vector<2x1x128xf32>
    %38 = vector.shape_cast %37 : vector<2x1x128xf32> to vector<2x128xf32>
    %39 = vector.shape_cast %36 : vector<2x128xf32> to vector<2x1x128xf32>
    tpu.vector_store %arg12[%c0_29, %c8, %c0_30], %39 {strides = array<i32>} : memref<2x18x128xf32, #tpu.memory_space<vmem>>, vector<2x1x128xf32>,
    %40 = vector.extract_strided_slice %11 {offsets = [0, 896], sizes = [2, 128], strides = [1, 1]} : vector<2x1024xf32> to vector<2x128xf32>
    %c0_31 = arith.constant 0 : index
    %c9 = arith.constant 9 : index
    %c0_32 = arith.constant 0 : index
    %41 = vector.load %arg12[%c0_31, %c9, %c0_32] : memref<2x18x128xf32, #tpu.memory_space<vmem>>, vector<2x1x128xf32>
    %42 = vector.shape_cast %41 : vector<2x1x128xf32> to vector<2x128xf32>
    %43 = vector.shape_cast %40 : vector<2x128xf32> to vector<2x1x128xf32>
    tpu.vector_store %arg12[%c0_31, %c9, %c0_32], %43 {strides = array<i32>} : memref<2x18x128xf32, #tpu.memory_space<vmem>>, vector<2x1x128xf32>,
    %cst_33 = arith.constant 0.000000e+00 : f32
    %44 = vector.broadcast %cst_33 : f32 to vector<2x10x126xf32>
    %cst_34 = arith.constant 0.000000e+00 : f32
    %45 = vector.broadcast %cst_34 : f32 to vector<2x10x126xf32>
    %cst_35 = arith.constant 0.000000e+00 : f32
    %46 = vector.broadcast %cst_35 : f32 to vector<2x10x126xf32>
    %cst_36 = arith.constant 0.000000e+00 : f32
    %47 = vector.broadcast %cst_36 : f32 to vector<2x10x126xf32>
    %c0_37 = arith.constant 0 : index
    %c0_38 = arith.constant 0 : index
    %c0_39 = arith.constant 0 : index
    %48 = vector.load %arg12[%c0_37, %c0_38, %c0_39] : memref<2x18x128xf32, #tpu.memory_space<vmem>>, vector<2x10x126xf32>
    %c0_40 = arith.constant 0 : index
    %c0_41 = arith.constant 0 : index
    %49 = vector.load %arg3[%c0_40, %c0_41] : memref<36x126xf32, #tpu.memory_space<vmem>>, vector<1x126xf32>
    %50 = vector.shape_cast %49 : vector<1x126xf32> to vector<126xf32>
    %51 = vector.shape_cast %50 : vector<126xf32> to vector<1x1x126xf32>
    %52 = vector.broadcast %51 : vector<1x1x126xf32> to vector<2x10x126xf32>
    %53 = arith.mulf %48, %52 : vector<2x10x126xf32>
    %54 = arith.addf %44, %53 : vector<2x10x126xf32>
    %c9_42 = arith.constant 9 : index
    %c0_43 = arith.constant 0 : index
    %55 = vector.load %arg3[%c9_42, %c0_43] : memref<36x126xf32, #tpu.memory_space<vmem>>, vector<1x126xf32>
    %56 = vector.shape_cast %55 : vector<1x126xf32> to vector<126xf32>
    %57 = vector.shape_cast %56 : vector<126xf32> to vector<1x1x126xf32>
    %58 = vector.broadcast %57 : vector<1x1x126xf32> to vector<2x10x126xf32>
    %59 = arith.mulf %48, %58 : vector<2x10x126xf32>
    %60 = arith.addf %45, %59 : vector<2x10x126xf32>
    %c18 = arith.constant 18 : index
    %c0_44 = arith.constant 0 : index
    %61 = vector.load %arg3[%c18, %c0_44] : memref<36x126xf32, #tpu.memory_space<vmem>>, vector<1x126xf32>
    %62 = vector.shape_cast %61 : vector<1x126xf32> to vector<126xf32>
    %63 = vector.shape_cast %62 : vector<126xf32> to vector<1x1x126xf32>
    %64 = vector.broadcast %63 : vector<1x1x126xf32> to vector<2x10x126xf32>
    %65 = arith.mulf %48, %64 : vector<2x10x126xf32>
    %66 = arith.addf %46, %65 : vector<2x10x126xf32>
    %c27 = arith.constant 27 : index
    %c0_45 = arith.constant 0 : index
    %67 = vector.load %arg3[%c27, %c0_45] : memref<36x126xf32, #tpu.memory_space<vmem>>, vector<1x126xf32>
    %68 = vector.shape_cast %67 : vector<1x126xf32> to vector<126xf32>
    %69 = vector.shape_cast %68 : vector<126xf32> to vector<1x1x126xf32>
    %70 = vector.broadcast %69 : vector<1x1x126xf32> to vector<2x10x126xf32>
    %71 = arith.mulf %48, %70 : vector<2x10x126xf32>
    %72 = arith.addf %47, %71 : vector<2x10x126xf32>
    %c0_46 = arith.constant 0 : index
    %c0_47 = arith.constant 0 : index
    %c1 = arith.constant 1 : index
    %73 = vector.load %arg12[%c0_46, %c0_47, %c1] : memref<2x18x128xf32, #tpu.memory_space<vmem>>, vector<2x10x126xf32>
    %c1_48 = arith.constant 1 : index
    %c0_49 = arith.constant 0 : index
    %74 = vector.load %arg3[%c1_48, %c0_49] : memref<36x126xf32, #tpu.memory_space<vmem>>, vector<1x126xf32>
    %75 = vector.shape_cast %74 : vector<1x126xf32> to vector<126xf32>
    %76 = vector.shape_cast %75 : vector<126xf32> to vector<1x1x126xf32>
    %77 = vector.broadcast %76 : vector<1x1x126xf32> to vector<2x10x126xf32>
    %78 = arith.mulf %73, %77 : vector<2x10x126xf32>
    %79 = arith.addf %54, %78 : vector<2x10x126xf32>
    %c10 = arith.constant 10 : index
    %c0_50 = arith.constant 0 : index
    %80 = vector.load %arg3[%c10, %c0_50] : memref<36x126xf32, #tpu.memory_space<vmem>>, vector<1x126xf32>
    %81 = vector.shape_cast %80 : vector<1x126xf32> to vector<126xf32>
    %82 = vector.shape_cast %81 : vector<126xf32> to vector<1x1x126xf32>
    %83 = vector.broadcast %82 : vector<1x1x126xf32> to vector<2x10x126xf32>
    %84 = arith.mulf %73, %83 : vector<2x10x126xf32>
    %85 = arith.addf %60, %84 : vector<2x10x126xf32>
    %c19 = arith.constant 19 : index
    %c0_51 = arith.constant 0 : index
    %86 = vector.load %arg3[%c19, %c0_51] : memref<36x126xf32, #tpu.memory_space<vmem>>, vector<1x126xf32>
    %87 = vector.shape_cast %86 : vector<1x126xf32> to vector<126xf32>
    %88 = vector.shape_cast %87 : vector<126xf32> to vector<1x1x126xf32>
    %89 = vector.broadcast %88 : vector<1x1x126xf32> to vector<2x10x126xf32>
    %90 = arith.mulf %73, %89 : vector<2x10x126xf32>
    %91 = arith.addf %66, %90 : vector<2x10x126xf32>
    %c28 = arith.constant 28 : index
    %c0_52 = arith.constant 0 : index
    %92 = vector.load %arg3[%c28, %c0_52] : memref<36x126xf32, #tpu.memory_space<vmem>>, vector<1x126xf32>
    %93 = vector.shape_cast %92 : vector<1x126xf32> to vector<126xf32>
    %94 = vector.shape_cast %93 : vector<126xf32> to vector<1x1x126xf32>
    %95 = vector.broadcast %94 : vector<1x1x126xf32> to vector<2x10x126xf32>
    %96 = arith.mulf %73, %95 : vector<2x10x126xf32>
    %97 = arith.addf %72, %96 : vector<2x10x126xf32>
    %c0_53 = arith.constant 0 : index
    %c0_54 = arith.constant 0 : index
    %c2_55 = arith.constant 2 : index
    %98 = vector.load %arg12[%c0_53, %c0_54, %c2_55] : memref<2x18x128xf32, #tpu.memory_space<vmem>>, vector<2x10x126xf32>
    %c2_56 = arith.constant 2 : index
    %c0_57 = arith.constant 0 : index
    %99 = vector.load %arg3[%c2_56, %c0_57] : memref<36x126xf32, #tpu.memory_space<vmem>>, vector<1x126xf32>
    %100 = vector.shape_cast %99 : vector<1x126xf32> to vector<126xf32>
    %101 = vector.shape_cast %100 : vector<126xf32> to vector<1x1x126xf32>
    %102 = vector.broadcast %101 : vector<1x1x126xf32> to vector<2x10x126xf32>
    %103 = arith.mulf %98, %102 : vector<2x10x126xf32>
    %104 = arith.addf %79, %103 : vector<2x10x126xf32>
    %c11 = arith.constant 11 : index
    %c0_58 = arith.constant 0 : index
    %105 = vector.load %arg3[%c11, %c0_58] : memref<36x126xf32, #tpu.memory_space<vmem>>, vector<1x126xf32>
    %106 = vector.shape_cast %105 : vector<1x126xf32> to vector<126xf32>
    %107 = vector.shape_cast %106 : vector<126xf32> to vector<1x1x126xf32>
    %108 = vector.broadcast %107 : vector<1x1x126xf32> to vector<2x10x126xf32>
    %109 = arith.mulf %98, %108 : vector<2x10x126xf32>
    %110 = arith.addf %85, %109 : vector<2x10x126xf32>
    %c20 = arith.constant 20 : index
    %c0_59 = arith.constant 0 : index
    %111 = vector.load %arg3[%c20, %c0_59] : memref<36x126xf32, #tpu.memory_space<vmem>>, vector<1x126xf32>
    %112 = vector.shape_cast %111 : vector<1x126xf32> to vector<126xf32>
    %113 = vector.shape_cast %112 : vector<126xf32> to vector<1x1x126xf32>
    %114 = vector.broadcast %113 : vector<1x1x126xf32> to vector<2x10x126xf32>
    %115 = arith.mulf %98, %114 : vector<2x10x126xf32>
    %116 = arith.addf %91, %115 : vector<2x10x126xf32>
    %c29 = arith.constant 29 : index
    %c0_60 = arith.constant 0 : index
    %117 = vector.load %arg3[%c29, %c0_60] : memref<36x126xf32, #tpu.memory_space<vmem>>, vector<1x126xf32>
    %118 = vector.shape_cast %117 : vector<1x126xf32> to vector<126xf32>
    %119 = vector.shape_cast %118 : vector<126xf32> to vector<1x1x126xf32>
    %120 = vector.broadcast %119 : vector<1x1x126xf32> to vector<2x10x126xf32>
    %121 = arith.mulf %98, %120 : vector<2x10x126xf32>
    %122 = arith.addf %97, %121 : vector<2x10x126xf32>
    %c0_61 = arith.constant 0 : index
    %c1_62 = arith.constant 1 : index
    %c0_63 = arith.constant 0 : index
    %123 = vector.load %arg12[%c0_61, %c1_62, %c0_63] : memref<2x18x128xf32, #tpu.memory_space<vmem>>, vector<2x10x126xf32>
    %c3_64 = arith.constant 3 : index
    %c0_65 = arith.constant 0 : index
    %124 = vector.load %arg3[%c3_64, %c0_65] : memref<36x126xf32, #tpu.memory_space<vmem>>, vector<1x126xf32>
    %125 = vector.shape_cast %124 : vector<1x126xf32> to vector<126xf32>
    %126 = vector.shape_cast %125 : vector<126xf32> to vector<1x1x126xf32>
    %127 = vector.broadcast %126 : vector<1x1x126xf32> to vector<2x10x126xf32>
    %128 = arith.mulf %123, %127 : vector<2x10x126xf32>
    %129 = arith.addf %104, %128 : vector<2x10x126xf32>
    %c12 = arith.constant 12 : index
    %c0_66 = arith.constant 0 : index
    %130 = vector.load %arg3[%c12, %c0_66] : memref<36x126xf32, #tpu.memory_space<vmem>>, vector<1x126xf32>
    %131 = vector.shape_cast %130 : vector<1x126xf32> to vector<126xf32>
    %132 = vector.shape_cast %131 : vector<126xf32> to vector<1x1x126xf32>
    %133 = vector.broadcast %132 : vector<1x1x126xf32> to vector<2x10x126xf32>
    %134 = arith.mulf %123, %133 : vector<2x10x126xf32>
    %135 = arith.addf %110, %134 : vector<2x10x126xf32>
    %c21 = arith.constant 21 : index
    %c0_67 = arith.constant 0 : index
    %136 = vector.load %arg3[%c21, %c0_67] : memref<36x126xf32, #tpu.memory_space<vmem>>, vector<1x126xf32>
    %137 = vector.shape_cast %136 : vector<1x126xf32> to vector<126xf32>
    %138 = vector.shape_cast %137 : vector<126xf32> to vector<1x1x126xf32>
    %139 = vector.broadcast %138 : vector<1x1x126xf32> to vector<2x10x126xf32>
    %140 = arith.mulf %123, %139 : vector<2x10x126xf32>
    %141 = arith.addf %116, %140 : vector<2x10x126xf32>
    %c30 = arith.constant 30 : index
    %c0_68 = arith.constant 0 : index
    %142 = vector.load %arg3[%c30, %c0_68] : memref<36x126xf32, #tpu.memory_space<vmem>>, vector<1x126xf32>
    %143 = vector.shape_cast %142 : vector<1x126xf32> to vector<126xf32>
    %144 = vector.shape_cast %143 : vector<126xf32> to vector<1x1x126xf32>
    %145 = vector.broadcast %144 : vector<1x1x126xf32> to vector<2x10x126xf32>
    %146 = arith.mulf %123, %145 : vector<2x10x126xf32>
    %147 = arith.addf %122, %146 : vector<2x10x126xf32>
    %c0_69 = arith.constant 0 : index
    %c1_70 = arith.constant 1 : index
    %c1_71 = arith.constant 1 : index
    %148 = vector.load %arg12[%c0_69, %c1_70, %c1_71] : memref<2x18x128xf32, #tpu.memory_space<vmem>>, vector<2x10x126xf32>
    %c4_72 = arith.constant 4 : index
    %c0_73 = arith.constant 0 : index
    %149 = vector.load %arg3[%c4_72, %c0_73] : memref<36x126xf32, #tpu.memory_space<vmem>>, vector<1x126xf32>
    %150 = vector.shape_cast %149 : vector<1x126xf32> to vector<126xf32>
    %151 = vector.shape_cast %150 : vector<126xf32> to vector<1x1x126xf32>
    %152 = vector.broadcast %151 : vector<1x1x126xf32> to vector<2x10x126xf32>
    %153 = arith.mulf %148, %152 : vector<2x10x126xf32>
    %154 = arith.addf %129, %153 : vector<2x10x126xf32>
    %c13 = arith.constant 13 : index
    %c0_74 = arith.constant 0 : index
    %155 = vector.load %arg3[%c13, %c0_74] : memref<36x126xf32, #tpu.memory_space<vmem>>, vector<1x126xf32>
    %156 = vector.shape_cast %155 : vector<1x126xf32> to vector<126xf32>
    %157 = vector.shape_cast %156 : vector<126xf32> to vector<1x1x126xf32>
    %158 = vector.broadcast %157 : vector<1x1x126xf32> to vector<2x10x126xf32>
    %159 = arith.mulf %148, %158 : vector<2x10x126xf32>
    %160 = arith.addf %135, %159 : vector<2x10x126xf32>
    %c22 = arith.constant 22 : index
    %c0_75 = arith.constant 0 : index
    %161 = vector.load %arg3[%c22, %c0_75] : memref<36x126xf32, #tpu.memory_space<vmem>>, vector<1x126xf32>
    %162 = vector.shape_cast %161 : vector<1x126xf32> to vector<126xf32>
    %163 = vector.shape_cast %162 : vector<126xf32> to vector<1x1x126xf32>
    %164 = vector.broadcast %163 : vector<1x1x126xf32> to vector<2x10x126xf32>
    %165 = arith.mulf %148, %164 : vector<2x10x126xf32>
    %166 = arith.addf %141, %165 : vector<2x10x126xf32>
    %c31 = arith.constant 31 : index
    %c0_76 = arith.constant 0 : index
    %167 = vector.load %arg3[%c31, %c0_76] : memref<36x126xf32, #tpu.memory_space<vmem>>, vector<1x126xf32>
    %168 = vector.shape_cast %167 : vector<1x126xf32> to vector<126xf32>
    %169 = vector.shape_cast %168 : vector<126xf32> to vector<1x1x126xf32>
    %170 = vector.broadcast %169 : vector<1x1x126xf32> to vector<2x10x126xf32>
    %171 = arith.mulf %148, %170 : vector<2x10x126xf32>
    %172 = arith.addf %147, %171 : vector<2x10x126xf32>
    %c0_77 = arith.constant 0 : index
    %c1_78 = arith.constant 1 : index
    %c2_79 = arith.constant 2 : index
    %173 = vector.load %arg12[%c0_77, %c1_78, %c2_79] : memref<2x18x128xf32, #tpu.memory_space<vmem>>, vector<2x10x126xf32>
    %c5_80 = arith.constant 5 : index
    %c0_81 = arith.constant 0 : index
    %174 = vector.load %arg3[%c5_80, %c0_81] : memref<36x126xf32, #tpu.memory_space<vmem>>, vector<1x126xf32>
    %175 = vector.shape_cast %174 : vector<1x126xf32> to vector<126xf32>
    %176 = vector.shape_cast %175 : vector<126xf32> to vector<1x1x126xf32>
    %177 = vector.broadcast %176 : vector<1x1x126xf32> to vector<2x10x126xf32>
    %178 = arith.mulf %173, %177 : vector<2x10x126xf32>
    %179 = arith.addf %154, %178 : vector<2x10x126xf32>
    %c14 = arith.constant 14 : index
    %c0_82 = arith.constant 0 : index
    %180 = vector.load %arg3[%c14, %c0_82] : memref<36x126xf32, #tpu.memory_space<vmem>>, vector<1x126xf32>
    %181 = vector.shape_cast %180 : vector<1x126xf32> to vector<126xf32>
    %182 = vector.shape_cast %181 : vector<126xf32> to vector<1x1x126xf32>
    %183 = vector.broadcast %182 : vector<1x1x126xf32> to vector<2x10x126xf32>
    %184 = arith.mulf %173, %183 : vector<2x10x126xf32>
    %185 = arith.addf %160, %184 : vector<2x10x126xf32>
    %c23 = arith.constant 23 : index
    %c0_83 = arith.constant 0 : index
    %186 = vector.load %arg3[%c23, %c0_83] : memref<36x126xf32, #tpu.memory_space<vmem>>, vector<1x126xf32>
    %187 = vector.shape_cast %186 : vector<1x126xf32> to vector<126xf32>
    %188 = vector.shape_cast %187 : vector<126xf32> to vector<1x1x126xf32>
    %189 = vector.broadcast %188 : vector<1x1x126xf32> to vector<2x10x126xf32>
    %190 = arith.mulf %173, %189 : vector<2x10x126xf32>
    %191 = arith.addf %166, %190 : vector<2x10x126xf32>
    %c32 = arith.constant 32 : index
    %c0_84 = arith.constant 0 : index
    %192 = vector.load %arg3[%c32, %c0_84] : memref<36x126xf32, #tpu.memory_space<vmem>>, vector<1x126xf32>
    %193 = vector.shape_cast %192 : vector<1x126xf32> to vector<126xf32>
    %194 = vector.shape_cast %193 : vector<126xf32> to vector<1x1x126xf32>
    %195 = vector.broadcast %194 : vector<1x1x126xf32> to vector<2x10x126xf32>
    %196 = arith.mulf %173, %195 : vector<2x10x126xf32>
    %197 = arith.addf %172, %196 : vector<2x10x126xf32>
    %c0_85 = arith.constant 0 : index
    %c2_86 = arith.constant 2 : index
    %c0_87 = arith.constant 0 : index
    %198 = vector.load %arg12[%c0_85, %c2_86, %c0_87] : memref<2x18x128xf32, #tpu.memory_space<vmem>>, vector<2x10x126xf32>
    %c6_88 = arith.constant 6 : index
    %c0_89 = arith.constant 0 : index
    %199 = vector.load %arg3[%c6_88, %c0_89] : memref<36x126xf32, #tpu.memory_space<vmem>>, vector<1x126xf32>
    %200 = vector.shape_cast %199 : vector<1x126xf32> to vector<126xf32>
    %201 = vector.shape_cast %200 : vector<126xf32> to vector<1x1x126xf32>
    %202 = vector.broadcast %201 : vector<1x1x126xf32> to vector<2x10x126xf32>
    %203 = arith.mulf %198, %202 : vector<2x10x126xf32>
    %204 = arith.addf %179, %203 : vector<2x10x126xf32>
    %c15 = arith.constant 15 : index
    %c0_90 = arith.constant 0 : index
    %205 = vector.load %arg3[%c15, %c0_90] : memref<36x126xf32, #tpu.memory_space<vmem>>, vector<1x126xf32>
    %206 = vector.shape_cast %205 : vector<1x126xf32> to vector<126xf32>
    %207 = vector.shape_cast %206 : vector<126xf32> to vector<1x1x126xf32>
    %208 = vector.broadcast %207 : vector<1x1x126xf32> to vector<2x10x126xf32>
    %209 = arith.mulf %198, %208 : vector<2x10x126xf32>
    %210 = arith.addf %185, %209 : vector<2x10x126xf32>
    %c24 = arith.constant 24 : index
    %c0_91 = arith.constant 0 : index
    %211 = vector.load %arg3[%c24, %c0_91] : memref<36x126xf32, #tpu.memory_space<vmem>>, vector<1x126xf32>
    %212 = vector.shape_cast %211 : vector<1x126xf32> to vector<126xf32>
    %213 = vector.shape_cast %212 : vector<126xf32> to vector<1x1x126xf32>
    %214 = vector.broadcast %213 : vector<1x1x126xf32> to vector<2x10x126xf32>
    %215 = arith.mulf %198, %214 : vector<2x10x126xf32>
    %216 = arith.addf %191, %215 : vector<2x10x126xf32>
    %c33 = arith.constant 33 : index
    %c0_92 = arith.constant 0 : index
    %217 = vector.load %arg3[%c33, %c0_92] : memref<36x126xf32, #tpu.memory_space<vmem>>, vector<1x126xf32>
    %218 = vector.shape_cast %217 : vector<1x126xf32> to vector<126xf32>
    %219 = vector.shape_cast %218 : vector<126xf32> to vector<1x1x126xf32>
    %220 = vector.broadcast %219 : vector<1x1x126xf32> to vector<2x10x126xf32>
    %221 = arith.mulf %198, %220 : vector<2x10x126xf32>
    %222 = arith.addf %197, %221 : vector<2x10x126xf32>
    %c0_93 = arith.constant 0 : index
    %c2_94 = arith.constant 2 : index
    %c1_95 = arith.constant 1 : index
    %223 = vector.load %arg12[%c0_93, %c2_94, %c1_95] : memref<2x18x128xf32, #tpu.memory_space<vmem>>, vector<2x10x126xf32>
    %c7_96 = arith.constant 7 : index
    %c0_97 = arith.constant 0 : index
    %224 = vector.load %arg3[%c7_96, %c0_97] : memref<36x126xf32, #tpu.memory_space<vmem>>, vector<1x126xf32>
    %225 = vector.shape_cast %224 : vector<1x126xf32> to vector<126xf32>
    %226 = vector.shape_cast %225 : vector<126xf32> to vector<1x1x126xf32>
    %227 = vector.broadcast %226 : vector<1x1x126xf32> to vector<2x10x126xf32>
    %228 = arith.mulf %223, %227 : vector<2x10x126xf32>
    %229 = arith.addf %204, %228 : vector<2x10x126xf32>
    %c16 = arith.constant 16 : index
    %c0_98 = arith.constant 0 : index
    %230 = vector.load %arg3[%c16, %c0_98] : memref<36x126xf32, #tpu.memory_space<vmem>>, vector<1x126xf32>
    %231 = vector.shape_cast %230 : vector<1x126xf32> to vector<126xf32>
    %232 = vector.shape_cast %231 : vector<126xf32> to vector<1x1x126xf32>
    %233 = vector.broadcast %232 : vector<1x1x126xf32> to vector<2x10x126xf32>
    %234 = arith.mulf %223, %233 : vector<2x10x126xf32>
    %235 = arith.addf %210, %234 : vector<2x10x126xf32>
    %c25 = arith.constant 25 : index
    %c0_99 = arith.constant 0 : index
    %236 = vector.load %arg3[%c25, %c0_99] : memref<36x126xf32, #tpu.memory_space<vmem>>, vector<1x126xf32>
    %237 = vector.shape_cast %236 : vector<1x126xf32> to vector<126xf32>
    %238 = vector.shape_cast %237 : vector<126xf32> to vector<1x1x126xf32>
    %239 = vector.broadcast %238 : vector<1x1x126xf32> to vector<2x10x126xf32>
    %240 = arith.mulf %223, %239 : vector<2x10x126xf32>
    %241 = arith.addf %216, %240 : vector<2x10x126xf32>
    %c34 = arith.constant 34 : index
    %c0_100 = arith.constant 0 : index
    %242 = vector.load %arg3[%c34, %c0_100] : memref<36x126xf32, #tpu.memory_space<vmem>>, vector<1x126xf32>
    %243 = vector.shape_cast %242 : vector<1x126xf32> to vector<126xf32>
    %244 = vector.shape_cast %243 : vector<126xf32> to vector<1x1x126xf32>
    %245 = vector.broadcast %244 : vector<1x1x126xf32> to vector<2x10x126xf32>
    %246 = arith.mulf %223, %245 : vector<2x10x126xf32>
    %247 = arith.addf %222, %246 : vector<2x10x126xf32>
    %c0_101 = arith.constant 0 : index
    %c2_102 = arith.constant 2 : index
    %c2_103 = arith.constant 2 : index
    %248 = vector.load %arg12[%c0_101, %c2_102, %c2_103] : memref<2x18x128xf32, #tpu.memory_space<vmem>>, vector<2x10x126xf32>
    %c8_104 = arith.constant 8 : index
    %c0_105 = arith.constant 0 : index
    %249 = vector.load %arg3[%c8_104, %c0_105] : memref<36x126xf32, #tpu.memory_space<vmem>>, vector<1x126xf32>
    %250 = vector.shape_cast %249 : vector<1x126xf32> to vector<126xf32>
    %251 = vector.shape_cast %250 : vector<126xf32> to vector<1x1x126xf32>
    %252 = vector.broadcast %251 : vector<1x1x126xf32> to vector<2x10x126xf32>
    %253 = arith.mulf %248, %252 : vector<2x10x126xf32>
    %254 = arith.addf %229, %253 : vector<2x10x126xf32>
    %c17 = arith.constant 17 : index
    %c0_106 = arith.constant 0 : index
    %255 = vector.load %arg3[%c17, %c0_106] : memref<36x126xf32, #tpu.memory_space<vmem>>, vector<1x126xf32>
    %256 = vector.shape_cast %255 : vector<1x126xf32> to vector<126xf32>
    %257 = vector.shape_cast %256 : vector<126xf32> to vector<1x1x126xf32>
    %258 = vector.broadcast %257 : vector<1x1x126xf32> to vector<2x10x126xf32>
    %259 = arith.mulf %248, %258 : vector<2x10x126xf32>
    %260 = arith.addf %235, %259 : vector<2x10x126xf32>
    %c26 = arith.constant 26 : index
    %c0_107 = arith.constant 0 : index
    %261 = vector.load %arg3[%c26, %c0_107] : memref<36x126xf32, #tpu.memory_space<vmem>>, vector<1x126xf32>
    %262 = vector.shape_cast %261 : vector<1x126xf32> to vector<126xf32>
    %263 = vector.shape_cast %262 : vector<126xf32> to vector<1x1x126xf32>
    %264 = vector.broadcast %263 : vector<1x1x126xf32> to vector<2x10x126xf32>
    %265 = arith.mulf %248, %264 : vector<2x10x126xf32>
    %266 = arith.addf %241, %265 : vector<2x10x126xf32>
    %c35 = arith.constant 35 : index
    %c0_108 = arith.constant 0 : index
    %267 = vector.load %arg3[%c35, %c0_108] : memref<36x126xf32, #tpu.memory_space<vmem>>, vector<1x126xf32>
    %268 = vector.shape_cast %267 : vector<1x126xf32> to vector<126xf32>
    %269 = vector.shape_cast %268 : vector<126xf32> to vector<1x1x126xf32>
    %270 = vector.broadcast %269 : vector<1x1x126xf32> to vector<2x10x126xf32>
    %271 = arith.mulf %248, %270 : vector<2x10x126xf32>
    %272 = arith.addf %247, %271 : vector<2x10x126xf32>
    %273 = vector.extract_strided_slice %254 {offsets = [0, 0, 0], sizes = [2, 10, 10], strides = [1, 1, 1]} : vector<2x10x126xf32> to vector<2x10x10xf32>
    %274 = vector.extract_strided_slice %254 {offsets = [0, 0, 32], sizes = [2, 10, 10], strides = [1, 1, 1]} : vector<2x10x126xf32> to vector<2x10x10xf32>
    %275 = arith.addf %273, %274 : vector<2x10x10xf32>
    %276 = vector.extract_strided_slice %254 {offsets = [0, 0, 64], sizes = [2, 10, 10], strides = [1, 1, 1]} : vector<2x10x126xf32> to vector<2x10x10xf32>
    %277 = arith.addf %275, %276 : vector<2x10x10xf32>
    %278 = vector.extract_strided_slice %254 {offsets = [0, 0, 96], sizes = [2, 10, 10], strides = [1, 1, 1]} : vector<2x10x126xf32> to vector<2x10x10xf32>
    %279 = arith.addf %277, %278 : vector<2x10x10xf32>
    %c0_109 = arith.constant 0 : index
    %280 = memref.load %arg4[%c0_109] : memref<4xf32, #tpu.memory_space<smem>>
    %281 = vector.broadcast %280 : f32 to vector<2x10x10xf32>
    %282 = arith.addf %279, %281 : vector<2x10x10xf32>
    %cst_110 = arith.constant 0.000000e+00 : f32
    %283 = vector.broadcast %cst_110 : f32 to vector<2x10x10xf32>
    %284 = arith.maximumf %282, %283 : vector<2x10x10xf32>
    %c0_111 = arith.constant 0 : index
    %c2_112 = arith.constant 2 : index
    %c2_113 = arith.constant 2 : index
    %285 = vector.load %arg13[%c0_111, %c2_112, %c2_113] : memref<2x18x128xf32, #tpu.memory_space<vmem>>, vector<2x10x10xf32>
    tpu.vector_store %arg13[%c0_111, %c2_112, %c2_113], %284 {strides = array<i32>} : memref<2x18x128xf32, #tpu.memory_space<vmem>>, vector<2x10x10xf32>,
    %286 = vector.extract_strided_slice %260 {offsets = [0, 0, 0], sizes = [2, 10, 10], strides = [1, 1, 1]} : vector<2x10x126xf32> to vector<2x10x10xf32>
    %287 = vector.extract_strided_slice %260 {offsets = [0, 0, 32], sizes = [2, 10, 10], strides = [1, 1, 1]} : vector<2x10x126xf32> to vector<2x10x10xf32>
    %288 = arith.addf %286, %287 : vector<2x10x10xf32>
    %289 = vector.extract_strided_slice %260 {offsets = [0, 0, 64], sizes = [2, 10, 10], strides = [1, 1, 1]} : vector<2x10x126xf32> to vector<2x10x10xf32>
    %290 = arith.addf %288, %289 : vector<2x10x10xf32>
    %291 = vector.extract_strided_slice %260 {offsets = [0, 0, 96], sizes = [2, 10, 10], strides = [1, 1, 1]} : vector<2x10x126xf32> to vector<2x10x10xf32>
    %292 = arith.addf %290, %291 : vector<2x10x10xf32>
    %c1_114 = arith.constant 1 : index
    %293 = memref.load %arg4[%c1_114] : memref<4xf32, #tpu.memory_space<smem>>
    %294 = vector.broadcast %293 : f32 to vector<2x10x10xf32>
    %295 = arith.addf %292, %294 : vector<2x10x10xf32>
    %cst_115 = arith.constant 0.000000e+00 : f32
    %296 = vector.broadcast %cst_115 : f32 to vector<2x10x10xf32>
    %297 = arith.maximumf %295, %296 : vector<2x10x10xf32>
    %c0_116 = arith.constant 0 : index
    %c2_117 = arith.constant 2 : index
    %c34_118 = arith.constant 34 : index
    %298 = vector.load %arg13[%c0_116, %c2_117, %c34_118] : memref<2x18x128xf32, #tpu.memory_space<vmem>>, vector<2x10x10xf32>
    tpu.vector_store %arg13[%c0_116, %c2_117, %c34_118], %297 {strides = array<i32>} : memref<2x18x128xf32, #tpu.memory_space<vmem>>, vector<2x10x10xf32>,
    %299 = vector.extract_strided_slice %266 {offsets = [0, 0, 0], sizes = [2, 10, 10], strides = [1, 1, 1]} : vector<2x10x126xf32> to vector<2x10x10xf32>
    %300 = vector.extract_strided_slice %266 {offsets = [0, 0, 32], sizes = [2, 10, 10], strides = [1, 1, 1]} : vector<2x10x126xf32> to vector<2x10x10xf32>
    %301 = arith.addf %299, %300 : vector<2x10x10xf32>
    %302 = vector.extract_strided_slice %266 {offsets = [0, 0, 64], sizes = [2, 10, 10], strides = [1, 1, 1]} : vector<2x10x126xf32> to vector<2x10x10xf32>
    %303 = arith.addf %301, %302 : vector<2x10x10xf32>
    %304 = vector.extract_strided_slice %266 {offsets = [0, 0, 96], sizes = [2, 10, 10], strides = [1, 1, 1]} : vector<2x10x126xf32> to vector<2x10x10xf32>
    %305 = arith.addf %303, %304 : vector<2x10x10xf32>
    %c2_119 = arith.constant 2 : index
    %306 = memref.load %arg4[%c2_119] : memref<4xf32, #tpu.memory_space<smem>>
    %307 = vector.broadcast %306 : f32 to vector<2x10x10xf32>
    %308 = arith.addf %305, %307 : vector<2x10x10xf32>
    %cst_120 = arith.constant 0.000000e+00 : f32
    %309 = vector.broadcast %cst_120 : f32 to vector<2x10x10xf32>
    %310 = arith.maximumf %308, %309 : vector<2x10x10xf32>
    %c0_121 = arith.constant 0 : index
    %c2_122 = arith.constant 2 : index
    %c66 = arith.constant 66 : index
    %311 = vector.load %arg13[%c0_121, %c2_122, %c66] : memref<2x18x128xf32, #tpu.memory_space<vmem>>, vector<2x10x10xf32>
    tpu.vector_store %arg13[%c0_121, %c2_122, %c66], %310 {strides = array<i32>} : memref<2x18x128xf32, #tpu.memory_space<vmem>>, vector<2x10x10xf32>,
    %312 = vector.extract_strided_slice %272 {offsets = [0, 0, 0], sizes = [2, 10, 10], strides = [1, 1, 1]} : vector<2x10x126xf32> to vector<2x10x10xf32>
    %313 = vector.extract_strided_slice %272 {offsets = [0, 0, 32], sizes = [2, 10, 10], strides = [1, 1, 1]} : vector<2x10x126xf32> to vector<2x10x10xf32>
    %314 = arith.addf %312, %313 : vector<2x10x10xf32>
    %315 = vector.extract_strided_slice %272 {offsets = [0, 0, 64], sizes = [2, 10, 10], strides = [1, 1, 1]} : vector<2x10x126xf32> to vector<2x10x10xf32>
    %316 = arith.addf %314, %315 : vector<2x10x10xf32>
    %317 = vector.extract_strided_slice %272 {offsets = [0, 0, 96], sizes = [2, 10, 10], strides = [1, 1, 1]} : vector<2x10x126xf32> to vector<2x10x10xf32>
    %318 = arith.addf %316, %317 : vector<2x10x10xf32>
    %c3_123 = arith.constant 3 : index
    %319 = memref.load %arg4[%c3_123] : memref<4xf32, #tpu.memory_space<smem>>
    %320 = vector.broadcast %319 : f32 to vector<2x10x10xf32>
    %321 = arith.addf %318, %320 : vector<2x10x10xf32>
    %cst_124 = arith.constant 0.000000e+00 : f32
    %322 = vector.broadcast %cst_124 : f32 to vector<2x10x10xf32>
    %323 = arith.maximumf %321, %322 : vector<2x10x10xf32>
    %c0_125 = arith.constant 0 : index
    %c2_126 = arith.constant 2 : index
    %c98 = arith.constant 98 : index
    %324 = vector.load %arg13[%c0_125, %c2_126, %c98] : memref<2x18x128xf32, #tpu.memory_space<vmem>>, vector<2x10x10xf32>
    tpu.vector_store %arg13[%c0_125, %c2_126, %c98], %323 {strides = array<i32>} : memref<2x18x128xf32, #tpu.memory_space<vmem>>, vector<2x10x10xf32>,
    %cst_127 = arith.constant 0.000000e+00 : f32
    %325 = vector.broadcast %cst_127 : f32 to vector<2x12x126xf32>
    %cst_128 = arith.constant 0.000000e+00 : f32
    %326 = vector.broadcast %cst_128 : f32 to vector<2x12x126xf32>
    %cst_129 = arith.constant 0.000000e+00 : f32
    %327 = vector.broadcast %cst_129 : f32 to vector<2x12x126xf32>
    %cst_130 = arith.constant 0.000000e+00 : f32
    %328 = vector.broadcast %cst_130 : f32 to vector<2x12x126xf32>
    %c0_131 = arith.constant 0 : index
    %c0_132 = arith.constant 0 : index
    %c0_133 = arith.constant 0 : index
    %329 = vector.load %arg13[%c0_131, %c0_132, %c0_133] : memref<2x18x128xf32, #tpu.memory_space<vmem>>, vector<2x12x126xf32>
    %c0_134 = arith.constant 0 : index
    %c0_135 = arith.constant 0 : index
    %330 = vector.load %arg5[%c0_134, %c0_135] : memref<36x126xf32, #tpu.memory_space<vmem>>, vector<1x126xf32>
    %331 = vector.shape_cast %330 : vector<1x126xf32> to vector<126xf32>
    %332 = vector.shape_cast %331 : vector<126xf32> to vector<1x1x126xf32>
    %333 = vector.broadcast %332 : vector<1x1x126xf32> to vector<2x12x126xf32>
    %334 = arith.mulf %329, %333 : vector<2x12x126xf32>
    %335 = arith.addf %325, %334 : vector<2x12x126xf32>
    %c9_136 = arith.constant 9 : index
    %c0_137 = arith.constant 0 : index
    %336 = vector.load %arg5[%c9_136, %c0_137] : memref<36x126xf32, #tpu.memory_space<vmem>>, vector<1x126xf32>
    %337 = vector.shape_cast %336 : vector<1x126xf32> to vector<126xf32>
    %338 = vector.shape_cast %337 : vector<126xf32> to vector<1x1x126xf32>
    %339 = vector.broadcast %338 : vector<1x1x126xf32> to vector<2x12x126xf32>
    %340 = arith.mulf %329, %339 : vector<2x12x126xf32>
    %341 = arith.addf %326, %340 : vector<2x12x126xf32>
    %c18_138 = arith.constant 18 : index
    %c0_139 = arith.constant 0 : index
    %342 = vector.load %arg5[%c18_138, %c0_139] : memref<36x126xf32, #tpu.memory_space<vmem>>, vector<1x126xf32>
    %343 = vector.shape_cast %342 : vector<1x126xf32> to vector<126xf32>
    %344 = vector.shape_cast %343 : vector<126xf32> to vector<1x1x126xf32>
    %345 = vector.broadcast %344 : vector<1x1x126xf32> to vector<2x12x126xf32>
    %346 = arith.mulf %329, %345 : vector<2x12x126xf32>
    %347 = arith.addf %327, %346 : vector<2x12x126xf32>
    %c27_140 = arith.constant 27 : index
    %c0_141 = arith.constant 0 : index
    %348 = vector.load %arg5[%c27_140, %c0_141] : memref<36x126xf32, #tpu.memory_space<vmem>>, vector<1x126xf32>
    %349 = vector.shape_cast %348 : vector<1x126xf32> to vector<126xf32>
    %350 = vector.shape_cast %349 : vector<126xf32> to vector<1x1x126xf32>
    %351 = vector.broadcast %350 : vector<1x1x126xf32> to vector<2x12x126xf32>
    %352 = arith.mulf %329, %351 : vector<2x12x126xf32>
    %353 = arith.addf %328, %352 : vector<2x12x126xf32>
    %c0_142 = arith.constant 0 : index
    %c0_143 = arith.constant 0 : index
    %c1_144 = arith.constant 1 : index
    %354 = vector.load %arg13[%c0_142, %c0_143, %c1_144] : memref<2x18x128xf32, #tpu.memory_space<vmem>>, vector<2x12x126xf32>
    %c1_145 = arith.constant 1 : index
    %c0_146 = arith.constant 0 : index
    %355 = vector.load %arg5[%c1_145, %c0_146] : memref<36x126xf32, #tpu.memory_space<vmem>>, vector<1x126xf32>
    %356 = vector.shape_cast %355 : vector<1x126xf32> to vector<126xf32>
    %357 = vector.shape_cast %356 : vector<126xf32> to vector<1x1x126xf32>
    %358 = vector.broadcast %357 : vector<1x1x126xf32> to vector<2x12x126xf32>
    %359 = arith.mulf %354, %358 : vector<2x12x126xf32>
    %360 = arith.addf %335, %359 : vector<2x12x126xf32>
    %c10_147 = arith.constant 10 : index
    %c0_148 = arith.constant 0 : index
    %361 = vector.load %arg5[%c10_147, %c0_148] : memref<36x126xf32, #tpu.memory_space<vmem>>, vector<1x126xf32>
    %362 = vector.shape_cast %361 : vector<1x126xf32> to vector<126xf32>
    %363 = vector.shape_cast %362 : vector<126xf32> to vector<1x1x126xf32>
    %364 = vector.broadcast %363 : vector<1x1x126xf32> to vector<2x12x126xf32>
    %365 = arith.mulf %354, %364 : vector<2x12x126xf32>
    %366 = arith.addf %341, %365 : vector<2x12x126xf32>
    %c19_149 = arith.constant 19 : index
    %c0_150 = arith.constant 0 : index
    %367 = vector.load %arg5[%c19_149, %c0_150] : memref<36x126xf32, #tpu.memory_space<vmem>>, vector<1x126xf32>
    %368 = vector.shape_cast %367 : vector<1x126xf32> to vector<126xf32>
    %369 = vector.shape_cast %368 : vector<126xf32> to vector<1x1x126xf32>
    %370 = vector.broadcast %369 : vector<1x1x126xf32> to vector<2x12x126xf32>
    %371 = arith.mulf %354, %370 : vector<2x12x126xf32>
    %372 = arith.addf %347, %371 : vector<2x12x126xf32>
    %c28_151 = arith.constant 28 : index
    %c0_152 = arith.constant 0 : index
    %373 = vector.load %arg5[%c28_151, %c0_152] : memref<36x126xf32, #tpu.memory_space<vmem>>, vector<1x126xf32>
    %374 = vector.shape_cast %373 : vector<1x126xf32> to vector<126xf32>
    %375 = vector.shape_cast %374 : vector<126xf32> to vector<1x1x126xf32>
    %376 = vector.broadcast %375 : vector<1x1x126xf32> to vector<2x12x126xf32>
    %377 = arith.mulf %354, %376 : vector<2x12x126xf32>
    %378 = arith.addf %353, %377 : vector<2x12x126xf32>
    %c0_153 = arith.constant 0 : index
    %c0_154 = arith.constant 0 : index
    %c2_155 = arith.constant 2 : index
    %379 = vector.load %arg13[%c0_153, %c0_154, %c2_155] : memref<2x18x128xf32, #tpu.memory_space<vmem>>, vector<2x12x126xf32>
    %c2_156 = arith.constant 2 : index
    %c0_157 = arith.constant 0 : index
    %380 = vector.load %arg5[%c2_156, %c0_157] : memref<36x126xf32, #tpu.memory_space<vmem>>, vector<1x126xf32>
    %381 = vector.shape_cast %380 : vector<1x126xf32> to vector<126xf32>
    %382 = vector.shape_cast %381 : vector<126xf32> to vector<1x1x126xf32>
    %383 = vector.broadcast %382 : vector<1x1x126xf32> to vector<2x12x126xf32>
    %384 = arith.mulf %379, %383 : vector<2x12x126xf32>
    %385 = arith.addf %360, %384 : vector<2x12x126xf32>
    %c11_158 = arith.constant 11 : index
    %c0_159 = arith.constant 0 : index
    %386 = vector.load %arg5[%c11_158, %c0_159] : memref<36x126xf32, #tpu.memory_space<vmem>>, vector<1x126xf32>
    %387 = vector.shape_cast %386 : vector<1x126xf32> to vector<126xf32>
    %388 = vector.shape_cast %387 : vector<126xf32> to vector<1x1x126xf32>
    %389 = vector.broadcast %388 : vector<1x1x126xf32> to vector<2x12x126xf32>
    %390 = arith.mulf %379, %389 : vector<2x12x126xf32>
    %391 = arith.addf %366, %390 : vector<2x12x126xf32>
    %c20_160 = arith.constant 20 : index
    %c0_161 = arith.constant 0 : index
    %392 = vector.load %arg5[%c20_160, %c0_161] : memref<36x126xf32, #tpu.memory_space<vmem>>, vector<1x126xf32>
    %393 = vector.shape_cast %392 : vector<1x126xf32> to vector<126xf32>
    %394 = vector.shape_cast %393 : vector<126xf32> to vector<1x1x126xf32>
    %395 = vector.broadcast %394 : vector<1x1x126xf32> to vector<2x12x126xf32>
    %396 = arith.mulf %379, %395 : vector<2x12x126xf32>
    %397 = arith.addf %372, %396 : vector<2x12x126xf32>
    %c29_162 = arith.constant 29 : index
    %c0_163 = arith.constant 0 : index
    %398 = vector.load %arg5[%c29_162, %c0_163] : memref<36x126xf32, #tpu.memory_space<vmem>>, vector<1x126xf32>
    %399 = vector.shape_cast %398 : vector<1x126xf32> to vector<126xf32>
    %400 = vector.shape_cast %399 : vector<126xf32> to vector<1x1x126xf32>
    %401 = vector.broadcast %400 : vector<1x1x126xf32> to vector<2x12x126xf32>
    %402 = arith.mulf %379, %401 : vector<2x12x126xf32>
    %403 = arith.addf %378, %402 : vector<2x12x126xf32>
    %c0_164 = arith.constant 0 : index
    %c1_165 = arith.constant 1 : index
    %c0_166 = arith.constant 0 : index
    %404 = vector.load %arg13[%c0_164, %c1_165, %c0_166] : memref<2x18x128xf32, #tpu.memory_space<vmem>>, vector<2x12x126xf32>
    %c3_167 = arith.constant 3 : index
    %c0_168 = arith.constant 0 : index
    %405 = vector.load %arg5[%c3_167, %c0_168] : memref<36x126xf32, #tpu.memory_space<vmem>>, vector<1x126xf32>
    %406 = vector.shape_cast %405 : vector<1x126xf32> to vector<126xf32>
    %407 = vector.shape_cast %406 : vector<126xf32> to vector<1x1x126xf32>
    %408 = vector.broadcast %407 : vector<1x1x126xf32> to vector<2x12x126xf32>
    %409 = arith.mulf %404, %408 : vector<2x12x126xf32>
    %410 = arith.addf %385, %409 : vector<2x12x126xf32>
    %c12_169 = arith.constant 12 : index
    %c0_170 = arith.constant 0 : index
    %411 = vector.load %arg5[%c12_169, %c0_170] : memref<36x126xf32, #tpu.memory_space<vmem>>, vector<1x126xf32>
    %412 = vector.shape_cast %411 : vector<1x126xf32> to vector<126xf32>
    %413 = vector.shape_cast %412 : vector<126xf32> to vector<1x1x126xf32>
    %414 = vector.broadcast %413 : vector<1x1x126xf32> to vector<2x12x126xf32>
    %415 = arith.mulf %404, %414 : vector<2x12x126xf32>
    %416 = arith.addf %391, %415 : vector<2x12x126xf32>
    %c21_171 = arith.constant 21 : index
    %c0_172 = arith.constant 0 : index
    %417 = vector.load %arg5[%c21_171, %c0_172] : memref<36x126xf32, #tpu.memory_space<vmem>>, vector<1x126xf32>
    %418 = vector.shape_cast %417 : vector<1x126xf32> to vector<126xf32>
    %419 = vector.shape_cast %418 : vector<126xf32> to vector<1x1x126xf32>
    %420 = vector.broadcast %419 : vector<1x1x126xf32> to vector<2x12x126xf32>
    %421 = arith.mulf %404, %420 : vector<2x12x126xf32>
    %422 = arith.addf %397, %421 : vector<2x12x126xf32>
    %c30_173 = arith.constant 30 : index
    %c0_174 = arith.constant 0 : index
    %423 = vector.load %arg5[%c30_173, %c0_174] : memref<36x126xf32, #tpu.memory_space<vmem>>, vector<1x126xf32>
    %424 = vector.shape_cast %423 : vector<1x126xf32> to vector<126xf32>
    %425 = vector.shape_cast %424 : vector<126xf32> to vector<1x1x126xf32>
    %426 = vector.broadcast %425 : vector<1x1x126xf32> to vector<2x12x126xf32>
    %427 = arith.mulf %404, %426 : vector<2x12x126xf32>
    %428 = arith.addf %403, %427 : vector<2x12x126xf32>
    %c0_175 = arith.constant 0 : index
    %c1_176 = arith.constant 1 : index
    %c1_177 = arith.constant 1 : index
    %429 = vector.load %arg13[%c0_175, %c1_176, %c1_177] : memref<2x18x128xf32, #tpu.memory_space<vmem>>, vector<2x12x126xf32>
    %c4_178 = arith.constant 4 : index
    %c0_179 = arith.constant 0 : index
    %430 = vector.load %arg5[%c4_178, %c0_179] : memref<36x126xf32, #tpu.memory_space<vmem>>, vector<1x126xf32>
    %431 = vector.shape_cast %430 : vector<1x126xf32> to vector<126xf32>
    %432 = vector.shape_cast %431 : vector<126xf32> to vector<1x1x126xf32>
    %433 = vector.broadcast %432 : vector<1x1x126xf32> to vector<2x12x126xf32>
    %434 = arith.mulf %429, %433 : vector<2x12x126xf32>
    %435 = arith.addf %410, %434 : vector<2x12x126xf32>
    %c13_180 = arith.constant 13 : index
    %c0_181 = arith.constant 0 : index
    %436 = vector.load %arg5[%c13_180, %c0_181] : memref<36x126xf32, #tpu.memory_space<vmem>>, vector<1x126xf32>
    %437 = vector.shape_cast %436 : vector<1x126xf32> to vector<126xf32>
    %438 = vector.shape_cast %437 : vector<126xf32> to vector<1x1x126xf32>
    %439 = vector.broadcast %438 : vector<1x1x126xf32> to vector<2x12x126xf32>
    %440 = arith.mulf %429, %439 : vector<2x12x126xf32>
    %441 = arith.addf %416, %440 : vector<2x12x126xf32>
    %c22_182 = arith.constant 22 : index
    %c0_183 = arith.constant 0 : index
    %442 = vector.load %arg5[%c22_182, %c0_183] : memref<36x126xf32, #tpu.memory_space<vmem>>, vector<1x126xf32>
    %443 = vector.shape_cast %442 : vector<1x126xf32> to vector<126xf32>
    %444 = vector.shape_cast %443 : vector<126xf32> to vector<1x1x126xf32>
    %445 = vector.broadcast %444 : vector<1x1x126xf32> to vector<2x12x126xf32>
    %446 = arith.mulf %429, %445 : vector<2x12x126xf32>
    %447 = arith.addf %422, %446 : vector<2x12x126xf32>
    %c31_184 = arith.constant 31 : index
    %c0_185 = arith.constant 0 : index
    %448 = vector.load %arg5[%c31_184, %c0_185] : memref<36x126xf32, #tpu.memory_space<vmem>>, vector<1x126xf32>
    %449 = vector.shape_cast %448 : vector<1x126xf32> to vector<126xf32>
    %450 = vector.shape_cast %449 : vector<126xf32> to vector<1x1x126xf32>
    %451 = vector.broadcast %450 : vector<1x1x126xf32> to vector<2x12x126xf32>
    %452 = arith.mulf %429, %451 : vector<2x12x126xf32>
    %453 = arith.addf %428, %452 : vector<2x12x126xf32>
    %c0_186 = arith.constant 0 : index
    %c1_187 = arith.constant 1 : index
    %c2_188 = arith.constant 2 : index
    %454 = vector.load %arg13[%c0_186, %c1_187, %c2_188] : memref<2x18x128xf32, #tpu.memory_space<vmem>>, vector<2x12x126xf32>
    %c5_189 = arith.constant 5 : index
    %c0_190 = arith.constant 0 : index
    %455 = vector.load %arg5[%c5_189, %c0_190] : memref<36x126xf32, #tpu.memory_space<vmem>>, vector<1x126xf32>
    %456 = vector.shape_cast %455 : vector<1x126xf32> to vector<126xf32>
    %457 = vector.shape_cast %456 : vector<126xf32> to vector<1x1x126xf32>
    %458 = vector.broadcast %457 : vector<1x1x126xf32> to vector<2x12x126xf32>
    %459 = arith.mulf %454, %458 : vector<2x12x126xf32>
    %460 = arith.addf %435, %459 : vector<2x12x126xf32>
    %c14_191 = arith.constant 14 : index
    %c0_192 = arith.constant 0 : index
    %461 = vector.load %arg5[%c14_191, %c0_192] : memref<36x126xf32, #tpu.memory_space<vmem>>, vector<1x126xf32>
    %462 = vector.shape_cast %461 : vector<1x126xf32> to vector<126xf32>
    %463 = vector.shape_cast %462 : vector<126xf32> to vector<1x1x126xf32>
    %464 = vector.broadcast %463 : vector<1x1x126xf32> to vector<2x12x126xf32>
    %465 = arith.mulf %454, %464 : vector<2x12x126xf32>
    %466 = arith.addf %441, %465 : vector<2x12x126xf32>
    %c23_193 = arith.constant 23 : index
    %c0_194 = arith.constant 0 : index
    %467 = vector.load %arg5[%c23_193, %c0_194] : memref<36x126xf32, #tpu.memory_space<vmem>>, vector<1x126xf32>
    %468 = vector.shape_cast %467 : vector<1x126xf32> to vector<126xf32>
    %469 = vector.shape_cast %468 : vector<126xf32> to vector<1x1x126xf32>
    %470 = vector.broadcast %469 : vector<1x1x126xf32> to vector<2x12x126xf32>
    %471 = arith.mulf %454, %470 : vector<2x12x126xf32>
    %472 = arith.addf %447, %471 : vector<2x12x126xf32>
    %c32_195 = arith.constant 32 : index
    %c0_196 = arith.constant 0 : index
    %473 = vector.load %arg5[%c32_195, %c0_196] : memref<36x126xf32, #tpu.memory_space<vmem>>, vector<1x126xf32>
    %474 = vector.shape_cast %473 : vector<1x126xf32> to vector<126xf32>
    %475 = vector.shape_cast %474 : vector<126xf32> to vector<1x1x126xf32>
    %476 = vector.broadcast %475 : vector<1x1x126xf32> to vector<2x12x126xf32>
    %477 = arith.mulf %454, %476 : vector<2x12x126xf32>
    %478 = arith.addf %453, %477 : vector<2x12x126xf32>
    %c0_197 = arith.constant 0 : index
    %c2_198 = arith.constant 2 : index
    %c0_199 = arith.constant 0 : index
    %479 = vector.load %arg13[%c0_197, %c2_198, %c0_199] : memref<2x18x128xf32, #tpu.memory_space<vmem>>, vector<2x12x126xf32>
    %c6_200 = arith.constant 6 : index
    %c0_201 = arith.constant 0 : index
    %480 = vector.load %arg5[%c6_200, %c0_201] : memref<36x126xf32, #tpu.memory_space<vmem>>, vector<1x126xf32>
    %481 = vector.shape_cast %480 : vector<1x126xf32> to vector<126xf32>
    %482 = vector.shape_cast %481 : vector<126xf32> to vector<1x1x126xf32>
    %483 = vector.broadcast %482 : vector<1x1x126xf32> to vector<2x12x126xf32>
    %484 = arith.mulf %479, %483 : vector<2x12x126xf32>
    %485 = arith.addf %460, %484 : vector<2x12x126xf32>
    %c15_202 = arith.constant 15 : index
    %c0_203 = arith.constant 0 : index
    %486 = vector.load %arg5[%c15_202, %c0_203] : memref<36x126xf32, #tpu.memory_space<vmem>>, vector<1x126xf32>
    %487 = vector.shape_cast %486 : vector<1x126xf32> to vector<126xf32>
    %488 = vector.shape_cast %487 : vector<126xf32> to vector<1x1x126xf32>
    %489 = vector.broadcast %488 : vector<1x1x126xf32> to vector<2x12x126xf32>
    %490 = arith.mulf %479, %489 : vector<2x12x126xf32>
    %491 = arith.addf %466, %490 : vector<2x12x126xf32>
    %c24_204 = arith.constant 24 : index
    %c0_205 = arith.constant 0 : index
    %492 = vector.load %arg5[%c24_204, %c0_205] : memref<36x126xf32, #tpu.memory_space<vmem>>, vector<1x126xf32>
    %493 = vector.shape_cast %492 : vector<1x126xf32> to vector<126xf32>
    %494 = vector.shape_cast %493 : vector<126xf32> to vector<1x1x126xf32>
    %495 = vector.broadcast %494 : vector<1x1x126xf32> to vector<2x12x126xf32>
    %496 = arith.mulf %479, %495 : vector<2x12x126xf32>
    %497 = arith.addf %472, %496 : vector<2x12x126xf32>
    %c33_206 = arith.constant 33 : index
    %c0_207 = arith.constant 0 : index
    %498 = vector.load %arg5[%c33_206, %c0_207] : memref<36x126xf32, #tpu.memory_space<vmem>>, vector<1x126xf32>
    %499 = vector.shape_cast %498 : vector<1x126xf32> to vector<126xf32>
    %500 = vector.shape_cast %499 : vector<126xf32> to vector<1x1x126xf32>
    %501 = vector.broadcast %500 : vector<1x1x126xf32> to vector<2x12x126xf32>
    %502 = arith.mulf %479, %501 : vector<2x12x126xf32>
    %503 = arith.addf %478, %502 : vector<2x12x126xf32>
    %c0_208 = arith.constant 0 : index
    %c2_209 = arith.constant 2 : index
    %c1_210 = arith.constant 1 : index
    %504 = vector.load %arg13[%c0_208, %c2_209, %c1_210] : memref<2x18x128xf32, #tpu.memory_space<vmem>>, vector<2x12x126xf32>
    %c7_211 = arith.constant 7 : index
    %c0_212 = arith.constant 0 : index
    %505 = vector.load %arg5[%c7_211, %c0_212] : memref<36x126xf32, #tpu.memory_space<vmem>>, vector<1x126xf32>
    %506 = vector.shape_cast %505 : vector<1x126xf32> to vector<126xf32>
    %507 = vector.shape_cast %506 : vector<126xf32> to vector<1x1x126xf32>
    %508 = vector.broadcast %507 : vector<1x1x126xf32> to vector<2x12x126xf32>
    %509 = arith.mulf %504, %508 : vector<2x12x126xf32>
    %510 = arith.addf %485, %509 : vector<2x12x126xf32>
    %c16_213 = arith.constant 16 : index
    %c0_214 = arith.constant 0 : index
    %511 = vector.load %arg5[%c16_213, %c0_214] : memref<36x126xf32, #tpu.memory_space<vmem>>, vector<1x126xf32>
    %512 = vector.shape_cast %511 : vector<1x126xf32> to vector<126xf32>
    %513 = vector.shape_cast %512 : vector<126xf32> to vector<1x1x126xf32>
    %514 = vector.broadcast %513 : vector<1x1x126xf32> to vector<2x12x126xf32>
    %515 = arith.mulf %504, %514 : vector<2x12x126xf32>
    %516 = arith.addf %491, %515 : vector<2x12x126xf32>
    %c25_215 = arith.constant 25 : index
    %c0_216 = arith.constant 0 : index
    %517 = vector.load %arg5[%c25_215, %c0_216] : memref<36x126xf32, #tpu.memory_space<vmem>>, vector<1x126xf32>
    %518 = vector.shape_cast %517 : vector<1x126xf32> to vector<126xf32>
    %519 = vector.shape_cast %518 : vector<126xf32> to vector<1x1x126xf32>
    %520 = vector.broadcast %519 : vector<1x1x126xf32> to vector<2x12x126xf32>
    %521 = arith.mulf %504, %520 : vector<2x12x126xf32>
    %522 = arith.addf %497, %521 : vector<2x12x126xf32>
    %c34_217 = arith.constant 34 : index
    %c0_218 = arith.constant 0 : index
    %523 = vector.load %arg5[%c34_217, %c0_218] : memref<36x126xf32, #tpu.memory_space<vmem>>, vector<1x126xf32>
    %524 = vector.shape_cast %523 : vector<1x126xf32> to vector<126xf32>
    %525 = vector.shape_cast %524 : vector<126xf32> to vector<1x1x126xf32>
    %526 = vector.broadcast %525 : vector<1x1x126xf32> to vector<2x12x126xf32>
    %527 = arith.mulf %504, %526 : vector<2x12x126xf32>
    %528 = arith.addf %503, %527 : vector<2x12x126xf32>
    %c0_219 = arith.constant 0 : index
    %c2_220 = arith.constant 2 : index
    %c2_221 = arith.constant 2 : index
    %529 = vector.load %arg13[%c0_219, %c2_220, %c2_221] : memref<2x18x128xf32, #tpu.memory_space<vmem>>, vector<2x12x126xf32>
    %c8_222 = arith.constant 8 : index
    %c0_223 = arith.constant 0 : index
    %530 = vector.load %arg5[%c8_222, %c0_223] : memref<36x126xf32, #tpu.memory_space<vmem>>, vector<1x126xf32>
    %531 = vector.shape_cast %530 : vector<1x126xf32> to vector<126xf32>
    %532 = vector.shape_cast %531 : vector<126xf32> to vector<1x1x126xf32>
    %533 = vector.broadcast %532 : vector<1x1x126xf32> to vector<2x12x126xf32>
    %534 = arith.mulf %529, %533 : vector<2x12x126xf32>
    %535 = arith.addf %510, %534 : vector<2x12x126xf32>
    %c17_224 = arith.constant 17 : index
    %c0_225 = arith.constant 0 : index
    %536 = vector.load %arg5[%c17_224, %c0_225] : memref<36x126xf32, #tpu.memory_space<vmem>>, vector<1x126xf32>
    %537 = vector.shape_cast %536 : vector<1x126xf32> to vector<126xf32>
    %538 = vector.shape_cast %537 : vector<126xf32> to vector<1x1x126xf32>
    %539 = vector.broadcast %538 : vector<1x1x126xf32> to vector<2x12x126xf32>
    %540 = arith.mulf %529, %539 : vector<2x12x126xf32>
    %541 = arith.addf %516, %540 : vector<2x12x126xf32>
    %c26_226 = arith.constant 26 : index
    %c0_227 = arith.constant 0 : index
    %542 = vector.load %arg5[%c26_226, %c0_227] : memref<36x126xf32, #tpu.memory_space<vmem>>, vector<1x126xf32>
    %543 = vector.shape_cast %542 : vector<1x126xf32> to vector<126xf32>
    %544 = vector.shape_cast %543 : vector<126xf32> to vector<1x1x126xf32>
    %545 = vector.broadcast %544 : vector<1x1x126xf32> to vector<2x12x126xf32>
    %546 = arith.mulf %529, %545 : vector<2x12x126xf32>
    %547 = arith.addf %522, %546 : vector<2x12x126xf32>
    %c35_228 = arith.constant 35 : index
    %c0_229 = arith.constant 0 : index
    %548 = vector.load %arg5[%c35_228, %c0_229] : memref<36x126xf32, #tpu.memory_space<vmem>>, vector<1x126xf32>
    %549 = vector.shape_cast %548 : vector<1x126xf32> to vector<126xf32>
    %550 = vector.shape_cast %549 : vector<126xf32> to vector<1x1x126xf32>
    %551 = vector.broadcast %550 : vector<1x1x126xf32> to vector<2x12x126xf32>
    %552 = arith.mulf %529, %551 : vector<2x12x126xf32>
    %553 = arith.addf %528, %552 : vector<2x12x126xf32>
    %554 = vector.extract_strided_slice %535 {offsets = [0, 0, 0], sizes = [2, 12, 12], strides = [1, 1, 1]} : vector<2x12x126xf32> to vector<2x12x12xf32>
    %555 = vector.extract_strided_slice %535 {offsets = [0, 0, 32], sizes = [2, 12, 12], strides = [1, 1, 1]} : vector<2x12x126xf32> to vector<2x12x12xf32>
    %556 = arith.addf %554, %555 : vector<2x12x12xf32>
    %557 = vector.extract_strided_slice %535 {offsets = [0, 0, 64], sizes = [2, 12, 12], strides = [1, 1, 1]} : vector<2x12x126xf32> to vector<2x12x12xf32>
    %558 = arith.addf %556, %557 : vector<2x12x12xf32>
    %559 = vector.extract_strided_slice %535 {offsets = [0, 0, 96], sizes = [2, 12, 12], strides = [1, 1, 1]} : vector<2x12x126xf32> to vector<2x12x12xf32>
    %560 = arith.addf %558, %559 : vector<2x12x12xf32>
    %c0_230 = arith.constant 0 : index
    %561 = memref.load %arg6[%c0_230] : memref<4xf32, #tpu.memory_space<smem>>
    %562 = vector.broadcast %561 : f32 to vector<2x12x12xf32>
    %563 = arith.addf %560, %562 : vector<2x12x12xf32>
    %cst_231 = arith.constant 0.000000e+00 : f32
    %564 = vector.broadcast %cst_231 : f32 to vector<2x12x12xf32>
    %565 = arith.maximumf %563, %564 : vector<2x12x12xf32>
    %c0_232 = arith.constant 0 : index
    %c2_233 = arith.constant 2 : index
    %c2_234 = arith.constant 2 : index
    %566 = vector.load %arg12[%c0_232, %c2_233, %c2_234] : memref<2x18x128xf32, #tpu.memory_space<vmem>>, vector<2x12x12xf32>
    tpu.vector_store %arg12[%c0_232, %c2_233, %c2_234], %565 {strides = array<i32>} : memref<2x18x128xf32, #tpu.memory_space<vmem>>, vector<2x12x12xf32>,
    %567 = vector.extract_strided_slice %541 {offsets = [0, 0, 0], sizes = [2, 12, 12], strides = [1, 1, 1]} : vector<2x12x126xf32> to vector<2x12x12xf32>
    %568 = vector.extract_strided_slice %541 {offsets = [0, 0, 32], sizes = [2, 12, 12], strides = [1, 1, 1]} : vector<2x12x126xf32> to vector<2x12x12xf32>
    %569 = arith.addf %567, %568 : vector<2x12x12xf32>
    %570 = vector.extract_strided_slice %541 {offsets = [0, 0, 64], sizes = [2, 12, 12], strides = [1, 1, 1]} : vector<2x12x126xf32> to vector<2x12x12xf32>
    %571 = arith.addf %569, %570 : vector<2x12x12xf32>
    %572 = vector.extract_strided_slice %541 {offsets = [0, 0, 96], sizes = [2, 12, 12], strides = [1, 1, 1]} : vector<2x12x126xf32> to vector<2x12x12xf32>
    %573 = arith.addf %571, %572 : vector<2x12x12xf32>
    %c1_235 = arith.constant 1 : index
    %574 = memref.load %arg6[%c1_235] : memref<4xf32, #tpu.memory_space<smem>>
    %575 = vector.broadcast %574 : f32 to vector<2x12x12xf32>
    %576 = arith.addf %573, %575 : vector<2x12x12xf32>
    %cst_236 = arith.constant 0.000000e+00 : f32
    %577 = vector.broadcast %cst_236 : f32 to vector<2x12x12xf32>
    %578 = arith.maximumf %576, %577 : vector<2x12x12xf32>
    %c0_237 = arith.constant 0 : index
    %c2_238 = arith.constant 2 : index
    %c34_239 = arith.constant 34 : index
    %579 = vector.load %arg12[%c0_237, %c2_238, %c34_239] : memref<2x18x128xf32, #tpu.memory_space<vmem>>, vector<2x12x12xf32>
    tpu.vector_store %arg12[%c0_237, %c2_238, %c34_239], %578 {strides = array<i32>} : memref<2x18x128xf32, #tpu.memory_space<vmem>>, vector<2x12x12xf32>,
    %580 = vector.extract_strided_slice %547 {offsets = [0, 0, 0], sizes = [2, 12, 12], strides = [1, 1, 1]} : vector<2x12x126xf32> to vector<2x12x12xf32>
    %581 = vector.extract_strided_slice %547 {offsets = [0, 0, 32], sizes = [2, 12, 12], strides = [1, 1, 1]} : vector<2x12x126xf32> to vector<2x12x12xf32>
    %582 = arith.addf %580, %581 : vector<2x12x12xf32>
    %583 = vector.extract_strided_slice %547 {offsets = [0, 0, 64], sizes = [2, 12, 12], strides = [1, 1, 1]} : vector<2x12x126xf32> to vector<2x12x12xf32>
    %584 = arith.addf %582, %583 : vector<2x12x12xf32>
    %585 = vector.extract_strided_slice %547 {offsets = [0, 0, 96], sizes = [2, 12, 12], strides = [1, 1, 1]} : vector<2x12x126xf32> to vector<2x12x12xf32>
    %586 = arith.addf %584, %585 : vector<2x12x12xf32>
    %c2_240 = arith.constant 2 : index
    %587 = memref.load %arg6[%c2_240] : memref<4xf32, #tpu.memory_space<smem>>
    %588 = vector.broadcast %587 : f32 to vector<2x12x12xf32>
    %589 = arith.addf %586, %588 : vector<2x12x12xf32>
    %cst_241 = arith.constant 0.000000e+00 : f32
    %590 = vector.broadcast %cst_241 : f32 to vector<2x12x12xf32>
    %591 = arith.maximumf %589, %590 : vector<2x12x12xf32>
    %c0_242 = arith.constant 0 : index
    %c2_243 = arith.constant 2 : index
    %c66_244 = arith.constant 66 : index
    %592 = vector.load %arg12[%c0_242, %c2_243, %c66_244] : memref<2x18x128xf32, #tpu.memory_space<vmem>>, vector<2x12x12xf32>
    tpu.vector_store %arg12[%c0_242, %c2_243, %c66_244], %591 {strides = array<i32>} : memref<2x18x128xf32, #tpu.memory_space<vmem>>, vector<2x12x12xf32>,
    %593 = vector.extract_strided_slice %553 {offsets = [0, 0, 0], sizes = [2, 12, 12], strides = [1, 1, 1]} : vector<2x12x126xf32> to vector<2x12x12xf32>
    %594 = vector.extract_strided_slice %553 {offsets = [0, 0, 32], sizes = [2, 12, 12], strides = [1, 1, 1]} : vector<2x12x126xf32> to vector<2x12x12xf32>
    %595 = arith.addf %593, %594 : vector<2x12x12xf32>
    %596 = vector.extract_strided_slice %553 {offsets = [0, 0, 64], sizes = [2, 12, 12], strides = [1, 1, 1]} : vector<2x12x126xf32> to vector<2x12x12xf32>
    %597 = arith.addf %595, %596 : vector<2x12x12xf32>
    %598 = vector.extract_strided_slice %553 {offsets = [0, 0, 96], sizes = [2, 12, 12], strides = [1, 1, 1]} : vector<2x12x126xf32> to vector<2x12x12xf32>
    %599 = arith.addf %597, %598 : vector<2x12x12xf32>
    %c3_245 = arith.constant 3 : index
    %600 = memref.load %arg6[%c3_245] : memref<4xf32, #tpu.memory_space<smem>>
    %601 = vector.broadcast %600 : f32 to vector<2x12x12xf32>
    %602 = arith.addf %599, %601 : vector<2x12x12xf32>
    %cst_246 = arith.constant 0.000000e+00 : f32
    %603 = vector.broadcast %cst_246 : f32 to vector<2x12x12xf32>
    %604 = arith.maximumf %602, %603 : vector<2x12x12xf32>
    %c0_247 = arith.constant 0 : index
    %c2_248 = arith.constant 2 : index
    %c98_249 = arith.constant 98 : index
    %605 = vector.load %arg12[%c0_247, %c2_248, %c98_249] : memref<2x18x128xf32, #tpu.memory_space<vmem>>, vector<2x12x12xf32>
    tpu.vector_store %arg12[%c0_247, %c2_248, %c98_249], %604 {strides = array<i32>} : memref<2x18x128xf32, #tpu.memory_space<vmem>>, vector<2x12x12xf32>,
    %cst_250 = arith.constant 0.000000e+00 : f32
    %606 = vector.broadcast %cst_250 : f32 to vector<2x14x126xf32>
    %cst_251 = arith.constant 0.000000e+00 : f32
    %607 = vector.broadcast %cst_251 : f32 to vector<2x14x126xf32>
    %cst_252 = arith.constant 0.000000e+00 : f32
    %608 = vector.broadcast %cst_252 : f32 to vector<2x14x126xf32>
    %cst_253 = arith.constant 0.000000e+00 : f32
    %609 = vector.broadcast %cst_253 : f32 to vector<2x14x126xf32>
    %c0_254 = arith.constant 0 : index
    %c0_255 = arith.constant 0 : index
    %c0_256 = arith.constant 0 : index
    %610 = vector.load %arg12[%c0_254, %c0_255, %c0_256] : memref<2x18x128xf32, #tpu.memory_space<vmem>>, vector<2x14x126xf32>
    %c0_257 = arith.constant 0 : index
    %c0_258 = arith.constant 0 : index
    %611 = vector.load %arg7[%c0_257, %c0_258] : memref<36x126xf32, #tpu.memory_space<vmem>>, vector<1x126xf32>
    %612 = vector.shape_cast %611 : vector<1x126xf32> to vector<126xf32>
    %613 = vector.shape_cast %612 : vector<126xf32> to vector<1x1x126xf32>
    %614 = vector.broadcast %613 : vector<1x1x126xf32> to vector<2x14x126xf32>
    %615 = arith.mulf %610, %614 : vector<2x14x126xf32>
    %616 = arith.addf %606, %615 : vector<2x14x126xf32>
    %c9_259 = arith.constant 9 : index
    %c0_260 = arith.constant 0 : index
    %617 = vector.load %arg7[%c9_259, %c0_260] : memref<36x126xf32, #tpu.memory_space<vmem>>, vector<1x126xf32>
    %618 = vector.shape_cast %617 : vector<1x126xf32> to vector<126xf32>
    %619 = vector.shape_cast %618 : vector<126xf32> to vector<1x1x126xf32>
    %620 = vector.broadcast %619 : vector<1x1x126xf32> to vector<2x14x126xf32>
    %621 = arith.mulf %610, %620 : vector<2x14x126xf32>
    %622 = arith.addf %607, %621 : vector<2x14x126xf32>
    %c18_261 = arith.constant 18 : index
    %c0_262 = arith.constant 0 : index
    %623 = vector.load %arg7[%c18_261, %c0_262] : memref<36x126xf32, #tpu.memory_space<vmem>>, vector<1x126xf32>
    %624 = vector.shape_cast %623 : vector<1x126xf32> to vector<126xf32>
    %625 = vector.shape_cast %624 : vector<126xf32> to vector<1x1x126xf32>
    %626 = vector.broadcast %625 : vector<1x1x126xf32> to vector<2x14x126xf32>
    %627 = arith.mulf %610, %626 : vector<2x14x126xf32>
    %628 = arith.addf %608, %627 : vector<2x14x126xf32>
    %c27_263 = arith.constant 27 : index
    %c0_264 = arith.constant 0 : index
    %629 = vector.load %arg7[%c27_263, %c0_264] : memref<36x126xf32, #tpu.memory_space<vmem>>, vector<1x126xf32>
    %630 = vector.shape_cast %629 : vector<1x126xf32> to vector<126xf32>
    %631 = vector.shape_cast %630 : vector<126xf32> to vector<1x1x126xf32>
    %632 = vector.broadcast %631 : vector<1x1x126xf32> to vector<2x14x126xf32>
    %633 = arith.mulf %610, %632 : vector<2x14x126xf32>
    %634 = arith.addf %609, %633 : vector<2x14x126xf32>
    %c0_265 = arith.constant 0 : index
    %c0_266 = arith.constant 0 : index
    %c1_267 = arith.constant 1 : index
    %635 = vector.load %arg12[%c0_265, %c0_266, %c1_267] : memref<2x18x128xf32, #tpu.memory_space<vmem>>, vector<2x14x126xf32>
    %c1_268 = arith.constant 1 : index
    %c0_269 = arith.constant 0 : index
    %636 = vector.load %arg7[%c1_268, %c0_269] : memref<36x126xf32, #tpu.memory_space<vmem>>, vector<1x126xf32>
    %637 = vector.shape_cast %636 : vector<1x126xf32> to vector<126xf32>
    %638 = vector.shape_cast %637 : vector<126xf32> to vector<1x1x126xf32>
    %639 = vector.broadcast %638 : vector<1x1x126xf32> to vector<2x14x126xf32>
    %640 = arith.mulf %635, %639 : vector<2x14x126xf32>
    %641 = arith.addf %616, %640 : vector<2x14x126xf32>
    %c10_270 = arith.constant 10 : index
    %c0_271 = arith.constant 0 : index
    %642 = vector.load %arg7[%c10_270, %c0_271] : memref<36x126xf32, #tpu.memory_space<vmem>>, vector<1x126xf32>
    %643 = vector.shape_cast %642 : vector<1x126xf32> to vector<126xf32>
    %644 = vector.shape_cast %643 : vector<126xf32> to vector<1x1x126xf32>
    %645 = vector.broadcast %644 : vector<1x1x126xf32> to vector<2x14x126xf32>
    %646 = arith.mulf %635, %645 : vector<2x14x126xf32>
    %647 = arith.addf %622, %646 : vector<2x14x126xf32>
    %c19_272 = arith.constant 19 : index
    %c0_273 = arith.constant 0 : index
    %648 = vector.load %arg7[%c19_272, %c0_273] : memref<36x126xf32, #tpu.memory_space<vmem>>, vector<1x126xf32>
    %649 = vector.shape_cast %648 : vector<1x126xf32> to vector<126xf32>
    %650 = vector.shape_cast %649 : vector<126xf32> to vector<1x1x126xf32>
    %651 = vector.broadcast %650 : vector<1x1x126xf32> to vector<2x14x126xf32>
    %652 = arith.mulf %635, %651 : vector<2x14x126xf32>
    %653 = arith.addf %628, %652 : vector<2x14x126xf32>
    %c28_274 = arith.constant 28 : index
    %c0_275 = arith.constant 0 : index
    %654 = vector.load %arg7[%c28_274, %c0_275] : memref<36x126xf32, #tpu.memory_space<vmem>>, vector<1x126xf32>
    %655 = vector.shape_cast %654 : vector<1x126xf32> to vector<126xf32>
    %656 = vector.shape_cast %655 : vector<126xf32> to vector<1x1x126xf32>
    %657 = vector.broadcast %656 : vector<1x1x126xf32> to vector<2x14x126xf32>
    %658 = arith.mulf %635, %657 : vector<2x14x126xf32>
    %659 = arith.addf %634, %658 : vector<2x14x126xf32>
    %c0_276 = arith.constant 0 : index
    %c0_277 = arith.constant 0 : index
    %c2_278 = arith.constant 2 : index
    %660 = vector.load %arg12[%c0_276, %c0_277, %c2_278] : memref<2x18x128xf32, #tpu.memory_space<vmem>>, vector<2x14x126xf32>
    %c2_279 = arith.constant 2 : index
    %c0_280 = arith.constant 0 : index
    %661 = vector.load %arg7[%c2_279, %c0_280] : memref<36x126xf32, #tpu.memory_space<vmem>>, vector<1x126xf32>
    %662 = vector.shape_cast %661 : vector<1x126xf32> to vector<126xf32>
    %663 = vector.shape_cast %662 : vector<126xf32> to vector<1x1x126xf32>
    %664 = vector.broadcast %663 : vector<1x1x126xf32> to vector<2x14x126xf32>
    %665 = arith.mulf %660, %664 : vector<2x14x126xf32>
    %666 = arith.addf %641, %665 : vector<2x14x126xf32>
    %c11_281 = arith.constant 11 : index
    %c0_282 = arith.constant 0 : index
    %667 = vector.load %arg7[%c11_281, %c0_282] : memref<36x126xf32, #tpu.memory_space<vmem>>, vector<1x126xf32>
    %668 = vector.shape_cast %667 : vector<1x126xf32> to vector<126xf32>
    %669 = vector.shape_cast %668 : vector<126xf32> to vector<1x1x126xf32>
    %670 = vector.broadcast %669 : vector<1x1x126xf32> to vector<2x14x126xf32>
    %671 = arith.mulf %660, %670 : vector<2x14x126xf32>
    %672 = arith.addf %647, %671 : vector<2x14x126xf32>
    %c20_283 = arith.constant 20 : index
    %c0_284 = arith.constant 0 : index
    %673 = vector.load %arg7[%c20_283, %c0_284] : memref<36x126xf32, #tpu.memory_space<vmem>>, vector<1x126xf32>
    %674 = vector.shape_cast %673 : vector<1x126xf32> to vector<126xf32>
    %675 = vector.shape_cast %674 : vector<126xf32> to vector<1x1x126xf32>
    %676 = vector.broadcast %675 : vector<1x1x126xf32> to vector<2x14x126xf32>
    %677 = arith.mulf %660, %676 : vector<2x14x126xf32>
    %678 = arith.addf %653, %677 : vector<2x14x126xf32>
    %c29_285 = arith.constant 29 : index
    %c0_286 = arith.constant 0 : index
    %679 = vector.load %arg7[%c29_285, %c0_286] : memref<36x126xf32, #tpu.memory_space<vmem>>, vector<1x126xf32>
    %680 = vector.shape_cast %679 : vector<1x126xf32> to vector<126xf32>
    %681 = vector.shape_cast %680 : vector<126xf32> to vector<1x1x126xf32>
    %682 = vector.broadcast %681 : vector<1x1x126xf32> to vector<2x14x126xf32>
    %683 = arith.mulf %660, %682 : vector<2x14x126xf32>
    %684 = arith.addf %659, %683 : vector<2x14x126xf32>
    %c0_287 = arith.constant 0 : index
    %c1_288 = arith.constant 1 : index
    %c0_289 = arith.constant 0 : index
    %685 = vector.load %arg12[%c0_287, %c1_288, %c0_289] : memref<2x18x128xf32, #tpu.memory_space<vmem>>, vector<2x14x126xf32>
    %c3_290 = arith.constant 3 : index
    %c0_291 = arith.constant 0 : index
    %686 = vector.load %arg7[%c3_290, %c0_291] : memref<36x126xf32, #tpu.memory_space<vmem>>, vector<1x126xf32>
    %687 = vector.shape_cast %686 : vector<1x126xf32> to vector<126xf32>
    %688 = vector.shape_cast %687 : vector<126xf32> to vector<1x1x126xf32>
    %689 = vector.broadcast %688 : vector<1x1x126xf32> to vector<2x14x126xf32>
    %690 = arith.mulf %685, %689 : vector<2x14x126xf32>
    %691 = arith.addf %666, %690 : vector<2x14x126xf32>
    %c12_292 = arith.constant 12 : index
    %c0_293 = arith.constant 0 : index
    %692 = vector.load %arg7[%c12_292, %c0_293] : memref<36x126xf32, #tpu.memory_space<vmem>>, vector<1x126xf32>
    %693 = vector.shape_cast %692 : vector<1x126xf32> to vector<126xf32>
    %694 = vector.shape_cast %693 : vector<126xf32> to vector<1x1x126xf32>
    %695 = vector.broadcast %694 : vector<1x1x126xf32> to vector<2x14x126xf32>
    %696 = arith.mulf %685, %695 : vector<2x14x126xf32>
    %697 = arith.addf %672, %696 : vector<2x14x126xf32>
    %c21_294 = arith.constant 21 : index
    %c0_295 = arith.constant 0 : index
    %698 = vector.load %arg7[%c21_294, %c0_295] : memref<36x126xf32, #tpu.memory_space<vmem>>, vector<1x126xf32>
    %699 = vector.shape_cast %698 : vector<1x126xf32> to vector<126xf32>
    %700 = vector.shape_cast %699 : vector<126xf32> to vector<1x1x126xf32>
    %701 = vector.broadcast %700 : vector<1x1x126xf32> to vector<2x14x126xf32>
    %702 = arith.mulf %685, %701 : vector<2x14x126xf32>
    %703 = arith.addf %678, %702 : vector<2x14x126xf32>
    %c30_296 = arith.constant 30 : index
    %c0_297 = arith.constant 0 : index
    %704 = vector.load %arg7[%c30_296, %c0_297] : memref<36x126xf32, #tpu.memory_space<vmem>>, vector<1x126xf32>
    %705 = vector.shape_cast %704 : vector<1x126xf32> to vector<126xf32>
    %706 = vector.shape_cast %705 : vector<126xf32> to vector<1x1x126xf32>
    %707 = vector.broadcast %706 : vector<1x1x126xf32> to vector<2x14x126xf32>
    %708 = arith.mulf %685, %707 : vector<2x14x126xf32>
    %709 = arith.addf %684, %708 : vector<2x14x126xf32>
    %c0_298 = arith.constant 0 : index
    %c1_299 = arith.constant 1 : index
    %c1_300 = arith.constant 1 : index
    %710 = vector.load %arg12[%c0_298, %c1_299, %c1_300] : memref<2x18x128xf32, #tpu.memory_space<vmem>>, vector<2x14x126xf32>
    %c4_301 = arith.constant 4 : index
    %c0_302 = arith.constant 0 : index
    %711 = vector.load %arg7[%c4_301, %c0_302] : memref<36x126xf32, #tpu.memory_space<vmem>>, vector<1x126xf32>
    %712 = vector.shape_cast %711 : vector<1x126xf32> to vector<126xf32>
    %713 = vector.shape_cast %712 : vector<126xf32> to vector<1x1x126xf32>
    %714 = vector.broadcast %713 : vector<1x1x126xf32> to vector<2x14x126xf32>
    %715 = arith.mulf %710, %714 : vector<2x14x126xf32>
    %716 = arith.addf %691, %715 : vector<2x14x126xf32>
    %c13_303 = arith.constant 13 : index
    %c0_304 = arith.constant 0 : index
    %717 = vector.load %arg7[%c13_303, %c0_304] : memref<36x126xf32, #tpu.memory_space<vmem>>, vector<1x126xf32>
    %718 = vector.shape_cast %717 : vector<1x126xf32> to vector<126xf32>
    %719 = vector.shape_cast %718 : vector<126xf32> to vector<1x1x126xf32>
    %720 = vector.broadcast %719 : vector<1x1x126xf32> to vector<2x14x126xf32>
    %721 = arith.mulf %710, %720 : vector<2x14x126xf32>
    %722 = arith.addf %697, %721 : vector<2x14x126xf32>
    %c22_305 = arith.constant 22 : index
    %c0_306 = arith.constant 0 : index
    %723 = vector.load %arg7[%c22_305, %c0_306] : memref<36x126xf32, #tpu.memory_space<vmem>>, vector<1x126xf32>
    %724 = vector.shape_cast %723 : vector<1x126xf32> to vector<126xf32>
    %725 = vector.shape_cast %724 : vector<126xf32> to vector<1x1x126xf32>
    %726 = vector.broadcast %725 : vector<1x1x126xf32> to vector<2x14x126xf32>
    %727 = arith.mulf %710, %726 : vector<2x14x126xf32>
    %728 = arith.addf %703, %727 : vector<2x14x126xf32>
    %c31_307 = arith.constant 31 : index
    %c0_308 = arith.constant 0 : index
    %729 = vector.load %arg7[%c31_307, %c0_308] : memref<36x126xf32, #tpu.memory_space<vmem>>, vector<1x126xf32>
    %730 = vector.shape_cast %729 : vector<1x126xf32> to vector<126xf32>
    %731 = vector.shape_cast %730 : vector<126xf32> to vector<1x1x126xf32>
    %732 = vector.broadcast %731 : vector<1x1x126xf32> to vector<2x14x126xf32>
    %733 = arith.mulf %710, %732 : vector<2x14x126xf32>
    %734 = arith.addf %709, %733 : vector<2x14x126xf32>
    %c0_309 = arith.constant 0 : index
    %c1_310 = arith.constant 1 : index
    %c2_311 = arith.constant 2 : index
    %735 = vector.load %arg12[%c0_309, %c1_310, %c2_311] : memref<2x18x128xf32, #tpu.memory_space<vmem>>, vector<2x14x126xf32>
    %c5_312 = arith.constant 5 : index
    %c0_313 = arith.constant 0 : index
    %736 = vector.load %arg7[%c5_312, %c0_313] : memref<36x126xf32, #tpu.memory_space<vmem>>, vector<1x126xf32>
    %737 = vector.shape_cast %736 : vector<1x126xf32> to vector<126xf32>
    %738 = vector.shape_cast %737 : vector<126xf32> to vector<1x1x126xf32>
    %739 = vector.broadcast %738 : vector<1x1x126xf32> to vector<2x14x126xf32>
    %740 = arith.mulf %735, %739 : vector<2x14x126xf32>
    %741 = arith.addf %716, %740 : vector<2x14x126xf32>
    %c14_314 = arith.constant 14 : index
    %c0_315 = arith.constant 0 : index
    %742 = vector.load %arg7[%c14_314, %c0_315] : memref<36x126xf32, #tpu.memory_space<vmem>>, vector<1x126xf32>
    %743 = vector.shape_cast %742 : vector<1x126xf32> to vector<126xf32>
    %744 = vector.shape_cast %743 : vector<126xf32> to vector<1x1x126xf32>
    %745 = vector.broadcast %744 : vector<1x1x126xf32> to vector<2x14x126xf32>
    %746 = arith.mulf %735, %745 : vector<2x14x126xf32>
    %747 = arith.addf %722, %746 : vector<2x14x126xf32>
    %c23_316 = arith.constant 23 : index
    %c0_317 = arith.constant 0 : index
    %748 = vector.load %arg7[%c23_316, %c0_317] : memref<36x126xf32, #tpu.memory_space<vmem>>, vector<1x126xf32>
    %749 = vector.shape_cast %748 : vector<1x126xf32> to vector<126xf32>
    %750 = vector.shape_cast %749 : vector<126xf32> to vector<1x1x126xf32>
    %751 = vector.broadcast %750 : vector<1x1x126xf32> to vector<2x14x126xf32>
    %752 = arith.mulf %735, %751 : vector<2x14x126xf32>
    %753 = arith.addf %728, %752 : vector<2x14x126xf32>
    %c32_318 = arith.constant 32 : index
    %c0_319 = arith.constant 0 : index
    %754 = vector.load %arg7[%c32_318, %c0_319] : memref<36x126xf32, #tpu.memory_space<vmem>>, vector<1x126xf32>
    %755 = vector.shape_cast %754 : vector<1x126xf32> to vector<126xf32>
    %756 = vector.shape_cast %755 : vector<126xf32> to vector<1x1x126xf32>
    %757 = vector.broadcast %756 : vector<1x1x126xf32> to vector<2x14x126xf32>
    %758 = arith.mulf %735, %757 : vector<2x14x126xf32>
    %759 = arith.addf %734, %758 : vector<2x14x126xf32>
    %c0_320 = arith.constant 0 : index
    %c2_321 = arith.constant 2 : index
    %c0_322 = arith.constant 0 : index
    %760 = vector.load %arg12[%c0_320, %c2_321, %c0_322] : memref<2x18x128xf32, #tpu.memory_space<vmem>>, vector<2x14x126xf32>
    %c6_323 = arith.constant 6 : index
    %c0_324 = arith.constant 0 : index
    %761 = vector.load %arg7[%c6_323, %c0_324] : memref<36x126xf32, #tpu.memory_space<vmem>>, vector<1x126xf32>
    %762 = vector.shape_cast %761 : vector<1x126xf32> to vector<126xf32>
    %763 = vector.shape_cast %762 : vector<126xf32> to vector<1x1x126xf32>
    %764 = vector.broadcast %763 : vector<1x1x126xf32> to vector<2x14x126xf32>
    %765 = arith.mulf %760, %764 : vector<2x14x126xf32>
    %766 = arith.addf %741, %765 : vector<2x14x126xf32>
    %c15_325 = arith.constant 15 : index
    %c0_326 = arith.constant 0 : index
    %767 = vector.load %arg7[%c15_325, %c0_326] : memref<36x126xf32, #tpu.memory_space<vmem>>, vector<1x126xf32>
    %768 = vector.shape_cast %767 : vector<1x126xf32> to vector<126xf32>
    %769 = vector.shape_cast %768 : vector<126xf32> to vector<1x1x126xf32>
    %770 = vector.broadcast %769 : vector<1x1x126xf32> to vector<2x14x126xf32>
    %771 = arith.mulf %760, %770 : vector<2x14x126xf32>
    %772 = arith.addf %747, %771 : vector<2x14x126xf32>
    %c24_327 = arith.constant 24 : index
    %c0_328 = arith.constant 0 : index
    %773 = vector.load %arg7[%c24_327, %c0_328] : memref<36x126xf32, #tpu.memory_space<vmem>>, vector<1x126xf32>
    %774 = vector.shape_cast %773 : vector<1x126xf32> to vector<126xf32>
    %775 = vector.shape_cast %774 : vector<126xf32> to vector<1x1x126xf32>
    %776 = vector.broadcast %775 : vector<1x1x126xf32> to vector<2x14x126xf32>
    %777 = arith.mulf %760, %776 : vector<2x14x126xf32>
    %778 = arith.addf %753, %777 : vector<2x14x126xf32>
    %c33_329 = arith.constant 33 : index
    %c0_330 = arith.constant 0 : index
    %779 = vector.load %arg7[%c33_329, %c0_330] : memref<36x126xf32, #tpu.memory_space<vmem>>, vector<1x126xf32>
    %780 = vector.shape_cast %779 : vector<1x126xf32> to vector<126xf32>
    %781 = vector.shape_cast %780 : vector<126xf32> to vector<1x1x126xf32>
    %782 = vector.broadcast %781 : vector<1x1x126xf32> to vector<2x14x126xf32>
    %783 = arith.mulf %760, %782 : vector<2x14x126xf32>
    %784 = arith.addf %759, %783 : vector<2x14x126xf32>
    %c0_331 = arith.constant 0 : index
    %c2_332 = arith.constant 2 : index
    %c1_333 = arith.constant 1 : index
    %785 = vector.load %arg12[%c0_331, %c2_332, %c1_333] : memref<2x18x128xf32, #tpu.memory_space<vmem>>, vector<2x14x126xf32>
    %c7_334 = arith.constant 7 : index
    %c0_335 = arith.constant 0 : index
    %786 = vector.load %arg7[%c7_334, %c0_335] : memref<36x126xf32, #tpu.memory_space<vmem>>, vector<1x126xf32>
    %787 = vector.shape_cast %786 : vector<1x126xf32> to vector<126xf32>
    %788 = vector.shape_cast %787 : vector<126xf32> to vector<1x1x126xf32>
    %789 = vector.broadcast %788 : vector<1x1x126xf32> to vector<2x14x126xf32>
    %790 = arith.mulf %785, %789 : vector<2x14x126xf32>
    %791 = arith.addf %766, %790 : vector<2x14x126xf32>
    %c16_336 = arith.constant 16 : index
    %c0_337 = arith.constant 0 : index
    %792 = vector.load %arg7[%c16_336, %c0_337] : memref<36x126xf32, #tpu.memory_space<vmem>>, vector<1x126xf32>
    %793 = vector.shape_cast %792 : vector<1x126xf32> to vector<126xf32>
    %794 = vector.shape_cast %793 : vector<126xf32> to vector<1x1x126xf32>
    %795 = vector.broadcast %794 : vector<1x1x126xf32> to vector<2x14x126xf32>
    %796 = arith.mulf %785, %795 : vector<2x14x126xf32>
    %797 = arith.addf %772, %796 : vector<2x14x126xf32>
    %c25_338 = arith.constant 25 : index
    %c0_339 = arith.constant 0 : index
    %798 = vector.load %arg7[%c25_338, %c0_339] : memref<36x126xf32, #tpu.memory_space<vmem>>, vector<1x126xf32>
    %799 = vector.shape_cast %798 : vector<1x126xf32> to vector<126xf32>
    %800 = vector.shape_cast %799 : vector<126xf32> to vector<1x1x126xf32>
    %801 = vector.broadcast %800 : vector<1x1x126xf32> to vector<2x14x126xf32>
    %802 = arith.mulf %785, %801 : vector<2x14x126xf32>
    %803 = arith.addf %778, %802 : vector<2x14x126xf32>
    %c34_340 = arith.constant 34 : index
    %c0_341 = arith.constant 0 : index
    %804 = vector.load %arg7[%c34_340, %c0_341] : memref<36x126xf32, #tpu.memory_space<vmem>>, vector<1x126xf32>
    %805 = vector.shape_cast %804 : vector<1x126xf32> to vector<126xf32>
    %806 = vector.shape_cast %805 : vector<126xf32> to vector<1x1x126xf32>
    %807 = vector.broadcast %806 : vector<1x1x126xf32> to vector<2x14x126xf32>
    %808 = arith.mulf %785, %807 : vector<2x14x126xf32>
    %809 = arith.addf %784, %808 : vector<2x14x126xf32>
    %c0_342 = arith.constant 0 : index
    %c2_343 = arith.constant 2 : index
    %c2_344 = arith.constant 2 : index
    %810 = vector.load %arg12[%c0_342, %c2_343, %c2_344] : memref<2x18x128xf32, #tpu.memory_space<vmem>>, vector<2x14x126xf32>
    %c8_345 = arith.constant 8 : index
    %c0_346 = arith.constant 0 : index
    %811 = vector.load %arg7[%c8_345, %c0_346] : memref<36x126xf32, #tpu.memory_space<vmem>>, vector<1x126xf32>
    %812 = vector.shape_cast %811 : vector<1x126xf32> to vector<126xf32>
    %813 = vector.shape_cast %812 : vector<126xf32> to vector<1x1x126xf32>
    %814 = vector.broadcast %813 : vector<1x1x126xf32> to vector<2x14x126xf32>
    %815 = arith.mulf %810, %814 : vector<2x14x126xf32>
    %816 = arith.addf %791, %815 : vector<2x14x126xf32>
    %c17_347 = arith.constant 17 : index
    %c0_348 = arith.constant 0 : index
    %817 = vector.load %arg7[%c17_347, %c0_348] : memref<36x126xf32, #tpu.memory_space<vmem>>, vector<1x126xf32>
    %818 = vector.shape_cast %817 : vector<1x126xf32> to vector<126xf32>
    %819 = vector.shape_cast %818 : vector<126xf32> to vector<1x1x126xf32>
    %820 = vector.broadcast %819 : vector<1x1x126xf32> to vector<2x14x126xf32>
    %821 = arith.mulf %810, %820 : vector<2x14x126xf32>
    %822 = arith.addf %797, %821 : vector<2x14x126xf32>
    %c26_349 = arith.constant 26 : index
    %c0_350 = arith.constant 0 : index
    %823 = vector.load %arg7[%c26_349, %c0_350] : memref<36x126xf32, #tpu.memory_space<vmem>>, vector<1x126xf32>
    %824 = vector.shape_cast %823 : vector<1x126xf32> to vector<126xf32>
    %825 = vector.shape_cast %824 : vector<126xf32> to vector<1x1x126xf32>
    %826 = vector.broadcast %825 : vector<1x1x126xf32> to vector<2x14x126xf32>
    %827 = arith.mulf %810, %826 : vector<2x14x126xf32>
    %828 = arith.addf %803, %827 : vector<2x14x126xf32>
    %c35_351 = arith.constant 35 : index
    %c0_352 = arith.constant 0 : index
    %829 = vector.load %arg7[%c35_351, %c0_352] : memref<36x126xf32, #tpu.memory_space<vmem>>, vector<1x126xf32>
    %830 = vector.shape_cast %829 : vector<1x126xf32> to vector<126xf32>
    %831 = vector.shape_cast %830 : vector<126xf32> to vector<1x1x126xf32>
    %832 = vector.broadcast %831 : vector<1x1x126xf32> to vector<2x14x126xf32>
    %833 = arith.mulf %810, %832 : vector<2x14x126xf32>
    %834 = arith.addf %809, %833 : vector<2x14x126xf32>
    %835 = vector.extract_strided_slice %816 {offsets = [0, 0, 0], sizes = [2, 14, 14], strides = [1, 1, 1]} : vector<2x14x126xf32> to vector<2x14x14xf32>
    %836 = vector.extract_strided_slice %816 {offsets = [0, 0, 32], sizes = [2, 14, 14], strides = [1, 1, 1]} : vector<2x14x126xf32> to vector<2x14x14xf32>
    %837 = arith.addf %835, %836 : vector<2x14x14xf32>
    %838 = vector.extract_strided_slice %816 {offsets = [0, 0, 64], sizes = [2, 14, 14], strides = [1, 1, 1]} : vector<2x14x126xf32> to vector<2x14x14xf32>
    %839 = arith.addf %837, %838 : vector<2x14x14xf32>
    %840 = vector.extract_strided_slice %816 {offsets = [0, 0, 96], sizes = [2, 14, 14], strides = [1, 1, 1]} : vector<2x14x126xf32> to vector<2x14x14xf32>
    %841 = arith.addf %839, %840 : vector<2x14x14xf32>
    %c0_353 = arith.constant 0 : index
    %842 = memref.load %arg8[%c0_353] : memref<4xf32, #tpu.memory_space<smem>>
    %843 = vector.broadcast %842 : f32 to vector<2x14x14xf32>
    %844 = arith.addf %841, %843 : vector<2x14x14xf32>
    %cst_354 = arith.constant 0.000000e+00 : f32
    %845 = vector.broadcast %cst_354 : f32 to vector<2x14x14xf32>
    %846 = arith.maximumf %844, %845 : vector<2x14x14xf32>
    %c0_355 = arith.constant 0 : index
    %c2_356 = arith.constant 2 : index
    %c2_357 = arith.constant 2 : index
    %847 = vector.load %arg13[%c0_355, %c2_356, %c2_357] : memref<2x18x128xf32, #tpu.memory_space<vmem>>, vector<2x14x14xf32>
    tpu.vector_store %arg13[%c0_355, %c2_356, %c2_357], %846 {strides = array<i32>} : memref<2x18x128xf32, #tpu.memory_space<vmem>>, vector<2x14x14xf32>,
    %848 = vector.extract_strided_slice %822 {offsets = [0, 0, 0], sizes = [2, 14, 14], strides = [1, 1, 1]} : vector<2x14x126xf32> to vector<2x14x14xf32>
    %849 = vector.extract_strided_slice %822 {offsets = [0, 0, 32], sizes = [2, 14, 14], strides = [1, 1, 1]} : vector<2x14x126xf32> to vector<2x14x14xf32>
    %850 = arith.addf %848, %849 : vector<2x14x14xf32>
    %851 = vector.extract_strided_slice %822 {offsets = [0, 0, 64], sizes = [2, 14, 14], strides = [1, 1, 1]} : vector<2x14x126xf32> to vector<2x14x14xf32>
    %852 = arith.addf %850, %851 : vector<2x14x14xf32>
    %853 = vector.extract_strided_slice %822 {offsets = [0, 0, 96], sizes = [2, 14, 14], strides = [1, 1, 1]} : vector<2x14x126xf32> to vector<2x14x14xf32>
    %854 = arith.addf %852, %853 : vector<2x14x14xf32>
    %c1_358 = arith.constant 1 : index
    %855 = memref.load %arg8[%c1_358] : memref<4xf32, #tpu.memory_space<smem>>
    %856 = vector.broadcast %855 : f32 to vector<2x14x14xf32>
    %857 = arith.addf %854, %856 : vector<2x14x14xf32>
    %cst_359 = arith.constant 0.000000e+00 : f32
    %858 = vector.broadcast %cst_359 : f32 to vector<2x14x14xf32>
    %859 = arith.maximumf %857, %858 : vector<2x14x14xf32>
    %c0_360 = arith.constant 0 : index
    %c2_361 = arith.constant 2 : index
    %c34_362 = arith.constant 34 : index
    %860 = vector.load %arg13[%c0_360, %c2_361, %c34_362] : memref<2x18x128xf32, #tpu.memory_space<vmem>>, vector<2x14x14xf32>
    tpu.vector_store %arg13[%c0_360, %c2_361, %c34_362], %859 {strides = array<i32>} : memref<2x18x128xf32, #tpu.memory_space<vmem>>, vector<2x14x14xf32>,
    %861 = vector.extract_strided_slice %828 {offsets = [0, 0, 0], sizes = [2, 14, 14], strides = [1, 1, 1]} : vector<2x14x126xf32> to vector<2x14x14xf32>
    %862 = vector.extract_strided_slice %828 {offsets = [0, 0, 32], sizes = [2, 14, 14], strides = [1, 1, 1]} : vector<2x14x126xf32> to vector<2x14x14xf32>
    %863 = arith.addf %861, %862 : vector<2x14x14xf32>
    %864 = vector.extract_strided_slice %828 {offsets = [0, 0, 64], sizes = [2, 14, 14], strides = [1, 1, 1]} : vector<2x14x126xf32> to vector<2x14x14xf32>
    %865 = arith.addf %863, %864 : vector<2x14x14xf32>
    %866 = vector.extract_strided_slice %828 {offsets = [0, 0, 96], sizes = [2, 14, 14], strides = [1, 1, 1]} : vector<2x14x126xf32> to vector<2x14x14xf32>
    %867 = arith.addf %865, %866 : vector<2x14x14xf32>
    %c2_363 = arith.constant 2 : index
    %868 = memref.load %arg8[%c2_363] : memref<4xf32, #tpu.memory_space<smem>>
    %869 = vector.broadcast %868 : f32 to vector<2x14x14xf32>
    %870 = arith.addf %867, %869 : vector<2x14x14xf32>
    %cst_364 = arith.constant 0.000000e+00 : f32
    %871 = vector.broadcast %cst_364 : f32 to vector<2x14x14xf32>
    %872 = arith.maximumf %870, %871 : vector<2x14x14xf32>
    %c0_365 = arith.constant 0 : index
    %c2_366 = arith.constant 2 : index
    %c66_367 = arith.constant 66 : index
    %873 = vector.load %arg13[%c0_365, %c2_366, %c66_367] : memref<2x18x128xf32, #tpu.memory_space<vmem>>, vector<2x14x14xf32>
    tpu.vector_store %arg13[%c0_365, %c2_366, %c66_367], %872 {strides = array<i32>} : memref<2x18x128xf32, #tpu.memory_space<vmem>>, vector<2x14x14xf32>,
    %874 = vector.extract_strided_slice %834 {offsets = [0, 0, 0], sizes = [2, 14, 14], strides = [1, 1, 1]} : vector<2x14x126xf32> to vector<2x14x14xf32>
    %875 = vector.extract_strided_slice %834 {offsets = [0, 0, 32], sizes = [2, 14, 14], strides = [1, 1, 1]} : vector<2x14x126xf32> to vector<2x14x14xf32>
    %876 = arith.addf %874, %875 : vector<2x14x14xf32>
    %877 = vector.extract_strided_slice %834 {offsets = [0, 0, 64], sizes = [2, 14, 14], strides = [1, 1, 1]} : vector<2x14x126xf32> to vector<2x14x14xf32>
    %878 = arith.addf %876, %877 : vector<2x14x14xf32>
    %879 = vector.extract_strided_slice %834 {offsets = [0, 0, 96], sizes = [2, 14, 14], strides = [1, 1, 1]} : vector<2x14x126xf32> to vector<2x14x14xf32>
    %880 = arith.addf %878, %879 : vector<2x14x14xf32>
    %c3_368 = arith.constant 3 : index
    %881 = memref.load %arg8[%c3_368] : memref<4xf32, #tpu.memory_space<smem>>
    %882 = vector.broadcast %881 : f32 to vector<2x14x14xf32>
    %883 = arith.addf %880, %882 : vector<2x14x14xf32>
    %cst_369 = arith.constant 0.000000e+00 : f32
    %884 = vector.broadcast %cst_369 : f32 to vector<2x14x14xf32>
    %885 = arith.maximumf %883, %884 : vector<2x14x14xf32>
    %c0_370 = arith.constant 0 : index
    %c2_371 = arith.constant 2 : index
    %c98_372 = arith.constant 98 : index
    %886 = vector.load %arg13[%c0_370, %c2_371, %c98_372] : memref<2x18x128xf32, #tpu.memory_space<vmem>>, vector<2x14x14xf32>
    tpu.vector_store %arg13[%c0_370, %c2_371, %c98_372], %885 {strides = array<i32>} : memref<2x18x128xf32, #tpu.memory_space<vmem>>, vector<2x14x14xf32>,
    %cst_373 = arith.constant 0.000000e+00 : f32
    %887 = vector.broadcast %cst_373 : f32 to vector<2x16x126xf32>
    %cst_374 = arith.constant 0.000000e+00 : f32
    %888 = vector.broadcast %cst_374 : f32 to vector<2x16x126xf32>
    %cst_375 = arith.constant 0.000000e+00 : f32
    %889 = vector.broadcast %cst_375 : f32 to vector<2x16x126xf32>
    %c0_376 = arith.constant 0 : index
    %c0_377 = arith.constant 0 : index
    %c0_378 = arith.constant 0 : index
    %890 = vector.load %arg13[%c0_376, %c0_377, %c0_378] : memref<2x18x128xf32, #tpu.memory_space<vmem>>, vector<2x16x126xf32>
    %c0_379 = arith.constant 0 : index
    %c0_380 = arith.constant 0 : index
    %891 = vector.load %arg9[%c0_379, %c0_380] : memref<27x126xf32, #tpu.memory_space<vmem>>, vector<1x126xf32>
    %892 = vector.shape_cast %891 : vector<1x126xf32> to vector<126xf32>
    %893 = vector.shape_cast %892 : vector<126xf32> to vector<1x1x126xf32>
    %894 = vector.broadcast %893 : vector<1x1x126xf32> to vector<2x16x126xf32>
    %895 = arith.mulf %890, %894 : vector<2x16x126xf32>
    %896 = arith.addf %887, %895 : vector<2x16x126xf32>
    %c9_381 = arith.constant 9 : index
    %c0_382 = arith.constant 0 : index
    %897 = vector.load %arg9[%c9_381, %c0_382] : memref<27x126xf32, #tpu.memory_space<vmem>>, vector<1x126xf32>
    %898 = vector.shape_cast %897 : vector<1x126xf32> to vector<126xf32>
    %899 = vector.shape_cast %898 : vector<126xf32> to vector<1x1x126xf32>
    %900 = vector.broadcast %899 : vector<1x1x126xf32> to vector<2x16x126xf32>
    %901 = arith.mulf %890, %900 : vector<2x16x126xf32>
    %902 = arith.addf %888, %901 : vector<2x16x126xf32>
    %c18_383 = arith.constant 18 : index
    %c0_384 = arith.constant 0 : index
    %903 = vector.load %arg9[%c18_383, %c0_384] : memref<27x126xf32, #tpu.memory_space<vmem>>, vector<1x126xf32>
    %904 = vector.shape_cast %903 : vector<1x126xf32> to vector<126xf32>
    %905 = vector.shape_cast %904 : vector<126xf32> to vector<1x1x126xf32>
    %906 = vector.broadcast %905 : vector<1x1x126xf32> to vector<2x16x126xf32>
    %907 = arith.mulf %890, %906 : vector<2x16x126xf32>
    %908 = arith.addf %889, %907 : vector<2x16x126xf32>
    %c0_385 = arith.constant 0 : index
    %c0_386 = arith.constant 0 : index
    %c1_387 = arith.constant 1 : index
    %909 = vector.load %arg13[%c0_385, %c0_386, %c1_387] : memref<2x18x128xf32, #tpu.memory_space<vmem>>, vector<2x16x126xf32>
    %c1_388 = arith.constant 1 : index
    %c0_389 = arith.constant 0 : index
    %910 = vector.load %arg9[%c1_388, %c0_389] : memref<27x126xf32, #tpu.memory_space<vmem>>, vector<1x126xf32>
    %911 = vector.shape_cast %910 : vector<1x126xf32> to vector<126xf32>
    %912 = vector.shape_cast %911 : vector<126xf32> to vector<1x1x126xf32>
    %913 = vector.broadcast %912 : vector<1x1x126xf32> to vector<2x16x126xf32>
    %914 = arith.mulf %909, %913 : vector<2x16x126xf32>
    %915 = arith.addf %896, %914 : vector<2x16x126xf32>
    %c10_390 = arith.constant 10 : index
    %c0_391 = arith.constant 0 : index
    %916 = vector.load %arg9[%c10_390, %c0_391] : memref<27x126xf32, #tpu.memory_space<vmem>>, vector<1x126xf32>
    %917 = vector.shape_cast %916 : vector<1x126xf32> to vector<126xf32>
    %918 = vector.shape_cast %917 : vector<126xf32> to vector<1x1x126xf32>
    %919 = vector.broadcast %918 : vector<1x1x126xf32> to vector<2x16x126xf32>
    %920 = arith.mulf %909, %919 : vector<2x16x126xf32>
    %921 = arith.addf %902, %920 : vector<2x16x126xf32>
    %c19_392 = arith.constant 19 : index
    %c0_393 = arith.constant 0 : index
    %922 = vector.load %arg9[%c19_392, %c0_393] : memref<27x126xf32, #tpu.memory_space<vmem>>, vector<1x126xf32>
    %923 = vector.shape_cast %922 : vector<1x126xf32> to vector<126xf32>
    %924 = vector.shape_cast %923 : vector<126xf32> to vector<1x1x126xf32>
    %925 = vector.broadcast %924 : vector<1x1x126xf32> to vector<2x16x126xf32>
    %926 = arith.mulf %909, %925 : vector<2x16x126xf32>
    %927 = arith.addf %908, %926 : vector<2x16x126xf32>
    %c0_394 = arith.constant 0 : index
    %c0_395 = arith.constant 0 : index
    %c2_396 = arith.constant 2 : index
    %928 = vector.load %arg13[%c0_394, %c0_395, %c2_396] : memref<2x18x128xf32, #tpu.memory_space<vmem>>, vector<2x16x126xf32>
    %c2_397 = arith.constant 2 : index
    %c0_398 = arith.constant 0 : index
    %929 = vector.load %arg9[%c2_397, %c0_398] : memref<27x126xf32, #tpu.memory_space<vmem>>, vector<1x126xf32>
    %930 = vector.shape_cast %929 : vector<1x126xf32> to vector<126xf32>
    %931 = vector.shape_cast %930 : vector<126xf32> to vector<1x1x126xf32>
    %932 = vector.broadcast %931 : vector<1x1x126xf32> to vector<2x16x126xf32>
    %933 = arith.mulf %928, %932 : vector<2x16x126xf32>
    %934 = arith.addf %915, %933 : vector<2x16x126xf32>
    %c11_399 = arith.constant 11 : index
    %c0_400 = arith.constant 0 : index
    %935 = vector.load %arg9[%c11_399, %c0_400] : memref<27x126xf32, #tpu.memory_space<vmem>>, vector<1x126xf32>
    %936 = vector.shape_cast %935 : vector<1x126xf32> to vector<126xf32>
    %937 = vector.shape_cast %936 : vector<126xf32> to vector<1x1x126xf32>
    %938 = vector.broadcast %937 : vector<1x1x126xf32> to vector<2x16x126xf32>
    %939 = arith.mulf %928, %938 : vector<2x16x126xf32>
    %940 = arith.addf %921, %939 : vector<2x16x126xf32>
    %c20_401 = arith.constant 20 : index
    %c0_402 = arith.constant 0 : index
    %941 = vector.load %arg9[%c20_401, %c0_402] : memref<27x126xf32, #tpu.memory_space<vmem>>, vector<1x126xf32>
    %942 = vector.shape_cast %941 : vector<1x126xf32> to vector<126xf32>
    %943 = vector.shape_cast %942 : vector<126xf32> to vector<1x1x126xf32>
    %944 = vector.broadcast %943 : vector<1x1x126xf32> to vector<2x16x126xf32>
    %945 = arith.mulf %928, %944 : vector<2x16x126xf32>
    %946 = arith.addf %927, %945 : vector<2x16x126xf32>
    %c0_403 = arith.constant 0 : index
    %c1_404 = arith.constant 1 : index
    %c0_405 = arith.constant 0 : index
    %947 = vector.load %arg13[%c0_403, %c1_404, %c0_405] : memref<2x18x128xf32, #tpu.memory_space<vmem>>, vector<2x16x126xf32>
    %c3_406 = arith.constant 3 : index
    %c0_407 = arith.constant 0 : index
    %948 = vector.load %arg9[%c3_406, %c0_407] : memref<27x126xf32, #tpu.memory_space<vmem>>, vector<1x126xf32>
    %949 = vector.shape_cast %948 : vector<1x126xf32> to vector<126xf32>
    %950 = vector.shape_cast %949 : vector<126xf32> to vector<1x1x126xf32>
    %951 = vector.broadcast %950 : vector<1x1x126xf32> to vector<2x16x126xf32>
    %952 = arith.mulf %947, %951 : vector<2x16x126xf32>
    %953 = arith.addf %934, %952 : vector<2x16x126xf32>
    %c12_408 = arith.constant 12 : index
    %c0_409 = arith.constant 0 : index
    %954 = vector.load %arg9[%c12_408, %c0_409] : memref<27x126xf32, #tpu.memory_space<vmem>>, vector<1x126xf32>
    %955 = vector.shape_cast %954 : vector<1x126xf32> to vector<126xf32>
    %956 = vector.shape_cast %955 : vector<126xf32> to vector<1x1x126xf32>
    %957 = vector.broadcast %956 : vector<1x1x126xf32> to vector<2x16x126xf32>
    %958 = arith.mulf %947, %957 : vector<2x16x126xf32>
    %959 = arith.addf %940, %958 : vector<2x16x126xf32>
    %c21_410 = arith.constant 21 : index
    %c0_411 = arith.constant 0 : index
    %960 = vector.load %arg9[%c21_410, %c0_411] : memref<27x126xf32, #tpu.memory_space<vmem>>, vector<1x126xf32>
    %961 = vector.shape_cast %960 : vector<1x126xf32> to vector<126xf32>
    %962 = vector.shape_cast %961 : vector<126xf32> to vector<1x1x126xf32>
    %963 = vector.broadcast %962 : vector<1x1x126xf32> to vector<2x16x126xf32>
    %964 = arith.mulf %947, %963 : vector<2x16x126xf32>
    %965 = arith.addf %946, %964 : vector<2x16x126xf32>
    %c0_412 = arith.constant 0 : index
    %c1_413 = arith.constant 1 : index
    %c1_414 = arith.constant 1 : index
    %966 = vector.load %arg13[%c0_412, %c1_413, %c1_414] : memref<2x18x128xf32, #tpu.memory_space<vmem>>, vector<2x16x126xf32>
    %c4_415 = arith.constant 4 : index
    %c0_416 = arith.constant 0 : index
    %967 = vector.load %arg9[%c4_415, %c0_416] : memref<27x126xf32, #tpu.memory_space<vmem>>, vector<1x126xf32>
    %968 = vector.shape_cast %967 : vector<1x126xf32> to vector<126xf32>
    %969 = vector.shape_cast %968 : vector<126xf32> to vector<1x1x126xf32>
    %970 = vector.broadcast %969 : vector<1x1x126xf32> to vector<2x16x126xf32>
    %971 = arith.mulf %966, %970 : vector<2x16x126xf32>
    %972 = arith.addf %953, %971 : vector<2x16x126xf32>
    %c13_417 = arith.constant 13 : index
    %c0_418 = arith.constant 0 : index
    %973 = vector.load %arg9[%c13_417, %c0_418] : memref<27x126xf32, #tpu.memory_space<vmem>>, vector<1x126xf32>
    %974 = vector.shape_cast %973 : vector<1x126xf32> to vector<126xf32>
    %975 = vector.shape_cast %974 : vector<126xf32> to vector<1x1x126xf32>
    %976 = vector.broadcast %975 : vector<1x1x126xf32> to vector<2x16x126xf32>
    %977 = arith.mulf %966, %976 : vector<2x16x126xf32>
    %978 = arith.addf %959, %977 : vector<2x16x126xf32>
    %c22_419 = arith.constant 22 : index
    %c0_420 = arith.constant 0 : index
    %979 = vector.load %arg9[%c22_419, %c0_420] : memref<27x126xf32, #tpu.memory_space<vmem>>, vector<1x126xf32>
    %980 = vector.shape_cast %979 : vector<1x126xf32> to vector<126xf32>
    %981 = vector.shape_cast %980 : vector<126xf32> to vector<1x1x126xf32>
    %982 = vector.broadcast %981 : vector<1x1x126xf32> to vector<2x16x126xf32>
    %983 = arith.mulf %966, %982 : vector<2x16x126xf32>
    %984 = arith.addf %965, %983 : vector<2x16x126xf32>
    %c0_421 = arith.constant 0 : index
    %c1_422 = arith.constant 1 : index
    %c2_423 = arith.constant 2 : index
    %985 = vector.load %arg13[%c0_421, %c1_422, %c2_423] : memref<2x18x128xf32, #tpu.memory_space<vmem>>, vector<2x16x126xf32>
    %c5_424 = arith.constant 5 : index
    %c0_425 = arith.constant 0 : index
    %986 = vector.load %arg9[%c5_424, %c0_425] : memref<27x126xf32, #tpu.memory_space<vmem>>, vector<1x126xf32>
    %987 = vector.shape_cast %986 : vector<1x126xf32> to vector<126xf32>
    %988 = vector.shape_cast %987 : vector<126xf32> to vector<1x1x126xf32>
    %989 = vector.broadcast %988 : vector<1x1x126xf32> to vector<2x16x126xf32>
    %990 = arith.mulf %985, %989 : vector<2x16x126xf32>
    %991 = arith.addf %972, %990 : vector<2x16x126xf32>
    %c14_426 = arith.constant 14 : index
    %c0_427 = arith.constant 0 : index
    %992 = vector.load %arg9[%c14_426, %c0_427] : memref<27x126xf32, #tpu.memory_space<vmem>>, vector<1x126xf32>
    %993 = vector.shape_cast %992 : vector<1x126xf32> to vector<126xf32>
    %994 = vector.shape_cast %993 : vector<126xf32> to vector<1x1x126xf32>
    %995 = vector.broadcast %994 : vector<1x1x126xf32> to vector<2x16x126xf32>
    %996 = arith.mulf %985, %995 : vector<2x16x126xf32>
    %997 = arith.addf %978, %996 : vector<2x16x126xf32>
    %c23_428 = arith.constant 23 : index
    %c0_429 = arith.constant 0 : index
    %998 = vector.load %arg9[%c23_428, %c0_429] : memref<27x126xf32, #tpu.memory_space<vmem>>, vector<1x126xf32>
    %999 = vector.shape_cast %998 : vector<1x126xf32> to vector<126xf32>
    %1000 = vector.shape_cast %999 : vector<126xf32> to vector<1x1x126xf32>
    %1001 = vector.broadcast %1000 : vector<1x1x126xf32> to vector<2x16x126xf32>
    %1002 = arith.mulf %985, %1001 : vector<2x16x126xf32>
    %1003 = arith.addf %984, %1002 : vector<2x16x126xf32>
    %c0_430 = arith.constant 0 : index
    %c2_431 = arith.constant 2 : index
    %c0_432 = arith.constant 0 : index
    %1004 = vector.load %arg13[%c0_430, %c2_431, %c0_432] : memref<2x18x128xf32, #tpu.memory_space<vmem>>, vector<2x16x126xf32>
    %c6_433 = arith.constant 6 : index
    %c0_434 = arith.constant 0 : index
    %1005 = vector.load %arg9[%c6_433, %c0_434] : memref<27x126xf32, #tpu.memory_space<vmem>>, vector<1x126xf32>
    %1006 = vector.shape_cast %1005 : vector<1x126xf32> to vector<126xf32>
    %1007 = vector.shape_cast %1006 : vector<126xf32> to vector<1x1x126xf32>
    %1008 = vector.broadcast %1007 : vector<1x1x126xf32> to vector<2x16x126xf32>
    %1009 = arith.mulf %1004, %1008 : vector<2x16x126xf32>
    %1010 = arith.addf %991, %1009 : vector<2x16x126xf32>
    %c15_435 = arith.constant 15 : index
    %c0_436 = arith.constant 0 : index
    %1011 = vector.load %arg9[%c15_435, %c0_436] : memref<27x126xf32, #tpu.memory_space<vmem>>, vector<1x126xf32>
    %1012 = vector.shape_cast %1011 : vector<1x126xf32> to vector<126xf32>
    %1013 = vector.shape_cast %1012 : vector<126xf32> to vector<1x1x126xf32>
    %1014 = vector.broadcast %1013 : vector<1x1x126xf32> to vector<2x16x126xf32>
    %1015 = arith.mulf %1004, %1014 : vector<2x16x126xf32>
    %1016 = arith.addf %997, %1015 : vector<2x16x126xf32>
    %c24_437 = arith.constant 24 : index
    %c0_438 = arith.constant 0 : index
    %1017 = vector.load %arg9[%c24_437, %c0_438] : memref<27x126xf32, #tpu.memory_space<vmem>>, vector<1x126xf32>
    %1018 = vector.shape_cast %1017 : vector<1x126xf32> to vector<126xf32>
    %1019 = vector.shape_cast %1018 : vector<126xf32> to vector<1x1x126xf32>
    %1020 = vector.broadcast %1019 : vector<1x1x126xf32> to vector<2x16x126xf32>
    %1021 = arith.mulf %1004, %1020 : vector<2x16x126xf32>
    %1022 = arith.addf %1003, %1021 : vector<2x16x126xf32>
    %c0_439 = arith.constant 0 : index
    %c2_440 = arith.constant 2 : index
    %c1_441 = arith.constant 1 : index
    %1023 = vector.load %arg13[%c0_439, %c2_440, %c1_441] : memref<2x18x128xf32, #tpu.memory_space<vmem>>, vector<2x16x126xf32>
    %c7_442 = arith.constant 7 : index
    %c0_443 = arith.constant 0 : index
    %1024 = vector.load %arg9[%c7_442, %c0_443] : memref<27x126xf32, #tpu.memory_space<vmem>>, vector<1x126xf32>
    %1025 = vector.shape_cast %1024 : vector<1x126xf32> to vector<126xf32>
    %1026 = vector.shape_cast %1025 : vector<126xf32> to vector<1x1x126xf32>
    %1027 = vector.broadcast %1026 : vector<1x1x126xf32> to vector<2x16x126xf32>
    %1028 = arith.mulf %1023, %1027 : vector<2x16x126xf32>
    %1029 = arith.addf %1010, %1028 : vector<2x16x126xf32>
    %c16_444 = arith.constant 16 : index
    %c0_445 = arith.constant 0 : index
    %1030 = vector.load %arg9[%c16_444, %c0_445] : memref<27x126xf32, #tpu.memory_space<vmem>>, vector<1x126xf32>
    %1031 = vector.shape_cast %1030 : vector<1x126xf32> to vector<126xf32>
    %1032 = vector.shape_cast %1031 : vector<126xf32> to vector<1x1x126xf32>
    %1033 = vector.broadcast %1032 : vector<1x1x126xf32> to vector<2x16x126xf32>
    %1034 = arith.mulf %1023, %1033 : vector<2x16x126xf32>
    %1035 = arith.addf %1016, %1034 : vector<2x16x126xf32>
    %c25_446 = arith.constant 25 : index
    %c0_447 = arith.constant 0 : index
    %1036 = vector.load %arg9[%c25_446, %c0_447] : memref<27x126xf32, #tpu.memory_space<vmem>>, vector<1x126xf32>
    %1037 = vector.shape_cast %1036 : vector<1x126xf32> to vector<126xf32>
    %1038 = vector.shape_cast %1037 : vector<126xf32> to vector<1x1x126xf32>
    %1039 = vector.broadcast %1038 : vector<1x1x126xf32> to vector<2x16x126xf32>
    %1040 = arith.mulf %1023, %1039 : vector<2x16x126xf32>
    %1041 = arith.addf %1022, %1040 : vector<2x16x126xf32>
    %c0_448 = arith.constant 0 : index
    %c2_449 = arith.constant 2 : index
    %c2_450 = arith.constant 2 : index
    %1042 = vector.load %arg13[%c0_448, %c2_449, %c2_450] : memref<2x18x128xf32, #tpu.memory_space<vmem>>, vector<2x16x126xf32>
    %c8_451 = arith.constant 8 : index
    %c0_452 = arith.constant 0 : index
    %1043 = vector.load %arg9[%c8_451, %c0_452] : memref<27x126xf32, #tpu.memory_space<vmem>>, vector<1x126xf32>
    %1044 = vector.shape_cast %1043 : vector<1x126xf32> to vector<126xf32>
    %1045 = vector.shape_cast %1044 : vector<126xf32> to vector<1x1x126xf32>
    %1046 = vector.broadcast %1045 : vector<1x1x126xf32> to vector<2x16x126xf32>
    %1047 = arith.mulf %1042, %1046 : vector<2x16x126xf32>
    %1048 = arith.addf %1029, %1047 : vector<2x16x126xf32>
    %c17_453 = arith.constant 17 : index
    %c0_454 = arith.constant 0 : index
    %1049 = vector.load %arg9[%c17_453, %c0_454] : memref<27x126xf32, #tpu.memory_space<vmem>>, vector<1x126xf32>
    %1050 = vector.shape_cast %1049 : vector<1x126xf32> to vector<126xf32>
    %1051 = vector.shape_cast %1050 : vector<126xf32> to vector<1x1x126xf32>
    %1052 = vector.broadcast %1051 : vector<1x1x126xf32> to vector<2x16x126xf32>
    %1053 = arith.mulf %1042, %1052 : vector<2x16x126xf32>
    %1054 = arith.addf %1035, %1053 : vector<2x16x126xf32>
    %c26_455 = arith.constant 26 : index
    %c0_456 = arith.constant 0 : index
    %1055 = vector.load %arg9[%c26_455, %c0_456] : memref<27x126xf32, #tpu.memory_space<vmem>>, vector<1x126xf32>
    %1056 = vector.shape_cast %1055 : vector<1x126xf32> to vector<126xf32>
    %1057 = vector.shape_cast %1056 : vector<126xf32> to vector<1x1x126xf32>
    %1058 = vector.broadcast %1057 : vector<1x1x126xf32> to vector<2x16x126xf32>
    %1059 = arith.mulf %1042, %1058 : vector<2x16x126xf32>
    %1060 = arith.addf %1041, %1059 : vector<2x16x126xf32>
    %1061 = vector.extract_strided_slice %1048 {offsets = [0, 0, 0], sizes = [2, 16, 16], strides = [1, 1, 1]} : vector<2x16x126xf32> to vector<2x16x16xf32>
    %1062 = vector.extract_strided_slice %1048 {offsets = [0, 0, 32], sizes = [2, 16, 16], strides = [1, 1, 1]} : vector<2x16x126xf32> to vector<2x16x16xf32>
    %1063 = arith.addf %1061, %1062 : vector<2x16x16xf32>
    %1064 = vector.extract_strided_slice %1048 {offsets = [0, 0, 64], sizes = [2, 16, 16], strides = [1, 1, 1]} : vector<2x16x126xf32> to vector<2x16x16xf32>
    %1065 = arith.addf %1063, %1064 : vector<2x16x16xf32>
    %1066 = vector.extract_strided_slice %1048 {offsets = [0, 0, 96], sizes = [2, 16, 16], strides = [1, 1, 1]} : vector<2x16x126xf32> to vector<2x16x16xf32>
    %1067 = arith.addf %1065, %1066 : vector<2x16x16xf32>
    %c0_457 = arith.constant 0 : index
    %1068 = memref.load %arg10[%c0_457] : memref<3xf32, #tpu.memory_space<smem>>
    %1069 = vector.broadcast %1068 : f32 to vector<2x16x16xf32>
    %1070 = arith.addf %1067, %1069 : vector<2x16x16xf32>
    %cst_458 = arith.constant 0.000000e+00 : f32
    %1071 = vector.broadcast %cst_458 : f32 to vector<2x16x16xf32>
    %1072 = arith.maximumf %1070, %1071 : vector<2x16x16xf32>
    %c0_459 = arith.constant 0 : index
    %c0_460 = arith.constant 0 : index
    %c0_461 = arith.constant 0 : index
    %1073 = vector.load %arg11[%c0_459, %c0_460, %c0_461] : memref<2x16x128xf32, #tpu.memory_space<vmem>>, vector<2x16x16xf32>
    tpu.vector_store %arg11[%c0_459, %c0_460, %c0_461], %1072 {strides = array<i32>} : memref<2x16x128xf32, #tpu.memory_space<vmem>>, vector<2x16x16xf32>,
    %1074 = vector.extract_strided_slice %1054 {offsets = [0, 0, 0], sizes = [2, 16, 16], strides = [1, 1, 1]} : vector<2x16x126xf32> to vector<2x16x16xf32>
    %1075 = vector.extract_strided_slice %1054 {offsets = [0, 0, 32], sizes = [2, 16, 16], strides = [1, 1, 1]} : vector<2x16x126xf32> to vector<2x16x16xf32>
    %1076 = arith.addf %1074, %1075 : vector<2x16x16xf32>
    %1077 = vector.extract_strided_slice %1054 {offsets = [0, 0, 64], sizes = [2, 16, 16], strides = [1, 1, 1]} : vector<2x16x126xf32> to vector<2x16x16xf32>
    %1078 = arith.addf %1076, %1077 : vector<2x16x16xf32>
    %1079 = vector.extract_strided_slice %1054 {offsets = [0, 0, 96], sizes = [2, 16, 16], strides = [1, 1, 1]} : vector<2x16x126xf32> to vector<2x16x16xf32>
    %1080 = arith.addf %1078, %1079 : vector<2x16x16xf32>
    %c1_462 = arith.constant 1 : index
    %1081 = memref.load %arg10[%c1_462] : memref<3xf32, #tpu.memory_space<smem>>
    %1082 = vector.broadcast %1081 : f32 to vector<2x16x16xf32>
    %1083 = arith.addf %1080, %1082 : vector<2x16x16xf32>
    %cst_463 = arith.constant 0.000000e+00 : f32
    %1084 = vector.broadcast %cst_463 : f32 to vector<2x16x16xf32>
    %1085 = arith.maximumf %1083, %1084 : vector<2x16x16xf32>
    %c0_464 = arith.constant 0 : index
    %c0_465 = arith.constant 0 : index
    %c32_466 = arith.constant 32 : index
    %1086 = vector.load %arg11[%c0_464, %c0_465, %c32_466] : memref<2x16x128xf32, #tpu.memory_space<vmem>>, vector<2x16x16xf32>
    tpu.vector_store %arg11[%c0_464, %c0_465, %c32_466], %1085 {strides = array<i32>} : memref<2x16x128xf32, #tpu.memory_space<vmem>>, vector<2x16x16xf32>,
    %1087 = vector.extract_strided_slice %1060 {offsets = [0, 0, 0], sizes = [2, 16, 16], strides = [1, 1, 1]} : vector<2x16x126xf32> to vector<2x16x16xf32>
    %1088 = vector.extract_strided_slice %1060 {offsets = [0, 0, 32], sizes = [2, 16, 16], strides = [1, 1, 1]} : vector<2x16x126xf32> to vector<2x16x16xf32>
    %1089 = arith.addf %1087, %1088 : vector<2x16x16xf32>
    %1090 = vector.extract_strided_slice %1060 {offsets = [0, 0, 64], sizes = [2, 16, 16], strides = [1, 1, 1]} : vector<2x16x126xf32> to vector<2x16x16xf32>
    %1091 = arith.addf %1089, %1090 : vector<2x16x16xf32>
    %1092 = vector.extract_strided_slice %1060 {offsets = [0, 0, 96], sizes = [2, 16, 16], strides = [1, 1, 1]} : vector<2x16x126xf32> to vector<2x16x16xf32>
    %1093 = arith.addf %1091, %1092 : vector<2x16x16xf32>
    %c2_467 = arith.constant 2 : index
    %1094 = memref.load %arg10[%c2_467] : memref<3xf32, #tpu.memory_space<smem>>
    %1095 = vector.broadcast %1094 : f32 to vector<2x16x16xf32>
    %1096 = arith.addf %1093, %1095 : vector<2x16x16xf32>
    %cst_468 = arith.constant 0.000000e+00 : f32
    %1097 = vector.broadcast %cst_468 : f32 to vector<2x16x16xf32>
    %1098 = arith.maximumf %1096, %1097 : vector<2x16x16xf32>
    %c0_469 = arith.constant 0 : index
    %c0_470 = arith.constant 0 : index
    %c64 = arith.constant 64 : index
    %1099 = vector.load %arg11[%c0_469, %c0_470, %c64] : memref<2x16x128xf32, #tpu.memory_space<vmem>>, vector<2x16x16xf32>
    tpu.vector_store %arg11[%c0_469, %c0_470, %c64], %1098 {strides = array<i32>} : memref<2x16x128xf32, #tpu.memory_space<vmem>>, vector<2x16x16xf32>,
    return
  }
}

</mosaic_0001>

<llo_original>
// kernel: _lambda_.1
$region0: #{_lambda_.1}
  #allocation0 [shape = 'u32[]', space=smem, size = 0x4, offset = 0x4, fixed_abs, tag = 'smem constant byte address 0x4 - core index']
  #allocation1 [shape = 'u32[144,128]{1,0:T(1,128)}', space=vmem, size = 0x12000, scoped, tag = 'internal scratch']
  #allocation2 [shape = 'f32[2,18,128]{2,1,0:T(8,128)}', space=vmem, size = 0x6000, scoped, tag = 'scratch operand']
  #allocation3 [shape = 'f32[2,18,128]{2,1,0:T(8,128)}', space=vmem, size = 0x6000, scoped, tag = 'scratch operand']
  %s0 = inlined_call_operand.hbm [shape: f32[2,32], index: 0, kind: input, shape index: {}]
  %s1 = inlined_call_operand.hbm [shape: f32[32,1024], index: 1, kind: input, shape index: {}]
  %s2 = inlined_call_operand.hbm [shape: f32[1,1024], index: 2, kind: input, shape index: {}]
  %s3 = inlined_call_operand.hbm [shape: f32[36,126], index: 3, kind: input, shape index: {}]
  %s4 = inlined_call_operand.vmem [shape: f32[4], index: 4, kind: input, shape index: {}]
  %s5 = inlined_call_operand.hbm [shape: f32[36,126], index: 5, kind: input, shape index: {}]
  %s6 = inlined_call_operand.vmem [shape: f32[4], index: 6, kind: input, shape index: {}]
  %s7 = inlined_call_operand.hbm [shape: f32[36,126], index: 7, kind: input, shape index: {}]
  %s8 = inlined_call_operand.vmem [shape: f32[4], index: 8, kind: input, shape index: {}]
  %s9 = inlined_call_operand.hbm [shape: f32[27,126], index: 9, kind: input, shape index: {}]
  %s10 = inlined_call_operand.vmem [shape: f32[3], index: 10, kind: input, shape index: {}]
  %s11 = inlined_call_operand.vmem [shape: f32[2,16,128], index: 11, kind: output, shape index: {}]
  %s12 = sld [smem:[#allocation0]]
  $region98: #{_lambda_.1} parent=0
    _
  %s14 = ssub.s32 1, %s12
  %s15 = scalar_select 0, %s14, %s12
  $region1: #{_lambda_.1} parent=0
    #allocation4 [shape = 'u8[1024]{0}', space=vmem, size = 0x400, scoped, tag = 'input window, operand 0, single buffered']
    #allocation5 [shape = 's32[1]{0}', space=sflag, size = 0x4, scoped, tag = 'scoped memory for _lambda_.1']
    #allocation6 [shape = 's32[1]{0}', space=sflag, size = 0x4, scoped, tag = 'scoped memory for _lambda_.1']
    #allocation7 [shape = 'u8[131072]{0}', space=vmem, size = 0x20000, scoped, tag = 'input window, operand 1, single buffered']
    #allocation8 [shape = 's32[1]{0}', space=sflag, size = 0x4, scoped, tag = 'scoped memory for _lambda_.1']
    #allocation9 [shape = 'u8[4096]{0}', space=vmem, size = 0x1000, scoped, tag = 'input window, operand 2, single buffered']
    #allocation10 [shape = 'u8[20480]{0}', space=vmem, size = 0x5000, scoped, tag = 'input window, operand 3, single buffered']
    #allocation11 [shape = 's32[1]{0}', space=sflag, size = 0x4, scoped, tag = 'scoped memory for _lambda_.1']
    #allocation12 [shape = 'u8[512]{0}', space=smem, size = 0x200, scoped, tag = 'input window, operand 4, single buffered']
    #allocation13 [shape = 'u8[20480]{0}', space=vmem, size = 0x5000, scoped, tag = 'input window, operand 5, single buffered']
    #allocation14 [shape = 'u8[512]{0}', space=smem, size = 0x200, scoped, tag = 'input window, operand 6, single buffered']
    #allocation15 [shape = 's32[1]{0}', space=sflag, size = 0x4, scoped, tag = 'scoped memory for _lambda_.1']
    #allocation16 [shape = 'u8[20480]{0}', space=vmem, size = 0x5000, scoped, tag = 'input window, operand 7, single buffered']
    #allocation17 [shape = 's32[1]{0}', space=sflag, size = 0x4, scoped, tag = 'scoped memory for _lambda_.1']
    #allocation18 [shape = 'u8[512]{0}', space=smem, size = 0x200, scoped, tag = 'input window, operand 8, single buffered']
    #allocation19 [shape = 'u8[16384]{0}', space=vmem, size = 0x4000, scoped, tag = 'input window, operand 9, single buffered']
    #allocation20 [shape = 'u8[512]{0}', space=smem, size = 0x200, scoped, tag = 'input window, operand 10, single buffered']
    #allocation21 [shape = 's32[1]{0}', space=sflag, size = 0x4, scoped, tag = 'scoped memory for _lambda_.1']
    %16 = vsyncpa [#allocation5], 0
    %17 = vsyncpa [#allocation8], 0
    %18 = vsyncpa [#allocation11], 0
    %19 = vsyncpa [#allocation6], 0
    %20 = vsyncpa [#allocation15], 0
    %21 = vsyncpa [#allocation17], 0
    %22 = vsyncpa [#allocation21], 0
    // Predicated region
    $region2: #{_lambda_.1} parent=1 // pred_check
      _
    $region3: #{_lambda_.1} parent=1 // pred_check_branch
      %24 = sbr.rel (0) target = $region5
    $region4: #{_lambda_.1} parent=1 // pred_region
      %s26 = ssub.s32 32, 32
      %27 = vsyncadd [#allocation5], %s26
      %s29 = sshll.u32 [#allocation4], 4
      %s30 = int_to_ptr.vmem [resolvable:$true] %s29
      %32 = dma.hbm_to_vmem [thread:$0]  %s0, 32, %s30, [#allocation5]
    $region5: #{_lambda_.1} parent=1 // pred_fallthru
      _
    // Predicated region
    $region6: #{_lambda_.1} parent=1 // pred_check
      _
    $region7: #{_lambda_.1} parent=1 // pred_check_branch
      %34 = sbr.rel (0) target = $region9
    $region8: #{_lambda_.1} parent=1 // pred_region
      %s36 = ssub.s32 4096, 4096
      %37 = vsyncadd [#allocation8], %s36
      %s38 = sshll.u32 [#allocation7], 4
      %s39 = int_to_ptr.vmem [resolvable:$true] %s38
      %44 = dma.hbm_to_vmem [thread:$0]  %s1, 4096, %s39, [#allocation8], 1024, 1024, 64
    $region9: #{_lambda_.1} parent=1 // pred_fallthru
      _
    // Predicated region
    $region10: #{_lambda_.1} parent=1 // pred_check
      _
    $region11: #{_lambda_.1} parent=1 // pred_check_branch
      %46 = sbr.rel (0) target = $region13
    $region12: #{_lambda_.1} parent=1 // pred_region
      %s48 = ssub.s32 128, 128
      %49 = vsyncadd [#allocation8], %s48
      %s51 = sshll.u32 [#allocation9], 4
      %s52 = int_to_ptr.vmem [resolvable:$true] %s51
      %54 = dma.hbm_to_vmem [thread:$0]  %s2, 128, %s52, [#allocation8]
    $region13: #{_lambda_.1} parent=1 // pred_fallthru
      _
    // Predicated region
    $region14: #{_lambda_.1} parent=1 // pred_check
      _
    $region15: #{_lambda_.1} parent=1 // pred_check_branch
      %56 = sbr.rel (0) target = $region17
    $region16: #{_lambda_.1} parent=1 // pred_region
      %s58 = ssub.s32 640, 640
      %59 = vsyncadd [#allocation11], %s58
      %s60 = sshll.u32 [#allocation10], 4
      %s61 = int_to_ptr.vmem [resolvable:$true] %s60
      %66 = dma.hbm_to_vmem [thread:$0]  %s3, 640, %s61, [#allocation11], 128, 128, 8
    $region17: #{_lambda_.1} parent=1 // pred_fallthru
      _
    // Predicated region
    $region18: #{_lambda_.1} parent=1 // pred_check
      _
    $region19: #{_lambda_.1} parent=1 // pred_check_branch
      %68 = sbr.rel (0) target = $region21
    $region20: #{_lambda_.1} parent=1 // pred_region
      %s70 = ssub.s32 16, 16
      %71 = vsyncadd [#allocation6], %s70
      %s73 = sshll.u32 %s4, 4
      %s74 = int_to_ptr.vmem [resolvable:$true] %s73
      %76 = dma.vmem_to_smem %s74, 16, [#allocation12], [#allocation6]
    $region21: #{_lambda_.1} parent=1 // pred_fallthru
      _
    // Predicated region
    $region22: #{_lambda_.1} parent=1 // pred_check
      _
    $region23: #{_lambda_.1} parent=1 // pred_check_branch
      %78 = sbr.rel (0) target = $region25
    $region24: #{_lambda_.1} parent=1 // pred_region
      %s80 = ssub.s32 640, 640
      %81 = vsyncadd [#allocation11], %s80
      %s82 = sshll.u32 [#allocation13], 4
      %s83 = int_to_ptr.vmem [resolvable:$true] %s82
      %88 = dma.hbm_to_vmem [thread:$0]  %s5, 640, %s83, [#allocation11], 128, 128, 8
    $region25: #{_lambda_.1} parent=1 // pred_fallthru
      _
    // Predicated region
    $region26: #{_lambda_.1} parent=1 // pred_check
      _
    $region27: #{_lambda_.1} parent=1 // pred_check_branch
      %90 = sbr.rel (0) target = $region29
    $region28: #{_lambda_.1} parent=1 // pred_region
      %s92 = ssub.s32 16, 16
      %93 = vsyncadd [#allocation15], %s92
      %s95 = sshll.u32 %s6, 4
      %s96 = int_to_ptr.vmem [resolvable:$true] %s95
      %98 = dma.vmem_to_smem %s96, 16, [#allocation14], [#allocation15]
    $region29: #{_lambda_.1} parent=1 // pred_fallthru
      _
    // Predicated region
    $region30: #{_lambda_.1} parent=1 // pred_check
      _
    $region31: #{_lambda_.1} parent=1 // pred_check_branch
      %100 = sbr.rel (0) target = $region33
    $region32: #{_lambda_.1} parent=1 // pred_region
      %s102 = ssub.s32 640, 640
      %103 = vsyncadd [#allocation17], %s102
      %s104 = sshll.u32 [#allocation16], 4
      %s105 = int_to_ptr.vmem [resolvable:$true] %s104
      %110 = dma.hbm_to_vmem [thread:$0]  %s7, 640, %s105, [#allocation17], 128, 128, 8
    $region33: #{_lambda_.1} parent=1 // pred_fallthru
      _
    // Predicated region
    $region34: #{_lambda_.1} parent=1 // pred_check
      _
    $region35: #{_lambda_.1} parent=1 // pred_check_branch
      %112 = sbr.rel (0) target = $region37
    $region36: #{_lambda_.1} parent=1 // pred_region
      %s114 = ssub.s32 16, 16
      %115 = vsyncadd [#allocation15], %s114
      %s117 = sshll.u32 %s8, 4
      %s118 = int_to_ptr.vmem [resolvable:$true] %s117
      %120 = dma.vmem_to_smem %s118, 16, [#allocation18], [#allocation15]
    $region37: #{_lambda_.1} parent=1 // pred_fallthru
      _
    // Predicated region
    $region38: #{_lambda_.1} parent=1 // pred_check
      _
    $region39: #{_lambda_.1} parent=1 // pred_check_branch
      %122 = sbr.rel (0) target = $region41
    $region40: #{_lambda_.1} parent=1 // pred_region
      %s124 = ssub.s32 512, 512
      %125 = vsyncadd [#allocation17], %s124
      %s126 = sshll.u32 [#allocation19], 4
      %s127 = int_to_ptr.vmem [resolvable:$true] %s126
      %132 = dma.hbm_to_vmem [thread:$0]  %s9, 512, %s127, [#allocation17], 128, 128, 8
    $region41: #{_lambda_.1} parent=1 // pred_fallthru
      _
    // Predicated region
    $region42: #{_lambda_.1} parent=1 // pred_check
      _
    $region43: #{_lambda_.1} parent=1 // pred_check_branch
      %134 = sbr.rel (0) target = $region45
    $region44: #{_lambda_.1} parent=1 // pred_region
      %s136 = ssub.s32 16, 16
      %137 = vsyncadd [#allocation21], %s136
      %s139 = sshll.u32 %s10, 4
      %s140 = int_to_ptr.vmem [resolvable:$true] %s139
      %142 = dma.vmem_to_smem %s140, 16, [#allocation20], [#allocation21]
    $region45: #{_lambda_.1} parent=1 // pred_fallthru
      _
    // Predicated region
    $region46: #{_lambda_.1} parent=1 // pred_check
      _
    $region47: #{_lambda_.1} parent=1 // pred_check_branch
      %144 = sbr.rel (0) target = $region49
    $region48: #{_lambda_.1} parent=1 // pred_region
      %145 = dma.done [#allocation5], 32
    $region49: #{_lambda_.1} parent=1 // pred_fallthru
      _
    // Predicated region
    $region50: #{_lambda_.1} parent=1 // pred_check
      _
    $region51: #{_lambda_.1} parent=1 // pred_check_branch
      %147 = sbr.rel (0) target = $region53
    $region52: #{_lambda_.1} parent=1 // pred_region
      %148 = dma.done [#allocation8], 4096
    $region53: #{_lambda_.1} parent=1 // pred_fallthru
      _
    // Predicated region
    $region54: #{_lambda_.1} parent=1 // pred_check
      _
    $region55: #{_lambda_.1} parent=1 // pred_check_branch
      %150 = sbr.rel (0) target = $region57
    $region56: #{_lambda_.1} parent=1 // pred_region
      %151 = dma.done [#allocation8], 128
    $region57: #{_lambda_.1} parent=1 // pred_fallthru
      _
    // Predicated region
    $region58: #{_lambda_.1} parent=1 // pred_check
      _
    $region59: #{_lambda_.1} parent=1 // pred_check_branch
      %153 = sbr.rel (0) target = $region61
    $region60: #{_lambda_.1} parent=1 // pred_region
      %154 = dma.done [#allocation11], 640
    $region61: #{_lambda_.1} parent=1 // pred_fallthru
      _
    // Predicated region
    $region62: #{_lambda_.1} parent=1 // pred_check
      _
    $region63: #{_lambda_.1} parent=1 // pred_check_branch
      %156 = sbr.rel (0) target = $region65
    $region64: #{_lambda_.1} parent=1 // pred_region
      %157 = dma.done [#allocation6], 16
    $region65: #{_lambda_.1} parent=1 // pred_fallthru
      _
    // Predicated region
    $region66: #{_lambda_.1} parent=1 // pred_check
      _
    $region67: #{_lambda_.1} parent=1 // pred_check_branch
      %159 = sbr.rel (0) target = $region69
    $region68: #{_lambda_.1} parent=1 // pred_region
      %160 = dma.done [#allocation11], 640
    $region69: #{_lambda_.1} parent=1 // pred_fallthru
      _
    // Predicated region
    $region70: #{_lambda_.1} parent=1 // pred_check
      _
    $region71: #{_lambda_.1} parent=1 // pred_check_branch
      %162 = sbr.rel (0) target = $region73
    $region72: #{_lambda_.1} parent=1 // pred_region
      %163 = dma.done [#allocation15], 16
    $region73: #{_lambda_.1} parent=1 // pred_fallthru
      _
    // Predicated region
    $region74: #{_lambda_.1} parent=1 // pred_check
      _
    $region75: #{_lambda_.1} parent=1 // pred_check_branch
      %165 = sbr.rel (0) target = $region77
    $region76: #{_lambda_.1} parent=1 // pred_region
      %166 = dma.done [#allocation17], 640
    $region77: #{_lambda_.1} parent=1 // pred_fallthru
      _
    // Predicated region
    $region78: #{_lambda_.1} parent=1 // pred_check
      _
    $region79: #{_lambda_.1} parent=1 // pred_check_branch
      %168 = sbr.rel (0) target = $region81
    $region80: #{_lambda_.1} parent=1 // pred_region
      %169 = dma.done [#allocation15], 16
    $region81: #{_lambda_.1} parent=1 // pred_fallthru
      _
    // Predicated region
    $region82: #{_lambda_.1} parent=1 // pred_check
      _
    $region83: #{_lambda_.1} parent=1 // pred_check_branch
      %171 = sbr.rel (0) target = $region85
    $region84: #{_lambda_.1} parent=1 // pred_region
      %172 = dma.done [#allocation17], 512
    $region85: #{_lambda_.1} parent=1 // pred_fallthru
      _
    // Predicated region
    $region86: #{_lambda_.1} parent=1 // pred_check
      _
    $region87: #{_lambda_.1} parent=1 // pred_check_branch
      %174 = sbr.rel (0) target = $region89
    $region88: #{_lambda_.1} parent=1 // pred_region
      %175 = dma.done [#allocation21], 16
    $region89: #{_lambda_.1} parent=1 // pred_fallthru
      _
    %176 = sfence
    %177 = vst [vmem:[#allocation2] sm:$0xff] 0.0
    %178 = vst [vmem:[#allocation2 + $0x8] sm:$0xff] 0.0
    %179 = vst [vmem:[#allocation2 + $0x10] sm:$0x3] 0.0
    %180 = vst [vmem:[#allocation2 + $0x18] sm:$0xff] 0.0
    %181 = vst [vmem:[#allocation2 + $0x20] sm:$0xff] 0.0
    %182 = vst [vmem:[#allocation2 + $0x28] sm:$0x3] 0.0
    %183 = vst [vmem:[#allocation3] sm:$0xff] 0.0
    %184 = vst [vmem:[#allocation3 + $0x8] sm:$0xff] 0.0
    %185 = vst [vmem:[#allocation3 + $0x10] sm:$0x3] 0.0
    %186 = vst [vmem:[#allocation3 + $0x18] sm:$0xff] 0.0
    %187 = vst [vmem:[#allocation3 + $0x20] sm:$0xff] 0.0
    %188 = vst [vmem:[#allocation3 + $0x28] sm:$0x3] 0.0
    %189 = vst [vmem:[%s11] sm:$0xff] 0.0
    %190 = vst [vmem:[%s11 + $0x8] sm:$0xff] 0.0
    %191 = vst [vmem:[%s11 + $0x10] sm:$0xff] 0.0
    %192 = vst [vmem:[%s11 + $0x18] sm:$0xff] 0.0
    %v193 = vld [vmem:[#allocation4] sm:$0x3]
    %v194 = vld [vmem:[#allocation7] sm:$0xff]
    %v195 = vld [vmem:[#allocation7 + $0x8] sm:$0xff]
    %v196 = vld [vmem:[#allocation7 + $0x10] sm:$0xff]
    %v197 = vld [vmem:[#allocation7 + $0x18] sm:$0xff]
    %v198 = vld [vmem:[#allocation7 + $0x20] sm:$0xff]
    %v199 = vld [vmem:[#allocation7 + $0x28] sm:$0xff]
    %v200 = vld [vmem:[#allocation7 + $0x30] sm:$0xff]
    %v201 = vld [vmem:[#allocation7 + $0x38] sm:$0xff]
    %v202 = vld [vmem:[#allocation7 + $0x40] sm:$0xff]
    %v203 = vld [vmem:[#allocation7 + $0x48] sm:$0xff]
    %v204 = vld [vmem:[#allocation7 + $0x50] sm:$0xff]
    %v205 = vld [vmem:[#allocation7 + $0x58] sm:$0xff]
    %v206 = vld [vmem:[#allocation7 + $0x60] sm:$0xff]
    %v207 = vld [vmem:[#allocation7 + $0x68] sm:$0xff]
    %v208 = vld [vmem:[#allocation7 + $0x70] sm:$0xff]
    %v209 = vld [vmem:[#allocation7 + $0x78] sm:$0xff]
    %v210 = vld [vmem:[#allocation7 + $0x80] sm:$0xff]
    %v211 = vld [vmem:[#allocation7 + $0x88] sm:$0xff]
    %v212 = vld [vmem:[#allocation7 + $0x90] sm:$0xff]
    %v213 = vld [vmem:[#allocation7 + $0x98] sm:$0xff]
    %v214 = vld [vmem:[#allocation7 + $0xa0] sm:$0xff]
    %v215 = vld [vmem:[#allocation7 + $0xa8] sm:$0xff]
    %v216 = vld [vmem:[#allocation7 + $0xb0] sm:$0xff]
    %v217 = vld [vmem:[#allocation7 + $0xb8] sm:$0xff]
    %v218 = vld [vmem:[#allocation7 + $0xc0] sm:$0xff]
    %v219 = vld [vmem:[#allocation7 + $0xc8] sm:$0xff]
    %v220 = vld [vmem:[#allocation7 + $0xd0] sm:$0xff]
    %v221 = vld [vmem:[#allocation7 + $0xd8] sm:$0xff]
    %v222 = vld [vmem:[#allocation7 + $0xe0] sm:$0xff]
    %v223 = vld [vmem:[#allocation7 + $0xe8] sm:$0xff]
    %v224 = vld [vmem:[#allocation7 + $0xf0] sm:$0xff]
    %v225 = vld [vmem:[#allocation7 + $0xf8] sm:$0xff]
    %v226 = vld [vmem:[#allocation9] sm:$0xff]
    %v228 = vlaneseq
    %v229 = vshrl.u32 %v228, 7
    %v230 = vsub.s32 0, %v229
    %v231 = vrot.slane %v226, %v230
    %v232 = vlaneseq
    %v233 = vshrl.u32 %v232, 7
    %v234 = vsub.s32 1, %v233
    %v235 = vrot.slane %v226, %v234
    %v236 = vlaneseq
    %v237 = vshrl.u32 %v236, 7
    %v238 = vsub.s32 2, %v237
    %v239 = vrot.slane %v226, %v238
    %v240 = vlaneseq
    %v241 = vshrl.u32 %v240, 7
    %v242 = vsub.s32 3, %v241
    %v243 = vrot.slane %v226, %v242
    %v244 = vlaneseq
    %v245 = vshrl.u32 %v244, 7
    %v246 = vsub.s32 4, %v245
    %v247 = vrot.slane %v226, %v246
    %v248 = vlaneseq
    %v249 = vshrl.u32 %v248, 7
    %v250 = vsub.s32 5, %v249
    %v251 = vrot.slane %v226, %v250
    %v252 = vlaneseq
    %v253 = vshrl.u32 %v252, 7
    %v254 = vsub.s32 6, %v253
    %v255 = vrot.slane %v226, %v254
    %v256 = vlaneseq
    %v257 = vshrl.u32 %v256, 7
    %v258 = vsub.s32 7, %v257
    %v259 = vrot.slane %v226, %v258
    %vm268 = vcmask 261120
    %v270 = vsel %vm268, %v193, 0
    %272 = vmatprep.subr.mxu0 0.0
    %273 = vmatpush1.msra.mxu0 0.0
    %274 = vmatprep.subr.mxu0 0.0
    %275 = vmatpush1.msra.mxu0 0.0
    %276 = vmatprep.subr.mxu0 0.0
    %277 = vmatpush1.msra.mxu0 0.0
    %278 = vmatprep.subr.mxu0 0.0
    %279 = vmatpush1.msra.mxu0 0.0
    %280 = vmatprep.subr.mxu0 0.0
    %281 = vmatpush1.msra.mxu0 0.0
    %282 = vmatprep.subr.mxu0 0.0
    %283 = vmatpush1.msra.mxu0 0.0
    %284 = vmatprep.subr.mxu0 0.0
    %285 = vmatpush1.msra.mxu0 0.0
    %286 = vmatprep.subr.mxu0 0.0
    %287 = vmatpush1.msra.mxu0 0.0
    %288 = vmatprep.subr.mxu0 0.0
    %289 = vmatpush1.msra.mxu0 0.0
    %290 = vmatprep.subr.mxu0 0.0
    %291 = vmatpush1.msra.mxu0 0.0
    %292 = vmatprep.subr.mxu0 0.0
    %293 = vmatpush1.msra.mxu0 0.0
    %294 = vmatprep.subr.mxu0 0.0
    %295 = vmatpush1.msra.mxu0 0.0
    %296 = vmatprep.subr.mxu0 %v219
    %297 = vmatpush1.msra.mxu0 %v218
    %298 = vmatprep.subr.mxu0 %v211
    %299 = vmatpush1.msra.mxu0 %v210
    %300 = vmatprep.subr.mxu0 %v203
    %301 = vmatpush1.msra.mxu0 %v202
    %302 = vmatprep.subr.mxu0 %v195
    %303 = vmatpush1.msra.mxu0 %v194
    %304 = vmatprep.subr.mxu0 0.0
    %305 = vmatpush2.msra.mxu0 0.0
    %306 = vmatprep.subr.mxu0 0.0
    %307 = vmatpush2.msra.mxu0 0.0
    %308 = vmatprep.subr.mxu0 0.0
    %309 = vmatpush2.msra.mxu0 0.0
    %310 = vmatprep.subr.mxu0 0.0
    %311 = vmatpush2.msra.mxu0 0.0
    %312 = vmatprep.subr.mxu0 0.0
    %313 = vmatpush2.msra.mxu0 0.0
    %314 = vmatprep.subr.mxu0 0.0
    %315 = vmatpush2.msra.mxu0 0.0
    %316 = vmatprep.subr.mxu0 0.0
    %317 = vmatpush2.msra.mxu0 0.0
    %318 = vmatprep.subr.mxu0 0.0
    %319 = vmatpush2.msra.mxu0 0.0
    %320 = vmatprep.subr.mxu0 0.0
    %321 = vmatpush2.msra.mxu0 0.0
    %322 = vmatprep.subr.mxu0 0.0
    %323 = vmatpush2.msra.mxu0 0.0
    %324 = vmatprep.subr.mxu0 0.0
    %325 = vmatpush2.msra.mxu0 0.0
    %326 = vmatprep.subr.mxu0 0.0
    %327 = vmatpush2.msra.mxu0 0.0
    %328 = vmatprep.subr.mxu0 0.0
    %329 = vmatpush2.msra.mxu0 0.0
    %330 = vmatprep.subr.mxu0 0.0
    %331 = vmatpush2.msra.mxu0 0.0
    %332 = vmatprep.subr.mxu0 0.0
    %333 = vmatpush2.msra.mxu0 0.0
    %334 = vmatprep.subr.mxu0 0.0
    %335 = vmatpush2.msra.mxu0 0.0
    %336 = vmatprep.mubr.f32.mxu0 0.0
    %337 = vmatmul.mubr.f32.gmra.mxu0 %v270
    %v338 = vpop.f32.mrf.mxu0
    %v339 = vadd.f32 %v231, %v338
    %v340 = vpop.f32.mrf.mxu0
    %v341 = vadd.f32 %v235, %v340
    %342 = vdwg.mxu0
    %343 = vmatprep.subr.mxu0 0.0
    %344 = vmatpush1.msra.mxu0 0.0
    %345 = vmatprep.subr.mxu0 0.0
    %346 = vmatpush1.msra.mxu0 0.0
    %347 = vmatprep.subr.mxu0 0.0
    %348 = vmatpush1.msra.mxu0 0.0
    %349 = vmatprep.subr.mxu0 0.0
    %350 = vmatpush1.msra.mxu0 0.0
    %351 = vmatprep.subr.mxu0 0.0
    %352 = vmatpush1.msra.mxu0 0.0
    %353 = vmatprep.subr.mxu0 0.0
    %354 = vmatpush1.msra.mxu0 0.0
    %355 = vmatprep.subr.mxu0 0.0
    %356 = vmatpush1.msra.mxu0 0.0
    %357 = vmatprep.subr.mxu0 0.0
    %358 = vmatpush1.msra.mxu0 0.0
    %359 = vmatprep.subr.mxu0 0.0
    %360 = vmatpush1.msra.mxu0 0.0
    %361 = vmatprep.subr.mxu0 0.0
    %362 = vmatpush1.msra.mxu0 0.0
    %363 = vmatprep.subr.mxu0 0.0
    %364 = vmatpush1.msra.mxu0 0.0
    %365 = vmatprep.subr.mxu0 0.0
    %366 = vmatpush1.msra.mxu0 0.0
    %367 = vmatprep.subr.mxu0 %v221
    %368 = vmatpush1.msra.mxu0 %v220
    %369 = vmatprep.subr.mxu0 %v213
    %370 = vmatpush1.msra.mxu0 %v212
    %371 = vmatprep.subr.mxu0 %v205
    %372 = vmatpush1.msra.mxu0 %v204
    %373 = vmatprep.subr.mxu0 %v197
    %374 = vmatpush1.msra.mxu0 %v196
    %375 = vmatprep.subr.mxu0 0.0
    %376 = vmatpush2.msra.mxu0 0.0
    %377 = vmatprep.subr.mxu0 0.0
    %378 = vmatpush2.msra.mxu0 0.0
    %379 = vmatprep.subr.mxu0 0.0
    %380 = vmatpush2.msra.mxu0 0.0
    %381 = vmatprep.subr.mxu0 0.0
    %382 = vmatpush2.msra.mxu0 0.0
    %383 = vmatprep.subr.mxu0 0.0
    %384 = vmatpush2.msra.mxu0 0.0
    %385 = vmatprep.subr.mxu0 0.0
    %386 = vmatpush2.msra.mxu0 0.0
    %387 = vmatprep.subr.mxu0 0.0
    %388 = vmatpush2.msra.mxu0 0.0
    %389 = vmatprep.subr.mxu0 0.0
    %390 = vmatpush2.msra.mxu0 0.0
    %391 = vmatprep.subr.mxu0 0.0
    %392 = vmatpush2.msra.mxu0 0.0
    %393 = vmatprep.subr.mxu0 0.0
    %394 = vmatpush2.msra.mxu0 0.0
    %395 = vmatprep.subr.mxu0 0.0
    %396 = vmatpush2.msra.mxu0 0.0
    %397 = vmatprep.subr.mxu0 0.0
    %398 = vmatpush2.msra.mxu0 0.0
    %399 = vmatprep.subr.mxu0 0.0
    %400 = vmatpush2.msra.mxu0 0.0
    %401 = vmatprep.subr.mxu0 0.0
    %402 = vmatpush2.msra.mxu0 0.0
    %403 = vmatprep.subr.mxu0 0.0
    %404 = vmatpush2.msra.mxu0 0.0
    %405 = vmatprep.subr.mxu0 0.0
    %406 = vmatpush2.msra.mxu0 0.0
    %407 = vmatprep.mubr.f32.mxu0 0.0
    %408 = vmatmul.mubr.f32.gmra.mxu0 %v270
    %v409 = vpop.f32.mrf.mxu0
    %v410 = vadd.f32 %v239, %v409
    %v411 = vpop.f32.mrf.mxu0
    %v412 = vadd.f32 %v243, %v411
    %413 = vdwg.mxu0
    %414 = vmatprep.subr.mxu0 0.0
    %415 = vmatpush1.msra.mxu0 0.0
    %416 = vmatprep.subr.mxu0 0.0
    %417 = vmatpush1.msra.mxu0 0.0
    %418 = vmatprep.subr.mxu0 0.0
    %419 = vmatpush1.msra.mxu0 0.0
    %420 = vmatprep.subr.mxu0 0.0
    %421 = vmatpush1.msra.mxu0 0.0
    %422 = vmatprep.subr.mxu0 0.0
    %423 = vmatpush1.msra.mxu0 0.0
    %424 = vmatprep.subr.mxu0 0.0
    %425 = vmatpush1.msra.mxu0 0.0
    %426 = vmatprep.subr.mxu0 0.0
    %427 = vmatpush1.msra.mxu0 0.0
    %428 = vmatprep.subr.mxu0 0.0
    %429 = vmatpush1.msra.mxu0 0.0
    %430 = vmatprep.subr.mxu0 0.0
    %431 = vmatpush1.msra.mxu0 0.0
    %432 = vmatprep.subr.mxu0 0.0
    %433 = vmatpush1.msra.mxu0 0.0
    %434 = vmatprep.subr.mxu0 0.0
    %435 = vmatpush1.msra.mxu0 0.0
    %436 = vmatprep.subr.mxu0 0.0
    %437 = vmatpush1.msra.mxu0 0.0
    %438 = vmatprep.subr.mxu0 %v223
    %439 = vmatpush1.msra.mxu0 %v222
    %440 = vmatprep.subr.mxu0 %v215
    %441 = vmatpush1.msra.mxu0 %v214
    %442 = vmatprep.subr.mxu0 %v207
    %443 = vmatpush1.msra.mxu0 %v206
    %444 = vmatprep.subr.mxu0 %v199
    %445 = vmatpush1.msra.mxu0 %v198
    %446 = vmatprep.subr.mxu0 0.0
    %447 = vmatpush2.msra.mxu0 0.0
    %448 = vmatprep.subr.mxu0 0.0
    %449 = vmatpush2.msra.mxu0 0.0
    %450 = vmatprep.subr.mxu0 0.0
    %451 = vmatpush2.msra.mxu0 0.0
    %452 = vmatprep.subr.mxu0 0.0
    %453 = vmatpush2.msra.mxu0 0.0
    %454 = vmatprep.subr.mxu0 0.0
    %455 = vmatpush2.msra.mxu0 0.0
    %456 = vmatprep.subr.mxu0 0.0
    %457 = vmatpush2.msra.mxu0 0.0
    %458 = vmatprep.subr.mxu0 0.0
    %459 = vmatpush2.msra.mxu0 0.0
    %460 = vmatprep.subr.mxu0 0.0
    %461 = vmatpush2.msra.mxu0 0.0
    %462 = vmatprep.subr.mxu0 0.0
    %463 = vmatpush2.msra.mxu0 0.0
    %464 = vmatprep.subr.mxu0 0.0
    %465 = vmatpush2.msra.mxu0 0.0
    %466 = vmatprep.subr.mxu0 0.0
    %467 = vmatpush2.msra.mxu0 0.0
    %468 = vmatprep.subr.mxu0 0.0
    %469 = vmatpush2.msra.mxu0 0.0
    %470 = vmatprep.subr.mxu0 0.0
    %471 = vmatpush2.msra.mxu0 0.0
    %472 = vmatprep.subr.mxu0 0.0
    %473 = vmatpush2.msra.mxu0 0.0
    %474 = vmatprep.subr.mxu0 0.0
    %475 = vmatpush2.msra.mxu0 0.0
    %476 = vmatprep.subr.mxu0 0.0
    %477 = vmatpush2.msra.mxu0 0.0
    %478 = vmatprep.mubr.f32.mxu0 0.0
    %479 = vmatmul.mubr.f32.gmra.mxu0 %v270
    %v480 = vpop.f32.mrf.mxu0
    %v481 = vadd.f32 %v247, %v480
    %v482 = vpop.f32.mrf.mxu0
    %v483 = vadd.f32 %v251, %v482
    %484 = vdwg.mxu0
    %485 = vmatprep.subr.mxu0 0.0
    %486 = vmatpush1.msra.mxu0 0.0
    %487 = vmatprep.subr.mxu0 0.0
    %488 = vmatpush1.msra.mxu0 0.0
    %489 = vmatprep.subr.mxu0 0.0
    %490 = vmatpush1.msra.mxu0 0.0
    %491 = vmatprep.subr.mxu0 0.0
    %492 = vmatpush1.msra.mxu0 0.0
    %493 = vmatprep.subr.mxu0 0.0
    %494 = vmatpush1.msra.mxu0 0.0
    %495 = vmatprep.subr.mxu0 0.0
    %496 = vmatpush1.msra.mxu0 0.0
    %497 = vmatprep.subr.mxu0 0.0
    %498 = vmatpush1.msra.mxu0 0.0
    %499 = vmatprep.subr.mxu0 0.0
    %500 = vmatpush1.msra.mxu0 0.0
    %501 = vmatprep.subr.mxu0 0.0
    %502 = vmatpush1.msra.mxu0 0.0
    %503 = vmatprep.subr.mxu0 0.0
    %504 = vmatpush1.msra.mxu0 0.0
    %505 = vmatprep.subr.mxu0 0.0
    %506 = vmatpush1.msra.mxu0 0.0
    %507 = vmatprep.subr.mxu0 0.0
    %508 = vmatpush1.msra.mxu0 0.0
    %509 = vmatprep.subr.mxu0 %v225
    %510 = vmatpush1.msra.mxu0 %v224
    %511 = vmatprep.subr.mxu0 %v217
    %512 = vmatpush1.msra.mxu0 %v216
    %513 = vmatprep.subr.mxu0 %v209
    %514 = vmatpush1.msra.mxu0 %v208
    %515 = vmatprep.subr.mxu0 %v201
    %516 = vmatpush1.msra.mxu0 %v200
    %517 = vmatprep.subr.mxu0 0.0
    %518 = vmatpush2.msra.mxu0 0.0
    %519 = vmatprep.subr.mxu0 0.0
    %520 = vmatpush2.msra.mxu0 0.0
    %521 = vmatprep.subr.mxu0 0.0
    %522 = vmatpush2.msra.mxu0 0.0
    %523 = vmatprep.subr.mxu0 0.0
    %524 = vmatpush2.msra.mxu0 0.0
    %525 = vmatprep.subr.mxu0 0.0
    %526 = vmatpush2.msra.mxu0 0.0
    %527 = vmatprep.subr.mxu0 0.0
    %528 = vmatpush2.msra.mxu0 0.0
    %529 = vmatprep.subr.mxu0 0.0
    %530 = vmatpush2.msra.mxu0 0.0
    %531 = vmatprep.subr.mxu0 0.0
    %532 = vmatpush2.msra.mxu0 0.0
    %533 = vmatprep.subr.mxu0 0.0
    %534 = vmatpush2.msra.mxu0 0.0
    %535 = vmatprep.subr.mxu0 0.0
    %536 = vmatpush2.msra.mxu0 0.0
    %537 = vmatprep.subr.mxu0 0.0
    %538 = vmatpush2.msra.mxu0 0.0
    %539 = vmatprep.subr.mxu0 0.0
    %540 = vmatpush2.msra.mxu0 0.0
    %541 = vmatprep.subr.mxu0 0.0
    %542 = vmatpush2.msra.mxu0 0.0
    %543 = vmatprep.subr.mxu0 0.0
    %544 = vmatpush2.msra.mxu0 0.0
    %545 = vmatprep.subr.mxu0 0.0
    %546 = vmatpush2.msra.mxu0 0.0
    %547 = vmatprep.subr.mxu0 0.0
    %548 = vmatpush2.msra.mxu0 0.0
    %549 = vmatprep.mubr.f32.mxu0 0.0
    %550 = vmatmul.mubr.f32.gmra.mxu0 %v270
    %v551 = vpop.f32.mrf.mxu0
    %v552 = vadd.f32 %v255, %v551
    %v553 = vpop.f32.mrf.mxu0
    %v554 = vadd.f32 %v259, %v553
    %555 = vdwg.mxu0
    %v558 = vunpack.c.l.s4 1966171168
    %v559 = vunpack.c.0.s8 %v558
    %v560 = vlaneseq
    %v561 = vshrl.u32 %v560, 7
    %v562 = vsub.s32 %v559, %v561
    %v563 = vrot.slane %v339, %v562
    %v564 = vcombine.high %v563, %v563
    %v566 = vunpack.c.l.s4 1966171168
    %v567 = vunpack.c.0.s8 %v566
    %v568 = vlaneseq
    %v569 = vshrl.u32 %v568, 7
    %v570 = vsub.s32 %v567, %v569
    %v571 = vrot.slane %v563, %v570
    %v573 = vunpack.c.l.s4 1966171168
    %v574 = vunpack.c.0.s8 %v573
    %v575 = vlaneseq
    %v576 = vshrl.u32 %v575, 7
    %v577 = vsub.s32 %v574, %v576
    %v578 = vrot.slane %v564, %v577
    %581 = vst [vmem:[#allocation2 + $0x2] sm:$0x1] %v571
    %582 = vst [vmem:[#allocation2 + $0x1a] sm:$0x1] %v578
    %v585 = vunpack.c.l.s4 1966171168
    %v586 = vunpack.c.0.s8 %v585
    %v587 = vlaneseq
    %v588 = vshrl.u32 %v587, 7
    %v589 = vsub.s32 %v586, %v588
    %v590 = vrot.slane %v341, %v589
    %v591 = vcombine.high %v590, %v590
    %v593 = vunpack.c.l.s4 1966171168
    %v594 = vunpack.c.0.s8 %v593
    %v595 = vlaneseq
    %v596 = vshrl.u32 %v595, 7
    %v597 = vsub.s32 %v594, %v596
    %v598 = vrot.slane %v590, %v597
    %v600 = vunpack.c.l.s4 1966171168
    %v601 = vunpack.c.0.s8 %v600
    %v602 = vlaneseq
    %v603 = vshrl.u32 %v602, 7
    %v604 = vsub.s32 %v601, %v603
    %v605 = vrot.slane %v591, %v604
    %608 = vst [vmem:[#allocation2 + $0x3] sm:$0x1] %v598
    %609 = vst [vmem:[#allocation2 + $0x1b] sm:$0x1] %v605
    %v612 = vunpack.c.l.s4 1966171168
    %v613 = vunpack.c.0.s8 %v612
    %v614 = vlaneseq
    %v615 = vshrl.u32 %v614, 7
    %v616 = vsub.s32 %v613, %v615
    %v617 = vrot.slane %v410, %v616
    %v618 = vcombine.high %v617, %v617
    %v620 = vunpack.c.l.s4 1966171168
    %v621 = vunpack.c.0.s8 %v620
    %v622 = vlaneseq
    %v623 = vshrl.u32 %v622, 7
    %v624 = vsub.s32 %v621, %v623
    %v625 = vrot.slane %v617, %v624
    %v627 = vunpack.c.l.s4 1966171168
    %v628 = vunpack.c.0.s8 %v627
    %v629 = vlaneseq
    %v630 = vshrl.u32 %v629, 7
    %v631 = vsub.s32 %v628, %v630
    %v632 = vrot.slane %v618, %v631
    %635 = vst [vmem:[#allocation2 + $0x4] sm:$0x1] %v625
    %636 = vst [vmem:[#allocation2 + $0x1c] sm:$0x1] %v632
    %v639 = vunpack.c.l.s4 1966171168
    %v640 = vunpack.c.0.s8 %v639
    %v641 = vlaneseq
    %v642 = vshrl.u32 %v641, 7
    %v643 = vsub.s32 %v640, %v642
    %v644 = vrot.slane %v412, %v643
    %v645 = vcombine.high %v644, %v644
    %v647 = vunpack.c.l.s4 1966171168
    %v648 = vunpack.c.0.s8 %v647
    %v649 = vlaneseq
    %v650 = vshrl.u32 %v649, 7
    %v651 = vsub.s32 %v648, %v650
    %v652 = vrot.slane %v644, %v651
    %v654 = vunpack.c.l.s4 1966171168
    %v655 = vunpack.c.0.s8 %v654
    %v656 = vlaneseq
    %v657 = vshrl.u32 %v656, 7
    %v658 = vsub.s32 %v655, %v657
    %v659 = vrot.slane %v645, %v658
    %662 = vst [vmem:[#allocation2 + $0x5] sm:$0x1] %v652
    %663 = vst [vmem:[#allocation2 + $0x1d] sm:$0x1] %v659
    %v666 = vunpack.c.l.s4 1966171168
    %v667 = vunpack.c.0.s8 %v666
    %v668 = vlaneseq
    %v669 = vshrl.u32 %v668, 7
    %v670 = vsub.s32 %v667, %v669
    %v671 = vrot.slane %v481, %v670
    %v672 = vcombine.high %v671, %v671
    %v674 = vunpack.c.l.s4 1966171168
    %v675 = vunpack.c.0.s8 %v674
    %v676 = vlaneseq
    %v677 = vshrl.u32 %v676, 7
    %v678 = vsub.s32 %v675, %v677
    %v679 = vrot.slane %v671, %v678
    %v681 = vunpack.c.l.s4 1966171168
    %v682 = vunpack.c.0.s8 %v681
    %v683 = vlaneseq
    %v684 = vshrl.u32 %v683, 7
    %v685 = vsub.s32 %v682, %v684
    %v686 = vrot.slane %v672, %v685
    %689 = vst [vmem:[#allocation2 + $0x6] sm:$0x1] %v679
    %690 = vst [vmem:[#allocation2 + $0x1e] sm:$0x1] %v686
    %v693 = vunpack.c.l.s4 1966171168
    %v694 = vunpack.c.0.s8 %v693
    %v695 = vlaneseq
    %v696 = vshrl.u32 %v695, 7
    %v697 = vsub.s32 %v694, %v696
    %v698 = vrot.slane %v483, %v697
    %v699 = vcombine.high %v698, %v698
    %v701 = vunpack.c.l.s4 1966171168
    %v702 = vunpack.c.0.s8 %v701
    %v703 = vlaneseq
    %v704 = vshrl.u32 %v703, 7
    %v705 = vsub.s32 %v702, %v704
    %v706 = vrot.slane %v698, %v705
    %v708 = vunpack.c.l.s4 1966171168
    %v709 = vunpack.c.0.s8 %v708
    %v710 = vlaneseq
    %v711 = vshrl.u32 %v710, 7
    %v712 = vsub.s32 %v709, %v711
    %v713 = vrot.slane %v699, %v712
    %716 = vst [vmem:[#allocation2 + $0x7] sm:$0x1] %v706
    %717 = vst [vmem:[#allocation2 + $0x1f] sm:$0x1] %v713
    %v720 = vunpack.c.l.s4 1966171168
    %v721 = vunpack.c.0.s8 %v720
    %v722 = vlaneseq
    %v723 = vshrl.u32 %v722, 7
    %v724 = vsub.s32 %v721, %v723
    %v725 = vrot.slane %v552, %v724
    %v726 = vcombine.high %v725, %v725
    %v728 = vunpack.c.l.s4 1966171168
    %v729 = vunpack.c.0.s8 %v728
    %v730 = vlaneseq
    %v731 = vshrl.u32 %v730, 7
    %v732 = vsub.s32 %v729, %v731
    %v733 = vrot.slane %v725, %v732
    %v735 = vunpack.c.l.s4 1966171168
    %v736 = vunpack.c.0.s8 %v735
    %v737 = vlaneseq
    %v738 = vshrl.u32 %v737, 7
    %v739 = vsub.s32 %v736, %v738
    %v740 = vrot.slane %v726, %v739
    %743 = vst [vmem:[#allocation2 + $0x8] sm:$0x1] %v733
    %744 = vst [vmem:[#allocation2 + $0x20] sm:$0x1] %v740
    %v747 = vunpack.c.l.s4 1966171168
    %v748 = vunpack.c.0.s8 %v747
    %v749 = vlaneseq
    %v750 = vshrl.u32 %v749, 7
    %v751 = vsub.s32 %v748, %v750
    %v752 = vrot.slane %v554, %v751
    %v753 = vcombine.high %v752, %v752
    %v755 = vunpack.c.l.s4 1966171168
    %v756 = vunpack.c.0.s8 %v755
    %v757 = vlaneseq
    %v758 = vshrl.u32 %v757, 7
    %v759 = vsub.s32 %v756, %v758
    %v760 = vrot.slane %v752, %v759
    %v762 = vunpack.c.l.s4 1966171168
    %v763 = vunpack.c.0.s8 %v762
    %v764 = vlaneseq
    %v765 = vshrl.u32 %v764, 7
    %v766 = vsub.s32 %v763, %v765
    %v767 = vrot.slane %v753, %v766
    %770 = vst [vmem:[#allocation2 + $0x9] sm:$0x1] %v760
    %771 = vst [vmem:[#allocation2 + $0x21] sm:$0x1] %v767
    %v772 = vld [vmem:[#allocation2] sm:$0xff]
    %v773 = vld [vmem:[#allocation2 + $0x8] sm:$0x3]
    %v774 = vld [vmem:[#allocation2 + $0x18] sm:$0xff]
    %v775 = vld [vmem:[#allocation2 + $0x20] sm:$0x3]
    %v776 = vld [vmem:[#allocation10] sm:$0x1]
    %v777 = vlaneseq
    %v778 = vshrl.u32 %v777, 7
    %v779 = vsub.s32 0, %v778
    %v780 = vrot.slane %v776, %v779
    %v781 = vmul.f32 %v772, %v780
    %v782 = vmul.f32 %v773, %v780
    %v783 = vmul.f32 %v774, %v780
    %v784 = vmul.f32 %v775, %v780
    %v785 = vadd.f32 %v781, 0.0
    %v786 = vadd.f32 %v782, 0.0
    %v787 = vadd.f32 %v783, 0.0
    %v788 = vadd.f32 %v784, 0.0
    %v789 = vld [vmem:[#allocation10 + $0x9] sm:$0x1]
    %v790 = vlaneseq
    %v791 = vshrl.u32 %v790, 7
    %v792 = vsub.s32 0, %v791
    %v793 = vrot.slane %v789, %v792
    %v794 = vmul.f32 %v772, %v793
    %v795 = vmul.f32 %v773, %v793
    %v796 = vmul.f32 %v774, %v793
    %v797 = vmul.f32 %v775, %v793
    %v798 = vadd.f32 %v794, 0.0
    %v799 = vadd.f32 %v795, 0.0
    %v800 = vadd.f32 %v796, 0.0
    %v801 = vadd.f32 %v797, 0.0
    %v802 = vld [vmem:[#allocation10 + $0x12] sm:$0x1]
    %v803 = vlaneseq
    %v804 = vshrl.u32 %v803, 7
    %v805 = vsub.s32 0, %v804
    %v806 = vrot.slane %v802, %v805
    %v807 = vmul.f32 %v772, %v806
    %v808 = vmul.f32 %v773, %v806
    %v809 = vmul.f32 %v774, %v806
    %v810 = vmul.f32 %v775, %v806
    %v811 = vadd.f32 %v807, 0.0
    %v812 = vadd.f32 %v808, 0.0
    %v813 = vadd.f32 %v809, 0.0
    %v814 = vadd.f32 %v810, 0.0
    %v815 = vld [vmem:[#allocation10 + $0x1b] sm:$0x1]
    %v816 = vlaneseq
    %v817 = vshrl.u32 %v816, 7
    %v818 = vsub.s32 0, %v817
    %v819 = vrot.slane %v815, %v818
    %v820 = vmul.f32 %v772, %v819
    %v821 = vmul.f32 %v773, %v819
    %v822 = vmul.f32 %v774, %v819
    %v823 = vmul.f32 %v775, %v819
    %v824 = vadd.f32 %v820, 0.0
    %v825 = vadd.f32 %v821, 0.0
    %v826 = vadd.f32 %v822, 0.0
    %v827 = vadd.f32 %v823, 0.0
    %v828 = vld [vmem:[#allocation10 + $0x1] sm:$0x1]
    %v829 = vlaneseq
    %v830 = vshrl.u32 %v829, 7
    %v831 = vsub.s32 0, %v830
    %v832 = vrot.slane %v828, %v831
    %834 = vrot.lane.b32.xlu0 %v832, 1
    %v835 = vpop.permute.xlu0 %834
    %v837 = vmul.f32 %v772, %v835
    %v838 = vmul.f32 %v773, %v835
    %v839 = vmul.f32 %v774, %v835
    %v840 = vmul.f32 %v775, %v835
    %845 = vrot.lane.b32.xlu0 %v837, 127
    %v846 = vpop.permute.xlu0 %845
    %847 = vrot.lane.b32.xlu0 %v838, 127
    %v848 = vpop.permute.xlu0 %847
    %849 = vrot.lane.b32.xlu0 %v839, 127
    %v850 = vpop.permute.xlu0 %849
    %851 = vrot.lane.b32.xlu0 %v840, 127
    %v852 = vpop.permute.xlu0 %851
    %v857 = vadd.f32 %v785, %v846
    %v858 = vadd.f32 %v786, %v848
    %v859 = vadd.f32 %v787, %v850
    %v860 = vadd.f32 %v788, %v852
    %v861 = vld [vmem:[#allocation10 + $0xa] sm:$0x1]
    %v862 = vlaneseq
    %v863 = vshrl.u32 %v862, 7
    %v864 = vsub.s32 0, %v863
    %v865 = vrot.slane %v861, %v864
    %867 = vrot.lane.b32.xlu0 %v865, 1
    %v868 = vpop.permute.xlu0 %867
    %v870 = vmul.f32 %v772, %v868
    %v871 = vmul.f32 %v773, %v868
    %v872 = vmul.f32 %v774, %v868
    %v873 = vmul.f32 %v775, %v868
    %878 = vrot.lane.b32.xlu0 %v870, 127
    %v879 = vpop.permute.xlu0 %878
    %880 = vrot.lane.b32.xlu0 %v871, 127
    %v881 = vpop.permute.xlu0 %880
    %882 = vrot.lane.b32.xlu0 %v872, 127
    %v883 = vpop.permute.xlu0 %882
    %884 = vrot.lane.b32.xlu0 %v873, 127
    %v885 = vpop.permute.xlu0 %884
    %v890 = vadd.f32 %v798, %v879
    %v891 = vadd.f32 %v799, %v881
    %v892 = vadd.f32 %v800, %v883
    %v893 = vadd.f32 %v801, %v885
    %v894 = vld [vmem:[#allocation10 + $0x13] sm:$0x1]
    %v895 = vlaneseq
    %v896 = vshrl.u32 %v895, 7
    %v897 = vsub.s32 0, %v896
    %v898 = vrot.slane %v894, %v897
    %900 = vrot.lane.b32.xlu0 %v898, 1
    %v901 = vpop.permute.xlu0 %900
    %v903 = vmul.f32 %v772, %v901
    %v904 = vmul.f32 %v773, %v901
    %v905 = vmul.f32 %v774, %v901
    %v906 = vmul.f32 %v775, %v901
    %911 = vrot.lane.b32.xlu0 %v903, 127
    %v912 = vpop.permute.xlu0 %911
    %913 = vrot.lane.b32.xlu0 %v904, 127
    %v914 = vpop.permute.xlu0 %913
    %915 = vrot.lane.b32.xlu0 %v905, 127
    %v916 = vpop.permute.xlu0 %915
    %917 = vrot.lane.b32.xlu0 %v906, 127
    %v918 = vpop.permute.xlu0 %917
    %v923 = vadd.f32 %v811, %v912
    %v924 = vadd.f32 %v812, %v914
    %v925 = vadd.f32 %v813, %v916
    %v926 = vadd.f32 %v814, %v918
    %v927 = vld [vmem:[#allocation10 + $0x1c] sm:$0x1]
    %v928 = vlaneseq
    %v929 = vshrl.u32 %v928, 7
    %v930 = vsub.s32 0, %v929
    %v931 = vrot.slane %v927, %v930
    %933 = vrot.lane.b32.xlu0 %v931, 1
    %v934 = vpop.permute.xlu0 %933
    %v936 = vmul.f32 %v772, %v934
    %v937 = vmul.f32 %v773, %v934
    %v938 = vmul.f32 %v774, %v934
    %v939 = vmul.f32 %v775, %v934
    %944 = vrot.lane.b32.xlu0 %v936, 127
    %v945 = vpop.permute.xlu0 %944
    %946 = vrot.lane.b32.xlu0 %v937, 127
    %v947 = vpop.permute.xlu0 %946
    %948 = vrot.lane.b32.xlu0 %v938, 127
    %v949 = vpop.permute.xlu0 %948
    %950 = vrot.lane.b32.xlu0 %v939, 127
    %v951 = vpop.permute.xlu0 %950
    %v956 = vadd.f32 %v824, %v945
    %v957 = vadd.f32 %v825, %v947
    %v958 = vadd.f32 %v826, %v949
    %v959 = vadd.f32 %v827, %v951
    %v960 = vld [vmem:[#allocation10 + $0x2] sm:$0x1]
    %v961 = vlaneseq
    %v962 = vshrl.u32 %v961, 7
    %v963 = vsub.s32 0, %v962
    %v964 = vrot.slane %v960, %v963
    %966 = vrot.lane.b32.xlu0 %v964, 2
    %v967 = vpop.permute.xlu0 %966
    %v969 = vmul.f32 %v772, %v967
    %v970 = vmul.f32 %v773, %v967
    %v971 = vmul.f32 %v774, %v967
    %v972 = vmul.f32 %v775, %v967
    %977 = vrot.lane.b32.xlu0 %v969, 126
    %v978 = vpop.permute.xlu0 %977
    %979 = vrot.lane.b32.xlu0 %v970, 126
    %v980 = vpop.permute.xlu0 %979
    %981 = vrot.lane.b32.xlu0 %v971, 126
    %v982 = vpop.permute.xlu0 %981
    %983 = vrot.lane.b32.xlu0 %v972, 126
    %v984 = vpop.permute.xlu0 %983
    %v989 = vadd.f32 %v857, %v978
    %v990 = vadd.f32 %v858, %v980
    %v991 = vadd.f32 %v859, %v982
    %v992 = vadd.f32 %v860, %v984
    %v993 = vld [vmem:[#allocation10 + $0xb] sm:$0x1]
    %v994 = vlaneseq
    %v995 = vshrl.u32 %v994, 7
    %v996 = vsub.s32 0, %v995
    %v997 = vrot.slane %v993, %v996
    %999 = vrot.lane.b32.xlu0 %v997, 2
    %v1000 = vpop.permute.xlu0 %999
    %v1002 = vmul.f32 %v772, %v1000
    %v1003 = vmul.f32 %v773, %v1000
    %v1004 = vmul.f32 %v774, %v1000
    %v1005 = vmul.f32 %v775, %v1000
    %1010 = vrot.lane.b32.xlu0 %v1002, 126
    %v1011 = vpop.permute.xlu0 %1010
    %1012 = vrot.lane.b32.xlu0 %v1003, 126
    %v1013 = vpop.permute.xlu0 %1012
    %1014 = vrot.lane.b32.xlu0 %v1004, 126
    %v1015 = vpop.permute.xlu0 %1014
    %1016 = vrot.lane.b32.xlu0 %v1005, 126
    %v1017 = vpop.permute.xlu0 %1016
    %v1022 = vadd.f32 %v890, %v1011
    %v1023 = vadd.f32 %v891, %v1013
    %v1024 = vadd.f32 %v892, %v1015
    %v1025 = vadd.f32 %v893, %v1017
    %v1026 = vld [vmem:[#allocation10 + $0x14] sm:$0x1]
    %v1027 = vlaneseq
    %v1028 = vshrl.u32 %v1027, 7
    %v1029 = vsub.s32 0, %v1028
    %v1030 = vrot.slane %v1026, %v1029
    %1032 = vrot.lane.b32.xlu0 %v1030, 2
    %v1033 = vpop.permute.xlu0 %1032
    %v1035 = vmul.f32 %v772, %v1033
    %v1036 = vmul.f32 %v773, %v1033
    %v1037 = vmul.f32 %v774, %v1033
    %v1038 = vmul.f32 %v775, %v1033
    %1043 = vrot.lane.b32.xlu0 %v1035, 126
    %v1044 = vpop.permute.xlu0 %1043
    %1045 = vrot.lane.b32.xlu0 %v1036, 126
    %v1046 = vpop.permute.xlu0 %1045
    %1047 = vrot.lane.b32.xlu0 %v1037, 126
    %v1048 = vpop.permute.xlu0 %1047
    %1049 = vrot.lane.b32.xlu0 %v1038, 126
    %v1050 = vpop.permute.xlu0 %1049
    %v1055 = vadd.f32 %v923, %v1044
    %v1056 = vadd.f32 %v924, %v1046
    %v1057 = vadd.f32 %v925, %v1048
    %v1058 = vadd.f32 %v926, %v1050
    %v1059 = vld [vmem:[#allocation10 + $0x1d] sm:$0x1]
    %v1060 = vlaneseq
    %v1061 = vshrl.u32 %v1060, 7
    %v1062 = vsub.s32 0, %v1061
    %v1063 = vrot.slane %v1059, %v1062
    %1065 = vrot.lane.b32.xlu0 %v1063, 2
    %v1066 = vpop.permute.xlu0 %1065
    %v1068 = vmul.f32 %v772, %v1066
    %v1069 = vmul.f32 %v773, %v1066
    %v1070 = vmul.f32 %v774, %v1066
    %v1071 = vmul.f32 %v775, %v1066
    %1076 = vrot.lane.b32.xlu0 %v1068, 126
    %v1077 = vpop.permute.xlu0 %1076
    %1078 = vrot.lane.b32.xlu0 %v1069, 126
    %v1079 = vpop.permute.xlu0 %1078
    %1080 = vrot.lane.b32.xlu0 %v1070, 126
    %v1081 = vpop.permute.xlu0 %1080
    %1082 = vrot.lane.b32.xlu0 %v1071, 126
    %v1083 = vpop.permute.xlu0 %1082
    %v1088 = vadd.f32 %v956, %v1077
    %v1089 = vadd.f32 %v957, %v1079
    %v1090 = vadd.f32 %v958, %v1081
    %v1091 = vadd.f32 %v959, %v1083
    %v1092 = vld [vmem:[#allocation2 + $0x1] sm:$0xff]
    %v1093 = vld [vmem:[#allocation2 + $0x9] sm:$0x3]
    %v1094 = vld [vmem:[#allocation2 + $0x19] sm:$0xff]
    %v1095 = vld [vmem:[#allocation2 + $0x21] sm:$0x3]
    %v1096 = vld [vmem:[#allocation10 + $0x3] sm:$0x1]
    %v1097 = vlaneseq
    %v1098 = vshrl.u32 %v1097, 7
    %v1099 = vsub.s32 0, %v1098
    %v1100 = vrot.slane %v1096, %v1099
    %v1101 = vmul.f32 %v1092, %v1100
    %v1102 = vmul.f32 %v1093, %v1100
    %v1103 = vmul.f32 %v1094, %v1100
    %v1104 = vmul.f32 %v1095, %v1100
    %v1105 = vadd.f32 %v989, %v1101
    %v1106 = vadd.f32 %v990, %v1102
    %v1107 = vadd.f32 %v991, %v1103
    %v1108 = vadd.f32 %v992, %v1104
    %v1109 = vld [vmem:[#allocation10 + $0xc] sm:$0x1]
    %v1110 = vlaneseq
    %v1111 = vshrl.u32 %v1110, 7
    %v1112 = vsub.s32 0, %v1111
    %v1113 = vrot.slane %v1109, %v1112
    %v1114 = vmul.f32 %v1092, %v1113
    %v1115 = vmul.f32 %v1093, %v1113
    %v1116 = vmul.f32 %v1094, %v1113
    %v1117 = vmul.f32 %v1095, %v1113
    %v1118 = vadd.f32 %v1022, %v1114
    %v1119 = vadd.f32 %v1023, %v1115
    %v1120 = vadd.f32 %v1024, %v1116
    %v1121 = vadd.f32 %v1025, %v1117
    %v1122 = vld [vmem:[#allocation10 + $0x15] sm:$0x1]
    %v1123 = vlaneseq
    %v1124 = vshrl.u32 %v1123, 7
    %v1125 = vsub.s32 0, %v1124
    %v1126 = vrot.slane %v1122, %v1125
    %v1127 = vmul.f32 %v1092, %v1126
    %v1128 = vmul.f32 %v1093, %v1126
    %v1129 = vmul.f32 %v1094, %v1126
    %v1130 = vmul.f32 %v1095, %v1126
    %v1131 = vadd.f32 %v1055, %v1127
    %v1132 = vadd.f32 %v1056, %v1128
    %v1133 = vadd.f32 %v1057, %v1129
    %v1134 = vadd.f32 %v1058, %v1130
    %v1135 = vld [vmem:[#allocation10 + $0x1e] sm:$0x1]
    %v1136 = vlaneseq
    %v1137 = vshrl.u32 %v1136, 7
    %v1138 = vsub.s32 0, %v1137
    %v1139 = vrot.slane %v1135, %v1138
    %v1140 = vmul.f32 %v1092, %v1139
    %v1141 = vmul.f32 %v1093, %v1139
    %v1142 = vmul.f32 %v1094, %v1139
    %v1143 = vmul.f32 %v1095, %v1139
    %v1144 = vadd.f32 %v1088, %v1140
    %v1145 = vadd.f32 %v1089, %v1141
    %v1146 = vadd.f32 %v1090, %v1142
    %v1147 = vadd.f32 %v1091, %v1143
    %v1148 = vld [vmem:[#allocation10 + $0x4] sm:$0x1]
    %v1149 = vlaneseq
    %v1150 = vshrl.u32 %v1149, 7
    %v1151 = vsub.s32 0, %v1150
    %v1152 = vrot.slane %v1148, %v1151
    %1154 = vrot.lane.b32.xlu0 %v1152, 1
    %v1155 = vpop.permute.xlu0 %1154
    %v1157 = vmul.f32 %v1092, %v1155
    %v1158 = vmul.f32 %v1093, %v1155
    %v1159 = vmul.f32 %v1094, %v1155
    %v1160 = vmul.f32 %v1095, %v1155
    %1165 = vrot.lane.b32.xlu0 %v1157, 127
    %v1166 = vpop.permute.xlu0 %1165
    %1167 = vrot.lane.b32.xlu0 %v1158, 127
    %v1168 = vpop.permute.xlu0 %1167
    %1169 = vrot.lane.b32.xlu0 %v1159, 127
    %v1170 = vpop.permute.xlu0 %1169
    %1171 = vrot.lane.b32.xlu0 %v1160, 127
    %v1172 = vpop.permute.xlu0 %1171
    %v1177 = vadd.f32 %v1105, %v1166
    %v1178 = vadd.f32 %v1106, %v1168
    %v1179 = vadd.f32 %v1107, %v1170
    %v1180 = vadd.f32 %v1108, %v1172
    %v1181 = vld [vmem:[#allocation10 + $0xd] sm:$0x1]
    %v1182 = vlaneseq
    %v1183 = vshrl.u32 %v1182, 7
    %v1184 = vsub.s32 0, %v1183
    %v1185 = vrot.slane %v1181, %v1184
    %1187 = vrot.lane.b32.xlu0 %v1185, 1
    %v1188 = vpop.permute.xlu0 %1187
    %v1190 = vmul.f32 %v1092, %v1188
    %v1191 = vmul.f32 %v1093, %v1188
    %v1192 = vmul.f32 %v1094, %v1188
    %v1193 = vmul.f32 %v1095, %v1188
    %1198 = vrot.lane.b32.xlu0 %v1190, 127
    %v1199 = vpop.permute.xlu0 %1198
    %1200 = vrot.lane.b32.xlu0 %v1191, 127
    %v1201 = vpop.permute.xlu0 %1200
    %1202 = vrot.lane.b32.xlu0 %v1192, 127
    %v1203 = vpop.permute.xlu0 %1202
    %1204 = vrot.lane.b32.xlu0 %v1193, 127
    %v1205 = vpop.permute.xlu0 %1204
    %v1210 = vadd.f32 %v1118, %v1199
    %v1211 = vadd.f32 %v1119, %v1201
    %v1212 = vadd.f32 %v1120, %v1203
    %v1213 = vadd.f32 %v1121, %v1205
    %v1214 = vld [vmem:[#allocation10 + $0x16] sm:$0x1]
    %v1215 = vlaneseq
    %v1216 = vshrl.u32 %v1215, 7
    %v1217 = vsub.s32 0, %v1216
    %v1218 = vrot.slane %v1214, %v1217
    %1220 = vrot.lane.b32.xlu0 %v1218, 1
    %v1221 = vpop.permute.xlu0 %1220
    %v1223 = vmul.f32 %v1092, %v1221
    %v1224 = vmul.f32 %v1093, %v1221
    %v1225 = vmul.f32 %v1094, %v1221
    %v1226 = vmul.f32 %v1095, %v1221
    %1231 = vrot.lane.b32.xlu0 %v1223, 127
    %v1232 = vpop.permute.xlu0 %1231
    %1233 = vrot.lane.b32.xlu0 %v1224, 127
    %v1234 = vpop.permute.xlu0 %1233
    %1235 = vrot.lane.b32.xlu0 %v1225, 127
    %v1236 = vpop.permute.xlu0 %1235
    %1237 = vrot.lane.b32.xlu0 %v1226, 127
    %v1238 = vpop.permute.xlu0 %1237
    %v1243 = vadd.f32 %v1131, %v1232
    %v1244 = vadd.f32 %v1132, %v1234
    %v1245 = vadd.f32 %v1133, %v1236
    %v1246 = vadd.f32 %v1134, %v1238
    %v1247 = vld [vmem:[#allocation10 + $0x1f] sm:$0x1]
    %v1248 = vlaneseq
    %v1249 = vshrl.u32 %v1248, 7
    %v1250 = vsub.s32 0, %v1249
    %v1251 = vrot.slane %v1247, %v1250
    %1253 = vrot.lane.b32.xlu0 %v1251, 1
    %v1254 = vpop.permute.xlu0 %1253
    %v1256 = vmul.f32 %v1092, %v1254
    %v1257 = vmul.f32 %v1093, %v1254
    %v1258 = vmul.f32 %v1094, %v1254
    %v1259 = vmul.f32 %v1095, %v1254
    %1264 = vrot.lane.b32.xlu0 %v1256, 127
    %v1265 = vpop.permute.xlu0 %1264
    %1266 = vrot.lane.b32.xlu0 %v1257, 127
    %v1267 = vpop.permute.xlu0 %1266
    %1268 = vrot.lane.b32.xlu0 %v1258, 127
    %v1269 = vpop.permute.xlu0 %1268
    %1270 = vrot.lane.b32.xlu0 %v1259, 127
    %v1271 = vpop.permute.xlu0 %1270
    %v1276 = vadd.f32 %v1144, %v1265
    %v1277 = vadd.f32 %v1145, %v1267
    %v1278 = vadd.f32 %v1146, %v1269
    %v1279 = vadd.f32 %v1147, %v1271
    %v1280 = vld [vmem:[#allocation10 + $0x5] sm:$0x1]
    %v1281 = vlaneseq
    %v1282 = vshrl.u32 %v1281, 7
    %v1283 = vsub.s32 0, %v1282
    %v1284 = vrot.slane %v1280, %v1283
    %1286 = vrot.lane.b32.xlu0 %v1284, 2
    %v1287 = vpop.permute.xlu0 %1286
    %v1289 = vmul.f32 %v1092, %v1287
    %v1290 = vmul.f32 %v1093, %v1287
    %v1291 = vmul.f32 %v1094, %v1287
    %v1292 = vmul.f32 %v1095, %v1287
    %1297 = vrot.lane.b32.xlu0 %v1289, 126
    %v1298 = vpop.permute.xlu0 %1297
    %1299 = vrot.lane.b32.xlu0 %v1290, 126
    %v1300 = vpop.permute.xlu0 %1299
    %1301 = vrot.lane.b32.xlu0 %v1291, 126
    %v1302 = vpop.permute.xlu0 %1301
    %1303 = vrot.lane.b32.xlu0 %v1292, 126
    %v1304 = vpop.permute.xlu0 %1303
    %v1309 = vadd.f32 %v1177, %v1298
    %v1310 = vadd.f32 %v1178, %v1300
    %v1311 = vadd.f32 %v1179, %v1302
    %v1312 = vadd.f32 %v1180, %v1304
    %v1313 = vld [vmem:[#allocation10 + $0xe] sm:$0x1]
    %v1314 = vlaneseq
    %v1315 = vshrl.u32 %v1314, 7
    %v1316 = vsub.s32 0, %v1315
    %v1317 = vrot.slane %v1313, %v1316
    %1319 = vrot.lane.b32.xlu0 %v1317, 2
    %v1320 = vpop.permute.xlu0 %1319
    %v1322 = vmul.f32 %v1092, %v1320
    %v1323 = vmul.f32 %v1093, %v1320
    %v1324 = vmul.f32 %v1094, %v1320
    %v1325 = vmul.f32 %v1095, %v1320
    %1330 = vrot.lane.b32.xlu0 %v1322, 126
    %v1331 = vpop.permute.xlu0 %1330
    %1332 = vrot.lane.b32.xlu0 %v1323, 126
    %v1333 = vpop.permute.xlu0 %1332
    %1334 = vrot.lane.b32.xlu0 %v1324, 126
    %v1335 = vpop.permute.xlu0 %1334
    %1336 = vrot.lane.b32.xlu0 %v1325, 126
    %v1337 = vpop.permute.xlu0 %1336
    %v1342 = vadd.f32 %v1210, %v1331
    %v1343 = vadd.f32 %v1211, %v1333
    %v1344 = vadd.f32 %v1212, %v1335
    %v1345 = vadd.f32 %v1213, %v1337
    %v1346 = vld [vmem:[#allocation10 + $0x17] sm:$0x1]
    %v1347 = vlaneseq
    %v1348 = vshrl.u32 %v1347, 7
    %v1349 = vsub.s32 0, %v1348
    %v1350 = vrot.slane %v1346, %v1349
    %1352 = vrot.lane.b32.xlu0 %v1350, 2
    %v1353 = vpop.permute.xlu0 %1352
    %v1355 = vmul.f32 %v1092, %v1353
    %v1356 = vmul.f32 %v1093, %v1353
    %v1357 = vmul.f32 %v1094, %v1353
    %v1358 = vmul.f32 %v1095, %v1353
    %1363 = vrot.lane.b32.xlu0 %v1355, 126
    %v1364 = vpop.permute.xlu0 %1363
    %1365 = vrot.lane.b32.xlu0 %v1356, 126
    %v1366 = vpop.permute.xlu0 %1365
    %1367 = vrot.lane.b32.xlu0 %v1357, 126
    %v1368 = vpop.permute.xlu0 %1367
    %1369 = vrot.lane.b32.xlu0 %v1358, 126
    %v1370 = vpop.permute.xlu0 %1369
    %v1375 = vadd.f32 %v1243, %v1364
    %v1376 = vadd.f32 %v1244, %v1366
    %v1377 = vadd.f32 %v1245, %v1368
    %v1378 = vadd.f32 %v1246, %v1370
    %v1379 = vld [vmem:[#allocation10 + $0x20] sm:$0x1]
    %v1380 = vlaneseq
    %v1381 = vshrl.u32 %v1380, 7
    %v1382 = vsub.s32 0, %v1381
    %v1383 = vrot.slane %v1379, %v1382
    %1385 = vrot.lane.b32.xlu0 %v1383, 2
    %v1386 = vpop.permute.xlu0 %1385
    %v1388 = vmul.f32 %v1092, %v1386
    %v1389 = vmul.f32 %v1093, %v1386
    %v1390 = vmul.f32 %v1094, %v1386
    %v1391 = vmul.f32 %v1095, %v1386
    %1396 = vrot.lane.b32.xlu0 %v1388, 126
    %v1397 = vpop.permute.xlu0 %1396
    %1398 = vrot.lane.b32.xlu0 %v1389, 126
    %v1399 = vpop.permute.xlu0 %1398
    %1400 = vrot.lane.b32.xlu0 %v1390, 126
    %v1401 = vpop.permute.xlu0 %1400
    %1402 = vrot.lane.b32.xlu0 %v1391, 126
    %v1403 = vpop.permute.xlu0 %1402
    %v1408 = vadd.f32 %v1276, %v1397
    %v1409 = vadd.f32 %v1277, %v1399
    %v1410 = vadd.f32 %v1278, %v1401
    %v1411 = vadd.f32 %v1279, %v1403
    %v1412 = vld [vmem:[#allocation2 + $0x2] sm:$0xff]
    %v1413 = vld [vmem:[#allocation2 + $0xa] sm:$0x3]
    %v1414 = vld [vmem:[#allocation2 + $0x1a] sm:$0xff]
    %v1415 = vld [vmem:[#allocation2 + $0x22] sm:$0x3]
    %v1416 = vld [vmem:[#allocation10 + $0x6] sm:$0x1]
    %v1417 = vlaneseq
    %v1418 = vshrl.u32 %v1417, 7
    %v1419 = vsub.s32 0, %v1418
    %v1420 = vrot.slane %v1416, %v1419
    %v1421 = vmul.f32 %v1412, %v1420
    %v1422 = vmul.f32 %v1413, %v1420
    %v1423 = vmul.f32 %v1414, %v1420
    %v1424 = vmul.f32 %v1415, %v1420
    %v1425 = vadd.f32 %v1309, %v1421
    %v1426 = vadd.f32 %v1310, %v1422
    %v1427 = vadd.f32 %v1311, %v1423
    %v1428 = vadd.f32 %v1312, %v1424
    %v1429 = vld [vmem:[#allocation10 + $0xf] sm:$0x1]
    %v1430 = vlaneseq
    %v1431 = vshrl.u32 %v1430, 7
    %v1432 = vsub.s32 0, %v1431
    %v1433 = vrot.slane %v1429, %v1432
    %v1434 = vmul.f32 %v1412, %v1433
    %v1435 = vmul.f32 %v1413, %v1433
    %v1436 = vmul.f32 %v1414, %v1433
    %v1437 = vmul.f32 %v1415, %v1433
    %v1438 = vadd.f32 %v1342, %v1434
    %v1439 = vadd.f32 %v1343, %v1435
    %v1440 = vadd.f32 %v1344, %v1436
    %v1441 = vadd.f32 %v1345, %v1437
    %v1442 = vld [vmem:[#allocation10 + $0x18] sm:$0x1]
    %v1443 = vlaneseq
    %v1444 = vshrl.u32 %v1443, 7
    %v1445 = vsub.s32 0, %v1444
    %v1446 = vrot.slane %v1442, %v1445
    %v1447 = vmul.f32 %v1412, %v1446
    %v1448 = vmul.f32 %v1413, %v1446
    %v1449 = vmul.f32 %v1414, %v1446
    %v1450 = vmul.f32 %v1415, %v1446
    %v1451 = vadd.f32 %v1375, %v1447
    %v1452 = vadd.f32 %v1376, %v1448
    %v1453 = vadd.f32 %v1377, %v1449
    %v1454 = vadd.f32 %v1378, %v1450
    %v1455 = vld [vmem:[#allocation10 + $0x21] sm:$0x1]
    %v1456 = vlaneseq
    %v1457 = vshrl.u32 %v1456, 7
    %v1458 = vsub.s32 0, %v1457
    %v1459 = vrot.slane %v1455, %v1458
    %v1460 = vmul.f32 %v1412, %v1459
    %v1461 = vmul.f32 %v1413, %v1459
    %v1462 = vmul.f32 %v1414, %v1459
    %v1463 = vmul.f32 %v1415, %v1459
    %v1464 = vadd.f32 %v1408, %v1460
    %v1465 = vadd.f32 %v1409, %v1461
    %v1466 = vadd.f32 %v1410, %v1462
    %v1467 = vadd.f32 %v1411, %v1463
    %v1468 = vld [vmem:[#allocation10 + $0x7] sm:$0x1]
    %v1469 = vlaneseq
    %v1470 = vshrl.u32 %v1469, 7
    %v1471 = vsub.s32 0, %v1470
    %v1472 = vrot.slane %v1468, %v1471
    %1474 = vrot.lane.b32.xlu0 %v1472, 1
    %v1475 = vpop.permute.xlu0 %1474
    %v1477 = vmul.f32 %v1412, %v1475
    %v1478 = vmul.f32 %v1413, %v1475
    %v1479 = vmul.f32 %v1414, %v1475
    %v1480 = vmul.f32 %v1415, %v1475
    %1485 = vrot.lane.b32.xlu0 %v1477, 127
    %v1486 = vpop.permute.xlu0 %1485
    %1487 = vrot.lane.b32.xlu0 %v1478, 127
    %v1488 = vpop.permute.xlu0 %1487
    %1489 = vrot.lane.b32.xlu0 %v1479, 127
    %v1490 = vpop.permute.xlu0 %1489
    %1491 = vrot.lane.b32.xlu0 %v1480, 127
    %v1492 = vpop.permute.xlu0 %1491
    %v1497 = vadd.f32 %v1425, %v1486
    %v1498 = vadd.f32 %v1426, %v1488
    %v1499 = vadd.f32 %v1427, %v1490
    %v1500 = vadd.f32 %v1428, %v1492
    %v1501 = vld [vmem:[#allocation10 + $0x10] sm:$0x1]
    %v1502 = vlaneseq
    %v1503 = vshrl.u32 %v1502, 7
    %v1504 = vsub.s32 0, %v1503
    %v1505 = vrot.slane %v1501, %v1504
    %1507 = vrot.lane.b32.xlu0 %v1505, 1
    %v1508 = vpop.permute.xlu0 %1507
    %v1510 = vmul.f32 %v1412, %v1508
    %v1511 = vmul.f32 %v1413, %v1508
    %v1512 = vmul.f32 %v1414, %v1508
    %v1513 = vmul.f32 %v1415, %v1508
    %1518 = vrot.lane.b32.xlu0 %v1510, 127
    %v1519 = vpop.permute.xlu0 %1518
    %1520 = vrot.lane.b32.xlu0 %v1511, 127
    %v1521 = vpop.permute.xlu0 %1520
    %1522 = vrot.lane.b32.xlu0 %v1512, 127
    %v1523 = vpop.permute.xlu0 %1522
    %1524 = vrot.lane.b32.xlu0 %v1513, 127
    %v1525 = vpop.permute.xlu0 %1524
    %v1530 = vadd.f32 %v1438, %v1519
    %v1531 = vadd.f32 %v1439, %v1521
    %v1532 = vadd.f32 %v1440, %v1523
    %v1533 = vadd.f32 %v1441, %v1525
    %v1534 = vld [vmem:[#allocation10 + $0x19] sm:$0x1]
    %v1535 = vlaneseq
    %v1536 = vshrl.u32 %v1535, 7
    %v1537 = vsub.s32 0, %v1536
    %v1538 = vrot.slane %v1534, %v1537
    %1540 = vrot.lane.b32.xlu0 %v1538, 1
    %v1541 = vpop.permute.xlu0 %1540
    %v1543 = vmul.f32 %v1412, %v1541
    %v1544 = vmul.f32 %v1413, %v1541
    %v1545 = vmul.f32 %v1414, %v1541
    %v1546 = vmul.f32 %v1415, %v1541
    %1551 = vrot.lane.b32.xlu0 %v1543, 127
    %v1552 = vpop.permute.xlu0 %1551
    %1553 = vrot.lane.b32.xlu0 %v1544, 127
    %v1554 = vpop.permute.xlu0 %1553
    %1555 = vrot.lane.b32.xlu0 %v1545, 127
    %v1556 = vpop.permute.xlu0 %1555
    %1557 = vrot.lane.b32.xlu0 %v1546, 127
    %v1558 = vpop.permute.xlu0 %1557
    %v1563 = vadd.f32 %v1451, %v1552
    %v1564 = vadd.f32 %v1452, %v1554
    %v1565 = vadd.f32 %v1453, %v1556
    %v1566 = vadd.f32 %v1454, %v1558
    %v1567 = vld [vmem:[#allocation10 + $0x22] sm:$0x1]
    %v1568 = vlaneseq
    %v1569 = vshrl.u32 %v1568, 7
    %v1570 = vsub.s32 0, %v1569
    %v1571 = vrot.slane %v1567, %v1570
    %1573 = vrot.lane.b32.xlu0 %v1571, 1
    %v1574 = vpop.permute.xlu0 %1573
    %v1576 = vmul.f32 %v1412, %v1574
    %v1577 = vmul.f32 %v1413, %v1574
    %v1578 = vmul.f32 %v1414, %v1574
    %v1579 = vmul.f32 %v1415, %v1574
    %1584 = vrot.lane.b32.xlu0 %v1576, 127
    %v1585 = vpop.permute.xlu0 %1584
    %1586 = vrot.lane.b32.xlu0 %v1577, 127
    %v1587 = vpop.permute.xlu0 %1586
    %1588 = vrot.lane.b32.xlu0 %v1578, 127
    %v1589 = vpop.permute.xlu0 %1588
    %1590 = vrot.lane.b32.xlu0 %v1579, 127
    %v1591 = vpop.permute.xlu0 %1590
    %v1596 = vadd.f32 %v1464, %v1585
    %v1597 = vadd.f32 %v1465, %v1587
    %v1598 = vadd.f32 %v1466, %v1589
    %v1599 = vadd.f32 %v1467, %v1591
    %v1600 = vld [vmem:[#allocation10 + $0x8] sm:$0x1]
    %v1601 = vlaneseq
    %v1602 = vshrl.u32 %v1601, 7
    %v1603 = vsub.s32 0, %v1602
    %v1604 = vrot.slane %v1600, %v1603
    %1606 = vrot.lane.b32.xlu0 %v1604, 2
    %v1607 = vpop.permute.xlu0 %1606
    %v1609 = vmul.f32 %v1412, %v1607
    %v1610 = vmul.f32 %v1413, %v1607
    %v1611 = vmul.f32 %v1414, %v1607
    %v1612 = vmul.f32 %v1415, %v1607
    %1617 = vrot.lane.b32.xlu0 %v1609, 126
    %v1618 = vpop.permute.xlu0 %1617
    %1619 = vrot.lane.b32.xlu0 %v1610, 126
    %v1620 = vpop.permute.xlu0 %1619
    %1621 = vrot.lane.b32.xlu0 %v1611, 126
    %v1622 = vpop.permute.xlu0 %1621
    %1623 = vrot.lane.b32.xlu0 %v1612, 126
    %v1624 = vpop.permute.xlu0 %1623
    %v1629 = vadd.f32 %v1497, %v1618
    %v1630 = vadd.f32 %v1498, %v1620
    %v1631 = vadd.f32 %v1499, %v1622
    %v1632 = vadd.f32 %v1500, %v1624
    %v1633 = vld [vmem:[#allocation10 + $0x11] sm:$0x1]
    %v1634 = vlaneseq
    %v1635 = vshrl.u32 %v1634, 7
    %v1636 = vsub.s32 0, %v1635
    %v1637 = vrot.slane %v1633, %v1636
    %1639 = vrot.lane.b32.xlu0 %v1637, 2
    %v1640 = vpop.permute.xlu0 %1639
    %v1642 = vmul.f32 %v1412, %v1640
    %v1643 = vmul.f32 %v1413, %v1640
    %v1644 = vmul.f32 %v1414, %v1640
    %v1645 = vmul.f32 %v1415, %v1640
    %1650 = vrot.lane.b32.xlu0 %v1642, 126
    %v1651 = vpop.permute.xlu0 %1650
    %1652 = vrot.lane.b32.xlu0 %v1643, 126
    %v1653 = vpop.permute.xlu0 %1652
    %1654 = vrot.lane.b32.xlu0 %v1644, 126
    %v1655 = vpop.permute.xlu0 %1654
    %1656 = vrot.lane.b32.xlu0 %v1645, 126
    %v1657 = vpop.permute.xlu0 %1656
    %v1662 = vadd.f32 %v1530, %v1651
    %v1663 = vadd.f32 %v1531, %v1653
    %v1664 = vadd.f32 %v1532, %v1655
    %v1665 = vadd.f32 %v1533, %v1657
    %v1666 = vld [vmem:[#allocation10 + $0x1a] sm:$0x1]
    %v1667 = vlaneseq
    %v1668 = vshrl.u32 %v1667, 7
    %v1669 = vsub.s32 0, %v1668
    %v1670 = vrot.slane %v1666, %v1669
    %1672 = vrot.lane.b32.xlu0 %v1670, 2
    %v1673 = vpop.permute.xlu0 %1672
    %v1675 = vmul.f32 %v1412, %v1673
    %v1676 = vmul.f32 %v1413, %v1673
    %v1677 = vmul.f32 %v1414, %v1673
    %v1678 = vmul.f32 %v1415, %v1673
    %1683 = vrot.lane.b32.xlu0 %v1675, 126
    %v1684 = vpop.permute.xlu0 %1683
    %1685 = vrot.lane.b32.xlu0 %v1676, 126
    %v1686 = vpop.permute.xlu0 %1685
    %1687 = vrot.lane.b32.xlu0 %v1677, 126
    %v1688 = vpop.permute.xlu0 %1687
    %1689 = vrot.lane.b32.xlu0 %v1678, 126
    %v1690 = vpop.permute.xlu0 %1689
    %v1695 = vadd.f32 %v1563, %v1684
    %v1696 = vadd.f32 %v1564, %v1686
    %v1697 = vadd.f32 %v1565, %v1688
    %v1698 = vadd.f32 %v1566, %v1690
    %v1699 = vld [vmem:[#allocation10 + $0x23] sm:$0x1]
    %v1700 = vlaneseq
    %v1701 = vshrl.u32 %v1700, 7
    %v1702 = vsub.s32 0, %v1701
    %v1703 = vrot.slane %v1699, %v1702
    %1705 = vrot.lane.b32.xlu0 %v1703, 2
    %v1706 = vpop.permute.xlu0 %1705
    %v1708 = vmul.f32 %v1412, %v1706
    %v1709 = vmul.f32 %v1413, %v1706
    %v1710 = vmul.f32 %v1414, %v1706
    %v1711 = vmul.f32 %v1415, %v1706
    %1716 = vrot.lane.b32.xlu0 %v1708, 126
    %v1717 = vpop.permute.xlu0 %1716
    %1718 = vrot.lane.b32.xlu0 %v1709, 126
    %v1719 = vpop.permute.xlu0 %1718
    %1720 = vrot.lane.b32.xlu0 %v1710, 126
    %v1721 = vpop.permute.xlu0 %1720
    %1722 = vrot.lane.b32.xlu0 %v1711, 126
    %v1723 = vpop.permute.xlu0 %1722
    %v1728 = vadd.f32 %v1596, %v1717
    %v1729 = vadd.f32 %v1597, %v1719
    %v1730 = vadd.f32 %v1598, %v1721
    %v1731 = vadd.f32 %v1599, %v1723
    %1736 = vrot.lane.b32.xlu0 %v1629, 96
    %v1737 = vpop.permute.xlu0 %1736
    %1738 = vrot.lane.b32.xlu0 %v1630, 96
    %v1739 = vpop.permute.xlu0 %1738
    %1740 = vrot.lane.b32.xlu0 %v1631, 96
    %v1741 = vpop.permute.xlu0 %1740
    %1742 = vrot.lane.b32.xlu0 %v1632, 96
    %v1743 = vpop.permute.xlu0 %1742
    %v1748 = vadd.f32 %v1629, %v1737
    %v1749 = vadd.f32 %v1630, %v1739
    %v1750 = vadd.f32 %v1631, %v1741
    %v1751 = vadd.f32 %v1632, %v1743
    %1752 = vrot.lane.b32.xlu0 %v1629, 64
    %v1753 = vpop.permute.xlu0 %1752
    %1754 = vrot.lane.b32.xlu0 %v1630, 64
    %v1755 = vpop.permute.xlu0 %1754
    %1756 = vrot.lane.b32.xlu0 %v1631, 64
    %v1757 = vpop.permute.xlu0 %1756
    %1758 = vrot.lane.b32.xlu0 %v1632, 64
    %v1759 = vpop.permute.xlu0 %1758
    %v1764 = vadd.f32 %v1748, %v1753
    %v1765 = vadd.f32 %v1749, %v1755
    %v1766 = vadd.f32 %v1750, %v1757
    %v1767 = vadd.f32 %v1751, %v1759
    %1768 = vrot.lane.b32.xlu0 %v1629, 32
    %v1769 = vpop.permute.xlu0 %1768
    %1770 = vrot.lane.b32.xlu0 %v1630, 32
    %v1771 = vpop.permute.xlu0 %1770
    %1772 = vrot.lane.b32.xlu0 %v1631, 32
    %v1773 = vpop.permute.xlu0 %1772
    %1774 = vrot.lane.b32.xlu0 %v1632, 32
    %v1775 = vpop.permute.xlu0 %1774
    %v1780 = vadd.f32 %v1764, %v1769
    %v1781 = vadd.f32 %v1765, %v1771
    %v1782 = vadd.f32 %v1766, %v1773
    %v1783 = vadd.f32 %v1767, %v1775
    %s1784 = sld [smem:[#allocation12]]
    %v1785 = vstv %s1784
    %v1786 = vadd.f32 %v1780, %v1785
    %v1787 = vadd.f32 %v1781, %v1785
    %v1788 = vadd.f32 %v1782, %v1785
    %v1789 = vadd.f32 %v1783, %v1785
    %v1790 = vmax.f32 %v1786, 0.0
    %v1791 = vmax.f32 %v1787, 0.0
    %v1792 = vmax.f32 %v1788, 0.0
    %v1793 = vmax.f32 %v1789, 0.0
    %1798 = vrot.lane.b32.xlu0 %v1790, 2
    %v1799 = vpop.permute.xlu0 %1798
    %1800 = vrot.lane.b32.xlu0 %v1791, 2
    %v1801 = vpop.permute.xlu0 %1800
    %1802 = vrot.lane.b32.xlu0 %v1792, 2
    %v1803 = vpop.permute.xlu0 %1802
    %1804 = vrot.lane.b32.xlu0 %v1793, 2
    %v1805 = vpop.permute.xlu0 %1804
    %vm1810 = vcmask 97296
    %1811 = vst.msk [vmem:[#allocation3 + $0x2] sm:$0xff] %vm1810, %v1799
    %vm1812 = vcmask 91152
    %1813 = vst.msk [vmem:[#allocation3 + $0xa] sm:$0x3] %vm1812, %v1801
    %1814 = vst.msk [vmem:[#allocation3 + $0x1a] sm:$0xff] %vm1810, %v1803
    %1815 = vst.msk [vmem:[#allocation3 + $0x22] sm:$0x3] %vm1812, %v1805
    %1820 = vrot.lane.b32.xlu0 %v1662, 96
    %v1821 = vpop.permute.xlu0 %1820
    %1822 = vrot.lane.b32.xlu0 %v1663, 96
    %v1823 = vpop.permute.xlu0 %1822
    %1824 = vrot.lane.b32.xlu0 %v1664, 96
    %v1825 = vpop.permute.xlu0 %1824
    %1826 = vrot.lane.b32.xlu0 %v1665, 96
    %v1827 = vpop.permute.xlu0 %1826
    %v1832 = vadd.f32 %v1662, %v1821
    %v1833 = vadd.f32 %v1663, %v1823
    %v1834 = vadd.f32 %v1664, %v1825
    %v1835 = vadd.f32 %v1665, %v1827
    %1836 = vrot.lane.b32.xlu0 %v1662, 64
    %v1837 = vpop.permute.xlu0 %1836
    %1838 = vrot.lane.b32.xlu0 %v1663, 64
    %v1839 = vpop.permute.xlu0 %1838
    %1840 = vrot.lane.b32.xlu0 %v1664, 64
    %v1841 = vpop.permute.xlu0 %1840
    %1842 = vrot.lane.b32.xlu0 %v1665, 64
    %v1843 = vpop.permute.xlu0 %1842
    %v1848 = vadd.f32 %v1832, %v1837
    %v1849 = vadd.f32 %v1833, %v1839
    %v1850 = vadd.f32 %v1834, %v1841
    %v1851 = vadd.f32 %v1835, %v1843
    %1852 = vrot.lane.b32.xlu0 %v1662, 32
    %v1853 = vpop.permute.xlu0 %1852
    %1854 = vrot.lane.b32.xlu0 %v1663, 32
    %v1855 = vpop.permute.xlu0 %1854
    %1856 = vrot.lane.b32.xlu0 %v1664, 32
    %v1857 = vpop.permute.xlu0 %1856
    %1858 = vrot.lane.b32.xlu0 %v1665, 32
    %v1859 = vpop.permute.xlu0 %1858
    %v1864 = vadd.f32 %v1848, %v1853
    %v1865 = vadd.f32 %v1849, %v1855
    %v1866 = vadd.f32 %v1850, %v1857
    %v1867 = vadd.f32 %v1851, %v1859
    %s1868 = sld [smem:[#allocation12 + $0x1]]
    %v1869 = vstv %s1868
    %v1870 = vadd.f32 %v1864, %v1869
    %v1871 = vadd.f32 %v1865, %v1869
    %v1872 = vadd.f32 %v1866, %v1869
    %v1873 = vadd.f32 %v1867, %v1869
    %v1874 = vmax.f32 %v1870, 0.0
    %v1875 = vmax.f32 %v1871, 0.0
    %v1876 = vmax.f32 %v1872, 0.0
    %v1877 = vmax.f32 %v1873, 0.0
    %1882 = vrot.lane.b32.xlu0 %v1874, 34
    %v1883 = vpop.permute.xlu0 %1882
    %1884 = vrot.lane.b32.xlu0 %v1875, 34
    %v1885 = vpop.permute.xlu0 %1884
    %1886 = vrot.lane.b32.xlu0 %v1876, 34
    %v1887 = vpop.permute.xlu0 %1886
    %1888 = vrot.lane.b32.xlu0 %v1877, 34
    %v1889 = vpop.permute.xlu0 %1888
    %vm1894 = vcmask 359696
    %1895 = vst.msk [vmem:[#allocation3 + $0x2] sm:$0xff] %vm1894, %v1883
    %vm1896 = vcmask 353552
    %1897 = vst.msk [vmem:[#allocation3 + $0xa] sm:$0x3] %vm1896, %v1885
    %1898 = vst.msk [vmem:[#allocation3 + $0x1a] sm:$0xff] %vm1894, %v1887
    %1899 = vst.msk [vmem:[#allocation3 + $0x22] sm:$0x3] %vm1896, %v1889
    %1904 = vrot.lane.b32.xlu0 %v1695, 96
    %v1905 = vpop.permute.xlu0 %1904
    %1906 = vrot.lane.b32.xlu0 %v1696, 96
    %v1907 = vpop.permute.xlu0 %1906
    %1908 = vrot.lane.b32.xlu0 %v1697, 96
    %v1909 = vpop.permute.xlu0 %1908
    %1910 = vrot.lane.b32.xlu0 %v1698, 96
    %v1911 = vpop.permute.xlu0 %1910
    %v1916 = vadd.f32 %v1695, %v1905
    %v1917 = vadd.f32 %v1696, %v1907
    %v1918 = vadd.f32 %v1697, %v1909
    %v1919 = vadd.f32 %v1698, %v1911
    %1920 = vrot.lane.b32.xlu0 %v1695, 64
    %v1921 = vpop.permute.xlu0 %1920
    %1922 = vrot.lane.b32.xlu0 %v1696, 64
    %v1923 = vpop.permute.xlu0 %1922
    %1924 = vrot.lane.b32.xlu0 %v1697, 64
    %v1925 = vpop.permute.xlu0 %1924
    %1926 = vrot.lane.b32.xlu0 %v1698, 64
    %v1927 = vpop.permute.xlu0 %1926
    %v1932 = vadd.f32 %v1916, %v1921
    %v1933 = vadd.f32 %v1917, %v1923
    %v1934 = vadd.f32 %v1918, %v1925
    %v1935 = vadd.f32 %v1919, %v1927
    %1936 = vrot.lane.b32.xlu0 %v1695, 32
    %v1937 = vpop.permute.xlu0 %1936
    %1938 = vrot.lane.b32.xlu0 %v1696, 32
    %v1939 = vpop.permute.xlu0 %1938
    %1940 = vrot.lane.b32.xlu0 %v1697, 32
    %v1941 = vpop.permute.xlu0 %1940
    %1942 = vrot.lane.b32.xlu0 %v1698, 32
    %v1943 = vpop.permute.xlu0 %1942
    %v1948 = vadd.f32 %v1932, %v1937
    %v1949 = vadd.f32 %v1933, %v1939
    %v1950 = vadd.f32 %v1934, %v1941
    %v1951 = vadd.f32 %v1935, %v1943
    %s1952 = sld [smem:[#allocation12 + $0x2]]
    %v1953 = vstv %s1952
    %v1954 = vadd.f32 %v1948, %v1953
    %v1955 = vadd.f32 %v1949, %v1953
    %v1956 = vadd.f32 %v1950, %v1953
    %v1957 = vadd.f32 %v1951, %v1953
    %v1958 = vmax.f32 %v1954, 0.0
    %v1959 = vmax.f32 %v1955, 0.0
    %v1960 = vmax.f32 %v1956, 0.0
    %v1961 = vmax.f32 %v1957, 0.0
    %1966 = vrot.lane.b32.xlu0 %v1958, 66
    %v1967 = vpop.permute.xlu0 %1966
    %1968 = vrot.lane.b32.xlu0 %v1959, 66
    %v1969 = vpop.permute.xlu0 %1968
    %1970 = vrot.lane.b32.xlu0 %v1960, 66
    %v1971 = vpop.permute.xlu0 %1970
    %1972 = vrot.lane.b32.xlu0 %v1961, 66
    %v1973 = vpop.permute.xlu0 %1972
    %vm1978 = vcmask 622096
    %1979 = vst.msk [vmem:[#allocation3 + $0x2] sm:$0xff] %vm1978, %v1967
    %vm1980 = vcmask 615952
    %1981 = vst.msk [vmem:[#allocation3 + $0xa] sm:$0x3] %vm1980, %v1969
    %1982 = vst.msk [vmem:[#allocation3 + $0x1a] sm:$0xff] %vm1978, %v1971
    %1983 = vst.msk [vmem:[#allocation3 + $0x22] sm:$0x3] %vm1980, %v1973
    %1988 = vrot.lane.b32.xlu0 %v1728, 96
    %v1989 = vpop.permute.xlu0 %1988
    %1990 = vrot.lane.b32.xlu0 %v1729, 96
    %v1991 = vpop.permute.xlu0 %1990
    %1992 = vrot.lane.b32.xlu0 %v1730, 96
    %v1993 = vpop.permute.xlu0 %1992
    %1994 = vrot.lane.b32.xlu0 %v1731, 96
    %v1995 = vpop.permute.xlu0 %1994
    %v2000 = vadd.f32 %v1728, %v1989
    %v2001 = vadd.f32 %v1729, %v1991
    %v2002 = vadd.f32 %v1730, %v1993
    %v2003 = vadd.f32 %v1731, %v1995
    %2004 = vrot.lane.b32.xlu0 %v1728, 64
    %v2005 = vpop.permute.xlu0 %2004
    %2006 = vrot.lane.b32.xlu0 %v1729, 64
    %v2007 = vpop.permute.xlu0 %2006
    %2008 = vrot.lane.b32.xlu0 %v1730, 64
    %v2009 = vpop.permute.xlu0 %2008
    %2010 = vrot.lane.b32.xlu0 %v1731, 64
    %v2011 = vpop.permute.xlu0 %2010
    %v2016 = vadd.f32 %v2000, %v2005
    %v2017 = vadd.f32 %v2001, %v2007
    %v2018 = vadd.f32 %v2002, %v2009
    %v2019 = vadd.f32 %v2003, %v2011
    %2020 = vrot.lane.b32.xlu0 %v1728, 32
    %v2021 = vpop.permute.xlu0 %2020
    %2022 = vrot.lane.b32.xlu0 %v1729, 32
    %v2023 = vpop.permute.xlu0 %2022
    %2024 = vrot.lane.b32.xlu0 %v1730, 32
    %v2025 = vpop.permute.xlu0 %2024
    %2026 = vrot.lane.b32.xlu0 %v1731, 32
    %v2027 = vpop.permute.xlu0 %2026
    %v2032 = vadd.f32 %v2016, %v2021
    %v2033 = vadd.f32 %v2017, %v2023
    %v2034 = vadd.f32 %v2018, %v2025
    %v2035 = vadd.f32 %v2019, %v2027
    %s2036 = sld [smem:[#allocation12 + $0x3]]
    %v2037 = vstv %s2036
    %v2038 = vadd.f32 %v2032, %v2037
    %v2039 = vadd.f32 %v2033, %v2037
    %v2040 = vadd.f32 %v2034, %v2037
    %v2041 = vadd.f32 %v2035, %v2037
    %v2042 = vmax.f32 %v2038, 0.0
    %v2043 = vmax.f32 %v2039, 0.0
    %v2044 = vmax.f32 %v2040, 0.0
    %v2045 = vmax.f32 %v2041, 0.0
    %2050 = vrot.lane.b32.xlu0 %v2042, 98
    %v2051 = vpop.permute.xlu0 %2050
    %2052 = vrot.lane.b32.xlu0 %v2043, 98
    %v2053 = vpop.permute.xlu0 %2052
    %2054 = vrot.lane.b32.xlu0 %v2044, 98
    %v2055 = vpop.permute.xlu0 %2054
    %2056 = vrot.lane.b32.xlu0 %v2045, 98
    %v2057 = vpop.permute.xlu0 %2056
    %vm2062 = vcmask 884496
    %2063 = vst.msk [vmem:[#allocation3 + $0x2] sm:$0xff] %vm2062, %v2051
    %vm2064 = vcmask 878352
    %2065 = vst.msk [vmem:[#allocation3 + $0xa] sm:$0x3] %vm2064, %v2053
    %2066 = vst.msk [vmem:[#allocation3 + $0x1a] sm:$0xff] %vm2062, %v2055
    %2067 = vst.msk [vmem:[#allocation3 + $0x22] sm:$0x3] %vm2064, %v2057
    %v2068 = vld [vmem:[#allocation3] sm:$0xff]
    %v2069 = vld [vmem:[#allocation3 + $0x8] sm:$0xf]
    %v2070 = vld [vmem:[#allocation3 + $0x18] sm:$0xff]
    %v2071 = vld [vmem:[#allocation3 + $0x20] sm:$0xf]
    %v2072 = vld [vmem:[#allocation13] sm:$0x1]
    %v2073 = vlaneseq
    %v2074 = vshrl.u32 %v2073, 7
    %v2075 = vsub.s32 0, %v2074
    %v2076 = vrot.slane %v2072, %v2075
    %v2077 = vmul.f32 %v2068, %v2076
    %v2078 = vmul.f32 %v2069, %v2076
    %v2079 = vmul.f32 %v2070, %v2076
    %v2080 = vmul.f32 %v2071, %v2076
    %v2081 = vadd.f32 %v2077, 0.0
    %v2082 = vadd.f32 %v2078, 0.0
    %v2083 = vadd.f32 %v2079, 0.0
    %v2084 = vadd.f32 %v2080, 0.0
    %v2085 = vld [vmem:[#allocation13 + $0x9] sm:$0x1]
    %v2086 = vlaneseq
    %v2087 = vshrl.u32 %v2086, 7
    %v2088 = vsub.s32 0, %v2087
    %v2089 = vrot.slane %v2085, %v2088
    %v2090 = vmul.f32 %v2068, %v2089
    %v2091 = vmul.f32 %v2069, %v2089
    %v2092 = vmul.f32 %v2070, %v2089
    %v2093 = vmul.f32 %v2071, %v2089
    %v2094 = vadd.f32 %v2090, 0.0
    %v2095 = vadd.f32 %v2091, 0.0
    %v2096 = vadd.f32 %v2092, 0.0
    %v2097 = vadd.f32 %v2093, 0.0
    %v2098 = vld [vmem:[#allocation13 + $0x12] sm:$0x1]
    %v2099 = vlaneseq
    %v2100 = vshrl.u32 %v2099, 7
    %v2101 = vsub.s32 0, %v2100
    %v2102 = vrot.slane %v2098, %v2101
    %v2103 = vmul.f32 %v2068, %v2102
    %v2104 = vmul.f32 %v2069, %v2102
    %v2105 = vmul.f32 %v2070, %v2102
    %v2106 = vmul.f32 %v2071, %v2102
    %v2107 = vadd.f32 %v2103, 0.0
    %v2108 = vadd.f32 %v2104, 0.0
    %v2109 = vadd.f32 %v2105, 0.0
    %v2110 = vadd.f32 %v2106, 0.0
    %v2111 = vld [vmem:[#allocation13 + $0x1b] sm:$0x1]
    %v2112 = vlaneseq
    %v2113 = vshrl.u32 %v2112, 7
    %v2114 = vsub.s32 0, %v2113
    %v2115 = vrot.slane %v2111, %v2114
    %v2116 = vmul.f32 %v2068, %v2115
    %v2117 = vmul.f32 %v2069, %v2115
    %v2118 = vmul.f32 %v2070, %v2115
    %v2119 = vmul.f32 %v2071, %v2115
    %v2120 = vadd.f32 %v2116, 0.0
    %v2121 = vadd.f32 %v2117, 0.0
    %v2122 = vadd.f32 %v2118, 0.0
    %v2123 = vadd.f32 %v2119, 0.0
    %v2124 = vld [vmem:[#allocation13 + $0x1] sm:$0x1]
    %v2125 = vlaneseq
    %v2126 = vshrl.u32 %v2125, 7
    %v2127 = vsub.s32 0, %v2126
    %v2128 = vrot.slane %v2124, %v2127
    %2130 = vrot.lane.b32.xlu0 %v2128, 1
    %v2131 = vpop.permute.xlu0 %2130
    %v2133 = vmul.f32 %v2068, %v2131
    %v2134 = vmul.f32 %v2069, %v2131
    %v2135 = vmul.f32 %v2070, %v2131
    %v2136 = vmul.f32 %v2071, %v2131
    %2141 = vrot.lane.b32.xlu0 %v2133, 127
    %v2142 = vpop.permute.xlu0 %2141
    %2143 = vrot.lane.b32.xlu0 %v2134, 127
    %v2144 = vpop.permute.xlu0 %2143
    %2145 = vrot.lane.b32.xlu0 %v2135, 127
    %v2146 = vpop.permute.xlu0 %2145
    %2147 = vrot.lane.b32.xlu0 %v2136, 127
    %v2148 = vpop.permute.xlu0 %2147
    %v2153 = vadd.f32 %v2081, %v2142
    %v2154 = vadd.f32 %v2082, %v2144
    %v2155 = vadd.f32 %v2083, %v2146
    %v2156 = vadd.f32 %v2084, %v2148
    %v2157 = vld [vmem:[#allocation13 + $0xa] sm:$0x1]
    %v2158 = vlaneseq
    %v2159 = vshrl.u32 %v2158, 7
    %v2160 = vsub.s32 0, %v2159
    %v2161 = vrot.slane %v2157, %v2160
    %2163 = vrot.lane.b32.xlu0 %v2161, 1
    %v2164 = vpop.permute.xlu0 %2163
    %v2166 = vmul.f32 %v2068, %v2164
    %v2167 = vmul.f32 %v2069, %v2164
    %v2168 = vmul.f32 %v2070, %v2164
    %v2169 = vmul.f32 %v2071, %v2164
    %2174 = vrot.lane.b32.xlu0 %v2166, 127
    %v2175 = vpop.permute.xlu0 %2174
    %2176 = vrot.lane.b32.xlu0 %v2167, 127
    %v2177 = vpop.permute.xlu0 %2176
    %2178 = vrot.lane.b32.xlu0 %v2168, 127
    %v2179 = vpop.permute.xlu0 %2178
    %2180 = vrot.lane.b32.xlu0 %v2169, 127
    %v2181 = vpop.permute.xlu0 %2180
    %v2186 = vadd.f32 %v2094, %v2175
    %v2187 = vadd.f32 %v2095, %v2177
    %v2188 = vadd.f32 %v2096, %v2179
    %v2189 = vadd.f32 %v2097, %v2181
    %v2190 = vld [vmem:[#allocation13 + $0x13] sm:$0x1]
    %v2191 = vlaneseq
    %v2192 = vshrl.u32 %v2191, 7
    %v2193 = vsub.s32 0, %v2192
    %v2194 = vrot.slane %v2190, %v2193
    %2196 = vrot.lane.b32.xlu0 %v2194, 1
    %v2197 = vpop.permute.xlu0 %2196
    %v2199 = vmul.f32 %v2068, %v2197
    %v2200 = vmul.f32 %v2069, %v2197
    %v2201 = vmul.f32 %v2070, %v2197
    %v2202 = vmul.f32 %v2071, %v2197
    %2207 = vrot.lane.b32.xlu0 %v2199, 127
    %v2208 = vpop.permute.xlu0 %2207
    %2209 = vrot.lane.b32.xlu0 %v2200, 127
    %v2210 = vpop.permute.xlu0 %2209
    %2211 = vrot.lane.b32.xlu0 %v2201, 127
    %v2212 = vpop.permute.xlu0 %2211
    %2213 = vrot.lane.b32.xlu0 %v2202, 127
    %v2214 = vpop.permute.xlu0 %2213
    %v2219 = vadd.f32 %v2107, %v2208
    %v2220 = vadd.f32 %v2108, %v2210
    %v2221 = vadd.f32 %v2109, %v2212
    %v2222 = vadd.f32 %v2110, %v2214
    %v2223 = vld [vmem:[#allocation13 + $0x1c] sm:$0x1]
    %v2224 = vlaneseq
    %v2225 = vshrl.u32 %v2224, 7
    %v2226 = vsub.s32 0, %v2225
    %v2227 = vrot.slane %v2223, %v2226
    %2229 = vrot.lane.b32.xlu0 %v2227, 1
    %v2230 = vpop.permute.xlu0 %2229
    %v2232 = vmul.f32 %v2068, %v2230
    %v2233 = vmul.f32 %v2069, %v2230
    %v2234 = vmul.f32 %v2070, %v2230
    %v2235 = vmul.f32 %v2071, %v2230
    %2240 = vrot.lane.b32.xlu0 %v2232, 127
    %v2241 = vpop.permute.xlu0 %2240
    %2242 = vrot.lane.b32.xlu0 %v2233, 127
    %v2243 = vpop.permute.xlu0 %2242
    %2244 = vrot.lane.b32.xlu0 %v2234, 127
    %v2245 = vpop.permute.xlu0 %2244
    %2246 = vrot.lane.b32.xlu0 %v2235, 127
    %v2247 = vpop.permute.xlu0 %2246
    %v2252 = vadd.f32 %v2120, %v2241
    %v2253 = vadd.f32 %v2121, %v2243
    %v2254 = vadd.f32 %v2122, %v2245
    %v2255 = vadd.f32 %v2123, %v2247
    %v2256 = vld [vmem:[#allocation13 + $0x2] sm:$0x1]
    %v2257 = vlaneseq
    %v2258 = vshrl.u32 %v2257, 7
    %v2259 = vsub.s32 0, %v2258
    %v2260 = vrot.slane %v2256, %v2259
    %2262 = vrot.lane.b32.xlu0 %v2260, 2
    %v2263 = vpop.permute.xlu0 %2262
    %v2265 = vmul.f32 %v2068, %v2263
    %v2266 = vmul.f32 %v2069, %v2263
    %v2267 = vmul.f32 %v2070, %v2263
    %v2268 = vmul.f32 %v2071, %v2263
    %2273 = vrot.lane.b32.xlu0 %v2265, 126
    %v2274 = vpop.permute.xlu0 %2273
    %2275 = vrot.lane.b32.xlu0 %v2266, 126
    %v2276 = vpop.permute.xlu0 %2275
    %2277 = vrot.lane.b32.xlu0 %v2267, 126
    %v2278 = vpop.permute.xlu0 %2277
    %2279 = vrot.lane.b32.xlu0 %v2268, 126
    %v2280 = vpop.permute.xlu0 %2279
    %v2285 = vadd.f32 %v2153, %v2274
    %v2286 = vadd.f32 %v2154, %v2276
    %v2287 = vadd.f32 %v2155, %v2278
    %v2288 = vadd.f32 %v2156, %v2280
    %v2289 = vld [vmem:[#allocation13 + $0xb] sm:$0x1]
    %v2290 = vlaneseq
    %v2291 = vshrl.u32 %v2290, 7
    %v2292 = vsub.s32 0, %v2291
    %v2293 = vrot.slane %v2289, %v2292
    %2295 = vrot.lane.b32.xlu0 %v2293, 2
    %v2296 = vpop.permute.xlu0 %2295
    %v2298 = vmul.f32 %v2068, %v2296
    %v2299 = vmul.f32 %v2069, %v2296
    %v2300 = vmul.f32 %v2070, %v2296
    %v2301 = vmul.f32 %v2071, %v2296
    %2306 = vrot.lane.b32.xlu0 %v2298, 126
    %v2307 = vpop.permute.xlu0 %2306
    %2308 = vrot.lane.b32.xlu0 %v2299, 126
    %v2309 = vpop.permute.xlu0 %2308
    %2310 = vrot.lane.b32.xlu0 %v2300, 126
    %v2311 = vpop.permute.xlu0 %2310
    %2312 = vrot.lane.b32.xlu0 %v2301, 126
    %v2313 = vpop.permute.xlu0 %2312
    %v2318 = vadd.f32 %v2186, %v2307
    %v2319 = vadd.f32 %v2187, %v2309
    %v2320 = vadd.f32 %v2188, %v2311
    %v2321 = vadd.f32 %v2189, %v2313
    %v2322 = vld [vmem:[#allocation13 + $0x14] sm:$0x1]
    %v2323 = vlaneseq
    %v2324 = vshrl.u32 %v2323, 7
    %v2325 = vsub.s32 0, %v2324
    %v2326 = vrot.slane %v2322, %v2325
    %2328 = vrot.lane.b32.xlu0 %v2326, 2
    %v2329 = vpop.permute.xlu0 %2328
    %v2331 = vmul.f32 %v2068, %v2329
    %v2332 = vmul.f32 %v2069, %v2329
    %v2333 = vmul.f32 %v2070, %v2329
    %v2334 = vmul.f32 %v2071, %v2329
    %2339 = vrot.lane.b32.xlu0 %v2331, 126
    %v2340 = vpop.permute.xlu0 %2339
    %2341 = vrot.lane.b32.xlu0 %v2332, 126
    %v2342 = vpop.permute.xlu0 %2341
    %2343 = vrot.lane.b32.xlu0 %v2333, 126
    %v2344 = vpop.permute.xlu0 %2343
    %2345 = vrot.lane.b32.xlu0 %v2334, 126
    %v2346 = vpop.permute.xlu0 %2345
    %v2351 = vadd.f32 %v2219, %v2340
    %v2352 = vadd.f32 %v2220, %v2342
    %v2353 = vadd.f32 %v2221, %v2344
    %v2354 = vadd.f32 %v2222, %v2346
    %v2355 = vld [vmem:[#allocation13 + $0x1d] sm:$0x1]
    %v2356 = vlaneseq
    %v2357 = vshrl.u32 %v2356, 7
    %v2358 = vsub.s32 0, %v2357
    %v2359 = vrot.slane %v2355, %v2358
    %2361 = vrot.lane.b32.xlu0 %v2359, 2
    %v2362 = vpop.permute.xlu0 %2361
    %v2364 = vmul.f32 %v2068, %v2362
    %v2365 = vmul.f32 %v2069, %v2362
    %v2366 = vmul.f32 %v2070, %v2362
    %v2367 = vmul.f32 %v2071, %v2362
    %2372 = vrot.lane.b32.xlu0 %v2364, 126
    %v2373 = vpop.permute.xlu0 %2372
    %2374 = vrot.lane.b32.xlu0 %v2365, 126
    %v2375 = vpop.permute.xlu0 %2374
    %2376 = vrot.lane.b32.xlu0 %v2366, 126
    %v2377 = vpop.permute.xlu0 %2376
    %2378 = vrot.lane.b32.xlu0 %v2367, 126
    %v2379 = vpop.permute.xlu0 %2378
    %v2384 = vadd.f32 %v2252, %v2373
    %v2385 = vadd.f32 %v2253, %v2375
    %v2386 = vadd.f32 %v2254, %v2377
    %v2387 = vadd.f32 %v2255, %v2379
    %v2388 = vld [vmem:[#allocation3 + $0x1] sm:$0xff]
    %v2389 = vld [vmem:[#allocation3 + $0x9] sm:$0xf]
    %v2390 = vld [vmem:[#allocation3 + $0x19] sm:$0xff]
    %v2391 = vld [vmem:[#allocation3 + $0x21] sm:$0xf]
    %v2392 = vld [vmem:[#allocation13 + $0x3] sm:$0x1]
    %v2393 = vlaneseq
    %v2394 = vshrl.u32 %v2393, 7
    %v2395 = vsub.s32 0, %v2394
    %v2396 = vrot.slane %v2392, %v2395
    %v2397 = vmul.f32 %v2388, %v2396
    %v2398 = vmul.f32 %v2389, %v2396
    %v2399 = vmul.f32 %v2390, %v2396
    %v2400 = vmul.f32 %v2391, %v2396
    %v2401 = vadd.f32 %v2285, %v2397
    %v2402 = vadd.f32 %v2286, %v2398
    %v2403 = vadd.f32 %v2287, %v2399
    %v2404 = vadd.f32 %v2288, %v2400
    %v2405 = vld [vmem:[#allocation13 + $0xc] sm:$0x1]
    %v2406 = vlaneseq
    %v2407 = vshrl.u32 %v2406, 7
    %v2408 = vsub.s32 0, %v2407
    %v2409 = vrot.slane %v2405, %v2408
    %v2410 = vmul.f32 %v2388, %v2409
    %v2411 = vmul.f32 %v2389, %v2409
    %v2412 = vmul.f32 %v2390, %v2409
    %v2413 = vmul.f32 %v2391, %v2409
    %v2414 = vadd.f32 %v2318, %v2410
    %v2415 = vadd.f32 %v2319, %v2411
    %v2416 = vadd.f32 %v2320, %v2412
    %v2417 = vadd.f32 %v2321, %v2413
    %v2418 = vld [vmem:[#allocation13 + $0x15] sm:$0x1]
    %v2419 = vlaneseq
    %v2420 = vshrl.u32 %v2419, 7
    %v2421 = vsub.s32 0, %v2420
    %v2422 = vrot.slane %v2418, %v2421
    %v2423 = vmul.f32 %v2388, %v2422
    %v2424 = vmul.f32 %v2389, %v2422
    %v2425 = vmul.f32 %v2390, %v2422
    %v2426 = vmul.f32 %v2391, %v2422
    %v2427 = vadd.f32 %v2351, %v2423
    %v2428 = vadd.f32 %v2352, %v2424
    %v2429 = vadd.f32 %v2353, %v2425
    %v2430 = vadd.f32 %v2354, %v2426
    %v2431 = vld [vmem:[#allocation13 + $0x1e] sm:$0x1]
    %v2432 = vlaneseq
    %v2433 = vshrl.u32 %v2432, 7
    %v2434 = vsub.s32 0, %v2433
    %v2435 = vrot.slane %v2431, %v2434
    %v2436 = vmul.f32 %v2388, %v2435
    %v2437 = vmul.f32 %v2389, %v2435
    %v2438 = vmul.f32 %v2390, %v2435
    %v2439 = vmul.f32 %v2391, %v2435
    %v2440 = vadd.f32 %v2384, %v2436
    %v2441 = vadd.f32 %v2385, %v2437
    %v2442 = vadd.f32 %v2386, %v2438
    %v2443 = vadd.f32 %v2387, %v2439
    %v2444 = vld [vmem:[#allocation13 + $0x4] sm:$0x1]
    %v2445 = vlaneseq
    %v2446 = vshrl.u32 %v2445, 7
    %v2447 = vsub.s32 0, %v2446
    %v2448 = vrot.slane %v2444, %v2447
    %2450 = vrot.lane.b32.xlu0 %v2448, 1
    %v2451 = vpop.permute.xlu0 %2450
    %v2453 = vmul.f32 %v2388, %v2451
    %v2454 = vmul.f32 %v2389, %v2451
    %v2455 = vmul.f32 %v2390, %v2451
    %v2456 = vmul.f32 %v2391, %v2451
    %2461 = vrot.lane.b32.xlu0 %v2453, 127
    %v2462 = vpop.permute.xlu0 %2461
    %2463 = vrot.lane.b32.xlu0 %v2454, 127
    %v2464 = vpop.permute.xlu0 %2463
    %2465 = vrot.lane.b32.xlu0 %v2455, 127
    %v2466 = vpop.permute.xlu0 %2465
    %2467 = vrot.lane.b32.xlu0 %v2456, 127
    %v2468 = vpop.permute.xlu0 %2467
    %v2473 = vadd.f32 %v2401, %v2462
    %v2474 = vadd.f32 %v2402, %v2464
    %v2475 = vadd.f32 %v2403, %v2466
    %v2476 = vadd.f32 %v2404, %v2468
    %v2477 = vld [vmem:[#allocation13 + $0xd] sm:$0x1]
    %v2478 = vlaneseq
    %v2479 = vshrl.u32 %v2478, 7
    %v2480 = vsub.s32 0, %v2479
    %v2481 = vrot.slane %v2477, %v2480
    %2483 = vrot.lane.b32.xlu0 %v2481, 1
    %v2484 = vpop.permute.xlu0 %2483
    %v2486 = vmul.f32 %v2388, %v2484
    %v2487 = vmul.f32 %v2389, %v2484
    %v2488 = vmul.f32 %v2390, %v2484
    %v2489 = vmul.f32 %v2391, %v2484
    %2494 = vrot.lane.b32.xlu0 %v2486, 127
    %v2495 = vpop.permute.xlu0 %2494
    %2496 = vrot.lane.b32.xlu0 %v2487, 127
    %v2497 = vpop.permute.xlu0 %2496
    %2498 = vrot.lane.b32.xlu0 %v2488, 127
    %v2499 = vpop.permute.xlu0 %2498
    %2500 = vrot.lane.b32.xlu0 %v2489, 127
    %v2501 = vpop.permute.xlu0 %2500
    %v2506 = vadd.f32 %v2414, %v2495
    %v2507 = vadd.f32 %v2415, %v2497
    %v2508 = vadd.f32 %v2416, %v2499
    %v2509 = vadd.f32 %v2417, %v2501
    %v2510 = vld [vmem:[#allocation13 + $0x16] sm:$0x1]
    %v2511 = vlaneseq
    %v2512 = vshrl.u32 %v2511, 7
    %v2513 = vsub.s32 0, %v2512
    %v2514 = vrot.slane %v2510, %v2513
    %2516 = vrot.lane.b32.xlu0 %v2514, 1
    %v2517 = vpop.permute.xlu0 %2516
    %v2519 = vmul.f32 %v2388, %v2517
    %v2520 = vmul.f32 %v2389, %v2517
    %v2521 = vmul.f32 %v2390, %v2517
    %v2522 = vmul.f32 %v2391, %v2517
    %2527 = vrot.lane.b32.xlu0 %v2519, 127
    %v2528 = vpop.permute.xlu0 %2527
    %2529 = vrot.lane.b32.xlu0 %v2520, 127
    %v2530 = vpop.permute.xlu0 %2529
    %2531 = vrot.lane.b32.xlu0 %v2521, 127
    %v2532 = vpop.permute.xlu0 %2531
    %2533 = vrot.lane.b32.xlu0 %v2522, 127
    %v2534 = vpop.permute.xlu0 %2533
    %v2539 = vadd.f32 %v2427, %v2528
    %v2540 = vadd.f32 %v2428, %v2530
    %v2541 = vadd.f32 %v2429, %v2532
    %v2542 = vadd.f32 %v2430, %v2534
    %v2543 = vld [vmem:[#allocation13 + $0x1f] sm:$0x1]
    %v2544 = vlaneseq
    %v2545 = vshrl.u32 %v2544, 7
    %v2546 = vsub.s32 0, %v2545
    %v2547 = vrot.slane %v2543, %v2546
    %2549 = vrot.lane.b32.xlu0 %v2547, 1
    %v2550 = vpop.permute.xlu0 %2549
    %v2552 = vmul.f32 %v2388, %v2550
    %v2553 = vmul.f32 %v2389, %v2550
    %v2554 = vmul.f32 %v2390, %v2550
    %v2555 = vmul.f32 %v2391, %v2550
    %2560 = vrot.lane.b32.xlu0 %v2552, 127
    %v2561 = vpop.permute.xlu0 %2560
    %2562 = vrot.lane.b32.xlu0 %v2553, 127
    %v2563 = vpop.permute.xlu0 %2562
    %2564 = vrot.lane.b32.xlu0 %v2554, 127
    %v2565 = vpop.permute.xlu0 %2564
    %2566 = vrot.lane.b32.xlu0 %v2555, 127
    %v2567 = vpop.permute.xlu0 %2566
    %v2572 = vadd.f32 %v2440, %v2561
    %v2573 = vadd.f32 %v2441, %v2563
    %v2574 = vadd.f32 %v2442, %v2565
    %v2575 = vadd.f32 %v2443, %v2567
    %v2576 = vld [vmem:[#allocation13 + $0x5] sm:$0x1]
    %v2577 = vlaneseq
    %v2578 = vshrl.u32 %v2577, 7
    %v2579 = vsub.s32 0, %v2578
    %v2580 = vrot.slane %v2576, %v2579
    %2582 = vrot.lane.b32.xlu0 %v2580, 2
    %v2583 = vpop.permute.xlu0 %2582
    %v2585 = vmul.f32 %v2388, %v2583
    %v2586 = vmul.f32 %v2389, %v2583
    %v2587 = vmul.f32 %v2390, %v2583
    %v2588 = vmul.f32 %v2391, %v2583
    %2593 = vrot.lane.b32.xlu0 %v2585, 126
    %v2594 = vpop.permute.xlu0 %2593
    %2595 = vrot.lane.b32.xlu0 %v2586, 126
    %v2596 = vpop.permute.xlu0 %2595
    %2597 = vrot.lane.b32.xlu0 %v2587, 126
    %v2598 = vpop.permute.xlu0 %2597
    %2599 = vrot.lane.b32.xlu0 %v2588, 126
    %v2600 = vpop.permute.xlu0 %2599
    %v2605 = vadd.f32 %v2473, %v2594
    %v2606 = vadd.f32 %v2474, %v2596
    %v2607 = vadd.f32 %v2475, %v2598
    %v2608 = vadd.f32 %v2476, %v2600
    %v2609 = vld [vmem:[#allocation13 + $0xe] sm:$0x1]
    %v2610 = vlaneseq
    %v2611 = vshrl.u32 %v2610, 7
    %v2612 = vsub.s32 0, %v2611
    %v2613 = vrot.slane %v2609, %v2612
    %2615 = vrot.lane.b32.xlu0 %v2613, 2
    %v2616 = vpop.permute.xlu0 %2615
    %v2618 = vmul.f32 %v2388, %v2616
    %v2619 = vmul.f32 %v2389, %v2616
    %v2620 = vmul.f32 %v2390, %v2616
    %v2621 = vmul.f32 %v2391, %v2616
    %2626 = vrot.lane.b32.xlu0 %v2618, 126
    %v2627 = vpop.permute.xlu0 %2626
    %2628 = vrot.lane.b32.xlu0 %v2619, 126
    %v2629 = vpop.permute.xlu0 %2628
    %2630 = vrot.lane.b32.xlu0 %v2620, 126
    %v2631 = vpop.permute.xlu0 %2630
    %2632 = vrot.lane.b32.xlu0 %v2621, 126
    %v2633 = vpop.permute.xlu0 %2632
    %v2638 = vadd.f32 %v2506, %v2627
    %v2639 = vadd.f32 %v2507, %v2629
    %v2640 = vadd.f32 %v2508, %v2631
    %v2641 = vadd.f32 %v2509, %v2633
    %v2642 = vld [vmem:[#allocation13 + $0x17] sm:$0x1]
    %v2643 = vlaneseq
    %v2644 = vshrl.u32 %v2643, 7
    %v2645 = vsub.s32 0, %v2644
    %v2646 = vrot.slane %v2642, %v2645
    %2648 = vrot.lane.b32.xlu0 %v2646, 2
    %v2649 = vpop.permute.xlu0 %2648
    %v2651 = vmul.f32 %v2388, %v2649
    %v2652 = vmul.f32 %v2389, %v2649
    %v2653 = vmul.f32 %v2390, %v2649
    %v2654 = vmul.f32 %v2391, %v2649
    %2659 = vrot.lane.b32.xlu0 %v2651, 126
    %v2660 = vpop.permute.xlu0 %2659
    %2661 = vrot.lane.b32.xlu0 %v2652, 126
    %v2662 = vpop.permute.xlu0 %2661
    %2663 = vrot.lane.b32.xlu0 %v2653, 126
    %v2664 = vpop.permute.xlu0 %2663
    %2665 = vrot.lane.b32.xlu0 %v2654, 126
    %v2666 = vpop.permute.xlu0 %2665
    %v2671 = vadd.f32 %v2539, %v2660
    %v2672 = vadd.f32 %v2540, %v2662
    %v2673 = vadd.f32 %v2541, %v2664
    %v2674 = vadd.f32 %v2542, %v2666
    %v2675 = vld [vmem:[#allocation13 + $0x20] sm:$0x1]
    %v2676 = vlaneseq
    %v2677 = vshrl.u32 %v2676, 7
    %v2678 = vsub.s32 0, %v2677
    %v2679 = vrot.slane %v2675, %v2678
    %2681 = vrot.lane.b32.xlu0 %v2679, 2
    %v2682 = vpop.permute.xlu0 %2681
    %v2684 = vmul.f32 %v2388, %v2682
    %v2685 = vmul.f32 %v2389, %v2682
    %v2686 = vmul.f32 %v2390, %v2682
    %v2687 = vmul.f32 %v2391, %v2682
    %2692 = vrot.lane.b32.xlu0 %v2684, 126
    %v2693 = vpop.permute.xlu0 %2692
    %2694 = vrot.lane.b32.xlu0 %v2685, 126
    %v2695 = vpop.permute.xlu0 %2694
    %2696 = vrot.lane.b32.xlu0 %v2686, 126
    %v2697 = vpop.permute.xlu0 %2696
    %2698 = vrot.lane.b32.xlu0 %v2687, 126
    %v2699 = vpop.permute.xlu0 %2698
    %v2704 = vadd.f32 %v2572, %v2693
    %v2705 = vadd.f32 %v2573, %v2695
    %v2706 = vadd.f32 %v2574, %v2697
    %v2707 = vadd.f32 %v2575, %v2699
    %v2708 = vld [vmem:[#allocation3 + $0x2] sm:$0xff]
    %v2709 = vld [vmem:[#allocation3 + $0xa] sm:$0xf]
    %v2710 = vld [vmem:[#allocation3 + $0x1a] sm:$0xff]
    %v2711 = vld [vmem:[#allocation3 + $0x22] sm:$0xf]
    %v2712 = vld [vmem:[#allocation13 + $0x6] sm:$0x1]
    %v2713 = vlaneseq
    %v2714 = vshrl.u32 %v2713, 7
    %v2715 = vsub.s32 0, %v2714
    %v2716 = vrot.slane %v2712, %v2715
    %v2717 = vmul.f32 %v2708, %v2716
    %v2718 = vmul.f32 %v2709, %v2716
    %v2719 = vmul.f32 %v2710, %v2716
    %v2720 = vmul.f32 %v2711, %v2716
    %v2721 = vadd.f32 %v2605, %v2717
    %v2722 = vadd.f32 %v2606, %v2718
    %v2723 = vadd.f32 %v2607, %v2719
    %v2724 = vadd.f32 %v2608, %v2720
    %v2725 = vld [vmem:[#allocation13 + $0xf] sm:$0x1]
    %v2726 = vlaneseq
    %v2727 = vshrl.u32 %v2726, 7
    %v2728 = vsub.s32 0, %v2727
    %v2729 = vrot.slane %v2725, %v2728
    %v2730 = vmul.f32 %v2708, %v2729
    %v2731 = vmul.f32 %v2709, %v2729
    %v2732 = vmul.f32 %v2710, %v2729
    %v2733 = vmul.f32 %v2711, %v2729
    %v2734 = vadd.f32 %v2638, %v2730
    %v2735 = vadd.f32 %v2639, %v2731
    %v2736 = vadd.f32 %v2640, %v2732
    %v2737 = vadd.f32 %v2641, %v2733
    %v2738 = vld [vmem:[#allocation13 + $0x18] sm:$0x1]
    %v2739 = vlaneseq
    %v2740 = vshrl.u32 %v2739, 7
    %v2741 = vsub.s32 0, %v2740
    %v2742 = vrot.slane %v2738, %v2741
    %v2743 = vmul.f32 %v2708, %v2742
    %v2744 = vmul.f32 %v2709, %v2742
    %v2745 = vmul.f32 %v2710, %v2742
    %v2746 = vmul.f32 %v2711, %v2742
    %v2747 = vadd.f32 %v2671, %v2743
    %v2748 = vadd.f32 %v2672, %v2744
    %v2749 = vadd.f32 %v2673, %v2745
    %v2750 = vadd.f32 %v2674, %v2746
    %v2751 = vld [vmem:[#allocation13 + $0x21] sm:$0x1]
    %v2752 = vlaneseq
    %v2753 = vshrl.u32 %v2752, 7
    %v2754 = vsub.s32 0, %v2753
    %v2755 = vrot.slane %v2751, %v2754
    %v2756 = vmul.f32 %v2708, %v2755
    %v2757 = vmul.f32 %v2709, %v2755
    %v2758 = vmul.f32 %v2710, %v2755
    %v2759 = vmul.f32 %v2711, %v2755
    %v2760 = vadd.f32 %v2704, %v2756
    %v2761 = vadd.f32 %v2705, %v2757
    %v2762 = vadd.f32 %v2706, %v2758
    %v2763 = vadd.f32 %v2707, %v2759
    %v2764 = vld [vmem:[#allocation13 + $0x7] sm:$0x1]
    %v2765 = vlaneseq
    %v2766 = vshrl.u32 %v2765, 7
    %v2767 = vsub.s32 0, %v2766
    %v2768 = vrot.slane %v2764, %v2767
    %2770 = vrot.lane.b32.xlu0 %v2768, 1
    %v2771 = vpop.permute.xlu0 %2770
    %v2773 = vmul.f32 %v2708, %v2771
    %v2774 = vmul.f32 %v2709, %v2771
    %v2775 = vmul.f32 %v2710, %v2771
    %v2776 = vmul.f32 %v2711, %v2771
    %2781 = vrot.lane.b32.xlu0 %v2773, 127
    %v2782 = vpop.permute.xlu0 %2781
    %2783 = vrot.lane.b32.xlu0 %v2774, 127
    %v2784 = vpop.permute.xlu0 %2783
    %2785 = vrot.lane.b32.xlu0 %v2775, 127
    %v2786 = vpop.permute.xlu0 %2785
    %2787 = vrot.lane.b32.xlu0 %v2776, 127
    %v2788 = vpop.permute.xlu0 %2787
    %v2793 = vadd.f32 %v2721, %v2782
    %v2794 = vadd.f32 %v2722, %v2784
    %v2795 = vadd.f32 %v2723, %v2786
    %v2796 = vadd.f32 %v2724, %v2788
    %v2797 = vld [vmem:[#allocation13 + $0x10] sm:$0x1]
    %v2798 = vlaneseq
    %v2799 = vshrl.u32 %v2798, 7
    %v2800 = vsub.s32 0, %v2799
    %v2801 = vrot.slane %v2797, %v2800
    %2803 = vrot.lane.b32.xlu0 %v2801, 1
    %v2804 = vpop.permute.xlu0 %2803
    %v2806 = vmul.f32 %v2708, %v2804
    %v2807 = vmul.f32 %v2709, %v2804
    %v2808 = vmul.f32 %v2710, %v2804
    %v2809 = vmul.f32 %v2711, %v2804
    %2814 = vrot.lane.b32.xlu0 %v2806, 127
    %v2815 = vpop.permute.xlu0 %2814
    %2816 = vrot.lane.b32.xlu0 %v2807, 127
    %v2817 = vpop.permute.xlu0 %2816
    %2818 = vrot.lane.b32.xlu0 %v2808, 127
    %v2819 = vpop.permute.xlu0 %2818
    %2820 = vrot.lane.b32.xlu0 %v2809, 127
    %v2821 = vpop.permute.xlu0 %2820
    %v2826 = vadd.f32 %v2734, %v2815
    %v2827 = vadd.f32 %v2735, %v2817
    %v2828 = vadd.f32 %v2736, %v2819
    %v2829 = vadd.f32 %v2737, %v2821
    %v2830 = vld [vmem:[#allocation13 + $0x19] sm:$0x1]
    %v2831 = vlaneseq
    %v2832 = vshrl.u32 %v2831, 7
    %v2833 = vsub.s32 0, %v2832
    %v2834 = vrot.slane %v2830, %v2833
    %2836 = vrot.lane.b32.xlu0 %v2834, 1
    %v2837 = vpop.permute.xlu0 %2836
    %v2839 = vmul.f32 %v2708, %v2837
    %v2840 = vmul.f32 %v2709, %v2837
    %v2841 = vmul.f32 %v2710, %v2837
    %v2842 = vmul.f32 %v2711, %v2837
    %2847 = vrot.lane.b32.xlu0 %v2839, 127
    %v2848 = vpop.permute.xlu0 %2847
    %2849 = vrot.lane.b32.xlu0 %v2840, 127
    %v2850 = vpop.permute.xlu0 %2849
    %2851 = vrot.lane.b32.xlu0 %v2841, 127
    %v2852 = vpop.permute.xlu0 %2851
    %2853 = vrot.lane.b32.xlu0 %v2842, 127
    %v2854 = vpop.permute.xlu0 %2853
    %v2859 = vadd.f32 %v2747, %v2848
    %v2860 = vadd.f32 %v2748, %v2850
    %v2861 = vadd.f32 %v2749, %v2852
    %v2862 = vadd.f32 %v2750, %v2854
    %v2863 = vld [vmem:[#allocation13 + $0x22] sm:$0x1]
    %v2864 = vlaneseq
    %v2865 = vshrl.u32 %v2864, 7
    %v2866 = vsub.s32 0, %v2865
    %v2867 = vrot.slane %v2863, %v2866
    %2869 = vrot.lane.b32.xlu0 %v2867, 1
    %v2870 = vpop.permute.xlu0 %2869
    %v2872 = vmul.f32 %v2708, %v2870
    %v2873 = vmul.f32 %v2709, %v2870
    %v2874 = vmul.f32 %v2710, %v2870
    %v2875 = vmul.f32 %v2711, %v2870
    %2880 = vrot.lane.b32.xlu0 %v2872, 127
    %v2881 = vpop.permute.xlu0 %2880
    %2882 = vrot.lane.b32.xlu0 %v2873, 127
    %v2883 = vpop.permute.xlu0 %2882
    %2884 = vrot.lane.b32.xlu0 %v2874, 127
    %v2885 = vpop.permute.xlu0 %2884
    %2886 = vrot.lane.b32.xlu0 %v2875, 127
    %v2887 = vpop.permute.xlu0 %2886
    %v2892 = vadd.f32 %v2760, %v2881
    %v2893 = vadd.f32 %v2761, %v2883
    %v2894 = vadd.f32 %v2762, %v2885
    %v2895 = vadd.f32 %v2763, %v2887
    %v2896 = vld [vmem:[#allocation13 + $0x8] sm:$0x1]
    %v2897 = vlaneseq
    %v2898 = vshrl.u32 %v2897, 7
    %v2899 = vsub.s32 0, %v2898
    %v2900 = vrot.slane %v2896, %v2899
    %2902 = vrot.lane.b32.xlu0 %v2900, 2
    %v2903 = vpop.permute.xlu0 %2902
    %v2905 = vmul.f32 %v2708, %v2903
    %v2906 = vmul.f32 %v2709, %v2903
    %v2907 = vmul.f32 %v2710, %v2903
    %v2908 = vmul.f32 %v2711, %v2903
    %2913 = vrot.lane.b32.xlu0 %v2905, 126
    %v2914 = vpop.permute.xlu0 %2913
    %2915 = vrot.lane.b32.xlu0 %v2906, 126
    %v2916 = vpop.permute.xlu0 %2915
    %2917 = vrot.lane.b32.xlu0 %v2907, 126
    %v2918 = vpop.permute.xlu0 %2917
    %2919 = vrot.lane.b32.xlu0 %v2908, 126
    %v2920 = vpop.permute.xlu0 %2919
    %v2925 = vadd.f32 %v2793, %v2914
    %v2926 = vadd.f32 %v2794, %v2916
    %v2927 = vadd.f32 %v2795, %v2918
    %v2928 = vadd.f32 %v2796, %v2920
    %v2929 = vld [vmem:[#allocation13 + $0x11] sm:$0x1]
    %v2930 = vlaneseq
    %v2931 = vshrl.u32 %v2930, 7
    %v2932 = vsub.s32 0, %v2931
    %v2933 = vrot.slane %v2929, %v2932
    %2935 = vrot.lane.b32.xlu0 %v2933, 2
    %v2936 = vpop.permute.xlu0 %2935
    %v2938 = vmul.f32 %v2708, %v2936
    %v2939 = vmul.f32 %v2709, %v2936
    %v2940 = vmul.f32 %v2710, %v2936
    %v2941 = vmul.f32 %v2711, %v2936
    %2946 = vrot.lane.b32.xlu0 %v2938, 126
    %v2947 = vpop.permute.xlu0 %2946
    %2948 = vrot.lane.b32.xlu0 %v2939, 126
    %v2949 = vpop.permute.xlu0 %2948
    %2950 = vrot.lane.b32.xlu0 %v2940, 126
    %v2951 = vpop.permute.xlu0 %2950
    %2952 = vrot.lane.b32.xlu0 %v2941, 126
    %v2953 = vpop.permute.xlu0 %2952
    %v2958 = vadd.f32 %v2826, %v2947
    %v2959 = vadd.f32 %v2827, %v2949
    %v2960 = vadd.f32 %v2828, %v2951
    %v2961 = vadd.f32 %v2829, %v2953
    %v2962 = vld [vmem:[#allocation13 + $0x1a] sm:$0x1]
    %v2963 = vlaneseq
    %v2964 = vshrl.u32 %v2963, 7
    %v2965 = vsub.s32 0, %v2964
    %v2966 = vrot.slane %v2962, %v2965
    %2968 = vrot.lane.b32.xlu0 %v2966, 2
    %v2969 = vpop.permute.xlu0 %2968
    %v2971 = vmul.f32 %v2708, %v2969
    %v2972 = vmul.f32 %v2709, %v2969
    %v2973 = vmul.f32 %v2710, %v2969
    %v2974 = vmul.f32 %v2711, %v2969
    %2979 = vrot.lane.b32.xlu0 %v2971, 126
    %v2980 = vpop.permute.xlu0 %2979
    %2981 = vrot.lane.b32.xlu0 %v2972, 126
    %v2982 = vpop.permute.xlu0 %2981
    %2983 = vrot.lane.b32.xlu0 %v2973, 126
    %v2984 = vpop.permute.xlu0 %2983
    %2985 = vrot.lane.b32.xlu0 %v2974, 126
    %v2986 = vpop.permute.xlu0 %2985
    %v2991 = vadd.f32 %v2859, %v2980
    %v2992 = vadd.f32 %v2860, %v2982
    %v2993 = vadd.f32 %v2861, %v2984
    %v2994 = vadd.f32 %v2862, %v2986
    %v2995 = vld [vmem:[#allocation13 + $0x23] sm:$0x1]
    %v2996 = vlaneseq
    %v2997 = vshrl.u32 %v2996, 7
    %v2998 = vsub.s32 0, %v2997
    %v2999 = vrot.slane %v2995, %v2998
    %3001 = vrot.lane.b32.xlu0 %v2999, 2
    %v3002 = vpop.permute.xlu0 %3001
    %v3004 = vmul.f32 %v2708, %v3002
    %v3005 = vmul.f32 %v2709, %v3002
    %v3006 = vmul.f32 %v2710, %v3002
    %v3007 = vmul.f32 %v2711, %v3002
    %3012 = vrot.lane.b32.xlu0 %v3004, 126
    %v3013 = vpop.permute.xlu0 %3012
    %3014 = vrot.lane.b32.xlu0 %v3005, 126
    %v3015 = vpop.permute.xlu0 %3014
    %3016 = vrot.lane.b32.xlu0 %v3006, 126
    %v3017 = vpop.permute.xlu0 %3016
    %3018 = vrot.lane.b32.xlu0 %v3007, 126
    %v3019 = vpop.permute.xlu0 %3018
    %v3024 = vadd.f32 %v2892, %v3013
    %v3025 = vadd.f32 %v2893, %v3015
    %v3026 = vadd.f32 %v2894, %v3017
    %v3027 = vadd.f32 %v2895, %v3019
    %3032 = vrot.lane.b32.xlu0 %v2925, 96
    %v3033 = vpop.permute.xlu0 %3032
    %3034 = vrot.lane.b32.xlu0 %v2926, 96
    %v3035 = vpop.permute.xlu0 %3034
    %3036 = vrot.lane.b32.xlu0 %v2927, 96
    %v3037 = vpop.permute.xlu0 %3036
    %3038 = vrot.lane.b32.xlu0 %v2928, 96
    %v3039 = vpop.permute.xlu0 %3038
    %v3044 = vadd.f32 %v2925, %v3033
    %v3045 = vadd.f32 %v2926, %v3035
    %v3046 = vadd.f32 %v2927, %v3037
    %v3047 = vadd.f32 %v2928, %v3039
    %3048 = vrot.lane.b32.xlu0 %v2925, 64
    %v3049 = vpop.permute.xlu0 %3048
    %3050 = vrot.lane.b32.xlu0 %v2926, 64
    %v3051 = vpop.permute.xlu0 %3050
    %3052 = vrot.lane.b32.xlu0 %v2927, 64
    %v3053 = vpop.permute.xlu0 %3052
    %3054 = vrot.lane.b32.xlu0 %v2928, 64
    %v3055 = vpop.permute.xlu0 %3054
    %v3060 = vadd.f32 %v3044, %v3049
    %v3061 = vadd.f32 %v3045, %v3051
    %v3062 = vadd.f32 %v3046, %v3053
    %v3063 = vadd.f32 %v3047, %v3055
    %3064 = vrot.lane.b32.xlu0 %v2925, 32
    %v3065 = vpop.permute.xlu0 %3064
    %3066 = vrot.lane.b32.xlu0 %v2926, 32
    %v3067 = vpop.permute.xlu0 %3066
    %3068 = vrot.lane.b32.xlu0 %v2927, 32
    %v3069 = vpop.permute.xlu0 %3068
    %3070 = vrot.lane.b32.xlu0 %v2928, 32
    %v3071 = vpop.permute.xlu0 %3070
    %v3076 = vadd.f32 %v3060, %v3065
    %v3077 = vadd.f32 %v3061, %v3067
    %v3078 = vadd.f32 %v3062, %v3069
    %v3079 = vadd.f32 %v3063, %v3071
    %s3080 = sld [smem:[#allocation14]]
    %v3081 = vstv %s3080
    %v3082 = vadd.f32 %v3076, %v3081
    %v3083 = vadd.f32 %v3077, %v3081
    %v3084 = vadd.f32 %v3078, %v3081
    %v3085 = vadd.f32 %v3079, %v3081
    %v3086 = vmax.f32 %v3082, 0.0
    %v3087 = vmax.f32 %v3083, 0.0
    %v3088 = vmax.f32 %v3084, 0.0
    %v3089 = vmax.f32 %v3085, 0.0
    %3094 = vrot.lane.b32.xlu0 %v3086, 2
    %v3095 = vpop.permute.xlu0 %3094
    %3096 = vrot.lane.b32.xlu0 %v3087, 2
    %v3097 = vpop.permute.xlu0 %3096
    %3098 = vrot.lane.b32.xlu0 %v3088, 2
    %v3099 = vpop.permute.xlu0 %3098
    %3100 = vrot.lane.b32.xlu0 %v3089, 2
    %v3101 = vpop.permute.xlu0 %3100
    %vm3106 = vcmask 113680
    %3107 = vst.msk [vmem:[#allocation2 + $0x2] sm:$0xff] %vm3106, %v3095
    %vm3108 = vcmask 109584
    %3109 = vst.msk [vmem:[#allocation2 + $0xa] sm:$0xf] %vm3108, %v3097
    %3110 = vst.msk [vmem:[#allocation2 + $0x1a] sm:$0xff] %vm3106, %v3099
    %3111 = vst.msk [vmem:[#allocation2 + $0x22] sm:$0xf] %vm3108, %v3101
    %3116 = vrot.lane.b32.xlu0 %v2958, 96
    %v3117 = vpop.permute.xlu0 %3116
    %3118 = vrot.lane.b32.xlu0 %v2959, 96
    %v3119 = vpop.permute.xlu0 %3118
    %3120 = vrot.lane.b32.xlu0 %v2960, 96
    %v3121 = vpop.permute.xlu0 %3120
    %3122 = vrot.lane.b32.xlu0 %v2961, 96
    %v3123 = vpop.permute.xlu0 %3122
    %v3128 = vadd.f32 %v2958, %v3117
    %v3129 = vadd.f32 %v2959, %v3119
    %v3130 = vadd.f32 %v2960, %v3121
    %v3131 = vadd.f32 %v2961, %v3123
    %3132 = vrot.lane.b32.xlu0 %v2958, 64
    %v3133 = vpop.permute.xlu0 %3132
    %3134 = vrot.lane.b32.xlu0 %v2959, 64
    %v3135 = vpop.permute.xlu0 %3134
    %3136 = vrot.lane.b32.xlu0 %v2960, 64
    %v3137 = vpop.permute.xlu0 %3136
    %3138 = vrot.lane.b32.xlu0 %v2961, 64
    %v3139 = vpop.permute.xlu0 %3138
    %v3144 = vadd.f32 %v3128, %v3133
    %v3145 = vadd.f32 %v3129, %v3135
    %v3146 = vadd.f32 %v3130, %v3137
    %v3147 = vadd.f32 %v3131, %v3139
    %3148 = vrot.lane.b32.xlu0 %v2958, 32
    %v3149 = vpop.permute.xlu0 %3148
    %3150 = vrot.lane.b32.xlu0 %v2959, 32
    %v3151 = vpop.permute.xlu0 %3150
    %3152 = vrot.lane.b32.xlu0 %v2960, 32
    %v3153 = vpop.permute.xlu0 %3152
    %3154 = vrot.lane.b32.xlu0 %v2961, 32
    %v3155 = vpop.permute.xlu0 %3154
    %v3160 = vadd.f32 %v3144, %v3149
    %v3161 = vadd.f32 %v3145, %v3151
    %v3162 = vadd.f32 %v3146, %v3153
    %v3163 = vadd.f32 %v3147, %v3155
    %s3164 = sld [smem:[#allocation14 + $0x1]]
    %v3165 = vstv %s3164
    %v3166 = vadd.f32 %v3160, %v3165
    %v3167 = vadd.f32 %v3161, %v3165
    %v3168 = vadd.f32 %v3162, %v3165
    %v3169 = vadd.f32 %v3163, %v3165
    %v3170 = vmax.f32 %v3166, 0.0
    %v3171 = vmax.f32 %v3167, 0.0
    %v3172 = vmax.f32 %v3168, 0.0
    %v3173 = vmax.f32 %v3169, 0.0
    %3178 = vrot.lane.b32.xlu0 %v3170, 34
    %v3179 = vpop.permute.xlu0 %3178
    %3180 = vrot.lane.b32.xlu0 %v3171, 34
    %v3181 = vpop.permute.xlu0 %3180
    %3182 = vrot.lane.b32.xlu0 %v3172, 34
    %v3183 = vpop.permute.xlu0 %3182
    %3184 = vrot.lane.b32.xlu0 %v3173, 34
    %v3185 = vpop.permute.xlu0 %3184
    %vm3190 = vcmask 376080
    %3191 = vst.msk [vmem:[#allocation2 + $0x2] sm:$0xff] %vm3190, %v3179
    %vm3192 = vcmask 371984
    %3193 = vst.msk [vmem:[#allocation2 + $0xa] sm:$0xf] %vm3192, %v3181
    %3194 = vst.msk [vmem:[#allocation2 + $0x1a] sm:$0xff] %vm3190, %v3183
    %3195 = vst.msk [vmem:[#allocation2 + $0x22] sm:$0xf] %vm3192, %v3185
    %3200 = vrot.lane.b32.xlu0 %v2991, 96
    %v3201 = vpop.permute.xlu0 %3200
    %3202 = vrot.lane.b32.xlu0 %v2992, 96
    %v3203 = vpop.permute.xlu0 %3202
    %3204 = vrot.lane.b32.xlu0 %v2993, 96
    %v3205 = vpop.permute.xlu0 %3204
    %3206 = vrot.lane.b32.xlu0 %v2994, 96
    %v3207 = vpop.permute.xlu0 %3206
    %v3212 = vadd.f32 %v2991, %v3201
    %v3213 = vadd.f32 %v2992, %v3203
    %v3214 = vadd.f32 %v2993, %v3205
    %v3215 = vadd.f32 %v2994, %v3207
    %3216 = vrot.lane.b32.xlu0 %v2991, 64
    %v3217 = vpop.permute.xlu0 %3216
    %3218 = vrot.lane.b32.xlu0 %v2992, 64
    %v3219 = vpop.permute.xlu0 %3218
    %3220 = vrot.lane.b32.xlu0 %v2993, 64
    %v3221 = vpop.permute.xlu0 %3220
    %3222 = vrot.lane.b32.xlu0 %v2994, 64
    %v3223 = vpop.permute.xlu0 %3222
    %v3228 = vadd.f32 %v3212, %v3217
    %v3229 = vadd.f32 %v3213, %v3219
    %v3230 = vadd.f32 %v3214, %v3221
    %v3231 = vadd.f32 %v3215, %v3223
    %3232 = vrot.lane.b32.xlu0 %v2991, 32
    %v3233 = vpop.permute.xlu0 %3232
    %3234 = vrot.lane.b32.xlu0 %v2992, 32
    %v3235 = vpop.permute.xlu0 %3234
    %3236 = vrot.lane.b32.xlu0 %v2993, 32
    %v3237 = vpop.permute.xlu0 %3236
    %3238 = vrot.lane.b32.xlu0 %v2994, 32
    %v3239 = vpop.permute.xlu0 %3238
    %v3244 = vadd.f32 %v3228, %v3233
    %v3245 = vadd.f32 %v3229, %v3235
    %v3246 = vadd.f32 %v3230, %v3237
    %v3247 = vadd.f32 %v3231, %v3239
    %s3248 = sld [smem:[#allocation14 + $0x2]]
    %v3249 = vstv %s3248
    %v3250 = vadd.f32 %v3244, %v3249
    %v3251 = vadd.f32 %v3245, %v3249
    %v3252 = vadd.f32 %v3246, %v3249
    %v3253 = vadd.f32 %v3247, %v3249
    %v3254 = vmax.f32 %v3250, 0.0
    %v3255 = vmax.f32 %v3251, 0.0
    %v3256 = vmax.f32 %v3252, 0.0
    %v3257 = vmax.f32 %v3253, 0.0
    %3262 = vrot.lane.b32.xlu0 %v3254, 66
    %v3263 = vpop.permute.xlu0 %3262
    %3264 = vrot.lane.b32.xlu0 %v3255, 66
    %v3265 = vpop.permute.xlu0 %3264
    %3266 = vrot.lane.b32.xlu0 %v3256, 66
    %v3267 = vpop.permute.xlu0 %3266
    %3268 = vrot.lane.b32.xlu0 %v3257, 66
    %v3269 = vpop.permute.xlu0 %3268
    %vm3274 = vcmask 638480
    %3275 = vst.msk [vmem:[#allocation2 + $0x2] sm:$0xff] %vm3274, %v3263
    %vm3276 = vcmask 634384
    %3277 = vst.msk [vmem:[#allocation2 + $0xa] sm:$0xf] %vm3276, %v3265
    %3278 = vst.msk [vmem:[#allocation2 + $0x1a] sm:$0xff] %vm3274, %v3267
    %3279 = vst.msk [vmem:[#allocation2 + $0x22] sm:$0xf] %vm3276, %v3269
    %3284 = vrot.lane.b32.xlu0 %v3024, 96
    %v3285 = vpop.permute.xlu0 %3284
    %3286 = vrot.lane.b32.xlu0 %v3025, 96
    %v3287 = vpop.permute.xlu0 %3286
    %3288 = vrot.lane.b32.xlu0 %v3026, 96
    %v3289 = vpop.permute.xlu0 %3288
    %3290 = vrot.lane.b32.xlu0 %v3027, 96
    %v3291 = vpop.permute.xlu0 %3290
    %v3296 = vadd.f32 %v3024, %v3285
    %v3297 = vadd.f32 %v3025, %v3287
    %v3298 = vadd.f32 %v3026, %v3289
    %v3299 = vadd.f32 %v3027, %v3291
    %3300 = vrot.lane.b32.xlu0 %v3024, 64
    %v3301 = vpop.permute.xlu0 %3300
    %3302 = vrot.lane.b32.xlu0 %v3025, 64
    %v3303 = vpop.permute.xlu0 %3302
    %3304 = vrot.lane.b32.xlu0 %v3026, 64
    %v3305 = vpop.permute.xlu0 %3304
    %3306 = vrot.lane.b32.xlu0 %v3027, 64
    %v3307 = vpop.permute.xlu0 %3306
    %v3312 = vadd.f32 %v3296, %v3301
    %v3313 = vadd.f32 %v3297, %v3303
    %v3314 = vadd.f32 %v3298, %v3305
    %v3315 = vadd.f32 %v3299, %v3307
    %3316 = vrot.lane.b32.xlu0 %v3024, 32
    %v3317 = vpop.permute.xlu0 %3316
    %3318 = vrot.lane.b32.xlu0 %v3025, 32
    %v3319 = vpop.permute.xlu0 %3318
    %3320 = vrot.lane.b32.xlu0 %v3026, 32
    %v3321 = vpop.permute.xlu0 %3320
    %3322 = vrot.lane.b32.xlu0 %v3027, 32
    %v3323 = vpop.permute.xlu0 %3322
    %v3328 = vadd.f32 %v3312, %v3317
    %v3329 = vadd.f32 %v3313, %v3319
    %v3330 = vadd.f32 %v3314, %v3321
    %v3331 = vadd.f32 %v3315, %v3323
    %s3332 = sld [smem:[#allocation14 + $0x3]]
    %v3333 = vstv %s3332
    %v3334 = vadd.f32 %v3328, %v3333
    %v3335 = vadd.f32 %v3329, %v3333
    %v3336 = vadd.f32 %v3330, %v3333
    %v3337 = vadd.f32 %v3331, %v3333
    %v3338 = vmax.f32 %v3334, 0.0
    %v3339 = vmax.f32 %v3335, 0.0
    %v3340 = vmax.f32 %v3336, 0.0
    %v3341 = vmax.f32 %v3337, 0.0
    %3346 = vrot.lane.b32.xlu0 %v3338, 98
    %v3347 = vpop.permute.xlu0 %3346
    %3348 = vrot.lane.b32.xlu0 %v3339, 98
    %v3349 = vpop.permute.xlu0 %3348
    %3350 = vrot.lane.b32.xlu0 %v3340, 98
    %v3351 = vpop.permute.xlu0 %3350
    %3352 = vrot.lane.b32.xlu0 %v3341, 98
    %v3353 = vpop.permute.xlu0 %3352
    %vm3358 = vcmask 900880
    %3359 = vst.msk [vmem:[#allocation2 + $0x2] sm:$0xff] %vm3358, %v3347
    %vm3360 = vcmask 896784
    %3361 = vst.msk [vmem:[#allocation2 + $0xa] sm:$0xf] %vm3360, %v3349
    %3362 = vst.msk [vmem:[#allocation2 + $0x1a] sm:$0xff] %vm3358, %v3351
    %3363 = vst.msk [vmem:[#allocation2 + $0x22] sm:$0xf] %vm3360, %v3353
    %v3364 = vld [vmem:[#allocation2] sm:$0xff]
    %v3365 = vld [vmem:[#allocation2 + $0x8] sm:$0x3f]
    %v3366 = vld [vmem:[#allocation2 + $0x18] sm:$0xff]
    %v3367 = vld [vmem:[#allocation2 + $0x20] sm:$0x3f]
    %v3368 = vld [vmem:[#allocation16] sm:$0x1]
    %v3369 = vlaneseq
    %v3370 = vshrl.u32 %v3369, 7
    %v3371 = vsub.s32 0, %v3370
    %v3372 = vrot.slane %v3368, %v3371
    %v3373 = vmul.f32 %v3364, %v3372
    %v3374 = vmul.f32 %v3365, %v3372
    %v3375 = vmul.f32 %v3366, %v3372
    %v3376 = vmul.f32 %v3367, %v3372
    %v3377 = vadd.f32 %v3373, 0.0
    %v3378 = vadd.f32 %v3374, 0.0
    %v3379 = vadd.f32 %v3375, 0.0
    %v3380 = vadd.f32 %v3376, 0.0
    %v3381 = vld [vmem:[#allocation16 + $0x9] sm:$0x1]
    %v3382 = vlaneseq
    %v3383 = vshrl.u32 %v3382, 7
    %v3384 = vsub.s32 0, %v3383
    %v3385 = vrot.slane %v3381, %v3384
    %v3386 = vmul.f32 %v3364, %v3385
    %v3387 = vmul.f32 %v3365, %v3385
    %v3388 = vmul.f32 %v3366, %v3385
    %v3389 = vmul.f32 %v3367, %v3385
    %v3390 = vadd.f32 %v3386, 0.0
    %v3391 = vadd.f32 %v3387, 0.0
    %v3392 = vadd.f32 %v3388, 0.0
    %v3393 = vadd.f32 %v3389, 0.0
    %v3394 = vld [vmem:[#allocation16 + $0x12] sm:$0x1]
    %v3395 = vlaneseq
    %v3396 = vshrl.u32 %v3395, 7
    %v3397 = vsub.s32 0, %v3396
    %v3398 = vrot.slane %v3394, %v3397
    %v3399 = vmul.f32 %v3364, %v3398
    %v3400 = vmul.f32 %v3365, %v3398
    %v3401 = vmul.f32 %v3366, %v3398
    %v3402 = vmul.f32 %v3367, %v3398
    %v3403 = vadd.f32 %v3399, 0.0
    %v3404 = vadd.f32 %v3400, 0.0
    %v3405 = vadd.f32 %v3401, 0.0
    %v3406 = vadd.f32 %v3402, 0.0
    %v3407 = vld [vmem:[#allocation16 + $0x1b] sm:$0x1]
    %v3408 = vlaneseq
    %v3409 = vshrl.u32 %v3408, 7
    %v3410 = vsub.s32 0, %v3409
    %v3411 = vrot.slane %v3407, %v3410
    %v3412 = vmul.f32 %v3364, %v3411
    %v3413 = vmul.f32 %v3365, %v3411
    %v3414 = vmul.f32 %v3366, %v3411
    %v3415 = vmul.f32 %v3367, %v3411
    %v3416 = vadd.f32 %v3412, 0.0
    %v3417 = vadd.f32 %v3413, 0.0
    %v3418 = vadd.f32 %v3414, 0.0
    %v3419 = vadd.f32 %v3415, 0.0
    %v3420 = vld [vmem:[#allocation16 + $0x1] sm:$0x1]
    %v3421 = vlaneseq
    %v3422 = vshrl.u32 %v3421, 7
    %v3423 = vsub.s32 0, %v3422
    %v3424 = vrot.slane %v3420, %v3423
    %3426 = vrot.lane.b32.xlu0 %v3424, 1
    %v3427 = vpop.permute.xlu0 %3426
    %v3429 = vmul.f32 %v3364, %v3427
    %v3430 = vmul.f32 %v3365, %v3427
    %v3431 = vmul.f32 %v3366, %v3427
    %v3432 = vmul.f32 %v3367, %v3427
    %3437 = vrot.lane.b32.xlu0 %v3429, 127
    %v3438 = vpop.permute.xlu0 %3437
    %3439 = vrot.lane.b32.xlu0 %v3430, 127
    %v3440 = vpop.permute.xlu0 %3439
    %3441 = vrot.lane.b32.xlu0 %v3431, 127
    %v3442 = vpop.permute.xlu0 %3441
    %3443 = vrot.lane.b32.xlu0 %v3432, 127
    %v3444 = vpop.permute.xlu0 %3443
    %v3449 = vadd.f32 %v3377, %v3438
    %v3450 = vadd.f32 %v3378, %v3440
    %v3451 = vadd.f32 %v3379, %v3442
    %v3452 = vadd.f32 %v3380, %v3444
    %v3453 = vld [vmem:[#allocation16 + $0xa] sm:$0x1]
    %v3454 = vlaneseq
    %v3455 = vshrl.u32 %v3454, 7
    %v3456 = vsub.s32 0, %v3455
    %v3457 = vrot.slane %v3453, %v3456
    %3459 = vrot.lane.b32.xlu0 %v3457, 1
    %v3460 = vpop.permute.xlu0 %3459
    %v3462 = vmul.f32 %v3364, %v3460
    %v3463 = vmul.f32 %v3365, %v3460
    %v3464 = vmul.f32 %v3366, %v3460
    %v3465 = vmul.f32 %v3367, %v3460
    %3470 = vrot.lane.b32.xlu0 %v3462, 127
    %v3471 = vpop.permute.xlu0 %3470
    %3472 = vrot.lane.b32.xlu0 %v3463, 127
    %v3473 = vpop.permute.xlu0 %3472
    %3474 = vrot.lane.b32.xlu0 %v3464, 127
    %v3475 = vpop.permute.xlu0 %3474
    %3476 = vrot.lane.b32.xlu0 %v3465, 127
    %v3477 = vpop.permute.xlu0 %3476
    %v3482 = vadd.f32 %v3390, %v3471
    %v3483 = vadd.f32 %v3391, %v3473
    %v3484 = vadd.f32 %v3392, %v3475
    %v3485 = vadd.f32 %v3393, %v3477
    %v3486 = vld [vmem:[#allocation16 + $0x13] sm:$0x1]
    %v3487 = vlaneseq
    %v3488 = vshrl.u32 %v3487, 7
    %v3489 = vsub.s32 0, %v3488
    %v3490 = vrot.slane %v3486, %v3489
    %3492 = vrot.lane.b32.xlu0 %v3490, 1
    %v3493 = vpop.permute.xlu0 %3492
    %v3495 = vmul.f32 %v3364, %v3493
    %v3496 = vmul.f32 %v3365, %v3493
    %v3497 = vmul.f32 %v3366, %v3493
    %v3498 = vmul.f32 %v3367, %v3493
    %3503 = vrot.lane.b32.xlu0 %v3495, 127
    %v3504 = vpop.permute.xlu0 %3503
    %3505 = vrot.lane.b32.xlu0 %v3496, 127
    %v3506 = vpop.permute.xlu0 %3505
    %3507 = vrot.lane.b32.xlu0 %v3497, 127
    %v3508 = vpop.permute.xlu0 %3507
    %3509 = vrot.lane.b32.xlu0 %v3498, 127
    %v3510 = vpop.permute.xlu0 %3509
    %v3515 = vadd.f32 %v3403, %v3504
    %v3516 = vadd.f32 %v3404, %v3506
    %v3517 = vadd.f32 %v3405, %v3508
    %v3518 = vadd.f32 %v3406, %v3510
    %v3519 = vld [vmem:[#allocation16 + $0x1c] sm:$0x1]
    %v3520 = vlaneseq
    %v3521 = vshrl.u32 %v3520, 7
    %v3522 = vsub.s32 0, %v3521
    %v3523 = vrot.slane %v3519, %v3522
    %3525 = vrot.lane.b32.xlu0 %v3523, 1
    %v3526 = vpop.permute.xlu0 %3525
    %v3528 = vmul.f32 %v3364, %v3526
    %v3529 = vmul.f32 %v3365, %v3526
    %v3530 = vmul.f32 %v3366, %v3526
    %v3531 = vmul.f32 %v3367, %v3526
    %3536 = vrot.lane.b32.xlu0 %v3528, 127
    %v3537 = vpop.permute.xlu0 %3536
    %3538 = vrot.lane.b32.xlu0 %v3529, 127
    %v3539 = vpop.permute.xlu0 %3538
    %3540 = vrot.lane.b32.xlu0 %v3530, 127
    %v3541 = vpop.permute.xlu0 %3540
    %3542 = vrot.lane.b32.xlu0 %v3531, 127
    %v3543 = vpop.permute.xlu0 %3542
    %v3548 = vadd.f32 %v3416, %v3537
    %v3549 = vadd.f32 %v3417, %v3539
    %v3550 = vadd.f32 %v3418, %v3541
    %v3551 = vadd.f32 %v3419, %v3543
    %v3552 = vld [vmem:[#allocation16 + $0x2] sm:$0x1]
    %v3553 = vlaneseq
    %v3554 = vshrl.u32 %v3553, 7
    %v3555 = vsub.s32 0, %v3554
    %v3556 = vrot.slane %v3552, %v3555
    %3558 = vrot.lane.b32.xlu0 %v3556, 2
    %v3559 = vpop.permute.xlu0 %3558
    %v3561 = vmul.f32 %v3364, %v3559
    %v3562 = vmul.f32 %v3365, %v3559
    %v3563 = vmul.f32 %v3366, %v3559
    %v3564 = vmul.f32 %v3367, %v3559
    %3569 = vrot.lane.b32.xlu0 %v3561, 126
    %v3570 = vpop.permute.xlu0 %3569
    %3571 = vrot.lane.b32.xlu0 %v3562, 126
    %v3572 = vpop.permute.xlu0 %3571
    %3573 = vrot.lane.b32.xlu0 %v3563, 126
    %v3574 = vpop.permute.xlu0 %3573
    %3575 = vrot.lane.b32.xlu0 %v3564, 126
    %v3576 = vpop.permute.xlu0 %3575
    %v3581 = vadd.f32 %v3449, %v3570
    %v3582 = vadd.f32 %v3450, %v3572
    %v3583 = vadd.f32 %v3451, %v3574
    %v3584 = vadd.f32 %v3452, %v3576
    %v3585 = vld [vmem:[#allocation16 + $0xb] sm:$0x1]
    %v3586 = vlaneseq
    %v3587 = vshrl.u32 %v3586, 7
    %v3588 = vsub.s32 0, %v3587
    %v3589 = vrot.slane %v3585, %v3588
    %3591 = vrot.lane.b32.xlu0 %v3589, 2
    %v3592 = vpop.permute.xlu0 %3591
    %v3594 = vmul.f32 %v3364, %v3592
    %v3595 = vmul.f32 %v3365, %v3592
    %v3596 = vmul.f32 %v3366, %v3592
    %v3597 = vmul.f32 %v3367, %v3592
    %3602 = vrot.lane.b32.xlu0 %v3594, 126
    %v3603 = vpop.permute.xlu0 %3602
    %3604 = vrot.lane.b32.xlu0 %v3595, 126
    %v3605 = vpop.permute.xlu0 %3604
    %3606 = vrot.lane.b32.xlu0 %v3596, 126
    %v3607 = vpop.permute.xlu0 %3606
    %3608 = vrot.lane.b32.xlu0 %v3597, 126
    %v3609 = vpop.permute.xlu0 %3608
    %v3614 = vadd.f32 %v3482, %v3603
    %v3615 = vadd.f32 %v3483, %v3605
    %v3616 = vadd.f32 %v3484, %v3607
    %v3617 = vadd.f32 %v3485, %v3609
    %v3618 = vld [vmem:[#allocation16 + $0x14] sm:$0x1]
    %v3619 = vlaneseq
    %v3620 = vshrl.u32 %v3619, 7
    %v3621 = vsub.s32 0, %v3620
    %v3622 = vrot.slane %v3618, %v3621
    %3624 = vrot.lane.b32.xlu0 %v3622, 2
    %v3625 = vpop.permute.xlu0 %3624
    %v3627 = vmul.f32 %v3364, %v3625
    %v3628 = vmul.f32 %v3365, %v3625
    %v3629 = vmul.f32 %v3366, %v3625
    %v3630 = vmul.f32 %v3367, %v3625
    %3635 = vrot.lane.b32.xlu0 %v3627, 126
    %v3636 = vpop.permute.xlu0 %3635
    %3637 = vrot.lane.b32.xlu0 %v3628, 126
    %v3638 = vpop.permute.xlu0 %3637
    %3639 = vrot.lane.b32.xlu0 %v3629, 126
    %v3640 = vpop.permute.xlu0 %3639
    %3641 = vrot.lane.b32.xlu0 %v3630, 126
    %v3642 = vpop.permute.xlu0 %3641
    %v3647 = vadd.f32 %v3515, %v3636
    %v3648 = vadd.f32 %v3516, %v3638
    %v3649 = vadd.f32 %v3517, %v3640
    %v3650 = vadd.f32 %v3518, %v3642
    %v3651 = vld [vmem:[#allocation16 + $0x1d] sm:$0x1]
    %v3652 = vlaneseq
    %v3653 = vshrl.u32 %v3652, 7
    %v3654 = vsub.s32 0, %v3653
    %v3655 = vrot.slane %v3651, %v3654
    %3657 = vrot.lane.b32.xlu0 %v3655, 2
    %v3658 = vpop.permute.xlu0 %3657
    %v3660 = vmul.f32 %v3364, %v3658
    %v3661 = vmul.f32 %v3365, %v3658
    %v3662 = vmul.f32 %v3366, %v3658
    %v3663 = vmul.f32 %v3367, %v3658
    %3668 = vrot.lane.b32.xlu0 %v3660, 126
    %v3669 = vpop.permute.xlu0 %3668
    %3670 = vrot.lane.b32.xlu0 %v3661, 126
    %v3671 = vpop.permute.xlu0 %3670
    %3672 = vrot.lane.b32.xlu0 %v3662, 126
    %v3673 = vpop.permute.xlu0 %3672
    %3674 = vrot.lane.b32.xlu0 %v3663, 126
    %v3675 = vpop.permute.xlu0 %3674
    %v3680 = vadd.f32 %v3548, %v3669
    %v3681 = vadd.f32 %v3549, %v3671
    %v3682 = vadd.f32 %v3550, %v3673
    %v3683 = vadd.f32 %v3551, %v3675
    %v3684 = vld [vmem:[#allocation2 + $0x1] sm:$0xff]
    %v3685 = vld [vmem:[#allocation2 + $0x9] sm:$0x3f]
    %v3686 = vld [vmem:[#allocation2 + $0x19] sm:$0xff]
    %v3687 = vld [vmem:[#allocation2 + $0x21] sm:$0x3f]
    %v3688 = vld [vmem:[#allocation16 + $0x3] sm:$0x1]
    %v3689 = vlaneseq
    %v3690 = vshrl.u32 %v3689, 7
    %v3691 = vsub.s32 0, %v3690
    %v3692 = vrot.slane %v3688, %v3691
    %v3693 = vmul.f32 %v3684, %v3692
    %v3694 = vmul.f32 %v3685, %v3692
    %v3695 = vmul.f32 %v3686, %v3692
    %v3696 = vmul.f32 %v3687, %v3692
    %v3697 = vadd.f32 %v3581, %v3693
    %v3698 = vadd.f32 %v3582, %v3694
    %v3699 = vadd.f32 %v3583, %v3695
    %v3700 = vadd.f32 %v3584, %v3696
    %v3701 = vld [vmem:[#allocation16 + $0xc] sm:$0x1]
    %v3702 = vlaneseq
    %v3703 = vshrl.u32 %v3702, 7
    %v3704 = vsub.s32 0, %v3703
    %v3705 = vrot.slane %v3701, %v3704
    %v3706 = vmul.f32 %v3684, %v3705
    %v3707 = vmul.f32 %v3685, %v3705
    %v3708 = vmul.f32 %v3686, %v3705
    %v3709 = vmul.f32 %v3687, %v3705
    %v3710 = vadd.f32 %v3614, %v3706
    %v3711 = vadd.f32 %v3615, %v3707
    %v3712 = vadd.f32 %v3616, %v3708
    %v3713 = vadd.f32 %v3617, %v3709
    %v3714 = vld [vmem:[#allocation16 + $0x15] sm:$0x1]
    %v3715 = vlaneseq
    %v3716 = vshrl.u32 %v3715, 7
    %v3717 = vsub.s32 0, %v3716
    %v3718 = vrot.slane %v3714, %v3717
    %v3719 = vmul.f32 %v3684, %v3718
    %v3720 = vmul.f32 %v3685, %v3718
    %v3721 = vmul.f32 %v3686, %v3718
    %v3722 = vmul.f32 %v3687, %v3718
    %v3723 = vadd.f32 %v3647, %v3719
    %v3724 = vadd.f32 %v3648, %v3720
    %v3725 = vadd.f32 %v3649, %v3721
    %v3726 = vadd.f32 %v3650, %v3722
    %v3727 = vld [vmem:[#allocation16 + $0x1e] sm:$0x1]
    %v3728 = vlaneseq
    %v3729 = vshrl.u32 %v3728, 7
    %v3730 = vsub.s32 0, %v3729
    %v3731 = vrot.slane %v3727, %v3730
    %v3732 = vmul.f32 %v3684, %v3731
    %v3733 = vmul.f32 %v3685, %v3731
    %v3734 = vmul.f32 %v3686, %v3731
    %v3735 = vmul.f32 %v3687, %v3731
    %v3736 = vadd.f32 %v3680, %v3732
    %v3737 = vadd.f32 %v3681, %v3733
    %v3738 = vadd.f32 %v3682, %v3734
    %v3739 = vadd.f32 %v3683, %v3735
    %v3740 = vld [vmem:[#allocation16 + $0x4] sm:$0x1]
    %v3741 = vlaneseq
    %v3742 = vshrl.u32 %v3741, 7
    %v3743 = vsub.s32 0, %v3742
    %v3744 = vrot.slane %v3740, %v3743
    %3746 = vrot.lane.b32.xlu0 %v3744, 1
    %v3747 = vpop.permute.xlu0 %3746
    %v3749 = vmul.f32 %v3684, %v3747
    %v3750 = vmul.f32 %v3685, %v3747
    %v3751 = vmul.f32 %v3686, %v3747
    %v3752 = vmul.f32 %v3687, %v3747
    %3757 = vrot.lane.b32.xlu0 %v3749, 127
    %v3758 = vpop.permute.xlu0 %3757
    %3759 = vrot.lane.b32.xlu0 %v3750, 127
    %v3760 = vpop.permute.xlu0 %3759
    %3761 = vrot.lane.b32.xlu0 %v3751, 127
    %v3762 = vpop.permute.xlu0 %3761
    %3763 = vrot.lane.b32.xlu0 %v3752, 127
    %v3764 = vpop.permute.xlu0 %3763
    %v3769 = vadd.f32 %v3697, %v3758
    %v3770 = vadd.f32 %v3698, %v3760
    %v3771 = vadd.f32 %v3699, %v3762
    %v3772 = vadd.f32 %v3700, %v3764
    %v3773 = vld [vmem:[#allocation16 + $0xd] sm:$0x1]
    %v3774 = vlaneseq
    %v3775 = vshrl.u32 %v3774, 7
    %v3776 = vsub.s32 0, %v3775
    %v3777 = vrot.slane %v3773, %v3776
    %3779 = vrot.lane.b32.xlu0 %v3777, 1
    %v3780 = vpop.permute.xlu0 %3779
    %v3782 = vmul.f32 %v3684, %v3780
    %v3783 = vmul.f32 %v3685, %v3780
    %v3784 = vmul.f32 %v3686, %v3780
    %v3785 = vmul.f32 %v3687, %v3780
    %3790 = vrot.lane.b32.xlu0 %v3782, 127
    %v3791 = vpop.permute.xlu0 %3790
    %3792 = vrot.lane.b32.xlu0 %v3783, 127
    %v3793 = vpop.permute.xlu0 %3792
    %3794 = vrot.lane.b32.xlu0 %v3784, 127
    %v3795 = vpop.permute.xlu0 %3794
    %3796 = vrot.lane.b32.xlu0 %v3785, 127
    %v3797 = vpop.permute.xlu0 %3796
    %v3802 = vadd.f32 %v3710, %v3791
    %v3803 = vadd.f32 %v3711, %v3793
    %v3804 = vadd.f32 %v3712, %v3795
    %v3805 = vadd.f32 %v3713, %v3797
    %v3806 = vld [vmem:[#allocation16 + $0x16] sm:$0x1]
    %v3807 = vlaneseq
    %v3808 = vshrl.u32 %v3807, 7
    %v3809 = vsub.s32 0, %v3808
    %v3810 = vrot.slane %v3806, %v3809
    %3812 = vrot.lane.b32.xlu0 %v3810, 1
    %v3813 = vpop.permute.xlu0 %3812
    %v3815 = vmul.f32 %v3684, %v3813
    %v3816 = vmul.f32 %v3685, %v3813
    %v3817 = vmul.f32 %v3686, %v3813
    %v3818 = vmul.f32 %v3687, %v3813
    %3823 = vrot.lane.b32.xlu0 %v3815, 127
    %v3824 = vpop.permute.xlu0 %3823
    %3825 = vrot.lane.b32.xlu0 %v3816, 127
    %v3826 = vpop.permute.xlu0 %3825
    %3827 = vrot.lane.b32.xlu0 %v3817, 127
    %v3828 = vpop.permute.xlu0 %3827
    %3829 = vrot.lane.b32.xlu0 %v3818, 127
    %v3830 = vpop.permute.xlu0 %3829
    %v3835 = vadd.f32 %v3723, %v3824
    %v3836 = vadd.f32 %v3724, %v3826
    %v3837 = vadd.f32 %v3725, %v3828
    %v3838 = vadd.f32 %v3726, %v3830
    %v3839 = vld [vmem:[#allocation16 + $0x1f] sm:$0x1]
    %v3840 = vlaneseq
    %v3841 = vshrl.u32 %v3840, 7
    %v3842 = vsub.s32 0, %v3841
    %v3843 = vrot.slane %v3839, %v3842
    %3845 = vrot.lane.b32.xlu0 %v3843, 1
    %v3846 = vpop.permute.xlu0 %3845
    %v3848 = vmul.f32 %v3684, %v3846
    %v3849 = vmul.f32 %v3685, %v3846
    %v3850 = vmul.f32 %v3686, %v3846
    %v3851 = vmul.f32 %v3687, %v3846
    %3856 = vrot.lane.b32.xlu0 %v3848, 127
    %v3857 = vpop.permute.xlu0 %3856
    %3858 = vrot.lane.b32.xlu0 %v3849, 127
    %v3859 = vpop.permute.xlu0 %3858
    %3860 = vrot.lane.b32.xlu0 %v3850, 127
    %v3861 = vpop.permute.xlu0 %3860
    %3862 = vrot.lane.b32.xlu0 %v3851, 127
    %v3863 = vpop.permute.xlu0 %3862
    %v3868 = vadd.f32 %v3736, %v3857
    %v3869 = vadd.f32 %v3737, %v3859
    %v3870 = vadd.f32 %v3738, %v3861
    %v3871 = vadd.f32 %v3739, %v3863
    %v3872 = vld [vmem:[#allocation16 + $0x5] sm:$0x1]
    %v3873 = vlaneseq
    %v3874 = vshrl.u32 %v3873, 7
    %v3875 = vsub.s32 0, %v3874
    %v3876 = vrot.slane %v3872, %v3875
    %3878 = vrot.lane.b32.xlu0 %v3876, 2
    %v3879 = vpop.permute.xlu0 %3878
    %v3881 = vmul.f32 %v3684, %v3879
    %v3882 = vmul.f32 %v3685, %v3879
    %v3883 = vmul.f32 %v3686, %v3879
    %v3884 = vmul.f32 %v3687, %v3879
    %3889 = vrot.lane.b32.xlu0 %v3881, 126
    %v3890 = vpop.permute.xlu0 %3889
    %3891 = vrot.lane.b32.xlu0 %v3882, 126
    %v3892 = vpop.permute.xlu0 %3891
    %3893 = vrot.lane.b32.xlu0 %v3883, 126
    %v3894 = vpop.permute.xlu0 %3893
    %3895 = vrot.lane.b32.xlu0 %v3884, 126
    %v3896 = vpop.permute.xlu0 %3895
    %v3901 = vadd.f32 %v3769, %v3890
    %v3902 = vadd.f32 %v3770, %v3892
    %v3903 = vadd.f32 %v3771, %v3894
    %v3904 = vadd.f32 %v3772, %v3896
    %v3905 = vld [vmem:[#allocation16 + $0xe] sm:$0x1]
    %v3906 = vlaneseq
    %v3907 = vshrl.u32 %v3906, 7
    %v3908 = vsub.s32 0, %v3907
    %v3909 = vrot.slane %v3905, %v3908
    %3911 = vrot.lane.b32.xlu0 %v3909, 2
    %v3912 = vpop.permute.xlu0 %3911
    %v3914 = vmul.f32 %v3684, %v3912
    %v3915 = vmul.f32 %v3685, %v3912
    %v3916 = vmul.f32 %v3686, %v3912
    %v3917 = vmul.f32 %v3687, %v3912
    %3922 = vrot.lane.b32.xlu0 %v3914, 126
    %v3923 = vpop.permute.xlu0 %3922
    %3924 = vrot.lane.b32.xlu0 %v3915, 126
    %v3925 = vpop.permute.xlu0 %3924
    %3926 = vrot.lane.b32.xlu0 %v3916, 126
    %v3927 = vpop.permute.xlu0 %3926
    %3928 = vrot.lane.b32.xlu0 %v3917, 126
    %v3929 = vpop.permute.xlu0 %3928
    %v3934 = vadd.f32 %v3802, %v3923
    %v3935 = vadd.f32 %v3803, %v3925
    %v3936 = vadd.f32 %v3804, %v3927
    %v3937 = vadd.f32 %v3805, %v3929
    %v3938 = vld [vmem:[#allocation16 + $0x17] sm:$0x1]
    %v3939 = vlaneseq
    %v3940 = vshrl.u32 %v3939, 7
    %v3941 = vsub.s32 0, %v3940
    %v3942 = vrot.slane %v3938, %v3941
    %3944 = vrot.lane.b32.xlu0 %v3942, 2
    %v3945 = vpop.permute.xlu0 %3944
    %v3947 = vmul.f32 %v3684, %v3945
    %v3948 = vmul.f32 %v3685, %v3945
    %v3949 = vmul.f32 %v3686, %v3945
    %v3950 = vmul.f32 %v3687, %v3945
    %3955 = vrot.lane.b32.xlu0 %v3947, 126
    %v3956 = vpop.permute.xlu0 %3955
    %3957 = vrot.lane.b32.xlu0 %v3948, 126
    %v3958 = vpop.permute.xlu0 %3957
    %3959 = vrot.lane.b32.xlu0 %v3949, 126
    %v3960 = vpop.permute.xlu0 %3959
    %3961 = vrot.lane.b32.xlu0 %v3950, 126
    %v3962 = vpop.permute.xlu0 %3961
    %v3967 = vadd.f32 %v3835, %v3956
    %v3968 = vadd.f32 %v3836, %v3958
    %v3969 = vadd.f32 %v3837, %v3960
    %v3970 = vadd.f32 %v3838, %v3962
    %v3971 = vld [vmem:[#allocation16 + $0x20] sm:$0x1]
    %v3972 = vlaneseq
    %v3973 = vshrl.u32 %v3972, 7
    %v3974 = vsub.s32 0, %v3973
    %v3975 = vrot.slane %v3971, %v3974
    %3977 = vrot.lane.b32.xlu0 %v3975, 2
    %v3978 = vpop.permute.xlu0 %3977
    %v3980 = vmul.f32 %v3684, %v3978
    %v3981 = vmul.f32 %v3685, %v3978
    %v3982 = vmul.f32 %v3686, %v3978
    %v3983 = vmul.f32 %v3687, %v3978
    %3988 = vrot.lane.b32.xlu0 %v3980, 126
    %v3989 = vpop.permute.xlu0 %3988
    %3990 = vrot.lane.b32.xlu0 %v3981, 126
    %v3991 = vpop.permute.xlu0 %3990
    %3992 = vrot.lane.b32.xlu0 %v3982, 126
    %v3993 = vpop.permute.xlu0 %3992
    %3994 = vrot.lane.b32.xlu0 %v3983, 126
    %v3995 = vpop.permute.xlu0 %3994
    %v4000 = vadd.f32 %v3868, %v3989
    %v4001 = vadd.f32 %v3869, %v3991
    %v4002 = vadd.f32 %v3870, %v3993
    %v4003 = vadd.f32 %v3871, %v3995
    %v4004 = vld [vmem:[#allocation2 + $0x2] sm:$0xff]
    %v4005 = vld [vmem:[#allocation2 + $0xa] sm:$0x3f]
    %v4006 = vld [vmem:[#allocation2 + $0x1a] sm:$0xff]
    %v4007 = vld [vmem:[#allocation2 + $0x22] sm:$0x3f]
    %v4008 = vld [vmem:[#allocation16 + $0x6] sm:$0x1]
    %v4009 = vlaneseq
    %v4010 = vshrl.u32 %v4009, 7
    %v4011 = vsub.s32 0, %v4010
    %v4012 = vrot.slane %v4008, %v4011
    %v4013 = vmul.f32 %v4004, %v4012
    %v4014 = vmul.f32 %v4005, %v4012
    %v4015 = vmul.f32 %v4006, %v4012
    %v4016 = vmul.f32 %v4007, %v4012
    %v4017 = vadd.f32 %v3901, %v4013
    %v4018 = vadd.f32 %v3902, %v4014
    %v4019 = vadd.f32 %v3903, %v4015
    %v4020 = vadd.f32 %v3904, %v4016
    %v4021 = vld [vmem:[#allocation16 + $0xf] sm:$0x1]
    %v4022 = vlaneseq
    %v4023 = vshrl.u32 %v4022, 7
    %v4024 = vsub.s32 0, %v4023
    %v4025 = vrot.slane %v4021, %v4024
    %v4026 = vmul.f32 %v4004, %v4025
    %v4027 = vmul.f32 %v4005, %v4025
    %v4028 = vmul.f32 %v4006, %v4025
    %v4029 = vmul.f32 %v4007, %v4025
    %v4030 = vadd.f32 %v3934, %v4026
    %v4031 = vadd.f32 %v3935, %v4027
    %v4032 = vadd.f32 %v3936, %v4028
    %v4033 = vadd.f32 %v3937, %v4029
    %v4034 = vld [vmem:[#allocation16 + $0x18] sm:$0x1]
    %v4035 = vlaneseq
    %v4036 = vshrl.u32 %v4035, 7
    %v4037 = vsub.s32 0, %v4036
    %v4038 = vrot.slane %v4034, %v4037
    %v4039 = vmul.f32 %v4004, %v4038
    %v4040 = vmul.f32 %v4005, %v4038
    %v4041 = vmul.f32 %v4006, %v4038
    %v4042 = vmul.f32 %v4007, %v4038
    %v4043 = vadd.f32 %v3967, %v4039
    %v4044 = vadd.f32 %v3968, %v4040
    %v4045 = vadd.f32 %v3969, %v4041
    %v4046 = vadd.f32 %v3970, %v4042
    %v4047 = vld [vmem:[#allocation16 + $0x21] sm:$0x1]
    %v4048 = vlaneseq
    %v4049 = vshrl.u32 %v4048, 7
    %v4050 = vsub.s32 0, %v4049
    %v4051 = vrot.slane %v4047, %v4050
    %v4052 = vmul.f32 %v4004, %v4051
    %v4053 = vmul.f32 %v4005, %v4051
    %v4054 = vmul.f32 %v4006, %v4051
    %v4055 = vmul.f32 %v4007, %v4051
    %v4056 = vadd.f32 %v4000, %v4052
    %v4057 = vadd.f32 %v4001, %v4053
    %v4058 = vadd.f32 %v4002, %v4054
    %v4059 = vadd.f32 %v4003, %v4055
    %v4060 = vld [vmem:[#allocation16 + $0x7] sm:$0x1]
    %v4061 = vlaneseq
    %v4062 = vshrl.u32 %v4061, 7
    %v4063 = vsub.s32 0, %v4062
    %v4064 = vrot.slane %v4060, %v4063
    %4066 = vrot.lane.b32.xlu0 %v4064, 1
    %v4067 = vpop.permute.xlu0 %4066
    %v4069 = vmul.f32 %v4004, %v4067
    %v4070 = vmul.f32 %v4005, %v4067
    %v4071 = vmul.f32 %v4006, %v4067
    %v4072 = vmul.f32 %v4007, %v4067
    %4077 = vrot.lane.b32.xlu0 %v4069, 127
    %v4078 = vpop.permute.xlu0 %4077
    %4079 = vrot.lane.b32.xlu0 %v4070, 127
    %v4080 = vpop.permute.xlu0 %4079
    %4081 = vrot.lane.b32.xlu0 %v4071, 127
    %v4082 = vpop.permute.xlu0 %4081
    %4083 = vrot.lane.b32.xlu0 %v4072, 127
    %v4084 = vpop.permute.xlu0 %4083
    %v4089 = vadd.f32 %v4017, %v4078
    %v4090 = vadd.f32 %v4018, %v4080
    %v4091 = vadd.f32 %v4019, %v4082
    %v4092 = vadd.f32 %v4020, %v4084
    %v4093 = vld [vmem:[#allocation16 + $0x10] sm:$0x1]
    %v4094 = vlaneseq
    %v4095 = vshrl.u32 %v4094, 7
    %v4096 = vsub.s32 0, %v4095
    %v4097 = vrot.slane %v4093, %v4096
    %4099 = vrot.lane.b32.xlu0 %v4097, 1
    %v4100 = vpop.permute.xlu0 %4099
    %v4102 = vmul.f32 %v4004, %v4100
    %v4103 = vmul.f32 %v4005, %v4100
    %v4104 = vmul.f32 %v4006, %v4100
    %v4105 = vmul.f32 %v4007, %v4100
    %4110 = vrot.lane.b32.xlu0 %v4102, 127
    %v4111 = vpop.permute.xlu0 %4110
    %4112 = vrot.lane.b32.xlu0 %v4103, 127
    %v4113 = vpop.permute.xlu0 %4112
    %4114 = vrot.lane.b32.xlu0 %v4104, 127
    %v4115 = vpop.permute.xlu0 %4114
    %4116 = vrot.lane.b32.xlu0 %v4105, 127
    %v4117 = vpop.permute.xlu0 %4116
    %v4122 = vadd.f32 %v4030, %v4111
    %v4123 = vadd.f32 %v4031, %v4113
    %v4124 = vadd.f32 %v4032, %v4115
    %v4125 = vadd.f32 %v4033, %v4117
    %v4126 = vld [vmem:[#allocation16 + $0x19] sm:$0x1]
    %v4127 = vlaneseq
    %v4128 = vshrl.u32 %v4127, 7
    %v4129 = vsub.s32 0, %v4128
    %v4130 = vrot.slane %v4126, %v4129
    %4132 = vrot.lane.b32.xlu0 %v4130, 1
    %v4133 = vpop.permute.xlu0 %4132
    %v4135 = vmul.f32 %v4004, %v4133
    %v4136 = vmul.f32 %v4005, %v4133
    %v4137 = vmul.f32 %v4006, %v4133
    %v4138 = vmul.f32 %v4007, %v4133
    %4143 = vrot.lane.b32.xlu0 %v4135, 127
    %v4144 = vpop.permute.xlu0 %4143
    %4145 = vrot.lane.b32.xlu0 %v4136, 127
    %v4146 = vpop.permute.xlu0 %4145
    %4147 = vrot.lane.b32.xlu0 %v4137, 127
    %v4148 = vpop.permute.xlu0 %4147
    %4149 = vrot.lane.b32.xlu0 %v4138, 127
    %v4150 = vpop.permute.xlu0 %4149
    %v4155 = vadd.f32 %v4043, %v4144
    %v4156 = vadd.f32 %v4044, %v4146
    %v4157 = vadd.f32 %v4045, %v4148
    %v4158 = vadd.f32 %v4046, %v4150
    %v4159 = vld [vmem:[#allocation16 + $0x22] sm:$0x1]
    %v4160 = vlaneseq
    %v4161 = vshrl.u32 %v4160, 7
    %v4162 = vsub.s32 0, %v4161
    %v4163 = vrot.slane %v4159, %v4162
    %4165 = vrot.lane.b32.xlu0 %v4163, 1
    %v4166 = vpop.permute.xlu0 %4165
    %v4168 = vmul.f32 %v4004, %v4166
    %v4169 = vmul.f32 %v4005, %v4166
    %v4170 = vmul.f32 %v4006, %v4166
    %v4171 = vmul.f32 %v4007, %v4166
    %4176 = vrot.lane.b32.xlu0 %v4168, 127
    %v4177 = vpop.permute.xlu0 %4176
    %4178 = vrot.lane.b32.xlu0 %v4169, 127
    %v4179 = vpop.permute.xlu0 %4178
    %4180 = vrot.lane.b32.xlu0 %v4170, 127
    %v4181 = vpop.permute.xlu0 %4180
    %4182 = vrot.lane.b32.xlu0 %v4171, 127
    %v4183 = vpop.permute.xlu0 %4182
    %v4188 = vadd.f32 %v4056, %v4177
    %v4189 = vadd.f32 %v4057, %v4179
    %v4190 = vadd.f32 %v4058, %v4181
    %v4191 = vadd.f32 %v4059, %v4183
    %v4192 = vld [vmem:[#allocation16 + $0x8] sm:$0x1]
    %v4193 = vlaneseq
    %v4194 = vshrl.u32 %v4193, 7
    %v4195 = vsub.s32 0, %v4194
    %v4196 = vrot.slane %v4192, %v4195
    %4198 = vrot.lane.b32.xlu0 %v4196, 2
    %v4199 = vpop.permute.xlu0 %4198
    %v4201 = vmul.f32 %v4004, %v4199
    %v4202 = vmul.f32 %v4005, %v4199
    %v4203 = vmul.f32 %v4006, %v4199
    %v4204 = vmul.f32 %v4007, %v4199
    %4209 = vrot.lane.b32.xlu0 %v4201, 126
    %v4210 = vpop.permute.xlu0 %4209
    %4211 = vrot.lane.b32.xlu0 %v4202, 126
    %v4212 = vpop.permute.xlu0 %4211
    %4213 = vrot.lane.b32.xlu0 %v4203, 126
    %v4214 = vpop.permute.xlu0 %4213
    %4215 = vrot.lane.b32.xlu0 %v4204, 126
    %v4216 = vpop.permute.xlu0 %4215
    %v4221 = vadd.f32 %v4089, %v4210
    %v4222 = vadd.f32 %v4090, %v4212
    %v4223 = vadd.f32 %v4091, %v4214
    %v4224 = vadd.f32 %v4092, %v4216
    %v4225 = vld [vmem:[#allocation16 + $0x11] sm:$0x1]
    %v4226 = vlaneseq
    %v4227 = vshrl.u32 %v4226, 7
    %v4228 = vsub.s32 0, %v4227
    %v4229 = vrot.slane %v4225, %v4228
    %4231 = vrot.lane.b32.xlu0 %v4229, 2
    %v4232 = vpop.permute.xlu0 %4231
    %v4234 = vmul.f32 %v4004, %v4232
    %v4235 = vmul.f32 %v4005, %v4232
    %v4236 = vmul.f32 %v4006, %v4232
    %v4237 = vmul.f32 %v4007, %v4232
    %4242 = vrot.lane.b32.xlu0 %v4234, 126
    %v4243 = vpop.permute.xlu0 %4242
    %4244 = vrot.lane.b32.xlu0 %v4235, 126
    %v4245 = vpop.permute.xlu0 %4244
    %4246 = vrot.lane.b32.xlu0 %v4236, 126
    %v4247 = vpop.permute.xlu0 %4246
    %4248 = vrot.lane.b32.xlu0 %v4237, 126
    %v4249 = vpop.permute.xlu0 %4248
    %v4254 = vadd.f32 %v4122, %v4243
    %v4255 = vadd.f32 %v4123, %v4245
    %v4256 = vadd.f32 %v4124, %v4247
    %v4257 = vadd.f32 %v4125, %v4249
    %v4258 = vld [vmem:[#allocation16 + $0x1a] sm:$0x1]
    %v4259 = vlaneseq
    %v4260 = vshrl.u32 %v4259, 7
    %v4261 = vsub.s32 0, %v4260
    %v4262 = vrot.slane %v4258, %v4261
    %4264 = vrot.lane.b32.xlu0 %v4262, 2
    %v4265 = vpop.permute.xlu0 %4264
    %v4267 = vmul.f32 %v4004, %v4265
    %v4268 = vmul.f32 %v4005, %v4265
    %v4269 = vmul.f32 %v4006, %v4265
    %v4270 = vmul.f32 %v4007, %v4265
    %4275 = vrot.lane.b32.xlu0 %v4267, 126
    %v4276 = vpop.permute.xlu0 %4275
    %4277 = vrot.lane.b32.xlu0 %v4268, 126
    %v4278 = vpop.permute.xlu0 %4277
    %4279 = vrot.lane.b32.xlu0 %v4269, 126
    %v4280 = vpop.permute.xlu0 %4279
    %4281 = vrot.lane.b32.xlu0 %v4270, 126
    %v4282 = vpop.permute.xlu0 %4281
    %v4287 = vadd.f32 %v4155, %v4276
    %v4288 = vadd.f32 %v4156, %v4278
    %v4289 = vadd.f32 %v4157, %v4280
    %v4290 = vadd.f32 %v4158, %v4282
    %v4291 = vld [vmem:[#allocation16 + $0x23] sm:$0x1]
    %v4292 = vlaneseq
    %v4293 = vshrl.u32 %v4292, 7
    %v4294 = vsub.s32 0, %v4293
    %v4295 = vrot.slane %v4291, %v4294
    %4297 = vrot.lane.b32.xlu0 %v4295, 2
    %v4298 = vpop.permute.xlu0 %4297
    %v4300 = vmul.f32 %v4004, %v4298
    %v4301 = vmul.f32 %v4005, %v4298
    %v4302 = vmul.f32 %v4006, %v4298
    %v4303 = vmul.f32 %v4007, %v4298
    %4308 = vrot.lane.b32.xlu0 %v4300, 126
    %v4309 = vpop.permute.xlu0 %4308
    %4310 = vrot.lane.b32.xlu0 %v4301, 126
    %v4311 = vpop.permute.xlu0 %4310
    %4312 = vrot.lane.b32.xlu0 %v4302, 126
    %v4313 = vpop.permute.xlu0 %4312
    %4314 = vrot.lane.b32.xlu0 %v4303, 126
    %v4315 = vpop.permute.xlu0 %4314
    %v4320 = vadd.f32 %v4188, %v4309
    %v4321 = vadd.f32 %v4189, %v4311
    %v4322 = vadd.f32 %v4190, %v4313
    %v4323 = vadd.f32 %v4191, %v4315
    %4328 = vrot.lane.b32.xlu0 %v4221, 96
    %v4329 = vpop.permute.xlu0 %4328
    %4330 = vrot.lane.b32.xlu0 %v4222, 96
    %v4331 = vpop.permute.xlu0 %4330
    %4332 = vrot.lane.b32.xlu0 %v4223, 96
    %v4333 = vpop.permute.xlu0 %4332
    %4334 = vrot.lane.b32.xlu0 %v4224, 96
    %v4335 = vpop.permute.xlu0 %4334
    %v4340 = vadd.f32 %v4221, %v4329
    %v4341 = vadd.f32 %v4222, %v4331
    %v4342 = vadd.f32 %v4223, %v4333
    %v4343 = vadd.f32 %v4224, %v4335
    %4344 = vrot.lane.b32.xlu0 %v4221, 64
    %v4345 = vpop.permute.xlu0 %4344
    %4346 = vrot.lane.b32.xlu0 %v4222, 64
    %v4347 = vpop.permute.xlu0 %4346
    %4348 = vrot.lane.b32.xlu0 %v4223, 64
    %v4349 = vpop.permute.xlu0 %4348
    %4350 = vrot.lane.b32.xlu0 %v4224, 64
    %v4351 = vpop.permute.xlu0 %4350
    %v4356 = vadd.f32 %v4340, %v4345
    %v4357 = vadd.f32 %v4341, %v4347
    %v4358 = vadd.f32 %v4342, %v4349
    %v4359 = vadd.f32 %v4343, %v4351
    %4360 = vrot.lane.b32.xlu0 %v4221, 32
    %v4361 = vpop.permute.xlu0 %4360
    %4362 = vrot.lane.b32.xlu0 %v4222, 32
    %v4363 = vpop.permute.xlu0 %4362
    %4364 = vrot.lane.b32.xlu0 %v4223, 32
    %v4365 = vpop.permute.xlu0 %4364
    %4366 = vrot.lane.b32.xlu0 %v4224, 32
    %v4367 = vpop.permute.xlu0 %4366
    %v4372 = vadd.f32 %v4356, %v4361
    %v4373 = vadd.f32 %v4357, %v4363
    %v4374 = vadd.f32 %v4358, %v4365
    %v4375 = vadd.f32 %v4359, %v4367
    %s4376 = sld [smem:[#allocation18]]
    %v4377 = vstv %s4376
    %v4378 = vadd.f32 %v4372, %v4377
    %v4379 = vadd.f32 %v4373, %v4377
    %v4380 = vadd.f32 %v4374, %v4377
    %v4381 = vadd.f32 %v4375, %v4377
    %v4382 = vmax.f32 %v4378, 0.0
    %v4383 = vmax.f32 %v4379, 0.0
    %v4384 = vmax.f32 %v4380, 0.0
    %v4385 = vmax.f32 %v4381, 0.0
    %4390 = vrot.lane.b32.xlu0 %v4382, 2
    %v4391 = vpop.permute.xlu0 %4390
    %4392 = vrot.lane.b32.xlu0 %v4383, 2
    %v4393 = vpop.permute.xlu0 %4392
    %4394 = vrot.lane.b32.xlu0 %v4384, 2
    %v4395 = vpop.permute.xlu0 %4394
    %4396 = vrot.lane.b32.xlu0 %v4385, 2
    %v4397 = vpop.permute.xlu0 %4396
    %vm4402 = vcmask 130064
    %4403 = vst.msk [vmem:[#allocation3 + $0x2] sm:$0xff] %vm4402, %v4391
    %vm4404 = vcmask 128016
    %4405 = vst.msk [vmem:[#allocation3 + $0xa] sm:$0x3f] %vm4404, %v4393
    %4406 = vst.msk [vmem:[#allocation3 + $0x1a] sm:$0xff] %vm4402, %v4395
    %4407 = vst.msk [vmem:[#allocation3 + $0x22] sm:$0x3f] %vm4404, %v4397
    %4412 = vrot.lane.b32.xlu0 %v4254, 96
    %v4413 = vpop.permute.xlu0 %4412
    %4414 = vrot.lane.b32.xlu0 %v4255, 96
    %v4415 = vpop.permute.xlu0 %4414
    %4416 = vrot.lane.b32.xlu0 %v4256, 96
    %v4417 = vpop.permute.xlu0 %4416
    %4418 = vrot.lane.b32.xlu0 %v4257, 96
    %v4419 = vpop.permute.xlu0 %4418
    %v4424 = vadd.f32 %v4254, %v4413
    %v4425 = vadd.f32 %v4255, %v4415
    %v4426 = vadd.f32 %v4256, %v4417
    %v4427 = vadd.f32 %v4257, %v4419
    %4428 = vrot.lane.b32.xlu0 %v4254, 64
    %v4429 = vpop.permute.xlu0 %4428
    %4430 = vrot.lane.b32.xlu0 %v4255, 64
    %v4431 = vpop.permute.xlu0 %4430
    %4432 = vrot.lane.b32.xlu0 %v4256, 64
    %v4433 = vpop.permute.xlu0 %4432
    %4434 = vrot.lane.b32.xlu0 %v4257, 64
    %v4435 = vpop.permute.xlu0 %4434
    %v4440 = vadd.f32 %v4424, %v4429
    %v4441 = vadd.f32 %v4425, %v4431
    %v4442 = vadd.f32 %v4426, %v4433
    %v4443 = vadd.f32 %v4427, %v4435
    %4444 = vrot.lane.b32.xlu0 %v4254, 32
    %v4445 = vpop.permute.xlu0 %4444
    %4446 = vrot.lane.b32.xlu0 %v4255, 32
    %v4447 = vpop.permute.xlu0 %4446
    %4448 = vrot.lane.b32.xlu0 %v4256, 32
    %v4449 = vpop.permute.xlu0 %4448
    %4450 = vrot.lane.b32.xlu0 %v4257, 32
    %v4451 = vpop.permute.xlu0 %4450
    %v4456 = vadd.f32 %v4440, %v4445
    %v4457 = vadd.f32 %v4441, %v4447
    %v4458 = vadd.f32 %v4442, %v4449
    %v4459 = vadd.f32 %v4443, %v4451
    %s4460 = sld [smem:[#allocation18 + $0x1]]
    %v4461 = vstv %s4460
    %v4462 = vadd.f32 %v4456, %v4461
    %v4463 = vadd.f32 %v4457, %v4461
    %v4464 = vadd.f32 %v4458, %v4461
    %v4465 = vadd.f32 %v4459, %v4461
    %v4466 = vmax.f32 %v4462, 0.0
    %v4467 = vmax.f32 %v4463, 0.0
    %v4468 = vmax.f32 %v4464, 0.0
    %v4469 = vmax.f32 %v4465, 0.0
    %4474 = vrot.lane.b32.xlu0 %v4466, 34
    %v4475 = vpop.permute.xlu0 %4474
    %4476 = vrot.lane.b32.xlu0 %v4467, 34
    %v4477 = vpop.permute.xlu0 %4476
    %4478 = vrot.lane.b32.xlu0 %v4468, 34
    %v4479 = vpop.permute.xlu0 %4478
    %4480 = vrot.lane.b32.xlu0 %v4469, 34
    %v4481 = vpop.permute.xlu0 %4480
    %vm4486 = vcmask 392464
    %4487 = vst.msk [vmem:[#allocation3 + $0x2] sm:$0xff] %vm4486, %v4475
    %vm4488 = vcmask 390416
    %4489 = vst.msk [vmem:[#allocation3 + $0xa] sm:$0x3f] %vm4488, %v4477
    %4490 = vst.msk [vmem:[#allocation3 + $0x1a] sm:$0xff] %vm4486, %v4479
    %4491 = vst.msk [vmem:[#allocation3 + $0x22] sm:$0x3f] %vm4488, %v4481
    %4496 = vrot.lane.b32.xlu0 %v4287, 96
    %v4497 = vpop.permute.xlu0 %4496
    %4498 = vrot.lane.b32.xlu0 %v4288, 96
    %v4499 = vpop.permute.xlu0 %4498
    %4500 = vrot.lane.b32.xlu0 %v4289, 96
    %v4501 = vpop.permute.xlu0 %4500
    %4502 = vrot.lane.b32.xlu0 %v4290, 96
    %v4503 = vpop.permute.xlu0 %4502
    %v4508 = vadd.f32 %v4287, %v4497
    %v4509 = vadd.f32 %v4288, %v4499
    %v4510 = vadd.f32 %v4289, %v4501
    %v4511 = vadd.f32 %v4290, %v4503
    %4512 = vrot.lane.b32.xlu0 %v4287, 64
    %v4513 = vpop.permute.xlu0 %4512
    %4514 = vrot.lane.b32.xlu0 %v4288, 64
    %v4515 = vpop.permute.xlu0 %4514
    %4516 = vrot.lane.b32.xlu0 %v4289, 64
    %v4517 = vpop.permute.xlu0 %4516
    %4518 = vrot.lane.b32.xlu0 %v4290, 64
    %v4519 = vpop.permute.xlu0 %4518
    %v4524 = vadd.f32 %v4508, %v4513
    %v4525 = vadd.f32 %v4509, %v4515
    %v4526 = vadd.f32 %v4510, %v4517
    %v4527 = vadd.f32 %v4511, %v4519
    %4528 = vrot.lane.b32.xlu0 %v4287, 32
    %v4529 = vpop.permute.xlu0 %4528
    %4530 = vrot.lane.b32.xlu0 %v4288, 32
    %v4531 = vpop.permute.xlu0 %4530
    %4532 = vrot.lane.b32.xlu0 %v4289, 32
    %v4533 = vpop.permute.xlu0 %4532
    %4534 = vrot.lane.b32.xlu0 %v4290, 32
    %v4535 = vpop.permute.xlu0 %4534
    %v4540 = vadd.f32 %v4524, %v4529
    %v4541 = vadd.f32 %v4525, %v4531
    %v4542 = vadd.f32 %v4526, %v4533
    %v4543 = vadd.f32 %v4527, %v4535
    %s4544 = sld [smem:[#allocation18 + $0x2]]
    %v4545 = vstv %s4544
    %v4546 = vadd.f32 %v4540, %v4545
    %v4547 = vadd.f32 %v4541, %v4545
    %v4548 = vadd.f32 %v4542, %v4545
    %v4549 = vadd.f32 %v4543, %v4545
    %v4550 = vmax.f32 %v4546, 0.0
    %v4551 = vmax.f32 %v4547, 0.0
    %v4552 = vmax.f32 %v4548, 0.0
    %v4553 = vmax.f32 %v4549, 0.0
    %4558 = vrot.lane.b32.xlu0 %v4550, 66
    %v4559 = vpop.permute.xlu0 %4558
    %4560 = vrot.lane.b32.xlu0 %v4551, 66
    %v4561 = vpop.permute.xlu0 %4560
    %4562 = vrot.lane.b32.xlu0 %v4552, 66
    %v4563 = vpop.permute.xlu0 %4562
    %4564 = vrot.lane.b32.xlu0 %v4553, 66
    %v4565 = vpop.permute.xlu0 %4564
    %vm4570 = vcmask 654864
    %4571 = vst.msk [vmem:[#allocation3 + $0x2] sm:$0xff] %vm4570, %v4559
    %vm4572 = vcmask 652816
    %4573 = vst.msk [vmem:[#allocation3 + $0xa] sm:$0x3f] %vm4572, %v4561
    %4574 = vst.msk [vmem:[#allocation3 + $0x1a] sm:$0xff] %vm4570, %v4563
    %4575 = vst.msk [vmem:[#allocation3 + $0x22] sm:$0x3f] %vm4572, %v4565
    %4580 = vrot.lane.b32.xlu0 %v4320, 96
    %v4581 = vpop.permute.xlu0 %4580
    %4582 = vrot.lane.b32.xlu0 %v4321, 96
    %v4583 = vpop.permute.xlu0 %4582
    %4584 = vrot.lane.b32.xlu0 %v4322, 96
    %v4585 = vpop.permute.xlu0 %4584
    %4586 = vrot.lane.b32.xlu0 %v4323, 96
    %v4587 = vpop.permute.xlu0 %4586
    %v4592 = vadd.f32 %v4320, %v4581
    %v4593 = vadd.f32 %v4321, %v4583
    %v4594 = vadd.f32 %v4322, %v4585
    %v4595 = vadd.f32 %v4323, %v4587
    %4596 = vrot.lane.b32.xlu0 %v4320, 64
    %v4597 = vpop.permute.xlu0 %4596
    %4598 = vrot.lane.b32.xlu0 %v4321, 64
    %v4599 = vpop.permute.xlu0 %4598
    %4600 = vrot.lane.b32.xlu0 %v4322, 64
    %v4601 = vpop.permute.xlu0 %4600
    %4602 = vrot.lane.b32.xlu0 %v4323, 64
    %v4603 = vpop.permute.xlu0 %4602
    %v4608 = vadd.f32 %v4592, %v4597
    %v4609 = vadd.f32 %v4593, %v4599
    %v4610 = vadd.f32 %v4594, %v4601
    %v4611 = vadd.f32 %v4595, %v4603
    %4612 = vrot.lane.b32.xlu0 %v4320, 32
    %v4613 = vpop.permute.xlu0 %4612
    %4614 = vrot.lane.b32.xlu0 %v4321, 32
    %v4615 = vpop.permute.xlu0 %4614
    %4616 = vrot.lane.b32.xlu0 %v4322, 32
    %v4617 = vpop.permute.xlu0 %4616
    %4618 = vrot.lane.b32.xlu0 %v4323, 32
    %v4619 = vpop.permute.xlu0 %4618
    %v4624 = vadd.f32 %v4608, %v4613
    %v4625 = vadd.f32 %v4609, %v4615
    %v4626 = vadd.f32 %v4610, %v4617
    %v4627 = vadd.f32 %v4611, %v4619
    %s4628 = sld [smem:[#allocation18 + $0x3]]
    %v4629 = vstv %s4628
    %v4630 = vadd.f32 %v4624, %v4629
    %v4631 = vadd.f32 %v4625, %v4629
    %v4632 = vadd.f32 %v4626, %v4629
    %v4633 = vadd.f32 %v4627, %v4629
    %v4634 = vmax.f32 %v4630, 0.0
    %v4635 = vmax.f32 %v4631, 0.0
    %v4636 = vmax.f32 %v4632, 0.0
    %v4637 = vmax.f32 %v4633, 0.0
    %4642 = vrot.lane.b32.xlu0 %v4634, 98
    %v4643 = vpop.permute.xlu0 %4642
    %4644 = vrot.lane.b32.xlu0 %v4635, 98
    %v4645 = vpop.permute.xlu0 %4644
    %4646 = vrot.lane.b32.xlu0 %v4636, 98
    %v4647 = vpop.permute.xlu0 %4646
    %4648 = vrot.lane.b32.xlu0 %v4637, 98
    %v4649 = vpop.permute.xlu0 %4648
    %vm4654 = vcmask 917264
    %4655 = vst.msk [vmem:[#allocation3 + $0x2] sm:$0xff] %vm4654, %v4643
    %vm4656 = vcmask 915216
    %4657 = vst.msk [vmem:[#allocation3 + $0xa] sm:$0x3f] %vm4656, %v4645
    %4658 = vst.msk [vmem:[#allocation3 + $0x1a] sm:$0xff] %vm4654, %v4647
    %4659 = vst.msk [vmem:[#allocation3 + $0x22] sm:$0x3f] %vm4656, %v4649
    %v4660 = vld [vmem:[#allocation3] sm:$0xff]
    %v4661 = vld [vmem:[#allocation3 + $0x8] sm:$0xff]
    %v4662 = vld [vmem:[#allocation3 + $0x18] sm:$0xff]
    %v4663 = vld [vmem:[#allocation3 + $0x20] sm:$0xff]
    %v4664 = vld [vmem:[#allocation19] sm:$0x1]
    %v4665 = vlaneseq
    %v4666 = vshrl.u32 %v4665, 7
    %v4667 = vsub.s32 0, %v4666
    %v4668 = vrot.slane %v4664, %v4667
    %v4669 = vmul.f32 %v4660, %v4668
    %v4670 = vmul.f32 %v4661, %v4668
    %v4671 = vmul.f32 %v4662, %v4668
    %v4672 = vmul.f32 %v4663, %v4668
    %v4673 = vadd.f32 %v4669, 0.0
    %v4674 = vadd.f32 %v4670, 0.0
    %v4675 = vadd.f32 %v4671, 0.0
    %v4676 = vadd.f32 %v4672, 0.0
    %v4677 = vld [vmem:[#allocation19 + $0x9] sm:$0x1]
    %v4678 = vlaneseq
    %v4679 = vshrl.u32 %v4678, 7
    %v4680 = vsub.s32 0, %v4679
    %v4681 = vrot.slane %v4677, %v4680
    %v4682 = vmul.f32 %v4660, %v4681
    %v4683 = vmul.f32 %v4661, %v4681
    %v4684 = vmul.f32 %v4662, %v4681
    %v4685 = vmul.f32 %v4663, %v4681
    %v4686 = vadd.f32 %v4682, 0.0
    %v4687 = vadd.f32 %v4683, 0.0
    %v4688 = vadd.f32 %v4684, 0.0
    %v4689 = vadd.f32 %v4685, 0.0
    %v4690 = vld [vmem:[#allocation19 + $0x12] sm:$0x1]
    %v4691 = vlaneseq
    %v4692 = vshrl.u32 %v4691, 7
    %v4693 = vsub.s32 0, %v4692
    %v4694 = vrot.slane %v4690, %v4693
    %v4695 = vmul.f32 %v4660, %v4694
    %v4696 = vmul.f32 %v4661, %v4694
    %v4697 = vmul.f32 %v4662, %v4694
    %v4698 = vmul.f32 %v4663, %v4694
    %v4699 = vadd.f32 %v4695, 0.0
    %v4700 = vadd.f32 %v4696, 0.0
    %v4701 = vadd.f32 %v4697, 0.0
    %v4702 = vadd.f32 %v4698, 0.0
    %v4703 = vld [vmem:[#allocation19 + $0x1] sm:$0x1]
    %v4704 = vlaneseq
    %v4705 = vshrl.u32 %v4704, 7
    %v4706 = vsub.s32 0, %v4705
    %v4707 = vrot.slane %v4703, %v4706
    %4709 = vrot.lane.b32.xlu0 %v4707, 1
    %v4710 = vpop.permute.xlu0 %4709
    %v4712 = vmul.f32 %v4660, %v4710
    %v4713 = vmul.f32 %v4661, %v4710
    %v4714 = vmul.f32 %v4662, %v4710
    %v4715 = vmul.f32 %v4663, %v4710
    %4720 = vrot.lane.b32.xlu0 %v4712, 127
    %v4721 = vpop.permute.xlu0 %4720
    %4722 = vrot.lane.b32.xlu0 %v4713, 127
    %v4723 = vpop.permute.xlu0 %4722
    %4724 = vrot.lane.b32.xlu0 %v4714, 127
    %v4725 = vpop.permute.xlu0 %4724
    %4726 = vrot.lane.b32.xlu0 %v4715, 127
    %v4727 = vpop.permute.xlu0 %4726
    %v4732 = vadd.f32 %v4673, %v4721
    %v4733 = vadd.f32 %v4674, %v4723
    %v4734 = vadd.f32 %v4675, %v4725
    %v4735 = vadd.f32 %v4676, %v4727
    %v4736 = vld [vmem:[#allocation19 + $0xa] sm:$0x1]
    %v4737 = vlaneseq
    %v4738 = vshrl.u32 %v4737, 7
    %v4739 = vsub.s32 0, %v4738
    %v4740 = vrot.slane %v4736, %v4739
    %4742 = vrot.lane.b32.xlu0 %v4740, 1
    %v4743 = vpop.permute.xlu0 %4742
    %v4745 = vmul.f32 %v4660, %v4743
    %v4746 = vmul.f32 %v4661, %v4743
    %v4747 = vmul.f32 %v4662, %v4743
    %v4748 = vmul.f32 %v4663, %v4743
    %4753 = vrot.lane.b32.xlu0 %v4745, 127
    %v4754 = vpop.permute.xlu0 %4753
    %4755 = vrot.lane.b32.xlu0 %v4746, 127
    %v4756 = vpop.permute.xlu0 %4755
    %4757 = vrot.lane.b32.xlu0 %v4747, 127
    %v4758 = vpop.permute.xlu0 %4757
    %4759 = vrot.lane.b32.xlu0 %v4748, 127
    %v4760 = vpop.permute.xlu0 %4759
    %v4765 = vadd.f32 %v4686, %v4754
    %v4766 = vadd.f32 %v4687, %v4756
    %v4767 = vadd.f32 %v4688, %v4758
    %v4768 = vadd.f32 %v4689, %v4760
    %v4769 = vld [vmem:[#allocation19 + $0x13] sm:$0x1]
    %v4770 = vlaneseq
    %v4771 = vshrl.u32 %v4770, 7
    %v4772 = vsub.s32 0, %v4771
    %v4773 = vrot.slane %v4769, %v4772
    %4775 = vrot.lane.b32.xlu0 %v4773, 1
    %v4776 = vpop.permute.xlu0 %4775
    %v4778 = vmul.f32 %v4660, %v4776
    %v4779 = vmul.f32 %v4661, %v4776
    %v4780 = vmul.f32 %v4662, %v4776
    %v4781 = vmul.f32 %v4663, %v4776
    %4786 = vrot.lane.b32.xlu0 %v4778, 127
    %v4787 = vpop.permute.xlu0 %4786
    %4788 = vrot.lane.b32.xlu0 %v4779, 127
    %v4789 = vpop.permute.xlu0 %4788
    %4790 = vrot.lane.b32.xlu0 %v4780, 127
    %v4791 = vpop.permute.xlu0 %4790
    %4792 = vrot.lane.b32.xlu0 %v4781, 127
    %v4793 = vpop.permute.xlu0 %4792
    %v4798 = vadd.f32 %v4699, %v4787
    %v4799 = vadd.f32 %v4700, %v4789
    %v4800 = vadd.f32 %v4701, %v4791
    %v4801 = vadd.f32 %v4702, %v4793
    %v4802 = vld [vmem:[#allocation19 + $0x2] sm:$0x1]
    %v4803 = vlaneseq
    %v4804 = vshrl.u32 %v4803, 7
    %v4805 = vsub.s32 0, %v4804
    %v4806 = vrot.slane %v4802, %v4805
    %4808 = vrot.lane.b32.xlu0 %v4806, 2
    %v4809 = vpop.permute.xlu0 %4808
    %v4811 = vmul.f32 %v4660, %v4809
    %v4812 = vmul.f32 %v4661, %v4809
    %v4813 = vmul.f32 %v4662, %v4809
    %v4814 = vmul.f32 %v4663, %v4809
    %4819 = vrot.lane.b32.xlu0 %v4811, 126
    %v4820 = vpop.permute.xlu0 %4819
    %4821 = vrot.lane.b32.xlu0 %v4812, 126
    %v4822 = vpop.permute.xlu0 %4821
    %4823 = vrot.lane.b32.xlu0 %v4813, 126
    %v4824 = vpop.permute.xlu0 %4823
    %4825 = vrot.lane.b32.xlu0 %v4814, 126
    %v4826 = vpop.permute.xlu0 %4825
    %v4831 = vadd.f32 %v4732, %v4820
    %v4832 = vadd.f32 %v4733, %v4822
    %v4833 = vadd.f32 %v4734, %v4824
    %v4834 = vadd.f32 %v4735, %v4826
    %v4835 = vld [vmem:[#allocation19 + $0xb] sm:$0x1]
    %v4836 = vlaneseq
    %v4837 = vshrl.u32 %v4836, 7
    %v4838 = vsub.s32 0, %v4837
    %v4839 = vrot.slane %v4835, %v4838
    %4841 = vrot.lane.b32.xlu0 %v4839, 2
    %v4842 = vpop.permute.xlu0 %4841
    %v4844 = vmul.f32 %v4660, %v4842
    %v4845 = vmul.f32 %v4661, %v4842
    %v4846 = vmul.f32 %v4662, %v4842
    %v4847 = vmul.f32 %v4663, %v4842
    %4852 = vrot.lane.b32.xlu0 %v4844, 126
    %v4853 = vpop.permute.xlu0 %4852
    %4854 = vrot.lane.b32.xlu0 %v4845, 126
    %v4855 = vpop.permute.xlu0 %4854
    %4856 = vrot.lane.b32.xlu0 %v4846, 126
    %v4857 = vpop.permute.xlu0 %4856
    %4858 = vrot.lane.b32.xlu0 %v4847, 126
    %v4859 = vpop.permute.xlu0 %4858
    %v4864 = vadd.f32 %v4765, %v4853
    %v4865 = vadd.f32 %v4766, %v4855
    %v4866 = vadd.f32 %v4767, %v4857
    %v4867 = vadd.f32 %v4768, %v4859
    %v4868 = vld [vmem:[#allocation19 + $0x14] sm:$0x1]
    %v4869 = vlaneseq
    %v4870 = vshrl.u32 %v4869, 7
    %v4871 = vsub.s32 0, %v4870
    %v4872 = vrot.slane %v4868, %v4871
    %4874 = vrot.lane.b32.xlu0 %v4872, 2
    %v4875 = vpop.permute.xlu0 %4874
    %v4877 = vmul.f32 %v4660, %v4875
    %v4878 = vmul.f32 %v4661, %v4875
    %v4879 = vmul.f32 %v4662, %v4875
    %v4880 = vmul.f32 %v4663, %v4875
    %4885 = vrot.lane.b32.xlu0 %v4877, 126
    %v4886 = vpop.permute.xlu0 %4885
    %4887 = vrot.lane.b32.xlu0 %v4878, 126
    %v4888 = vpop.permute.xlu0 %4887
    %4889 = vrot.lane.b32.xlu0 %v4879, 126
    %v4890 = vpop.permute.xlu0 %4889
    %4891 = vrot.lane.b32.xlu0 %v4880, 126
    %v4892 = vpop.permute.xlu0 %4891
    %v4897 = vadd.f32 %v4798, %v4886
    %v4898 = vadd.f32 %v4799, %v4888
    %v4899 = vadd.f32 %v4800, %v4890
    %v4900 = vadd.f32 %v4801, %v4892
    %v4901 = vld [vmem:[#allocation3 + $0x1] sm:$0xff]
    %v4902 = vld [vmem:[#allocation3 + $0x9] sm:$0xff]
    %v4903 = vld [vmem:[#allocation3 + $0x19] sm:$0xff]
    %v4904 = vld [vmem:[#allocation3 + $0x21] sm:$0xff]
    %v4905 = vld [vmem:[#allocation19 + $0x3] sm:$0x1]
    %v4906 = vlaneseq
    %v4907 = vshrl.u32 %v4906, 7
    %v4908 = vsub.s32 0, %v4907
    %v4909 = vrot.slane %v4905, %v4908
    %v4910 = vmul.f32 %v4901, %v4909
    %v4911 = vmul.f32 %v4902, %v4909
    %v4912 = vmul.f32 %v4903, %v4909
    %v4913 = vmul.f32 %v4904, %v4909
    %v4914 = vadd.f32 %v4831, %v4910
    %v4915 = vadd.f32 %v4832, %v4911
    %v4916 = vadd.f32 %v4833, %v4912
    %v4917 = vadd.f32 %v4834, %v4913
    %v4918 = vld [vmem:[#allocation19 + $0xc] sm:$0x1]
    %v4919 = vlaneseq
    %v4920 = vshrl.u32 %v4919, 7
    %v4921 = vsub.s32 0, %v4920
    %v4922 = vrot.slane %v4918, %v4921
    %v4923 = vmul.f32 %v4901, %v4922
    %v4924 = vmul.f32 %v4902, %v4922
    %v4925 = vmul.f32 %v4903, %v4922
    %v4926 = vmul.f32 %v4904, %v4922
    %v4927 = vadd.f32 %v4864, %v4923
    %v4928 = vadd.f32 %v4865, %v4924
    %v4929 = vadd.f32 %v4866, %v4925
    %v4930 = vadd.f32 %v4867, %v4926
    %v4931 = vld [vmem:[#allocation19 + $0x15] sm:$0x1]
    %v4932 = vlaneseq
    %v4933 = vshrl.u32 %v4932, 7
    %v4934 = vsub.s32 0, %v4933
    %v4935 = vrot.slane %v4931, %v4934
    %v4936 = vmul.f32 %v4901, %v4935
    %v4937 = vmul.f32 %v4902, %v4935
    %v4938 = vmul.f32 %v4903, %v4935
    %v4939 = vmul.f32 %v4904, %v4935
    %v4940 = vadd.f32 %v4897, %v4936
    %v4941 = vadd.f32 %v4898, %v4937
    %v4942 = vadd.f32 %v4899, %v4938
    %v4943 = vadd.f32 %v4900, %v4939
    %v4944 = vld [vmem:[#allocation19 + $0x4] sm:$0x1]
    %v4945 = vlaneseq
    %v4946 = vshrl.u32 %v4945, 7
    %v4947 = vsub.s32 0, %v4946
    %v4948 = vrot.slane %v4944, %v4947
    %4950 = vrot.lane.b32.xlu0 %v4948, 1
    %v4951 = vpop.permute.xlu0 %4950
    %v4953 = vmul.f32 %v4901, %v4951
    %v4954 = vmul.f32 %v4902, %v4951
    %v4955 = vmul.f32 %v4903, %v4951
    %v4956 = vmul.f32 %v4904, %v4951
    %4961 = vrot.lane.b32.xlu0 %v4953, 127
    %v4962 = vpop.permute.xlu0 %4961
    %4963 = vrot.lane.b32.xlu0 %v4954, 127
    %v4964 = vpop.permute.xlu0 %4963
    %4965 = vrot.lane.b32.xlu0 %v4955, 127
    %v4966 = vpop.permute.xlu0 %4965
    %4967 = vrot.lane.b32.xlu0 %v4956, 127
    %v4968 = vpop.permute.xlu0 %4967
    %v4973 = vadd.f32 %v4914, %v4962
    %v4974 = vadd.f32 %v4915, %v4964
    %v4975 = vadd.f32 %v4916, %v4966
    %v4976 = vadd.f32 %v4917, %v4968
    %v4977 = vld [vmem:[#allocation19 + $0xd] sm:$0x1]
    %v4978 = vlaneseq
    %v4979 = vshrl.u32 %v4978, 7
    %v4980 = vsub.s32 0, %v4979
    %v4981 = vrot.slane %v4977, %v4980
    %4983 = vrot.lane.b32.xlu0 %v4981, 1
    %v4984 = vpop.permute.xlu0 %4983
    %v4986 = vmul.f32 %v4901, %v4984
    %v4987 = vmul.f32 %v4902, %v4984
    %v4988 = vmul.f32 %v4903, %v4984
    %v4989 = vmul.f32 %v4904, %v4984
    %4994 = vrot.lane.b32.xlu0 %v4986, 127
    %v4995 = vpop.permute.xlu0 %4994
    %4996 = vrot.lane.b32.xlu0 %v4987, 127
    %v4997 = vpop.permute.xlu0 %4996
    %4998 = vrot.lane.b32.xlu0 %v4988, 127
    %v4999 = vpop.permute.xlu0 %4998
    %5000 = vrot.lane.b32.xlu0 %v4989, 127
    %v5001 = vpop.permute.xlu0 %5000
    %v5006 = vadd.f32 %v4927, %v4995
    %v5007 = vadd.f32 %v4928, %v4997
    %v5008 = vadd.f32 %v4929, %v4999
    %v5009 = vadd.f32 %v4930, %v5001
    %v5010 = vld [vmem:[#allocation19 + $0x16] sm:$0x1]
    %v5011 = vlaneseq
    %v5012 = vshrl.u32 %v5011, 7
    %v5013 = vsub.s32 0, %v5012
    %v5014 = vrot.slane %v5010, %v5013
    %5016 = vrot.lane.b32.xlu0 %v5014, 1
    %v5017 = vpop.permute.xlu0 %5016
    %v5019 = vmul.f32 %v4901, %v5017
    %v5020 = vmul.f32 %v4902, %v5017
    %v5021 = vmul.f32 %v4903, %v5017
    %v5022 = vmul.f32 %v4904, %v5017
    %5027 = vrot.lane.b32.xlu0 %v5019, 127
    %v5028 = vpop.permute.xlu0 %5027
    %5029 = vrot.lane.b32.xlu0 %v5020, 127
    %v5030 = vpop.permute.xlu0 %5029
    %5031 = vrot.lane.b32.xlu0 %v5021, 127
    %v5032 = vpop.permute.xlu0 %5031
    %5033 = vrot.lane.b32.xlu0 %v5022, 127
    %v5034 = vpop.permute.xlu0 %5033
    %v5039 = vadd.f32 %v4940, %v5028
    %v5040 = vadd.f32 %v4941, %v5030
    %v5041 = vadd.f32 %v4942, %v5032
    %v5042 = vadd.f32 %v4943, %v5034
    %v5043 = vld [vmem:[#allocation19 + $0x5] sm:$0x1]
    %v5044 = vlaneseq
    %v5045 = vshrl.u32 %v5044, 7
    %v5046 = vsub.s32 0, %v5045
    %v5047 = vrot.slane %v5043, %v5046
    %5049 = vrot.lane.b32.xlu0 %v5047, 2
    %v5050 = vpop.permute.xlu0 %5049
    %v5052 = vmul.f32 %v4901, %v5050
    %v5053 = vmul.f32 %v4902, %v5050
    %v5054 = vmul.f32 %v4903, %v5050
    %v5055 = vmul.f32 %v4904, %v5050
    %5060 = vrot.lane.b32.xlu0 %v5052, 126
    %v5061 = vpop.permute.xlu0 %5060
    %5062 = vrot.lane.b32.xlu0 %v5053, 126
    %v5063 = vpop.permute.xlu0 %5062
    %5064 = vrot.lane.b32.xlu0 %v5054, 126
    %v5065 = vpop.permute.xlu0 %5064
    %5066 = vrot.lane.b32.xlu0 %v5055, 126
    %v5067 = vpop.permute.xlu0 %5066
    %v5072 = vadd.f32 %v4973, %v5061
    %v5073 = vadd.f32 %v4974, %v5063
    %v5074 = vadd.f32 %v4975, %v5065
    %v5075 = vadd.f32 %v4976, %v5067
    %v5076 = vld [vmem:[#allocation19 + $0xe] sm:$0x1]
    %v5077 = vlaneseq
    %v5078 = vshrl.u32 %v5077, 7
    %v5079 = vsub.s32 0, %v5078
    %v5080 = vrot.slane %v5076, %v5079
    %5082 = vrot.lane.b32.xlu0 %v5080, 2
    %v5083 = vpop.permute.xlu0 %5082
    %v5085 = vmul.f32 %v4901, %v5083
    %v5086 = vmul.f32 %v4902, %v5083
    %v5087 = vmul.f32 %v4903, %v5083
    %v5088 = vmul.f32 %v4904, %v5083
    %5093 = vrot.lane.b32.xlu0 %v5085, 126
    %v5094 = vpop.permute.xlu0 %5093
    %5095 = vrot.lane.b32.xlu0 %v5086, 126
    %v5096 = vpop.permute.xlu0 %5095
    %5097 = vrot.lane.b32.xlu0 %v5087, 126
    %v5098 = vpop.permute.xlu0 %5097
    %5099 = vrot.lane.b32.xlu0 %v5088, 126
    %v5100 = vpop.permute.xlu0 %5099
    %v5105 = vadd.f32 %v5006, %v5094
    %v5106 = vadd.f32 %v5007, %v5096
    %v5107 = vadd.f32 %v5008, %v5098
    %v5108 = vadd.f32 %v5009, %v5100
    %v5109 = vld [vmem:[#allocation19 + $0x17] sm:$0x1]
    %v5110 = vlaneseq
    %v5111 = vshrl.u32 %v5110, 7
    %v5112 = vsub.s32 0, %v5111
    %v5113 = vrot.slane %v5109, %v5112
    %5115 = vrot.lane.b32.xlu0 %v5113, 2
    %v5116 = vpop.permute.xlu0 %5115
    %v5118 = vmul.f32 %v4901, %v5116
    %v5119 = vmul.f32 %v4902, %v5116
    %v5120 = vmul.f32 %v4903, %v5116
    %v5121 = vmul.f32 %v4904, %v5116
    %5126 = vrot.lane.b32.xlu0 %v5118, 126
    %v5127 = vpop.permute.xlu0 %5126
    %5128 = vrot.lane.b32.xlu0 %v5119, 126
    %v5129 = vpop.permute.xlu0 %5128
    %5130 = vrot.lane.b32.xlu0 %v5120, 126
    %v5131 = vpop.permute.xlu0 %5130
    %5132 = vrot.lane.b32.xlu0 %v5121, 126
    %v5133 = vpop.permute.xlu0 %5132
    %v5138 = vadd.f32 %v5039, %v5127
    %v5139 = vadd.f32 %v5040, %v5129
    %v5140 = vadd.f32 %v5041, %v5131
    %v5141 = vadd.f32 %v5042, %v5133
    %v5142 = vld [vmem:[#allocation3 + $0x2] sm:$0xff]
    %v5143 = vld [vmem:[#allocation3 + $0xa] sm:$0xff]
    %v5144 = vld [vmem:[#allocation3 + $0x1a] sm:$0xff]
    %v5145 = vld [vmem:[#allocation3 + $0x22] sm:$0xff]
    %v5146 = vld [vmem:[#allocation19 + $0x6] sm:$0x1]
    %v5147 = vlaneseq
    %v5148 = vshrl.u32 %v5147, 7
    %v5149 = vsub.s32 0, %v5148
    %v5150 = vrot.slane %v5146, %v5149
    %v5151 = vmul.f32 %v5142, %v5150
    %v5152 = vmul.f32 %v5143, %v5150
    %v5153 = vmul.f32 %v5144, %v5150
    %v5154 = vmul.f32 %v5145, %v5150
    %v5155 = vadd.f32 %v5072, %v5151
    %v5156 = vadd.f32 %v5073, %v5152
    %v5157 = vadd.f32 %v5074, %v5153
    %v5158 = vadd.f32 %v5075, %v5154
    %v5159 = vld [vmem:[#allocation19 + $0xf] sm:$0x1]
    %v5160 = vlaneseq
    %v5161 = vshrl.u32 %v5160, 7
    %v5162 = vsub.s32 0, %v5161
    %v5163 = vrot.slane %v5159, %v5162
    %v5164 = vmul.f32 %v5142, %v5163
    %v5165 = vmul.f32 %v5143, %v5163
    %v5166 = vmul.f32 %v5144, %v5163
    %v5167 = vmul.f32 %v5145, %v5163
    %v5168 = vadd.f32 %v5105, %v5164
    %v5169 = vadd.f32 %v5106, %v5165
    %v5170 = vadd.f32 %v5107, %v5166
    %v5171 = vadd.f32 %v5108, %v5167
    %v5172 = vld [vmem:[#allocation19 + $0x18] sm:$0x1]
    %v5173 = vlaneseq
    %v5174 = vshrl.u32 %v5173, 7
    %v5175 = vsub.s32 0, %v5174
    %v5176 = vrot.slane %v5172, %v5175
    %v5177 = vmul.f32 %v5142, %v5176
    %v5178 = vmul.f32 %v5143, %v5176
    %v5179 = vmul.f32 %v5144, %v5176
    %v5180 = vmul.f32 %v5145, %v5176
    %v5181 = vadd.f32 %v5138, %v5177
    %v5182 = vadd.f32 %v5139, %v5178
    %v5183 = vadd.f32 %v5140, %v5179
    %v5184 = vadd.f32 %v5141, %v5180
    %v5185 = vld [vmem:[#allocation19 + $0x7] sm:$0x1]
    %v5186 = vlaneseq
    %v5187 = vshrl.u32 %v5186, 7
    %v5188 = vsub.s32 0, %v5187
    %v5189 = vrot.slane %v5185, %v5188
    %5191 = vrot.lane.b32.xlu0 %v5189, 1
    %v5192 = vpop.permute.xlu0 %5191
    %v5194 = vmul.f32 %v5142, %v5192
    %v5195 = vmul.f32 %v5143, %v5192
    %v5196 = vmul.f32 %v5144, %v5192
    %v5197 = vmul.f32 %v5145, %v5192
    %5202 = vrot.lane.b32.xlu0 %v5194, 127
    %v5203 = vpop.permute.xlu0 %5202
    %5204 = vrot.lane.b32.xlu0 %v5195, 127
    %v5205 = vpop.permute.xlu0 %5204
    %5206 = vrot.lane.b32.xlu0 %v5196, 127
    %v5207 = vpop.permute.xlu0 %5206
    %5208 = vrot.lane.b32.xlu0 %v5197, 127
    %v5209 = vpop.permute.xlu0 %5208
    %v5214 = vadd.f32 %v5155, %v5203
    %v5215 = vadd.f32 %v5156, %v5205
    %v5216 = vadd.f32 %v5157, %v5207
    %v5217 = vadd.f32 %v5158, %v5209
    %v5218 = vld [vmem:[#allocation19 + $0x10] sm:$0x1]
    %v5219 = vlaneseq
    %v5220 = vshrl.u32 %v5219, 7
    %v5221 = vsub.s32 0, %v5220
    %v5222 = vrot.slane %v5218, %v5221
    %5224 = vrot.lane.b32.xlu0 %v5222, 1
    %v5225 = vpop.permute.xlu0 %5224
    %v5227 = vmul.f32 %v5142, %v5225
    %v5228 = vmul.f32 %v5143, %v5225
    %v5229 = vmul.f32 %v5144, %v5225
    %v5230 = vmul.f32 %v5145, %v5225
    %5235 = vrot.lane.b32.xlu0 %v5227, 127
    %v5236 = vpop.permute.xlu0 %5235
    %5237 = vrot.lane.b32.xlu0 %v5228, 127
    %v5238 = vpop.permute.xlu0 %5237
    %5239 = vrot.lane.b32.xlu0 %v5229, 127
    %v5240 = vpop.permute.xlu0 %5239
    %5241 = vrot.lane.b32.xlu0 %v5230, 127
    %v5242 = vpop.permute.xlu0 %5241
    %v5247 = vadd.f32 %v5168, %v5236
    %v5248 = vadd.f32 %v5169, %v5238
    %v5249 = vadd.f32 %v5170, %v5240
    %v5250 = vadd.f32 %v5171, %v5242
    %v5251 = vld [vmem:[#allocation19 + $0x19] sm:$0x1]
    %v5252 = vlaneseq
    %v5253 = vshrl.u32 %v5252, 7
    %v5254 = vsub.s32 0, %v5253
    %v5255 = vrot.slane %v5251, %v5254
    %5257 = vrot.lane.b32.xlu0 %v5255, 1
    %v5258 = vpop.permute.xlu0 %5257
    %v5260 = vmul.f32 %v5142, %v5258
    %v5261 = vmul.f32 %v5143, %v5258
    %v5262 = vmul.f32 %v5144, %v5258
    %v5263 = vmul.f32 %v5145, %v5258
    %5268 = vrot.lane.b32.xlu0 %v5260, 127
    %v5269 = vpop.permute.xlu0 %5268
    %5270 = vrot.lane.b32.xlu0 %v5261, 127
    %v5271 = vpop.permute.xlu0 %5270
    %5272 = vrot.lane.b32.xlu0 %v5262, 127
    %v5273 = vpop.permute.xlu0 %5272
    %5274 = vrot.lane.b32.xlu0 %v5263, 127
    %v5275 = vpop.permute.xlu0 %5274
    %v5280 = vadd.f32 %v5181, %v5269
    %v5281 = vadd.f32 %v5182, %v5271
    %v5282 = vadd.f32 %v5183, %v5273
    %v5283 = vadd.f32 %v5184, %v5275
    %v5284 = vld [vmem:[#allocation19 + $0x8] sm:$0x1]
    %v5285 = vlaneseq
    %v5286 = vshrl.u32 %v5285, 7
    %v5287 = vsub.s32 0, %v5286
    %v5288 = vrot.slane %v5284, %v5287
    %5290 = vrot.lane.b32.xlu0 %v5288, 2
    %v5291 = vpop.permute.xlu0 %5290
    %v5293 = vmul.f32 %v5142, %v5291
    %v5294 = vmul.f32 %v5143, %v5291
    %v5295 = vmul.f32 %v5144, %v5291
    %v5296 = vmul.f32 %v5145, %v5291
    %5301 = vrot.lane.b32.xlu0 %v5293, 126
    %v5302 = vpop.permute.xlu0 %5301
    %5303 = vrot.lane.b32.xlu0 %v5294, 126
    %v5304 = vpop.permute.xlu0 %5303
    %5305 = vrot.lane.b32.xlu0 %v5295, 126
    %v5306 = vpop.permute.xlu0 %5305
    %5307 = vrot.lane.b32.xlu0 %v5296, 126
    %v5308 = vpop.permute.xlu0 %5307
    %v5313 = vadd.f32 %v5214, %v5302
    %v5314 = vadd.f32 %v5215, %v5304
    %v5315 = vadd.f32 %v5216, %v5306
    %v5316 = vadd.f32 %v5217, %v5308
    %v5317 = vld [vmem:[#allocation19 + $0x11] sm:$0x1]
    %v5318 = vlaneseq
    %v5319 = vshrl.u32 %v5318, 7
    %v5320 = vsub.s32 0, %v5319
    %v5321 = vrot.slane %v5317, %v5320
    %5323 = vrot.lane.b32.xlu0 %v5321, 2
    %v5324 = vpop.permute.xlu0 %5323
    %v5326 = vmul.f32 %v5142, %v5324
    %v5327 = vmul.f32 %v5143, %v5324
    %v5328 = vmul.f32 %v5144, %v5324
    %v5329 = vmul.f32 %v5145, %v5324
    %5334 = vrot.lane.b32.xlu0 %v5326, 126
    %v5335 = vpop.permute.xlu0 %5334
    %5336 = vrot.lane.b32.xlu0 %v5327, 126
    %v5337 = vpop.permute.xlu0 %5336
    %5338 = vrot.lane.b32.xlu0 %v5328, 126
    %v5339 = vpop.permute.xlu0 %5338
    %5340 = vrot.lane.b32.xlu0 %v5329, 126
    %v5341 = vpop.permute.xlu0 %5340
    %v5346 = vadd.f32 %v5247, %v5335
    %v5347 = vadd.f32 %v5248, %v5337
    %v5348 = vadd.f32 %v5249, %v5339
    %v5349 = vadd.f32 %v5250, %v5341
    %v5350 = vld [vmem:[#allocation19 + $0x1a] sm:$0x1]
    %v5351 = vlaneseq
    %v5352 = vshrl.u32 %v5351, 7
    %v5353 = vsub.s32 0, %v5352
    %v5354 = vrot.slane %v5350, %v5353
    %5356 = vrot.lane.b32.xlu0 %v5354, 2
    %v5357 = vpop.permute.xlu0 %5356
    %v5359 = vmul.f32 %v5142, %v5357
    %v5360 = vmul.f32 %v5143, %v5357
    %v5361 = vmul.f32 %v5144, %v5357
    %v5362 = vmul.f32 %v5145, %v5357
    %5367 = vrot.lane.b32.xlu0 %v5359, 126
    %v5368 = vpop.permute.xlu0 %5367
    %5369 = vrot.lane.b32.xlu0 %v5360, 126
    %v5370 = vpop.permute.xlu0 %5369
    %5371 = vrot.lane.b32.xlu0 %v5361, 126
    %v5372 = vpop.permute.xlu0 %5371
    %5373 = vrot.lane.b32.xlu0 %v5362, 126
    %v5374 = vpop.permute.xlu0 %5373
    %v5379 = vadd.f32 %v5280, %v5368
    %v5380 = vadd.f32 %v5281, %v5370
    %v5381 = vadd.f32 %v5282, %v5372
    %v5382 = vadd.f32 %v5283, %v5374
    %5387 = vrot.lane.b32.xlu0 %v5313, 96
    %v5388 = vpop.permute.xlu0 %5387
    %5389 = vrot.lane.b32.xlu0 %v5314, 96
    %v5390 = vpop.permute.xlu0 %5389
    %5391 = vrot.lane.b32.xlu0 %v5315, 96
    %v5392 = vpop.permute.xlu0 %5391
    %5393 = vrot.lane.b32.xlu0 %v5316, 96
    %v5394 = vpop.permute.xlu0 %5393
    %v5399 = vadd.f32 %v5313, %v5388
    %v5400 = vadd.f32 %v5314, %v5390
    %v5401 = vadd.f32 %v5315, %v5392
    %v5402 = vadd.f32 %v5316, %v5394
    %5403 = vrot.lane.b32.xlu0 %v5313, 64
    %v5404 = vpop.permute.xlu0 %5403
    %5405 = vrot.lane.b32.xlu0 %v5314, 64
    %v5406 = vpop.permute.xlu0 %5405
    %5407 = vrot.lane.b32.xlu0 %v5315, 64
    %v5408 = vpop.permute.xlu0 %5407
    %5409 = vrot.lane.b32.xlu0 %v5316, 64
    %v5410 = vpop.permute.xlu0 %5409
    %v5415 = vadd.f32 %v5399, %v5404
    %v5416 = vadd.f32 %v5400, %v5406
    %v5417 = vadd.f32 %v5401, %v5408
    %v5418 = vadd.f32 %v5402, %v5410
    %5419 = vrot.lane.b32.xlu0 %v5313, 32
    %v5420 = vpop.permute.xlu0 %5419
    %5421 = vrot.lane.b32.xlu0 %v5314, 32
    %v5422 = vpop.permute.xlu0 %5421
    %5423 = vrot.lane.b32.xlu0 %v5315, 32
    %v5424 = vpop.permute.xlu0 %5423
    %5425 = vrot.lane.b32.xlu0 %v5316, 32
    %v5426 = vpop.permute.xlu0 %5425
    %v5431 = vadd.f32 %v5415, %v5420
    %v5432 = vadd.f32 %v5416, %v5422
    %v5433 = vadd.f32 %v5417, %v5424
    %v5434 = vadd.f32 %v5418, %v5426
    %s5435 = sld [smem:[#allocation20]]
    %v5436 = vstv %s5435
    %v5437 = vadd.f32 %v5431, %v5436
    %v5438 = vadd.f32 %v5432, %v5436
    %v5439 = vadd.f32 %v5433, %v5436
    %v5440 = vadd.f32 %v5434, %v5436
    %v5441 = vmax.f32 %v5437, 0.0
    %v5442 = vmax.f32 %v5438, 0.0
    %v5443 = vmax.f32 %v5439, 0.0
    %v5444 = vmax.f32 %v5440, 0.0
    %vm5445 = vcmask 130048
    %5446 = vst.msk [vmem:[%s11] sm:$0xff] %vm5445, %v5441
    %5447 = vst.msk [vmem:[%s11 + $0x8] sm:$0xff] %vm5445, %v5442
    %5448 = vst.msk [vmem:[%s11 + $0x10] sm:$0xff] %vm5445, %v5443
    %5449 = vst.msk [vmem:[%s11 + $0x18] sm:$0xff] %vm5445, %v5444
    %5454 = vrot.lane.b32.xlu0 %v5346, 96
    %v5455 = vpop.permute.xlu0 %5454
    %5456 = vrot.lane.b32.xlu0 %v5347, 96
    %v5457 = vpop.permute.xlu0 %5456
    %5458 = vrot.lane.b32.xlu0 %v5348, 96
    %v5459 = vpop.permute.xlu0 %5458
    %5460 = vrot.lane.b32.xlu0 %v5349, 96
    %v5461 = vpop.permute.xlu0 %5460
    %v5466 = vadd.f32 %v5346, %v5455
    %v5467 = vadd.f32 %v5347, %v5457
    %v5468 = vadd.f32 %v5348, %v5459
    %v5469 = vadd.f32 %v5349, %v5461
    %5470 = vrot.lane.b32.xlu0 %v5346, 64
    %v5471 = vpop.permute.xlu0 %5470
    %5472 = vrot.lane.b32.xlu0 %v5347, 64
    %v5473 = vpop.permute.xlu0 %5472
    %5474 = vrot.lane.b32.xlu0 %v5348, 64
    %v5475 = vpop.permute.xlu0 %5474
    %5476 = vrot.lane.b32.xlu0 %v5349, 64
    %v5477 = vpop.permute.xlu0 %5476
    %v5482 = vadd.f32 %v5466, %v5471
    %v5483 = vadd.f32 %v5467, %v5473
    %v5484 = vadd.f32 %v5468, %v5475
    %v5485 = vadd.f32 %v5469, %v5477
    %5486 = vrot.lane.b32.xlu0 %v5346, 32
    %v5487 = vpop.permute.xlu0 %5486
    %5488 = vrot.lane.b32.xlu0 %v5347, 32
    %v5489 = vpop.permute.xlu0 %5488
    %5490 = vrot.lane.b32.xlu0 %v5348, 32
    %v5491 = vpop.permute.xlu0 %5490
    %5492 = vrot.lane.b32.xlu0 %v5349, 32
    %v5493 = vpop.permute.xlu0 %5492
    %v5498 = vadd.f32 %v5482, %v5487
    %v5499 = vadd.f32 %v5483, %v5489
    %v5500 = vadd.f32 %v5484, %v5491
    %v5501 = vadd.f32 %v5485, %v5493
    %s5502 = sld [smem:[#allocation20 + $0x1]]
    %v5503 = vstv %s5502
    %v5504 = vadd.f32 %v5498, %v5503
    %v5505 = vadd.f32 %v5499, %v5503
    %v5506 = vadd.f32 %v5500, %v5503
    %v5507 = vadd.f32 %v5501, %v5503
    %v5508 = vmax.f32 %v5504, 0.0
    %v5509 = vmax.f32 %v5505, 0.0
    %v5510 = vmax.f32 %v5506, 0.0
    %v5511 = vmax.f32 %v5507, 0.0
    %5516 = vrot.lane.b32.xlu0 %v5508, 32
    %v5517 = vpop.permute.xlu0 %5516
    %5518 = vrot.lane.b32.xlu0 %v5509, 32
    %v5519 = vpop.permute.xlu0 %5518
    %5520 = vrot.lane.b32.xlu0 %v5510, 32
    %v5521 = vpop.permute.xlu0 %5520
    %5522 = vrot.lane.b32.xlu0 %v5511, 32
    %v5523 = vpop.permute.xlu0 %5522
    %vm5528 = vcmask 392448
    %5529 = vst.msk [vmem:[%s11] sm:$0xff] %vm5528, %v5517
    %5530 = vst.msk [vmem:[%s11 + $0x8] sm:$0xff] %vm5528, %v5519
    %5531 = vst.msk [vmem:[%s11 + $0x10] sm:$0xff] %vm5528, %v5521
    %5532 = vst.msk [vmem:[%s11 + $0x18] sm:$0xff] %vm5528, %v5523
    %5537 = vrot.lane.b32.xlu0 %v5379, 96
    %v5538 = vpop.permute.xlu0 %5537
    %5539 = vrot.lane.b32.xlu0 %v5380, 96
    %v5540 = vpop.permute.xlu0 %5539
    %5541 = vrot.lane.b32.xlu0 %v5381, 96
    %v5542 = vpop.permute.xlu0 %5541
    %5543 = vrot.lane.b32.xlu0 %v5382, 96
    %v5544 = vpop.permute.xlu0 %5543
    %v5549 = vadd.f32 %v5379, %v5538
    %v5550 = vadd.f32 %v5380, %v5540
    %v5551 = vadd.f32 %v5381, %v5542
    %v5552 = vadd.f32 %v5382, %v5544
    %5553 = vrot.lane.b32.xlu0 %v5379, 64
    %v5554 = vpop.permute.xlu0 %5553
    %5555 = vrot.lane.b32.xlu0 %v5380, 64
    %v5556 = vpop.permute.xlu0 %5555
    %5557 = vrot.lane.b32.xlu0 %v5381, 64
    %v5558 = vpop.permute.xlu0 %5557
    %5559 = vrot.lane.b32.xlu0 %v5382, 64
    %v5560 = vpop.permute.xlu0 %5559
    %v5565 = vadd.f32 %v5549, %v5554
    %v5566 = vadd.f32 %v5550, %v5556
    %v5567 = vadd.f32 %v5551, %v5558
    %v5568 = vadd.f32 %v5552, %v5560
    %5569 = vrot.lane.b32.xlu0 %v5379, 32
    %v5570 = vpop.permute.xlu0 %5569
    %5571 = vrot.lane.b32.xlu0 %v5380, 32
    %v5572 = vpop.permute.xlu0 %5571
    %5573 = vrot.lane.b32.xlu0 %v5381, 32
    %v5574 = vpop.permute.xlu0 %5573
    %5575 = vrot.lane.b32.xlu0 %v5382, 32
    %v5576 = vpop.permute.xlu0 %5575
    %v5581 = vadd.f32 %v5565, %v5570
    %v5582 = vadd.f32 %v5566, %v5572
    %v5583 = vadd.f32 %v5567, %v5574
    %v5584 = vadd.f32 %v5568, %v5576
    %s5585 = sld [smem:[#allocation20 + $0x2]]
    %v5586 = vstv %s5585
    %v5587 = vadd.f32 %v5581, %v5586
    %v5588 = vadd.f32 %v5582, %v5586
    %v5589 = vadd.f32 %v5583, %v5586
    %v5590 = vadd.f32 %v5584, %v5586
    %v5591 = vmax.f32 %v5587, 0.0
    %v5592 = vmax.f32 %v5588, 0.0
    %v5593 = vmax.f32 %v5589, 0.0
    %v5594 = vmax.f32 %v5590, 0.0
    %5599 = vrot.lane.b32.xlu0 %v5591, 64
    %v5600 = vpop.permute.xlu0 %5599
    %5601 = vrot.lane.b32.xlu0 %v5592, 64
    %v5602 = vpop.permute.xlu0 %5601
    %5603 = vrot.lane.b32.xlu0 %v5593, 64
    %v5604 = vpop.permute.xlu0 %5603
    %5605 = vrot.lane.b32.xlu0 %v5594, 64
    %v5606 = vpop.permute.xlu0 %5605
    %vm5611 = vcmask 654848
    %5612 = vst.msk [vmem:[%s11] sm:$0xff] %vm5611, %v5600
    %5613 = vst.msk [vmem:[%s11 + $0x8] sm:$0xff] %vm5611, %v5602
    %5614 = vst.msk [vmem:[%s11 + $0x10] sm:$0xff] %vm5611, %v5604
    %5615 = vst.msk [vmem:[%s11 + $0x18] sm:$0xff] %vm5611, %v5606
    // Predicated region
    $region90: #{_lambda_.1} parent=1 // pred_check
      _
    $region91: #{_lambda_.1} parent=1 // pred_check_branch
      %5617 = sbr.rel (0) target = $region93
    $region92: #{_lambda_.1} parent=1 // pred_region
      _
    $region93: #{_lambda_.1} parent=1 // pred_fallthru
      _
    // Predicated region
    $region94: #{_lambda_.1} parent=1 // pred_check
      _
    $region95: #{_lambda_.1} parent=1 // pred_check_branch
      %5619 = sbr.rel (0) target = $region97
    $region96: #{_lambda_.1} parent=1 // pred_region
      _
    $region97: #{_lambda_.1} parent=1 // pred_fallthru
      _
    %5620 = vsyncpa [#allocation5], 1
    %5621 = vsyncpa [#allocation8], 1
    %5622 = vsyncpa [#allocation11], 1
    %5623 = vsyncpa [#allocation17], 1
    %5624 = vsyncpa [#allocation6], 1
    %5625 = vsyncpa [#allocation15], 1
    %5626 = vsyncpa [#allocation21], 1

</llo_original>
